<compile_context>
chip_gen: v5e
topology: v5e:2x2
jax: 0.10.0
libtpu: 0.0.40
codegen_flags: <defaults>
</compile_context>

<pallas_src>
import functools

import jax
import jax.numpy as jnp
from jax.experimental import pallas as pl
from jax.experimental.pallas import tpu as pltpu

_TM = 1536        # layer-1 lane tile (multiple of 128; grid of 4 at 224x224, B=2)


# ------------------------------ Pallas kernels ------------------------------

def _layer1_kernel(p_ref, w_ref, scale_ref, shift_ref, o_ref):
    """Fused Conv2d(3x3,s2) + BN(eval) + ReLU + MaxPool2d(2), transposed layout.

    p_ref:  (4, 27, TM) bf16 stacked im2col patches (4 conv positions per 2x2
            pooling window) -- a single operand, so one DMA stream per step.
    w_ref:  (16, 27) bf16 conv weight; scale/shift: (16, 1) folded BN affine.
    o_ref:  (16, TM) bf16 pooled activations (channels on sublanes, spatial on
            lanes -> unmasked, lane-dense stores).
    """
    w = w_ref[...]
    scale = scale_ref[...]
    shift = shift_ref[...]
    best = None
    for pos in range(4):                    # static unroll; weight stays loaded
        y = jnp.dot(w, p_ref[pos], preferred_element_type=jnp.float32)
        y = y * scale + shift               # affine before max (gamma may be < 0)
        best = y if best is None else jnp.maximum(best, y)
    o_ref[...] = jnp.maximum(best, 0.0).astype(o_ref.dtype)


def _tail_kernel(p2_ref, w2_ref, s2_ref, t2_ref, w3_ref, s3_ref, t3_ref,
                 w1_ref, b1_ref, w4_ref, b4_ref, o_ref, *, batch):
    """layer2 + layer3 + flatten + fc1(+ReLU) + fc2, all resident in VMEM.

    p2_ref: (4, 144, 256*B) bf16 layer-2 patches whose M axis is ordered
            (r4, c4, R, C, b), a 4x4 phase split of layer2's 13x13 pooled grid
            (qr, qc) = (4R + r4, 4C + c4) padded to R, C in [0, 4).  That
            ordering makes every layer-3 conv tap a contiguous lane slice.
    """
    # ---- layer2: Conv(3x3,s2)+BN+ReLU+MaxPool(2).  Padded columns come from
    #      zero patch columns -> finite garbage, never consumed below.
    w2 = w2_ref[...]
    s2 = s2_ref[...]
    t2 = t2_ref[...]
    a2 = None
    for pos in range(4):
        y = jnp.dot(w2, p2_ref[pos], preferred_element_type=jnp.float32)
        y = y * s2 + t2
        a2 = y if a2 is None else jnp.maximum(a2, y)
    a2 = jnp.maximum(a2, 0.0).astype(jnp.bfloat16)          # (32, 256*B)

    # ---- layer3: Conv(3x3,s2)+BN+ReLU+MaxPool(2) with in-kernel window
    #      extraction.  Each tap is one contiguous 16*B-wide lane slice of a2;
    #      columns falling outside the valid 3x3 output grid hold finite
    #      garbage and are simply never read by fc1.
    w3 = w3_ref[...]
    s3 = s3_ref[...]
    t3 = t3_ref[...]
    blkw = 16 * batch                                       # columns per (r4, c4) block
    a3 = None
    for i in (0, 1):                                        # pool position (i, j)
        for j in (0, 1):
            acc = None
            for dh in range(3):                             # conv tap (dh, dw)
                for dw in range(3):
                    rr, cc = 2 * i + dh, 2 * j + dw
                    r4, ro = rr % 4, rr // 4
                    c4, co = cc % 4, cc // 4
                    start = (r4 * 4 + c4) * blkw + (ro * 4 + co) * batch
                    piece = a2[:, start:start + blkw]       # (32, 16*B)
                    wk = w3[:, (dh * 3 + dw) * 32:(dh * 3 + dw + 1) * 32]
                    y = jnp.dot(wk, piece, preferred_element_type=jnp.float32)
                    acc = y if acc is None else acc + y
            y = acc * s3 + t3
            a3 = y if a3 is None else jnp.maximum(a3, y)
    a3 = jnp.maximum(a3, 0.0)                               # (64, 16*B) f32

    # ---- flatten (PyTorch NCHW order baked into fc1's weight layout) + fc1
    #      + ReLU + fc2.  Only the 9 valid spatial positions are read.
    acc1 = None
    for s in range(9):
        ur, uc = s // 3, s % 3
        col = (ur * 4 + uc) * batch
        y = jnp.dot(w1_ref[s], a3[:, col:col + batch],
                    preferred_element_type=jnp.float32)     # (10, B)
        acc1 = y if acc1 is None else acc1 + y
    h1 = jnp.maximum(acc1 + b1_ref[...], 0.0)               # (10, B)
    out = jax.lax.dot_general(h1, w4_ref[...], (((0,), (0,)), ((), ())),
                              preferred_element_type=jnp.float32)
    o_ref[...] = out + b4_ref[...]                          # (B, 2)


# ----------------------------- XLA-side patching -----------------------------

def _layer1_patches(x_nchw):
    """Stacked, transposed, padded layer-1 im2col (single XLA fusion).

    Returns (4, 27, Mp) bf16 with rows ordered (kh, kw, cin) and columns
    ordered (b, pr, pc), zero-padded once to a multiple of _TM.
    """
    b = x_nchw.shape[0]
    assert x_nchw.shape[1:] == (3, 224, 224), "Model3's fc1 implies 224x224 RGB input"
    xb = x_nchw.astype(jnp.bfloat16)
    m = b * 55 * 55
    pos_blocks = []
    for i in (0, 1):
        for j in (0, 1):
            taps = []
            for dh in range(3):
                for dw in range(3):
                    r0, c0 = 2 * i + dh, 2 * j + dw
                    taps.append(xb[:, :, r0:r0 + 217:4, c0:c0 + 217:4])  # (B,3,55,55)
            blk = jnp.stack(taps, axis=0)                 # (9, B, 3, 55, 55)
            blk = jnp.transpose(blk, (0, 2, 1, 3, 4))     # (9, 3, B, 55, 55)
            pos_blocks.append(blk.reshape(27, m))
    p1 = jnp.stack(pos_blocks, axis=0)                    # (4, 27, M)
    mp = pl.cdiv(m, _TM) * _TM
    if mp != m:                                           # one pad of one stacked array
        p1 = jnp.pad(p1, ((0, 0), (0, 0), (0, mp - m)))
    return p1


def _layer2_patches(a1, batch):
    """Layer-2 im2col from layer-1's (16, Mp) activation (small XLA fusion).

    Output (4, 144, 256*B) bf16; rows ordered (kh, kw, c1); columns ordered
    (r4, c4, R, C, b) -- the phase-split layout the tail kernel relies on.
    """
    c1 = a1.shape[0]
    a1r = a1[:, :batch * 55 * 55].reshape(c1, batch, 55, 55)
    views = {}
    for er in range(5):                       # er = 2*i2 + dh2, ec = 2*j2 + dw2
        for ec in range(5):
            v = a1r[:, :, er:er + 49:4, ec:ec + 49:4]          # (16, B, 13, 13)
            v = jnp.pad(v, ((0, 0), (0, 0), (0, 3), (0, 3)))   # (16, B, 16, 16)
            v = v.reshape(c1, batch, 4, 4, 4, 4)               # (c1, b, R, r4, C, c4)
            v = jnp.transpose(v, (0, 3, 5, 2, 4, 1))           # (c1, r4, c4, R, C, b)
            views[(er, ec)] = v.reshape(c1, 256 * batch)
    pos_blocks = []
    for i in (0, 1):
        for j in (0, 1):
            rows = [views[(2 * i + dh, 2 * j + dw)]
                    for dh in range(3) for dw in range(3)]
            pos_blocks.append(jnp.concatenate(rows, axis=0))   # (144, 256*B)
    return jnp.stack(pos_blocks, axis=0)                       # (4, 144, 256*B)


# ------------------------------ layer wrappers -------------------------------

def _layer1_call(p1, w, scale, shift):
    cout, k, mp = w.shape[0], p1.shape[1], p1.shape[2]
    grid_m = mp // _TM
    return pl.pallas_call(
        _layer1_kernel,
        out_shape=jax.ShapeDtypeStruct((cout, mp), jnp.bfloat16),
        grid=(grid_m,),
        in_specs=[
            pl.BlockSpec((4, k, _TM), lambda i: (0, 0, i)),
            pl.BlockSpec(w.shape, lambda i: (0, 0)),
            pl.BlockSpec(scale.shape, lambda i: (0, 0)),
            pl.BlockSpec(shift.shape, lambda i: (0, 0)),
        ],
        out_specs=pl.BlockSpec((cout, _TM), lambda i: (0, i)),
        compiler_params=pltpu.CompilerParams(dimension_semantics=("parallel",)),
    )(p1, w, scale, shift)


def _tail_call(p2, params, batch):
    # No grid: everything (well under 1 MiB) is resident in VMEM for one step.
    return pl.pallas_call(
        functools.partial(_tail_kernel, batch=batch),
        out_shape=jax.ShapeDtypeStruct((batch, 2), jnp.float32),
    )(p2,
      params["l2_w"], params["l2_scale"], params["l2_shift"],
      params["l3_w"], params["l3_scale"], params["l3_shift"],
      params["fc1_w"], params["fc1_b"], params["fc2_w"], params["fc2_b"])


# -------------------------------- full model ---------------------------------

def model3_forward(x_nchw, params):
    batch = x_nchw.shape[0]
    p1 = _layer1_patches(x_nchw)
    a1 = _layer1_call(p1, params["l1_w"], params["l1_scale"], params["l1_shift"])
    p2 = _layer2_patches(a1, batch)
    return _tail_call(p2, params, batch)


# ---------------------------- parameter preparation --------------------------

def prepare_params(raw, eps=1e-5):
    """One-time prep: fold conv bias + BN(eval) into per-channel affine,
    transpose conv weights to (Cout, kh*kw*Cin), rearrange fc1 for the fused
    tail (PyTorch NCHW flatten order baked in), cast conv operands to bf16."""
    prep = {}
    for li in (1, 2, 3):
        lp = raw[f"layer{li}"]
        cout, cin = lp["w"].shape[0], lp["w"].shape[1]
        w = jnp.transpose(lp["w"], (0, 2, 3, 1)).reshape(cout, 9 * cin)
        scale = lp["gamma"] / jnp.sqrt(lp["var"] + eps)
        shift = (lp["b"] - lp["mean"]) * scale + lp["beta"]
        prep[f"l{li}_w"] = w.astype(jnp.bfloat16)
        prep[f"l{li}_scale"] = scale.reshape(cout, 1).astype(jnp.float32)
        prep[f"l{li}_shift"] = shift.reshape(cout, 1).astype(jnp.float32)
    w1 = raw["fc1_w"].reshape(10, 64, 3, 3)                       # (h, c3, ur, uc)
    prep["fc1_w"] = jnp.transpose(w1, (2, 3, 0, 1)).reshape(9, 10, 64).astype(jnp.float32)
    prep["fc1_b"] = raw["fc1_b"].reshape(10, 1).astype(jnp.float32)
    prep["fc2_w"] = jnp.transpose(raw["fc2_w"]).astype(jnp.float32)   # (10, 2)
    prep["fc2_b"] = raw["fc2_b"].reshape(1, 2).astype(jnp.float32)
    return prep


def init_params(key):
    """Deterministic synthetic parameters with the shapes from Model3.__init__."""
    ks = jax.random.split(key, 20)
    params = {}
    conv_shapes = [(16, 3, 3, 3), (32, 16, 3, 3), (64, 32, 3, 3)]
    ki = 0
    for li, cs in enumerate(conv_shapes, start=1):
        cout = cs[0]
        params[f"layer{li}"] = {
            "w": 0.05 * jax.random.normal(ks[ki + 0], cs, dtype=jnp.float32),
            "b": 0.01 * jax.random.normal(ks[ki + 1], (cout,), dtype=jnp.float32),
            "gamma": 1.0 + 0.1 * jax.random.normal(ks[ki + 2], (cout,), dtype=jnp.float32),
            "beta": 0.05 * jax.random.normal(ks[ki + 3], (cout,), dtype=jnp.float32),
            "mean": 0.02 * jax.random.normal(ks[ki + 4], (cout,), dtype=jnp.float32),
            "var": 1.0 + 0.1 * jax.random.uniform(ks[ki + 5], (cout,), dtype=jnp.float32),
        }
        ki += 6
    params["fc1_w"] = 0.05 * jax.random.normal(ks[18], (10, 576), dtype=jnp.float32)
    params["fc1_b"] = jnp.zeros((10,), dtype=jnp.float32)
    params["fc2_w"] = 0.05 * jax.random.normal(ks[19], (2, 10), dtype=jnp.float32)
    params["fc2_b"] = jnp.zeros((2,), dtype=jnp.float32)
    return params


if __name__ == "__main__":
    key = jax.random.PRNGKey(0)
    pkey, xkey = jax.random.split(key)
    params = prepare_params(init_params(pkey))
    # 224x224 is the input size implied by fc1 expecting 3*3*64 features.
    x = jax.random.normal(xkey, (2, 3, 224, 224), dtype=jnp.float32)

    out = jax.block_until_ready(jax.jit(model3_forward)(x, params))
    assert out.shape == (2, 2) and out.dtype == jnp.float32
    assert bool(jnp.all(jnp.isfinite(out)))
    print("KERNEL_OK")
</pallas_src>

<mosaic_0001>
module attributes {stable_mosaic.version = 11 : i64} {
  func.func @_layer1_kernel(%arg0: i32, %arg1: memref<4x27x1536xbf16, #tpu.memory_space<vmem>>, %arg2: memref<16x27xbf16, #tpu.memory_space<vmem>>, %arg3: memref<16x1xf32, #tpu.memory_space<vmem>>, %arg4: memref<16x1xf32, #tpu.memory_space<vmem>>, %arg5: memref<16x1536xbf16, #tpu.memory_space<vmem>>) attributes {dimension_semantics = [#tpu.dimension_semantics<parallel>], iteration_bounds = array<i64: 4>, scalar_prefetch = 0 : i64, scratch_operands = 0 : i64, tpu.core_type = #tpu.core_type<tc>, window_params = [{transform_indices = @transform_0, window_bounds = array<i64: 4, 27, 1536>}, {pipeline_mode = #tpu.pipeline_mode<synchronous>, transform_indices = @transform_1, window_bounds = array<i64: 16, 27>}, {pipeline_mode = #tpu.pipeline_mode<synchronous>, transform_indices = @transform_2, window_bounds = array<i64: 16, 1>}, {pipeline_mode = #tpu.pipeline_mode<synchronous>, transform_indices = @transform_3, window_bounds = array<i64: 16, 1>}, {transform_indices = @transform_4, window_bounds = array<i64: 16, 1536>}]} {
    %c0 = arith.constant 0 : index
    %c0_0 = arith.constant 0 : index
    %0 = vector.load %arg2[%c0, %c0_0] : memref<16x27xbf16, #tpu.memory_space<vmem>>, vector<16x27xbf16>
    %c0_1 = arith.constant 0 : index
    %c0_2 = arith.constant 0 : index
    %1 = vector.load %arg3[%c0_1, %c0_2] : memref<16x1xf32, #tpu.memory_space<vmem>>, vector<16x1xf32>
    %c0_3 = arith.constant 0 : index
    %c0_4 = arith.constant 0 : index
    %2 = vector.load %arg4[%c0_3, %c0_4] : memref<16x1xf32, #tpu.memory_space<vmem>>, vector<16x1xf32>
    %c0_5 = arith.constant 0 : index
    %c0_6 = arith.constant 0 : index
    %c0_7 = arith.constant 0 : index
    %3 = vector.load %arg1[%c0_5, %c0_6, %c0_7] : memref<4x27x1536xbf16, #tpu.memory_space<vmem>>, vector<1x27x1536xbf16>
    %4 = vector.shape_cast %3 : vector<1x27x1536xbf16> to vector<27x1536xbf16>
    %cst = arith.constant dense<0.000000e+00> : vector<16x1536xf32>
    %5 = tpu.matmul %0, %4, %cst {dimension_numbers = #tpu.dot_dimension_numbers<[1], [0], [0], [1], [0, 0, 1, 1], [], []>} : vector<16x27xbf16>, vector<27x1536xbf16>, vector<16x1536xf32> -> vector<16x1536xf32>
    %6 = vector.broadcast %1 : vector<16x1xf32> to vector<16x1536xf32>
    %7 = arith.mulf %5, %6 : vector<16x1536xf32>
    %8 = vector.broadcast %2 : vector<16x1xf32> to vector<16x1536xf32>
    %9 = arith.addf %7, %8 : vector<16x1536xf32>
    %c1 = arith.constant 1 : index
    %c0_8 = arith.constant 0 : index
    %c0_9 = arith.constant 0 : index
    %10 = vector.load %arg1[%c1, %c0_8, %c0_9] : memref<4x27x1536xbf16, #tpu.memory_space<vmem>>, vector<1x27x1536xbf16>
    %11 = vector.shape_cast %10 : vector<1x27x1536xbf16> to vector<27x1536xbf16>
    %cst_10 = arith.constant dense<0.000000e+00> : vector<16x1536xf32>
    %12 = tpu.matmul %0, %11, %cst_10 {dimension_numbers = #tpu.dot_dimension_numbers<[1], [0], [0], [1], [0, 0, 1, 1], [], []>} : vector<16x27xbf16>, vector<27x1536xbf16>, vector<16x1536xf32> -> vector<16x1536xf32>
    %13 = vector.broadcast %1 : vector<16x1xf32> to vector<16x1536xf32>
    %14 = arith.mulf %12, %13 : vector<16x1536xf32>
    %15 = vector.broadcast %2 : vector<16x1xf32> to vector<16x1536xf32>
    %16 = arith.addf %14, %15 : vector<16x1536xf32>
    %17 = arith.maximumf %9, %16 : vector<16x1536xf32>
    %c2 = arith.constant 2 : index
    %c0_11 = arith.constant 0 : index
    %c0_12 = arith.constant 0 : index
    %18 = vector.load %arg1[%c2, %c0_11, %c0_12] : memref<4x27x1536xbf16, #tpu.memory_space<vmem>>, vector<1x27x1536xbf16>
    %19 = vector.shape_cast %18 : vector<1x27x1536xbf16> to vector<27x1536xbf16>
    %cst_13 = arith.constant dense<0.000000e+00> : vector<16x1536xf32>
    %20 = tpu.matmul %0, %19, %cst_13 {dimension_numbers = #tpu.dot_dimension_numbers<[1], [0], [0], [1], [0, 0, 1, 1], [], []>} : vector<16x27xbf16>, vector<27x1536xbf16>, vector<16x1536xf32> -> vector<16x1536xf32>
    %21 = vector.broadcast %1 : vector<16x1xf32> to vector<16x1536xf32>
    %22 = arith.mulf %20, %21 : vector<16x1536xf32>
    %23 = vector.broadcast %2 : vector<16x1xf32> to vector<16x1536xf32>
    %24 = arith.addf %22, %23 : vector<16x1536xf32>
    %25 = arith.maximumf %17, %24 : vector<16x1536xf32>
    %c3 = arith.constant 3 : index
    %c0_14 = arith.constant 0 : index
    %c0_15 = arith.constant 0 : index
    %26 = vector.load %arg1[%c3, %c0_14, %c0_15] : memref<4x27x1536xbf16, #tpu.memory_space<vmem>>, vector<1x27x1536xbf16>
    %27 = vector.shape_cast %26 : vector<1x27x1536xbf16> to vector<27x1536xbf16>
    %cst_16 = arith.constant dense<0.000000e+00> : vector<16x1536xf32>
    %28 = tpu.matmul %0, %27, %cst_16 {dimension_numbers = #tpu.dot_dimension_numbers<[1], [0], [0], [1], [0, 0, 1, 1], [], []>} : vector<16x27xbf16>, vector<27x1536xbf16>, vector<16x1536xf32> -> vector<16x1536xf32>
    %29 = vector.broadcast %1 : vector<16x1xf32> to vector<16x1536xf32>
    %30 = arith.mulf %28, %29 : vector<16x1536xf32>
    %31 = vector.broadcast %2 : vector<16x1xf32> to vector<16x1536xf32>
    %32 = arith.addf %30, %31 : vector<16x1536xf32>
    %33 = arith.maximumf %25, %32 : vector<16x1536xf32>
    %cst_17 = arith.constant 0.000000e+00 : f32
    %34 = vector.broadcast %cst_17 : f32 to vector<16x1536xf32>
    %35 = arith.maximumf %33, %34 : vector<16x1536xf32>
    %36 = arith.truncf %35 : vector<16x1536xf32> to vector<16x1536xbf16>
    %c0_18 = arith.constant 0 : index
    %c0_19 = arith.constant 0 : index
    %37 = vector.load %arg5[%c0_18, %c0_19] : memref<16x1536xbf16, #tpu.memory_space<vmem>>, vector<16x1536xbf16>
    tpu.vector_store %arg5[%c0_18, %c0_19], %36 {strides = array<i32>} : memref<16x1536xbf16, #tpu.memory_space<vmem>>, vector<16x1536xbf16>,
    return
  }
  func.func @transform_0(%arg0: i32) -> (i32, i32, i32) {
    %c0_i32 = arith.constant 0 : i32
    %c0_i32_0 = arith.constant 0 : i32
    %c0_i32_1 = arith.constant 0 : i32
    return %c0_i32, %c0_i32_0, %arg0 : i32, i32, i32
  }
  func.func @transform_1(%arg0: i32) -> (i32, i32) {
    %c0_i32 = arith.constant 0 : i32
    %c0_i32_0 = arith.constant 0 : i32
    %c0_i32_1 = arith.constant 0 : i32
    return %c0_i32, %c0_i32_0 : i32, i32
  }
  func.func @transform_2(%arg0: i32) -> (i32, i32) {
    %c0_i32 = arith.constant 0 : i32
    %c0_i32_0 = arith.constant 0 : i32
    %c0_i32_1 = arith.constant 0 : i32
    return %c0_i32, %c0_i32_0 : i32, i32
  }
  func.func @transform_3(%arg0: i32) -> (i32, i32) {
    %c0_i32 = arith.constant 0 : i32
    %c0_i32_0 = arith.constant 0 : i32
    %c0_i32_1 = arith.constant 0 : i32
    return %c0_i32, %c0_i32_0 : i32, i32
  }
  func.func @transform_4(%arg0: i32) -> (i32, i32) {
    %c0_i32 = arith.constant 0 : i32
    %c0_i32_0 = arith.constant 0 : i32
    return %c0_i32, %arg0 : i32, i32
  }
}

module attributes {stable_mosaic.version = 11 : i64} {
  func.func @_tail_kernel(%arg0: memref<4x144x512xbf16, #tpu.memory_space<vmem>>, %arg1: memref<32x144xbf16, #tpu.memory_space<vmem>>, %arg2: memref<32x1xf32, #tpu.memory_space<vmem>>, %arg3: memref<32x1xf32, #tpu.memory_space<vmem>>, %arg4: memref<64x288xbf16, #tpu.memory_space<vmem>>, %arg5: memref<64x1xf32, #tpu.memory_space<vmem>>, %arg6: memref<64x1xf32, #tpu.memory_space<vmem>>, %arg7: memref<9x10x64xf32, #tpu.memory_space<vmem>>, %arg8: memref<10x1xf32, #tpu.memory_space<vmem>>, %arg9: memref<10x2xf32, #tpu.memory_space<vmem>>, %arg10: memref<1x2xf32, #tpu.memory_space<vmem>>, %arg11: memref<2x2xf32, #tpu.memory_space<vmem>>) attributes {dimension_semantics = [], scalar_prefetch = 0 : i64, scratch_operands = 0 : i64, tpu.core_type = #tpu.core_type<tc>} {
    %c0 = arith.constant 0 : index
    %c0_0 = arith.constant 0 : index
    %0 = vector.load %arg1[%c0, %c0_0] : memref<32x144xbf16, #tpu.memory_space<vmem>>, vector<32x144xbf16>
    %c0_1 = arith.constant 0 : index
    %c0_2 = arith.constant 0 : index
    %1 = vector.load %arg2[%c0_1, %c0_2] : memref<32x1xf32, #tpu.memory_space<vmem>>, vector<32x1xf32>
    %c0_3 = arith.constant 0 : index
    %c0_4 = arith.constant 0 : index
    %2 = vector.load %arg3[%c0_3, %c0_4] : memref<32x1xf32, #tpu.memory_space<vmem>>, vector<32x1xf32>
    %c0_5 = arith.constant 0 : index
    %c0_6 = arith.constant 0 : index
    %c0_7 = arith.constant 0 : index
    %3 = vector.load %arg0[%c0_5, %c0_6, %c0_7] : memref<4x144x512xbf16, #tpu.memory_space<vmem>>, vector<1x144x512xbf16>
    %4 = vector.shape_cast %3 : vector<1x144x512xbf16> to vector<144x512xbf16>
    %cst = arith.constant dense<0.000000e+00> : vector<32x512xf32>
    %5 = tpu.matmul %0, %4, %cst {dimension_numbers = #tpu.dot_dimension_numbers<[1], [0], [0], [1], [0, 0, 1, 1], [], []>} : vector<32x144xbf16>, vector<144x512xbf16>, vector<32x512xf32> -> vector<32x512xf32>
    %6 = vector.broadcast %1 : vector<32x1xf32> to vector<32x512xf32>
    %7 = arith.mulf %5, %6 : vector<32x512xf32>
    %8 = vector.broadcast %2 : vector<32x1xf32> to vector<32x512xf32>
    %9 = arith.addf %7, %8 : vector<32x512xf32>
    %c1 = arith.constant 1 : index
    %c0_8 = arith.constant 0 : index
    %c0_9 = arith.constant 0 : index
    %10 = vector.load %arg0[%c1, %c0_8, %c0_9] : memref<4x144x512xbf16, #tpu.memory_space<vmem>>, vector<1x144x512xbf16>
    %11 = vector.shape_cast %10 : vector<1x144x512xbf16> to vector<144x512xbf16>
    %cst_10 = arith.constant dense<0.000000e+00> : vector<32x512xf32>
    %12 = tpu.matmul %0, %11, %cst_10 {dimension_numbers = #tpu.dot_dimension_numbers<[1], [0], [0], [1], [0, 0, 1, 1], [], []>} : vector<32x144xbf16>, vector<144x512xbf16>, vector<32x512xf32> -> vector<32x512xf32>
    %13 = vector.broadcast %1 : vector<32x1xf32> to vector<32x512xf32>
    %14 = arith.mulf %12, %13 : vector<32x512xf32>
    %15 = vector.broadcast %2 : vector<32x1xf32> to vector<32x512xf32>
    %16 = arith.addf %14, %15 : vector<32x512xf32>
    %17 = arith.maximumf %9, %16 : vector<32x512xf32>
    %c2 = arith.constant 2 : index
    %c0_11 = arith.constant 0 : index
    %c0_12 = arith.constant 0 : index
    %18 = vector.load %arg0[%c2, %c0_11, %c0_12] : memref<4x144x512xbf16, #tpu.memory_space<vmem>>, vector<1x144x512xbf16>
    %19 = vector.shape_cast %18 : vector<1x144x512xbf16> to vector<144x512xbf16>
    %cst_13 = arith.constant dense<0.000000e+00> : vector<32x512xf32>
    %20 = tpu.matmul %0, %19, %cst_13 {dimension_numbers = #tpu.dot_dimension_numbers<[1], [0], [0], [1], [0, 0, 1, 1], [], []>} : vector<32x144xbf16>, vector<144x512xbf16>, vector<32x512xf32> -> vector<32x512xf32>
    %21 = vector.broadcast %1 : vector<32x1xf32> to vector<32x512xf32>
    %22 = arith.mulf %20, %21 : vector<32x512xf32>
    %23 = vector.broadcast %2 : vector<32x1xf32> to vector<32x512xf32>
    %24 = arith.addf %22, %23 : vector<32x512xf32>
    %25 = arith.maximumf %17, %24 : vector<32x512xf32>
    %c3 = arith.constant 3 : index
    %c0_14 = arith.constant 0 : index
    %c0_15 = arith.constant 0 : index
    %26 = vector.load %arg0[%c3, %c0_14, %c0_15] : memref<4x144x512xbf16, #tpu.memory_space<vmem>>, vector<1x144x512xbf16>
    %27 = vector.shape_cast %26 : vector<1x144x512xbf16> to vector<144x512xbf16>
    %cst_16 = arith.constant dense<0.000000e+00> : vector<32x512xf32>
    %28 = tpu.matmul %0, %27, %cst_16 {dimension_numbers = #tpu.dot_dimension_numbers<[1], [0], [0], [1], [0, 0, 1, 1], [], []>} : vector<32x144xbf16>, vector<144x512xbf16>, vector<32x512xf32> -> vector<32x512xf32>
    %29 = vector.broadcast %1 : vector<32x1xf32> to vector<32x512xf32>
    %30 = arith.mulf %28, %29 : vector<32x512xf32>
    %31 = vector.broadcast %2 : vector<32x1xf32> to vector<32x512xf32>
    %32 = arith.addf %30, %31 : vector<32x512xf32>
    %33 = arith.maximumf %25, %32 : vector<32x512xf32>
    %cst_17 = arith.constant 0.000000e+00 : f32
    %34 = vector.broadcast %cst_17 : f32 to vector<32x512xf32>
    %35 = arith.maximumf %33, %34 : vector<32x512xf32>
    %36 = arith.truncf %35 : vector<32x512xf32> to vector<32x512xbf16>
    %c0_18 = arith.constant 0 : index
    %c0_19 = arith.constant 0 : index
    %37 = vector.load %arg4[%c0_18, %c0_19] : memref<64x288xbf16, #tpu.memory_space<vmem>>, vector<64x288xbf16>
    %c0_20 = arith.constant 0 : index
    %c0_21 = arith.constant 0 : index
    %38 = vector.load %arg5[%c0_20, %c0_21] : memref<64x1xf32, #tpu.memory_space<vmem>>, vector<64x1xf32>
    %c0_22 = arith.constant 0 : index
    %c0_23 = arith.constant 0 : index
    %39 = vector.load %arg6[%c0_22, %c0_23] : memref<64x1xf32, #tpu.memory_space<vmem>>, vector<64x1xf32>
    %40 = vector.extract_strided_slice %36 {offsets = [0, 0], sizes = [32, 32], strides = [1, 1]} : vector<32x512xbf16> to vector<32x32xbf16>
    %41 = vector.extract_strided_slice %37 {offsets = [0, 0], sizes = [64, 32], strides = [1, 1]} : vector<64x288xbf16> to vector<64x32xbf16>
    %cst_24 = arith.constant dense<0.000000e+00> : vector<64x32xf32>
    %42 = tpu.matmul %41, %40, %cst_24 {dimension_numbers = #tpu.dot_dimension_numbers<[1], [0], [0], [1], [0, 0, 1, 1], [], []>} : vector<64x32xbf16>, vector<32x32xbf16>, vector<64x32xf32> -> vector<64x32xf32>
    %43 = vector.extract_strided_slice %36 {offsets = [0, 32], sizes = [32, 32], strides = [1, 1]} : vector<32x512xbf16> to vector<32x32xbf16>
    %44 = vector.extract_strided_slice %37 {offsets = [0, 32], sizes = [64, 32], strides = [1, 1]} : vector<64x288xbf16> to vector<64x32xbf16>
    %cst_25 = arith.constant dense<0.000000e+00> : vector<64x32xf32>
    %45 = tpu.matmul %44, %43, %cst_25 {dimension_numbers = #tpu.dot_dimension_numbers<[1], [0], [0], [1], [0, 0, 1, 1], [], []>} : vector<64x32xbf16>, vector<32x32xbf16>, vector<64x32xf32> -> vector<64x32xf32>
    %46 = arith.addf %42, %45 : vector<64x32xf32>
    %47 = vector.extract_strided_slice %36 {offsets = [0, 64], sizes = [32, 32], strides = [1, 1]} : vector<32x512xbf16> to vector<32x32xbf16>
    %48 = vector.extract_strided_slice %37 {offsets = [0, 64], sizes = [64, 32], strides = [1, 1]} : vector<64x288xbf16> to vector<64x32xbf16>
    %cst_26 = arith.constant dense<0.000000e+00> : vector<64x32xf32>
    %49 = tpu.matmul %48, %47, %cst_26 {dimension_numbers = #tpu.dot_dimension_numbers<[1], [0], [0], [1], [0, 0, 1, 1], [], []>} : vector<64x32xbf16>, vector<32x32xbf16>, vector<64x32xf32> -> vector<64x32xf32>
    %50 = arith.addf %46, %49 : vector<64x32xf32>
    %51 = vector.extract_strided_slice %36 {offsets = [0, 128], sizes = [32, 32], strides = [1, 1]} : vector<32x512xbf16> to vector<32x32xbf16>
    %52 = vector.extract_strided_slice %37 {offsets = [0, 96], sizes = [64, 32], strides = [1, 1]} : vector<64x288xbf16> to vector<64x32xbf16>
    %cst_27 = arith.constant dense<0.000000e+00> : vector<64x32xf32>
    %53 = tpu.matmul %52, %51, %cst_27 {dimension_numbers = #tpu.dot_dimension_numbers<[1], [0], [0], [1], [0, 0, 1, 1], [], []>} : vector<64x32xbf16>, vector<32x32xbf16>, vector<64x32xf32> -> vector<64x32xf32>
    %54 = arith.addf %50, %53 : vector<64x32xf32>
    %55 = vector.extract_strided_slice %36 {offsets = [0, 160], sizes = [32, 32], strides = [1, 1]} : vector<32x512xbf16> to vector<32x32xbf16>
    %56 = vector.extract_strided_slice %37 {offsets = [0, 128], sizes = [64, 32], strides = [1, 1]} : vector<64x288xbf16> to vector<64x32xbf16>
    %cst_28 = arith.constant dense<0.000000e+00> : vector<64x32xf32>
    %57 = tpu.matmul %56, %55, %cst_28 {dimension_numbers = #tpu.dot_dimension_numbers<[1], [0], [0], [1], [0, 0, 1, 1], [], []>} : vector<64x32xbf16>, vector<32x32xbf16>, vector<64x32xf32> -> vector<64x32xf32>
    %58 = arith.addf %54, %57 : vector<64x32xf32>
    %59 = vector.extract_strided_slice %36 {offsets = [0, 192], sizes = [32, 32], strides = [1, 1]} : vector<32x512xbf16> to vector<32x32xbf16>
    %60 = vector.extract_strided_slice %37 {offsets = [0, 160], sizes = [64, 32], strides = [1, 1]} : vector<64x288xbf16> to vector<64x32xbf16>
    %cst_29 = arith.constant dense<0.000000e+00> : vector<64x32xf32>
    %61 = tpu.matmul %60, %59, %cst_29 {dimension_numbers = #tpu.dot_dimension_numbers<[1], [0], [0], [1], [0, 0, 1, 1], [], []>} : vector<64x32xbf16>, vector<32x32xbf16>, vector<64x32xf32> -> vector<64x32xf32>
    %62 = arith.addf %58, %61 : vector<64x32xf32>
    %63 = vector.extract_strided_slice %36 {offsets = [0, 256], sizes = [32, 32], strides = [1, 1]} : vector<32x512xbf16> to vector<32x32xbf16>
    %64 = vector.extract_strided_slice %37 {offsets = [0, 192], sizes = [64, 32], strides = [1, 1]} : vector<64x288xbf16> to vector<64x32xbf16>
    %cst_30 = arith.constant dense<0.000000e+00> : vector<64x32xf32>
    %65 = tpu.matmul %64, %63, %cst_30 {dimension_numbers = #tpu.dot_dimension_numbers<[1], [0], [0], [1], [0, 0, 1, 1], [], []>} : vector<64x32xbf16>, vector<32x32xbf16>, vector<64x32xf32> -> vector<64x32xf32>
    %66 = arith.addf %62, %65 : vector<64x32xf32>
    %67 = vector.extract_strided_slice %36 {offsets = [0, 288], sizes = [32, 32], strides = [1, 1]} : vector<32x512xbf16> to vector<32x32xbf16>
    %68 = vector.extract_strided_slice %37 {offsets = [0, 224], sizes = [64, 32], strides = [1, 1]} : vector<64x288xbf16> to vector<64x32xbf16>
    %cst_31 = arith.constant dense<0.000000e+00> : vector<64x32xf32>
    %69 = tpu.matmul %68, %67, %cst_31 {dimension_numbers = #tpu.dot_dimension_numbers<[1], [0], [0], [1], [0, 0, 1, 1], [], []>} : vector<64x32xbf16>, vector<32x32xbf16>, vector<64x32xf32> -> vector<64x32xf32>
    %70 = arith.addf %66, %69 : vector<64x32xf32>
    %71 = vector.extract_strided_slice %36 {offsets = [0, 320], sizes = [32, 32], strides = [1, 1]} : vector<32x512xbf16> to vector<32x32xbf16>
    %72 = vector.extract_strided_slice %37 {offsets = [0, 256], sizes = [64, 32], strides = [1, 1]} : vector<64x288xbf16> to vector<64x32xbf16>
    %cst_32 = arith.constant dense<0.000000e+00> : vector<64x32xf32>
    %73 = tpu.matmul %72, %71, %cst_32 {dimension_numbers = #tpu.dot_dimension_numbers<[1], [0], [0], [1], [0, 0, 1, 1], [], []>} : vector<64x32xbf16>, vector<32x32xbf16>, vector<64x32xf32> -> vector<64x32xf32>
    %74 = arith.addf %70, %73 : vector<64x32xf32>
    %75 = vector.broadcast %38 : vector<64x1xf32> to vector<64x32xf32>
    %76 = arith.mulf %74, %75 : vector<64x32xf32>
    %77 = vector.broadcast %39 : vector<64x1xf32> to vector<64x32xf32>
    %78 = arith.addf %76, %77 : vector<64x32xf32>
    %79 = vector.extract_strided_slice %36 {offsets = [0, 64], sizes = [32, 32], strides = [1, 1]} : vector<32x512xbf16> to vector<32x32xbf16>
    %80 = vector.extract_strided_slice %37 {offsets = [0, 0], sizes = [64, 32], strides = [1, 1]} : vector<64x288xbf16> to vector<64x32xbf16>
    %cst_33 = arith.constant dense<0.000000e+00> : vector<64x32xf32>
    %81 = tpu.matmul %80, %79, %cst_33 {dimension_numbers = #tpu.dot_dimension_numbers<[1], [0], [0], [1], [0, 0, 1, 1], [], []>} : vector<64x32xbf16>, vector<32x32xbf16>, vector<64x32xf32> -> vector<64x32xf32>
    %82 = vector.extract_strided_slice %36 {offsets = [0, 96], sizes = [32, 32], strides = [1, 1]} : vector<32x512xbf16> to vector<32x32xbf16>
    %83 = vector.extract_strided_slice %37 {offsets = [0, 32], sizes = [64, 32], strides = [1, 1]} : vector<64x288xbf16> to vector<64x32xbf16>
    %cst_34 = arith.constant dense<0.000000e+00> : vector<64x32xf32>
    %84 = tpu.matmul %83, %82, %cst_34 {dimension_numbers = #tpu.dot_dimension_numbers<[1], [0], [0], [1], [0, 0, 1, 1], [], []>} : vector<64x32xbf16>, vector<32x32xbf16>, vector<64x32xf32> -> vector<64x32xf32>
    %85 = arith.addf %81, %84 : vector<64x32xf32>
    %86 = vector.extract_strided_slice %36 {offsets = [0, 2], sizes = [32, 32], strides = [1, 1]} : vector<32x512xbf16> to vector<32x32xbf16>
    %87 = vector.extract_strided_slice %37 {offsets = [0, 64], sizes = [64, 32], strides = [1, 1]} : vector<64x288xbf16> to vector<64x32xbf16>
    %cst_35 = arith.constant dense<0.000000e+00> : vector<64x32xf32>
    %88 = tpu.matmul %87, %86, %cst_35 {dimension_numbers = #tpu.dot_dimension_numbers<[1], [0], [0], [1], [0, 0, 1, 1], [], []>} : vector<64x32xbf16>, vector<32x32xbf16>, vector<64x32xf32> -> vector<64x32xf32>
    %89 = arith.addf %85, %88 : vector<64x32xf32>
    %90 = vector.extract_strided_slice %36 {offsets = [0, 192], sizes = [32, 32], strides = [1, 1]} : vector<32x512xbf16> to vector<32x32xbf16>
    %91 = vector.extract_strided_slice %37 {offsets = [0, 96], sizes = [64, 32], strides = [1, 1]} : vector<64x288xbf16> to vector<64x32xbf16>
    %cst_36 = arith.constant dense<0.000000e+00> : vector<64x32xf32>
    %92 = tpu.matmul %91, %90, %cst_36 {dimension_numbers = #tpu.dot_dimension_numbers<[1], [0], [0], [1], [0, 0, 1, 1], [], []>} : vector<64x32xbf16>, vector<32x32xbf16>, vector<64x32xf32> -> vector<64x32xf32>
    %93 = arith.addf %89, %92 : vector<64x32xf32>
    %94 = vector.extract_strided_slice %36 {offsets = [0, 224], sizes = [32, 32], strides = [1, 1]} : vector<32x512xbf16> to vector<32x32xbf16>
    %95 = vector.extract_strided_slice %37 {offsets = [0, 128], sizes = [64, 32], strides = [1, 1]} : vector<64x288xbf16> to vector<64x32xbf16>
    %cst_37 = arith.constant dense<0.000000e+00> : vector<64x32xf32>
    %96 = tpu.matmul %95, %94, %cst_37 {dimension_numbers = #tpu.dot_dimension_numbers<[1], [0], [0], [1], [0, 0, 1, 1], [], []>} : vector<64x32xbf16>, vector<32x32xbf16>, vector<64x32xf32> -> vector<64x32xf32>
    %97 = arith.addf %93, %96 : vector<64x32xf32>
    %98 = vector.extract_strided_slice %36 {offsets = [0, 130], sizes = [32, 32], strides = [1, 1]} : vector<32x512xbf16> to vector<32x32xbf16>
    %99 = vector.extract_strided_slice %37 {offsets = [0, 160], sizes = [64, 32], strides = [1, 1]} : vector<64x288xbf16> to vector<64x32xbf16>
    %cst_38 = arith.constant dense<0.000000e+00> : vector<64x32xf32>
    %100 = tpu.matmul %99, %98, %cst_38 {dimension_numbers = #tpu.dot_dimension_numbers<[1], [0], [0], [1], [0, 0, 1, 1], [], []>} : vector<64x32xbf16>, vector<32x32xbf16>, vector<64x32xf32> -> vector<64x32xf32>
    %101 = arith.addf %97, %100 : vector<64x32xf32>
    %102 = vector.extract_strided_slice %36 {offsets = [0, 320], sizes = [32, 32], strides = [1, 1]} : vector<32x512xbf16> to vector<32x32xbf16>
    %103 = vector.extract_strided_slice %37 {offsets = [0, 192], sizes = [64, 32], strides = [1, 1]} : vector<64x288xbf16> to vector<64x32xbf16>
    %cst_39 = arith.constant dense<0.000000e+00> : vector<64x32xf32>
    %104 = tpu.matmul %103, %102, %cst_39 {dimension_numbers = #tpu.dot_dimension_numbers<[1], [0], [0], [1], [0, 0, 1, 1], [], []>} : vector<64x32xbf16>, vector<32x32xbf16>, vector<64x32xf32> -> vector<64x32xf32>
    %105 = arith.addf %101, %104 : vector<64x32xf32>
    %106 = vector.extract_strided_slice %36 {offsets = [0, 352], sizes = [32, 32], strides = [1, 1]} : vector<32x512xbf16> to vector<32x32xbf16>
    %107 = vector.extract_strided_slice %37 {offsets = [0, 224], sizes = [64, 32], strides = [1, 1]} : vector<64x288xbf16> to vector<64x32xbf16>
    %cst_40 = arith.constant dense<0.000000e+00> : vector<64x32xf32>
    %108 = tpu.matmul %107, %106, %cst_40 {dimension_numbers = #tpu.dot_dimension_numbers<[1], [0], [0], [1], [0, 0, 1, 1], [], []>} : vector<64x32xbf16>, vector<32x32xbf16>, vector<64x32xf32> -> vector<64x32xf32>
    %109 = arith.addf %105, %108 : vector<64x32xf32>
    %110 = vector.extract_strided_slice %36 {offsets = [0, 258], sizes = [32, 32], strides = [1, 1]} : vector<32x512xbf16> to vector<32x32xbf16>
    %111 = vector.extract_strided_slice %37 {offsets = [0, 256], sizes = [64, 32], strides = [1, 1]} : vector<64x288xbf16> to vector<64x32xbf16>
    %cst_41 = arith.constant dense<0.000000e+00> : vector<64x32xf32>
    %112 = tpu.matmul %111, %110, %cst_41 {dimension_numbers = #tpu.dot_dimension_numbers<[1], [0], [0], [1], [0, 0, 1, 1], [], []>} : vector<64x32xbf16>, vector<32x32xbf16>, vector<64x32xf32> -> vector<64x32xf32>
    %113 = arith.addf %109, %112 : vector<64x32xf32>
    %114 = vector.broadcast %38 : vector<64x1xf32> to vector<64x32xf32>
    %115 = arith.mulf %113, %114 : vector<64x32xf32>
    %116 = vector.broadcast %39 : vector<64x1xf32> to vector<64x32xf32>
    %117 = arith.addf %115, %116 : vector<64x32xf32>
    %118 = arith.maximumf %78, %117 : vector<64x32xf32>
    %119 = vector.extract_strided_slice %36 {offsets = [0, 256], sizes = [32, 32], strides = [1, 1]} : vector<32x512xbf16> to vector<32x32xbf16>
    %120 = vector.extract_strided_slice %37 {offsets = [0, 0], sizes = [64, 32], strides = [1, 1]} : vector<64x288xbf16> to vector<64x32xbf16>
    %cst_42 = arith.constant dense<0.000000e+00> : vector<64x32xf32>
    %121 = tpu.matmul %120, %119, %cst_42 {dimension_numbers = #tpu.dot_dimension_numbers<[1], [0], [0], [1], [0, 0, 1, 1], [], []>} : vector<64x32xbf16>, vector<32x32xbf16>, vector<64x32xf32> -> vector<64x32xf32>
    %122 = vector.extract_strided_slice %36 {offsets = [0, 288], sizes = [32, 32], strides = [1, 1]} : vector<32x512xbf16> to vector<32x32xbf16>
    %123 = vector.extract_strided_slice %37 {offsets = [0, 32], sizes = [64, 32], strides = [1, 1]} : vector<64x288xbf16> to vector<64x32xbf16>
    %cst_43 = arith.constant dense<0.000000e+00> : vector<64x32xf32>
    %124 = tpu.matmul %123, %122, %cst_43 {dimension_numbers = #tpu.dot_dimension_numbers<[1], [0], [0], [1], [0, 0, 1, 1], [], []>} : vector<64x32xbf16>, vector<32x32xbf16>, vector<64x32xf32> -> vector<64x32xf32>
    %125 = arith.addf %121, %124 : vector<64x32xf32>
    %126 = vector.extract_strided_slice %36 {offsets = [0, 320], sizes = [32, 32], strides = [1, 1]} : vector<32x512xbf16> to vector<32x32xbf16>
    %127 = vector.extract_strided_slice %37 {offsets = [0, 64], sizes = [64, 32], strides = [1, 1]} : vector<64x288xbf16> to vector<64x32xbf16>
    %cst_44 = arith.constant dense<0.000000e+00> : vector<64x32xf32>
    %128 = tpu.matmul %127, %126, %cst_44 {dimension_numbers = #tpu.dot_dimension_numbers<[1], [0], [0], [1], [0, 0, 1, 1], [], []>} : vector<64x32xbf16>, vector<32x32xbf16>, vector<64x32xf32> -> vector<64x32xf32>
    %129 = arith.addf %125, %128 : vector<64x32xf32>
    %130 = vector.extract_strided_slice %36 {offsets = [0, 384], sizes = [32, 32], strides = [1, 1]} : vector<32x512xbf16> to vector<32x32xbf16>
    %131 = vector.extract_strided_slice %37 {offsets = [0, 96], sizes = [64, 32], strides = [1, 1]} : vector<64x288xbf16> to vector<64x32xbf16>
    %cst_45 = arith.constant dense<0.000000e+00> : vector<64x32xf32>
    %132 = tpu.matmul %131, %130, %cst_45 {dimension_numbers = #tpu.dot_dimension_numbers<[1], [0], [0], [1], [0, 0, 1, 1], [], []>} : vector<64x32xbf16>, vector<32x32xbf16>, vector<64x32xf32> -> vector<64x32xf32>
    %133 = arith.addf %129, %132 : vector<64x32xf32>
    %134 = vector.extract_strided_slice %36 {offsets = [0, 416], sizes = [32, 32], strides = [1, 1]} : vector<32x512xbf16> to vector<32x32xbf16>
    %135 = vector.extract_strided_slice %37 {offsets = [0, 128], sizes = [64, 32], strides = [1, 1]} : vector<64x288xbf16> to vector<64x32xbf16>
    %cst_46 = arith.constant dense<0.000000e+00> : vector<64x32xf32>
    %136 = tpu.matmul %135, %134, %cst_46 {dimension_numbers = #tpu.dot_dimension_numbers<[1], [0], [0], [1], [0, 0, 1, 1], [], []>} : vector<64x32xbf16>, vector<32x32xbf16>, vector<64x32xf32> -> vector<64x32xf32>
    %137 = arith.addf %133, %136 : vector<64x32xf32>
    %138 = vector.extract_strided_slice %36 {offsets = [0, 448], sizes = [32, 32], strides = [1, 1]} : vector<32x512xbf16> to vector<32x32xbf16>
    %139 = vector.extract_strided_slice %37 {offsets = [0, 160], sizes = [64, 32], strides = [1, 1]} : vector<64x288xbf16> to vector<64x32xbf16>
    %cst_47 = arith.constant dense<0.000000e+00> : vector<64x32xf32>
    %140 = tpu.matmul %139, %138, %cst_47 {dimension_numbers = #tpu.dot_dimension_numbers<[1], [0], [0], [1], [0, 0, 1, 1], [], []>} : vector<64x32xbf16>, vector<32x32xbf16>, vector<64x32xf32> -> vector<64x32xf32>
    %141 = arith.addf %137, %140 : vector<64x32xf32>
    %142 = vector.extract_strided_slice %36 {offsets = [0, 8], sizes = [32, 32], strides = [1, 1]} : vector<32x512xbf16> to vector<32x32xbf16>
    %143 = vector.extract_strided_slice %37 {offsets = [0, 192], sizes = [64, 32], strides = [1, 1]} : vector<64x288xbf16> to vector<64x32xbf16>
    %cst_48 = arith.constant dense<0.000000e+00> : vector<64x32xf32>
    %144 = tpu.matmul %143, %142, %cst_48 {dimension_numbers = #tpu.dot_dimension_numbers<[1], [0], [0], [1], [0, 0, 1, 1], [], []>} : vector<64x32xbf16>, vector<32x32xbf16>, vector<64x32xf32> -> vector<64x32xf32>
    %145 = arith.addf %141, %144 : vector<64x32xf32>
    %146 = vector.extract_strided_slice %36 {offsets = [0, 40], sizes = [32, 32], strides = [1, 1]} : vector<32x512xbf16> to vector<32x32xbf16>
    %147 = vector.extract_strided_slice %37 {offsets = [0, 224], sizes = [64, 32], strides = [1, 1]} : vector<64x288xbf16> to vector<64x32xbf16>
    %cst_49 = arith.constant dense<0.000000e+00> : vector<64x32xf32>
    %148 = tpu.matmul %147, %146, %cst_49 {dimension_numbers = #tpu.dot_dimension_numbers<[1], [0], [0], [1], [0, 0, 1, 1], [], []>} : vector<64x32xbf16>, vector<32x32xbf16>, vector<64x32xf32> -> vector<64x32xf32>
    %149 = arith.addf %145, %148 : vector<64x32xf32>
    %150 = vector.extract_strided_slice %36 {offsets = [0, 72], sizes = [32, 32], strides = [1, 1]} : vector<32x512xbf16> to vector<32x32xbf16>
    %151 = vector.extract_strided_slice %37 {offsets = [0, 256], sizes = [64, 32], strides = [1, 1]} : vector<64x288xbf16> to vector<64x32xbf16>
    %cst_50 = arith.constant dense<0.000000e+00> : vector<64x32xf32>
    %152 = tpu.matmul %151, %150, %cst_50 {dimension_numbers = #tpu.dot_dimension_numbers<[1], [0], [0], [1], [0, 0, 1, 1], [], []>} : vector<64x32xbf16>, vector<32x32xbf16>, vector<64x32xf32> -> vector<64x32xf32>
    %153 = arith.addf %149, %152 : vector<64x32xf32>
    %154 = vector.broadcast %38 : vector<64x1xf32> to vector<64x32xf32>
    %155 = arith.mulf %153, %154 : vector<64x32xf32>
    %156 = vector.broadcast %39 : vector<64x1xf32> to vector<64x32xf32>
    %157 = arith.addf %155, %156 : vector<64x32xf32>
    %158 = arith.maximumf %118, %157 : vector<64x32xf32>
    %159 = vector.extract_strided_slice %36 {offsets = [0, 320], sizes = [32, 32], strides = [1, 1]} : vector<32x512xbf16> to vector<32x32xbf16>
    %160 = vector.extract_strided_slice %37 {offsets = [0, 0], sizes = [64, 32], strides = [1, 1]} : vector<64x288xbf16> to vector<64x32xbf16>
    %cst_51 = arith.constant dense<0.000000e+00> : vector<64x32xf32>
    %161 = tpu.matmul %160, %159, %cst_51 {dimension_numbers = #tpu.dot_dimension_numbers<[1], [0], [0], [1], [0, 0, 1, 1], [], []>} : vector<64x32xbf16>, vector<32x32xbf16>, vector<64x32xf32> -> vector<64x32xf32>
    %162 = vector.extract_strided_slice %36 {offsets = [0, 352], sizes = [32, 32], strides = [1, 1]} : vector<32x512xbf16> to vector<32x32xbf16>
    %163 = vector.extract_strided_slice %37 {offsets = [0, 32], sizes = [64, 32], strides = [1, 1]} : vector<64x288xbf16> to vector<64x32xbf16>
    %cst_52 = arith.constant dense<0.000000e+00> : vector<64x32xf32>
    %164 = tpu.matmul %163, %162, %cst_52 {dimension_numbers = #tpu.dot_dimension_numbers<[1], [0], [0], [1], [0, 0, 1, 1], [], []>} : vector<64x32xbf16>, vector<32x32xbf16>, vector<64x32xf32> -> vector<64x32xf32>
    %165 = arith.addf %161, %164 : vector<64x32xf32>
    %166 = vector.extract_strided_slice %36 {offsets = [0, 258], sizes = [32, 32], strides = [1, 1]} : vector<32x512xbf16> to vector<32x32xbf16>
    %167 = vector.extract_strided_slice %37 {offsets = [0, 64], sizes = [64, 32], strides = [1, 1]} : vector<64x288xbf16> to vector<64x32xbf16>
    %cst_53 = arith.constant dense<0.000000e+00> : vector<64x32xf32>
    %168 = tpu.matmul %167, %166, %cst_53 {dimension_numbers = #tpu.dot_dimension_numbers<[1], [0], [0], [1], [0, 0, 1, 1], [], []>} : vector<64x32xbf16>, vector<32x32xbf16>, vector<64x32xf32> -> vector<64x32xf32>
    %169 = arith.addf %165, %168 : vector<64x32xf32>
    %170 = vector.extract_strided_slice %36 {offsets = [0, 448], sizes = [32, 32], strides = [1, 1]} : vector<32x512xbf16> to vector<32x32xbf16>
    %171 = vector.extract_strided_slice %37 {offsets = [0, 96], sizes = [64, 32], strides = [1, 1]} : vector<64x288xbf16> to vector<64x32xbf16>
    %cst_54 = arith.constant dense<0.000000e+00> : vector<64x32xf32>
    %172 = tpu.matmul %171, %170, %cst_54 {dimension_numbers = #tpu.dot_dimension_numbers<[1], [0], [0], [1], [0, 0, 1, 1], [], []>} : vector<64x32xbf16>, vector<32x32xbf16>, vector<64x32xf32> -> vector<64x32xf32>
    %173 = arith.addf %169, %172 : vector<64x32xf32>
    %174 = vector.extract_strided_slice %36 {offsets = [0, 480], sizes = [32, 32], strides = [1, 1]} : vector<32x512xbf16> to vector<32x32xbf16>
    %175 = vector.extract_strided_slice %37 {offsets = [0, 128], sizes = [64, 32], strides = [1, 1]} : vector<64x288xbf16> to vector<64x32xbf16>
    %cst_55 = arith.constant dense<0.000000e+00> : vector<64x32xf32>
    %176 = tpu.matmul %175, %174, %cst_55 {dimension_numbers = #tpu.dot_dimension_numbers<[1], [0], [0], [1], [0, 0, 1, 1], [], []>} : vector<64x32xbf16>, vector<32x32xbf16>, vector<64x32xf32> -> vector<64x32xf32>
    %177 = arith.addf %173, %176 : vector<64x32xf32>
    %178 = vector.extract_strided_slice %36 {offsets = [0, 386], sizes = [32, 32], strides = [1, 1]} : vector<32x512xbf16> to vector<32x32xbf16>
    %179 = vector.extract_strided_slice %37 {offsets = [0, 160], sizes = [64, 32], strides = [1, 1]} : vector<64x288xbf16> to vector<64x32xbf16>
    %cst_56 = arith.constant dense<0.000000e+00> : vector<64x32xf32>
    %180 = tpu.matmul %179, %178, %cst_56 {dimension_numbers = #tpu.dot_dimension_numbers<[1], [0], [0], [1], [0, 0, 1, 1], [], []>} : vector<64x32xbf16>, vector<32x32xbf16>, vector<64x32xf32> -> vector<64x32xf32>
    %181 = arith.addf %177, %180 : vector<64x32xf32>
    %182 = vector.extract_strided_slice %36 {offsets = [0, 72], sizes = [32, 32], strides = [1, 1]} : vector<32x512xbf16> to vector<32x32xbf16>
    %183 = vector.extract_strided_slice %37 {offsets = [0, 192], sizes = [64, 32], strides = [1, 1]} : vector<64x288xbf16> to vector<64x32xbf16>
    %cst_57 = arith.constant dense<0.000000e+00> : vector<64x32xf32>
    %184 = tpu.matmul %183, %182, %cst_57 {dimension_numbers = #tpu.dot_dimension_numbers<[1], [0], [0], [1], [0, 0, 1, 1], [], []>} : vector<64x32xbf16>, vector<32x32xbf16>, vector<64x32xf32> -> vector<64x32xf32>
    %185 = arith.addf %181, %184 : vector<64x32xf32>
    %186 = vector.extract_strided_slice %36 {offsets = [0, 104], sizes = [32, 32], strides = [1, 1]} : vector<32x512xbf16> to vector<32x32xbf16>
    %187 = vector.extract_strided_slice %37 {offsets = [0, 224], sizes = [64, 32], strides = [1, 1]} : vector<64x288xbf16> to vector<64x32xbf16>
    %cst_58 = arith.constant dense<0.000000e+00> : vector<64x32xf32>
    %188 = tpu.matmul %187, %186, %cst_58 {dimension_numbers = #tpu.dot_dimension_numbers<[1], [0], [0], [1], [0, 0, 1, 1], [], []>} : vector<64x32xbf16>, vector<32x32xbf16>, vector<64x32xf32> -> vector<64x32xf32>
    %189 = arith.addf %185, %188 : vector<64x32xf32>
    %190 = vector.extract_strided_slice %36 {offsets = [0, 10], sizes = [32, 32], strides = [1, 1]} : vector<32x512xbf16> to vector<32x32xbf16>
    %191 = vector.extract_strided_slice %37 {offsets = [0, 256], sizes = [64, 32], strides = [1, 1]} : vector<64x288xbf16> to vector<64x32xbf16>
    %cst_59 = arith.constant dense<0.000000e+00> : vector<64x32xf32>
    %192 = tpu.matmul %191, %190, %cst_59 {dimension_numbers = #tpu.dot_dimension_numbers<[1], [0], [0], [1], [0, 0, 1, 1], [], []>} : vector<64x32xbf16>, vector<32x32xbf16>, vector<64x32xf32> -> vector<64x32xf32>
    %193 = arith.addf %189, %192 : vector<64x32xf32>
    %194 = vector.broadcast %38 : vector<64x1xf32> to vector<64x32xf32>
    %195 = arith.mulf %193, %194 : vector<64x32xf32>
    %196 = vector.broadcast %39 : vector<64x1xf32> to vector<64x32xf32>
    %197 = arith.addf %195, %196 : vector<64x32xf32>
    %198 = arith.maximumf %158, %197 : vector<64x32xf32>
    %cst_60 = arith.constant 0.000000e+00 : f32
    %199 = vector.broadcast %cst_60 : f32 to vector<64x32xf32>
    %200 = arith.maximumf %198, %199 : vector<64x32xf32>
    %c0_61 = arith.constant 0 : index
    %c0_62 = arith.constant 0 : index
    %c0_63 = arith.constant 0 : index
    %201 = vector.load %arg7[%c0_61, %c0_62, %c0_63] : memref<9x10x64xf32, #tpu.memory_space<vmem>>, vector<1x10x64xf32>
    %202 = vector.shape_cast %201 : vector<1x10x64xf32> to vector<10x64xf32>
    %203 = vector.extract_strided_slice %200 {offsets = [0, 0], sizes = [64, 2], strides = [1, 1]} : vector<64x32xf32> to vector<64x2xf32>
    %cst_64 = arith.constant dense<0.000000e+00> : vector<10x2xf32>
    %204 = tpu.matmul %202, %203, %cst_64 {dimension_numbers = #tpu.dot_dimension_numbers<[1], [0], [0], [1], [0, 0, 1, 1], [], []>} : vector<10x64xf32>, vector<64x2xf32>, vector<10x2xf32> -> vector<10x2xf32>
    %c1_65 = arith.constant 1 : index
    %c0_66 = arith.constant 0 : index
    %c0_67 = arith.constant 0 : index
    %205 = vector.load %arg7[%c1_65, %c0_66, %c0_67] : memref<9x10x64xf32, #tpu.memory_space<vmem>>, vector<1x10x64xf32>
    %206 = vector.shape_cast %205 : vector<1x10x64xf32> to vector<10x64xf32>
    %207 = vector.extract_strided_slice %200 {offsets = [0, 2], sizes = [64, 2], strides = [1, 1]} : vector<64x32xf32> to vector<64x2xf32>
    %cst_68 = arith.constant dense<0.000000e+00> : vector<10x2xf32>
    %208 = tpu.matmul %206, %207, %cst_68 {dimension_numbers = #tpu.dot_dimension_numbers<[1], [0], [0], [1], [0, 0, 1, 1], [], []>} : vector<10x64xf32>, vector<64x2xf32>, vector<10x2xf32> -> vector<10x2xf32>
    %209 = arith.addf %204, %208 : vector<10x2xf32>
    %c2_69 = arith.constant 2 : index
    %c0_70 = arith.constant 0 : index
    %c0_71 = arith.constant 0 : index
    %210 = vector.load %arg7[%c2_69, %c0_70, %c0_71] : memref<9x10x64xf32, #tpu.memory_space<vmem>>, vector<1x10x64xf32>
    %211 = vector.shape_cast %210 : vector<1x10x64xf32> to vector<10x64xf32>
    %212 = vector.extract_strided_slice %200 {offsets = [0, 4], sizes = [64, 2], strides = [1, 1]} : vector<64x32xf32> to vector<64x2xf32>
    %cst_72 = arith.constant dense<0.000000e+00> : vector<10x2xf32>
    %213 = tpu.matmul %211, %212, %cst_72 {dimension_numbers = #tpu.dot_dimension_numbers<[1], [0], [0], [1], [0, 0, 1, 1], [], []>} : vector<10x64xf32>, vector<64x2xf32>, vector<10x2xf32> -> vector<10x2xf32>
    %214 = arith.addf %209, %213 : vector<10x2xf32>
    %c3_73 = arith.constant 3 : index
    %c0_74 = arith.constant 0 : index
    %c0_75 = arith.constant 0 : index
    %215 = vector.load %arg7[%c3_73, %c0_74, %c0_75] : memref<9x10x64xf32, #tpu.memory_space<vmem>>, vector<1x10x64xf32>
    %216 = vector.shape_cast %215 : vector<1x10x64xf32> to vector<10x64xf32>
    %217 = vector.extract_strided_slice %200 {offsets = [0, 8], sizes = [64, 2], strides = [1, 1]} : vector<64x32xf32> to vector<64x2xf32>
    %cst_76 = arith.constant dense<0.000000e+00> : vector<10x2xf32>
    %218 = tpu.matmul %216, %217, %cst_76 {dimension_numbers = #tpu.dot_dimension_numbers<[1], [0], [0], [1], [0, 0, 1, 1], [], []>} : vector<10x64xf32>, vector<64x2xf32>, vector<10x2xf32> -> vector<10x2xf32>
    %219 = arith.addf %214, %218 : vector<10x2xf32>
    %c4 = arith.constant 4 : index
    %c0_77 = arith.constant 0 : index
    %c0_78 = arith.constant 0 : index
    %220 = vector.load %arg7[%c4, %c0_77, %c0_78] : memref<9x10x64xf32, #tpu.memory_space<vmem>>, vector<1x10x64xf32>
    %221 = vector.shape_cast %220 : vector<1x10x64xf32> to vector<10x64xf32>
    %222 = vector.extract_strided_slice %200 {offsets = [0, 10], sizes = [64, 2], strides = [1, 1]} : vector<64x32xf32> to vector<64x2xf32>
    %cst_79 = arith.constant dense<0.000000e+00> : vector<10x2xf32>
    %223 = tpu.matmul %221, %222, %cst_79 {dimension_numbers = #tpu.dot_dimension_numbers<[1], [0], [0], [1], [0, 0, 1, 1], [], []>} : vector<10x64xf32>, vector<64x2xf32>, vector<10x2xf32> -> vector<10x2xf32>
    %224 = arith.addf %219, %223 : vector<10x2xf32>
    %c5 = arith.constant 5 : index
    %c0_80 = arith.constant 0 : index
    %c0_81 = arith.constant 0 : index
    %225 = vector.load %arg7[%c5, %c0_80, %c0_81] : memref<9x10x64xf32, #tpu.memory_space<vmem>>, vector<1x10x64xf32>
    %226 = vector.shape_cast %225 : vector<1x10x64xf32> to vector<10x64xf32>
    %227 = vector.extract_strided_slice %200 {offsets = [0, 12], sizes = [64, 2], strides = [1, 1]} : vector<64x32xf32> to vector<64x2xf32>
    %cst_82 = arith.constant dense<0.000000e+00> : vector<10x2xf32>
    %228 = tpu.matmul %226, %227, %cst_82 {dimension_numbers = #tpu.dot_dimension_numbers<[1], [0], [0], [1], [0, 0, 1, 1], [], []>} : vector<10x64xf32>, vector<64x2xf32>, vector<10x2xf32> -> vector<10x2xf32>
    %229 = arith.addf %224, %228 : vector<10x2xf32>
    %c6 = arith.constant 6 : index
    %c0_83 = arith.constant 0 : index
    %c0_84 = arith.constant 0 : index
    %230 = vector.load %arg7[%c6, %c0_83, %c0_84] : memref<9x10x64xf32, #tpu.memory_space<vmem>>, vector<1x10x64xf32>
    %231 = vector.shape_cast %230 : vector<1x10x64xf32> to vector<10x64xf32>
    %232 = vector.extract_strided_slice %200 {offsets = [0, 16], sizes = [64, 2], strides = [1, 1]} : vector<64x32xf32> to vector<64x2xf32>
    %cst_85 = arith.constant dense<0.000000e+00> : vector<10x2xf32>
    %233 = tpu.matmul %231, %232, %cst_85 {dimension_numbers = #tpu.dot_dimension_numbers<[1], [0], [0], [1], [0, 0, 1, 1], [], []>} : vector<10x64xf32>, vector<64x2xf32>, vector<10x2xf32> -> vector<10x2xf32>
    %234 = arith.addf %229, %233 : vector<10x2xf32>
    %c7 = arith.constant 7 : index
    %c0_86 = arith.constant 0 : index
    %c0_87 = arith.constant 0 : index
    %235 = vector.load %arg7[%c7, %c0_86, %c0_87] : memref<9x10x64xf32, #tpu.memory_space<vmem>>, vector<1x10x64xf32>
    %236 = vector.shape_cast %235 : vector<1x10x64xf32> to vector<10x64xf32>
    %237 = vector.extract_strided_slice %200 {offsets = [0, 18], sizes = [64, 2], strides = [1, 1]} : vector<64x32xf32> to vector<64x2xf32>
    %cst_88 = arith.constant dense<0.000000e+00> : vector<10x2xf32>
    %238 = tpu.matmul %236, %237, %cst_88 {dimension_numbers = #tpu.dot_dimension_numbers<[1], [0], [0], [1], [0, 0, 1, 1], [], []>} : vector<10x64xf32>, vector<64x2xf32>, vector<10x2xf32> -> vector<10x2xf32>
    %239 = arith.addf %234, %238 : vector<10x2xf32>
    %c8 = arith.constant 8 : index
    %c0_89 = arith.constant 0 : index
    %c0_90 = arith.constant 0 : index
    %240 = vector.load %arg7[%c8, %c0_89, %c0_90] : memref<9x10x64xf32, #tpu.memory_space<vmem>>, vector<1x10x64xf32>
    %241 = vector.shape_cast %240 : vector<1x10x64xf32> to vector<10x64xf32>
    %242 = vector.extract_strided_slice %200 {offsets = [0, 20], sizes = [64, 2], strides = [1, 1]} : vector<64x32xf32> to vector<64x2xf32>
    %cst_91 = arith.constant dense<0.000000e+00> : vector<10x2xf32>
    %243 = tpu.matmul %241, %242, %cst_91 {dimension_numbers = #tpu.dot_dimension_numbers<[1], [0], [0], [1], [0, 0, 1, 1], [], []>} : vector<10x64xf32>, vector<64x2xf32>, vector<10x2xf32> -> vector<10x2xf32>
    %244 = arith.addf %239, %243 : vector<10x2xf32>
    %c0_92 = arith.constant 0 : index
    %c0_93 = arith.constant 0 : index
    %245 = vector.load %arg8[%c0_92, %c0_93] : memref<10x1xf32, #tpu.memory_space<vmem>>, vector<10x1xf32>
    %246 = vector.broadcast %245 : vector<10x1xf32> to vector<10x2xf32>
    %247 = arith.addf %244, %246 : vector<10x2xf32>
    %cst_94 = arith.constant 0.000000e+00 : f32
    %248 = vector.broadcast %cst_94 : f32 to vector<10x2xf32>
    %249 = arith.maximumf %247, %248 : vector<10x2xf32>
    %c0_95 = arith.constant 0 : index
    %c0_96 = arith.constant 0 : index
    %250 = vector.load %arg9[%c0_95, %c0_96] : memref<10x2xf32, #tpu.memory_space<vmem>>, vector<10x2xf32>
    %cst_97 = arith.constant dense<0.000000e+00> : vector<2x2xf32>
    %251 = tpu.matmul %249, %250, %cst_97 {dimension_numbers = #tpu.dot_dimension_numbers<[0], [0], [1], [1], [0, 1, 1, 1], [], []>} : vector<10x2xf32>, vector<10x2xf32>, vector<2x2xf32> -> vector<2x2xf32>
    %c0_98 = arith.constant 0 : index
    %c0_99 = arith.constant 0 : index
    %252 = vector.load %arg10[%c0_98, %c0_99] : memref<1x2xf32, #tpu.memory_space<vmem>>, vector<1x2xf32>
    %253 = vector.broadcast %252 : vector<1x2xf32> to vector<2x2xf32>
    %254 = arith.addf %251, %253 : vector<2x2xf32>
    %c0_100 = arith.constant 0 : index
    %c0_101 = arith.constant 0 : index
    %255 = vector.load %arg11[%c0_100, %c0_101] : memref<2x2xf32, #tpu.memory_space<vmem>>, vector<2x2xf32>
    tpu.vector_store %arg11[%c0_100, %c0_101], %254 {strides = array<i32>} : memref<2x2xf32, #tpu.memory_space<vmem>>, vector<2x2xf32>,
    return
  }
}

</mosaic_0001>

<llo_original>
// kernel: model3_forward.2
$region0: #{model3_forward.2}
  #allocation0 [shape = 'u32[]', space=smem, size = 0x4, offset = 0x4, fixed_abs, tag = 'smem constant byte address 0x4 - core index']
  #allocation1 [shape = 'u32[72,128]{1,0:T(1,128)}', space=vmem, size = 0x9000, scoped, tag = 'internal scratch']
  %s0 = inlined_call_operand.vmem [shape: bf16[4,27,6144], index: 0, kind: input, shape index: {}]
  %s1 = inlined_call_operand.vmem [shape: bf16[16,27], index: 1, kind: input, shape index: {}]
  %s2 = inlined_call_operand.vmem [shape: f32[16,1], index: 2, kind: input, shape index: {}]
  %s3 = inlined_call_operand.vmem [shape: f32[16,1], index: 3, kind: input, shape index: {}]
  %s4 = inlined_call_operand.vmem [shape: bf16[16,6144], index: 4, kind: output, shape index: {}]
  %s5 = sld [smem:[#allocation0]]
  $region91: #{model3_forward.2} parent=0
    _
  %s7 = ssub.s32 1, %s5
  %s8 = scalar_select 0, %s7, %s5
  $region1: #{model3_forward.2} parent=0
    #allocation2 [shape = 'u8[786432]{0}', space=vmem, size = 0xc0000, scoped, tag = 'input window, operand 0']
    #allocation3 [shape = 'u8[98304]{0}', space=vmem, size = 0x18000, scoped, tag = 'output window, operand 0']
    loop: start=0, step=1, limit=6
    $region2: #{model3_forward.2} parent=1 // loop_pre_header
      _
    $region3: #{model3_forward.2} parent=1 // loop_header
      %s10 = sphi 0, %s14
      %p11 = scmp.ge.s32.totalorder %s10, 6
      %s20 = sphi 0, %s22
      %s23 = sphi 0, %s20
      %s24 = sphi 0, %s23
      %s40 = sphi 0, %s24
      %s44 = sphi 0, %s44
      %s46 = sphi 0, %s44
      %s47 = sphi 0, %s46
      %s61 = sphi 0, %s47
      %s65 = sphi 0, %s65
      %s67 = sphi 0, %s65
      %s68 = sphi 0, %s67
      %s82 = sphi 0, %s68
      %s86 = sphi 0, %s86
      %s88 = sphi 0, %s86
      %s89 = sphi 0, %s88
      %s103 = sphi 0, %s89
      %s109 = sphi 0, %s111
      %s112 = sphi 0, %s109
      %s113 = sphi 0, %s112
      %s129 = sphi 0, %s113
    $region4: #{model3_forward.2} parent=1 // loop_header_branch
      %13 = sbr.rel (%p11) target = $region8
    $region5: #{model3_forward.2} parent=1 // loop_body
      %s15 = ssub.s32 %s10, 1
      %s16 = ssub.s32 %s10, 2
      %s17 = sadd.s32 %s10, 1
      %s18 = ssub.s32 %s10, %s17
      %p19 = scmp.eq.s32.totalorder %s18, 0
      %s21 = sadd.s32 %s20, 1
      %s22 = scalar_select %p19, %s20, %s21
      %p25 = pneg %p19
      %p26 = scmp.eq.s32.totalorder %s10, 3
      %p27 = por %p25, %p26
      %p28 = scmp.ne.s32.totalorder %s20, %s23
      %p29 = scmp.eq.s32.totalorder %s10, 0
      %p30 = por %p28, %p29
      %p31 = scmp.ne.s32.totalorder %s20, %s23
      %p32 = scmp.eq.s32.totalorder %s15, 3
      %p33 = por %p31, %p32
      %p34 = scmp.ne.s32.totalorder %s23, %s24
      %p35 = scmp.eq.s32.totalorder %s15, 0
      %p36 = por %p34, %p35
      %p37 = scmp.ne.s32.totalorder %s23, %s24
      %p38 = scmp.eq.s32.totalorder %s16, 3
      %p39 = por %p37, %p38
      %p41 = scmp.ne.s32.totalorder %s24, %s40
      %p42 = scmp.eq.s32.totalorder %s16, 0
      %p43 = por %p41, %p42
      %s45 = sadd.s32 %s44, 1
      %p48 = scmp.eq.s32.totalorder %s10, 3
      %p49 = scmp.ne.s32.totalorder %s44, %s46
      %p50 = scmp.eq.s32.totalorder %s10, 0
      %p51 = por %p49, %p50
      %p52 = scmp.ne.s32.totalorder %s44, %s46
      %p53 = scmp.eq.s32.totalorder %s15, 3
      %p54 = por %p52, %p53
      %p55 = scmp.ne.s32.totalorder %s46, %s47
      %p56 = scmp.eq.s32.totalorder %s15, 0
      %p57 = por %p55, %p56
      %p58 = scmp.ne.s32.totalorder %s46, %s47
      %p59 = scmp.eq.s32.totalorder %s16, 3
      %p60 = por %p58, %p59
      %p62 = scmp.ne.s32.totalorder %s47, %s61
      %p63 = scmp.eq.s32.totalorder %s16, 0
      %p64 = por %p62, %p63
      %s66 = sadd.s32 %s65, 1
      %p69 = scmp.eq.s32.totalorder %s10, 3
      %p70 = scmp.ne.s32.totalorder %s65, %s67
      %p71 = scmp.eq.s32.totalorder %s10, 0
      %p72 = por %p70, %p71
      %p73 = scmp.ne.s32.totalorder %s65, %s67
      %p74 = scmp.eq.s32.totalorder %s15, 3
      %p75 = por %p73, %p74
      %p76 = scmp.ne.s32.totalorder %s67, %s68
      %p77 = scmp.eq.s32.totalorder %s15, 0
      %p78 = por %p76, %p77
      %p79 = scmp.ne.s32.totalorder %s67, %s68
      %p80 = scmp.eq.s32.totalorder %s16, 3
      %p81 = por %p79, %p80
      %p83 = scmp.ne.s32.totalorder %s68, %s82
      %p84 = scmp.eq.s32.totalorder %s16, 0
      %p85 = por %p83, %p84
      %s87 = sadd.s32 %s86, 1
      %p90 = scmp.eq.s32.totalorder %s10, 3
      %p91 = scmp.ne.s32.totalorder %s86, %s88
      %p92 = scmp.eq.s32.totalorder %s10, 0
      %p93 = por %p91, %p92
      %p94 = scmp.ne.s32.totalorder %s86, %s88
      %p95 = scmp.eq.s32.totalorder %s15, 3
      %p96 = por %p94, %p95
      %p97 = scmp.ne.s32.totalorder %s88, %s89
      %p98 = scmp.eq.s32.totalorder %s15, 0
      %p99 = por %p97, %p98
      %p100 = scmp.ne.s32.totalorder %s88, %s89
      %p101 = scmp.eq.s32.totalorder %s16, 3
      %p102 = por %p100, %p101
      %p104 = scmp.ne.s32.totalorder %s89, %s103
      %p105 = scmp.eq.s32.totalorder %s16, 0
      %p106 = por %p104, %p105
      %s107 = ssub.s32 %s10, %s17
      %p108 = scmp.eq.s32.totalorder %s107, 0
      %s110 = sadd.s32 %s109, 1
      %s111 = scalar_select %p108, %s109, %s110
      %p114 = pneg %p108
      %p115 = scmp.eq.s32.totalorder %s10, 3
      %p116 = por %p114, %p115
      %p117 = scmp.ne.s32.totalorder %s109, %s112
      %p118 = scmp.eq.s32.totalorder %s10, 0
      %p119 = por %p117, %p118
      %p120 = scmp.ne.s32.totalorder %s109, %s112
      %p121 = scmp.eq.s32.totalorder %s15, 3
      %p122 = por %p120, %p121
      %p123 = scmp.ne.s32.totalorder %s112, %s113
      %p124 = scmp.eq.s32.totalorder %s15, 0
      %p125 = por %p123, %p124
      %p126 = scmp.ne.s32.totalorder %s112, %s113
      %p127 = scmp.eq.s32.totalorder %s16, 3
      %p128 = por %p126, %p127
      %p130 = scmp.ne.s32.totalorder %s113, %s129
      %p131 = scmp.eq.s32.totalorder %s16, 0
      %p132 = por %p130, %p131
      %p133 = scmp.le.s32.totalorder 1, %s10
      %p134 = scmp.lt.s32.totalorder %s10, 5
      %p135 = pnand %p133, %p134
      %p136 = pneg %p135
      // Predicated region
      $region9: #{model3_forward.2} parent=5 // pred_check
        _
      $region10: #{model3_forward.2} parent=5 // pred_check_branch
        %138 = sbr.rel (%p135) target = $region12
      $region11: #{model3_forward.2} parent=5 // pred_region
        %s139 = ssub.s32 %s10, 1
        // Predicated region
        $region13: #{model3_forward.2} parent=11 // pred_check
          %p140 = pneg %p57
        $region14: #{model3_forward.2} parent=11 // pred_check_branch
          %142 = sbr.rel (%p140) target = $region16
        $region15: #{model3_forward.2} parent=11 // pred_region
          _
        $region16: #{model3_forward.2} parent=11 // pred_fallthru
          _
        // Predicated region
        $region17: #{model3_forward.2} parent=11 // pred_check
          %p143 = pneg %p78
        $region18: #{model3_forward.2} parent=11 // pred_check_branch
          %145 = sbr.rel (%p143) target = $region20
        $region19: #{model3_forward.2} parent=11 // pred_region
          _
        $region20: #{model3_forward.2} parent=11 // pred_fallthru
          _
        // Predicated region
        $region21: #{model3_forward.2} parent=11 // pred_check
          %p146 = pneg %p99
        $region22: #{model3_forward.2} parent=11 // pred_check_branch
          %148 = sbr.rel (%p146) target = $region24
        $region23: #{model3_forward.2} parent=11 // pred_region
          _
        $region24: #{model3_forward.2} parent=11 // pred_fallthru
          _
      $region12: #{model3_forward.2} parent=5 // pred_fallthru
        _
      %p149 = scmp.lt.s32.totalorder %s10, 4
      // Predicated region
      $region25: #{model3_forward.2} parent=5 // pred_check
        %p150 = pneg %p149
      $region26: #{model3_forward.2} parent=5 // pred_check_branch
        %152 = sbr.rel (%p150) target = $region28
      $region27: #{model3_forward.2} parent=5 // pred_region
        // Predicated region
        $region29: #{model3_forward.2} parent=27 // pred_check
          %p153 = pneg %p30
        $region30: #{model3_forward.2} parent=27 // pred_check_branch
          %155 = sbr.rel (%p153) target = $region32
        $region31: #{model3_forward.2} parent=27 // pred_region
          %s156 = sand.u32 %s20, 1
          %s157 = sand.u32 %s20, 1
          %s158 = smul.addr %s157, 768
          %s159 = scalar_lea.vmem [#allocation2], %s158
          %s160 = smul.u32 12, %s10
          %s161 = smul.addr %s160, 4
          %s162 = scalar_lea.vmem %s0, %s161
          // Predicated region
          $region33: #{model3_forward.2} parent=31 // pred_check
            _
          $region34: #{model3_forward.2} parent=31 // pred_check_branch
            %164 = sbr.rel (0) target = $region36
          $region35: #{model3_forward.2} parent=31 // pred_region
            // Predicated region
            $region37: #{model3_forward.2} parent=35 // pred_check
              _
            $region38: #{model3_forward.2} parent=35 // pred_check_branch
              %166 = sbr.rel (0) target = $region40
            $region39: #{model3_forward.2} parent=35 // pred_region
              loop: start=0, step=1, limit=1
              $region41: #{model3_forward.2} parent=39 // loop_pre_header
                _
              $region42: #{model3_forward.2} parent=39 // loop_header
                %s168 = sphi 0, %s172
                %p169 = scmp.ge.s32.totalorder %s168, 1
                %s173 = sphi %s162, %s162
                %s174 = sphi %s159, %s159
              $region43: #{model3_forward.2} parent=39 // loop_header_branch
                %171 = sbr.rel (%p169) target = $region47
              $region44: #{model3_forward.2} parent=39 // loop_body
                %v175 = vld [vmem:[%s173] sm:$0xff]
                %176 = vst [vmem:[%s174] sm:$0xff] %v175
                %v177 = vld [vmem:[%s173 + $0x8] sm:$0xff]
                %178 = vst [vmem:[%s174 + $0x8] sm:$0xff] %v177
                %v179 = vld [vmem:[%s173 + $0x10] sm:$0xff]
                %180 = vst [vmem:[%s174 + $0x10] sm:$0xff] %v179
                %v181 = vld [vmem:[%s173 + $0x18] sm:$0xff]
                %182 = vst [vmem:[%s174 + $0x18] sm:$0xff] %v181
                %v183 = vld [vmem:[%s173 + $0x20] sm:$0xff]
                %184 = vst [vmem:[%s174 + $0x20] sm:$0xff] %v183
                %v185 = vld [vmem:[%s173 + $0x28] sm:$0xff]
                %186 = vst [vmem:[%s174 + $0x28] sm:$0xff] %v185
                %v187 = vld [vmem:[%s173 + $0xc0] sm:$0xff]
                %188 = vst [vmem:[%s174 + $0x30] sm:$0xff] %v187
                %v189 = vld [vmem:[%s173 + $0xc8] sm:$0xff]
                %190 = vst [vmem:[%s174 + $0x38] sm:$0xff] %v189
                %v191 = vld [vmem:[%s173 + $0xd0] sm:$0xff]
                %192 = vst [vmem:[%s174 + $0x40] sm:$0xff] %v191
                %v193 = vld [vmem:[%s173 + $0xd8] sm:$0xff]
                %194 = vst [vmem:[%s174 + $0x48] sm:$0xff] %v193
                %v195 = vld [vmem:[%s173 + $0xe0] sm:$0xff]
                %196 = vst [vmem:[%s174 + $0x50] sm:$0xff] %v195
                %v197 = vld [vmem:[%s173 + $0xe8] sm:$0xff]
                %198 = vst [vmem:[%s174 + $0x58] sm:$0xff] %v197
                %v199 = vld [vmem:[%s173 + $0x180] sm:$0xff]
                %200 = vst [vmem:[%s174 + $0x60] sm:$0xff] %v199
                %v201 = vld [vmem:[%s173 + $0x188] sm:$0xff]
                %202 = vst [vmem:[%s174 + $0x68] sm:$0xff] %v201
                %v203 = vld [vmem:[%s173 + $0x190] sm:$0xff]
                %204 = vst [vmem:[%s174 + $0x70] sm:$0xff] %v203
                %v205 = vld [vmem:[%s173 + $0x198] sm:$0xff]
                %206 = vst [vmem:[%s174 + $0x78] sm:$0xff] %v205
                %v207 = vld [vmem:[%s173 + $0x1a0] sm:$0xff]
                %208 = vst [vmem:[%s174 + $0x80] sm:$0xff] %v207
                %v209 = vld [vmem:[%s173 + $0x1a8] sm:$0xff]
                %210 = vst [vmem:[%s174 + $0x88] sm:$0xff] %v209
                %v211 = vld [vmem:[%s173 + $0x240] sm:$0xff]
                %212 = vst [vmem:[%s174 + $0x90] sm:$0xff] %v211
                %v213 = vld [vmem:[%s173 + $0x248] sm:$0xff]
                %214 = vst [vmem:[%s174 + $0x98] sm:$0xff] %v213
                %v215 = vld [vmem:[%s173 + $0x250] sm:$0xff]
                %216 = vst [vmem:[%s174 + $0xa0] sm:$0xff] %v215
                %v217 = vld [vmem:[%s173 + $0x258] sm:$0xff]
                %218 = vst [vmem:[%s174 + $0xa8] sm:$0xff] %v217
                %v219 = vld [vmem:[%s173 + $0x260] sm:$0xff]
                %220 = vst [vmem:[%s174 + $0xb0] sm:$0xff] %v219
                %v221 = vld [vmem:[%s173 + $0x268] sm:$0xff]
                %222 = vst [vmem:[%s174 + $0xb8] sm:$0xff] %v221
                %v223 = vld [vmem:[%s173 + $0x300] sm:$0xff]
                %224 = vst [vmem:[%s174 + $0xc0] sm:$0xff] %v223
                %v225 = vld [vmem:[%s173 + $0x308] sm:$0xff]
                %226 = vst [vmem:[%s174 + $0xc8] sm:$0xff] %v225
                %v227 = vld [vmem:[%s173 + $0x310] sm:$0xff]
                %228 = vst [vmem:[%s174 + $0xd0] sm:$0xff] %v227
                %v229 = vld [vmem:[%s173 + $0x318] sm:$0xff]
                %230 = vst [vmem:[%s174 + $0xd8] sm:$0xff] %v229
                %v231 = vld [vmem:[%s173 + $0x320] sm:$0xff]
                %232 = vst [vmem:[%s174 + $0xe0] sm:$0xff] %v231
                %v233 = vld [vmem:[%s173 + $0x328] sm:$0xff]
                %234 = vst [vmem:[%s174 + $0xe8] sm:$0xff] %v233
                %v235 = vld [vmem:[%s173 + $0x3c0] sm:$0xff]
                %236 = vst [vmem:[%s174 + $0xf0] sm:$0xff] %v235
                %v237 = vld [vmem:[%s173 + $0x3c8] sm:$0xff]
                %238 = vst [vmem:[%s174 + $0xf8] sm:$0xff] %v237
                %v239 = vld [vmem:[%s173 + $0x3d0] sm:$0xff]
                %240 = vst [vmem:[%s174 + $0x100] sm:$0xff] %v239
                %v241 = vld [vmem:[%s173 + $0x3d8] sm:$0xff]
                %242 = vst [vmem:[%s174 + $0x108] sm:$0xff] %v241
                %v243 = vld [vmem:[%s173 + $0x3e0] sm:$0xff]
                %244 = vst [vmem:[%s174 + $0x110] sm:$0xff] %v243
                %v245 = vld [vmem:[%s173 + $0x3e8] sm:$0xff]
                %246 = vst [vmem:[%s174 + $0x118] sm:$0xff] %v245
                %v247 = vld [vmem:[%s173 + $0x480] sm:$0xff]
                %248 = vst [vmem:[%s174 + $0x120] sm:$0xff] %v247
                %v249 = vld [vmem:[%s173 + $0x488] sm:$0xff]
                %250 = vst [vmem:[%s174 + $0x128] sm:$0xff] %v249
                %v251 = vld [vmem:[%s173 + $0x490] sm:$0xff]
                %252 = vst [vmem:[%s174 + $0x130] sm:$0xff] %v251
                %v253 = vld [vmem:[%s173 + $0x498] sm:$0xff]
                %254 = vst [vmem:[%s174 + $0x138] sm:$0xff] %v253
                %v255 = vld [vmem:[%s173 + $0x4a0] sm:$0xff]
                %256 = vst [vmem:[%s174 + $0x140] sm:$0xff] %v255
                %v257 = vld [vmem:[%s173 + $0x4a8] sm:$0xff]
                %258 = vst [vmem:[%s174 + $0x148] sm:$0xff] %v257
                %v259 = vld [vmem:[%s173 + $0x540] sm:$0xff]
                %260 = vst [vmem:[%s174 + $0x150] sm:$0xff] %v259
                %v261 = vld [vmem:[%s173 + $0x548] sm:$0xff]
                %262 = vst [vmem:[%s174 + $0x158] sm:$0xff] %v261
                %v263 = vld [vmem:[%s173 + $0x550] sm:$0xff]
                %264 = vst [vmem:[%s174 + $0x160] sm:$0xff] %v263
                %v265 = vld [vmem:[%s173 + $0x558] sm:$0xff]
                %266 = vst [vmem:[%s174 + $0x168] sm:$0xff] %v265
                %v267 = vld [vmem:[%s173 + $0x560] sm:$0xff]
                %268 = vst [vmem:[%s174 + $0x170] sm:$0xff] %v267
                %v269 = vld [vmem:[%s173 + $0x568] sm:$0xff]
                %270 = vst [vmem:[%s174 + $0x178] sm:$0xff] %v269
                %v271 = vld [vmem:[%s173 + $0x600] sm:$0xff]
                %272 = vst [vmem:[%s174 + $0x180] sm:$0xff] %v271
                %v273 = vld [vmem:[%s173 + $0x608] sm:$0xff]
                %274 = vst [vmem:[%s174 + $0x188] sm:$0xff] %v273
                %v275 = vld [vmem:[%s173 + $0x610] sm:$0xff]
                %276 = vst [vmem:[%s174 + $0x190] sm:$0xff] %v275
                %v277 = vld [vmem:[%s173 + $0x618] sm:$0xff]
                %278 = vst [vmem:[%s174 + $0x198] sm:$0xff] %v277
                %v279 = vld [vmem:[%s173 + $0x620] sm:$0xff]
                %280 = vst [vmem:[%s174 + $0x1a0] sm:$0xff] %v279
                %v281 = vld [vmem:[%s173 + $0x628] sm:$0xff]
                %282 = vst [vmem:[%s174 + $0x1a8] sm:$0xff] %v281
                %v283 = vld [vmem:[%s173 + $0x6c0] sm:$0xff]
                %284 = vst [vmem:[%s174 + $0x1b0] sm:$0xff] %v283
                %v285 = vld [vmem:[%s173 + $0x6c8] sm:$0xff]
                %286 = vst [vmem:[%s174 + $0x1b8] sm:$0xff] %v285
                %v287 = vld [vmem:[%s173 + $0x6d0] sm:$0xff]
                %288 = vst [vmem:[%s174 + $0x1c0] sm:$0xff] %v287
                %v289 = vld [vmem:[%s173 + $0x6d8] sm:$0xff]
                %290 = vst [vmem:[%s174 + $0x1c8] sm:$0xff] %v289
                %v291 = vld [vmem:[%s173 + $0x6e0] sm:$0xff]
                %292 = vst [vmem:[%s174 + $0x1d0] sm:$0xff] %v291
                %v293 = vld [vmem:[%s173 + $0x6e8] sm:$0xff]
                %294 = vst [vmem:[%s174 + $0x1d8] sm:$0xff] %v293
                %v295 = vld [vmem:[%s173 + $0x780] sm:$0xff]
                %296 = vst [vmem:[%s174 + $0x1e0] sm:$0xff] %v295
                %v297 = vld [vmem:[%s173 + $0x788] sm:$0xff]
                %298 = vst [vmem:[%s174 + $0x1e8] sm:$0xff] %v297
                %v299 = vld [vmem:[%s173 + $0x790] sm:$0xff]
                %300 = vst [vmem:[%s174 + $0x1f0] sm:$0xff] %v299
                %v301 = vld [vmem:[%s173 + $0x798] sm:$0xff]
                %302 = vst [vmem:[%s174 + $0x1f8] sm:$0xff] %v301
                %v303 = vld [vmem:[%s173 + $0x7a0] sm:$0xff]
                %304 = vst [vmem:[%s174 + $0x200] sm:$0xff] %v303
                %v305 = vld [vmem:[%s173 + $0x7a8] sm:$0xff]
                %306 = vst [vmem:[%s174 + $0x208] sm:$0xff] %v305
                %v307 = vld [vmem:[%s173 + $0x840] sm:$0xff]
                %308 = vst [vmem:[%s174 + $0x210] sm:$0xff] %v307
                %v309 = vld [vmem:[%s173 + $0x848] sm:$0xff]
                %310 = vst [vmem:[%s174 + $0x218] sm:$0xff] %v309
                %v311 = vld [vmem:[%s173 + $0x850] sm:$0xff]
                %312 = vst [vmem:[%s174 + $0x220] sm:$0xff] %v311
                %v313 = vld [vmem:[%s173 + $0x858] sm:$0xff]
                %314 = vst [vmem:[%s174 + $0x228] sm:$0xff] %v313
                %v315 = vld [vmem:[%s173 + $0x860] sm:$0xff]
                %316 = vst [vmem:[%s174 + $0x230] sm:$0xff] %v315
                %v317 = vld [vmem:[%s173 + $0x868] sm:$0xff]
                %318 = vst [vmem:[%s174 + $0x238] sm:$0xff] %v317
                %v319 = vld [vmem:[%s173 + $0x900] sm:$0xff]
                %320 = vst [vmem:[%s174 + $0x240] sm:$0xff] %v319
                %v321 = vld [vmem:[%s173 + $0x908] sm:$0xff]
                %322 = vst [vmem:[%s174 + $0x248] sm:$0xff] %v321
                %v323 = vld [vmem:[%s173 + $0x910] sm:$0xff]
                %324 = vst [vmem:[%s174 + $0x250] sm:$0xff] %v323
                %v325 = vld [vmem:[%s173 + $0x918] sm:$0xff]
                %326 = vst [vmem:[%s174 + $0x258] sm:$0xff] %v325
                %v327 = vld [vmem:[%s173 + $0x920] sm:$0xff]
                %328 = vst [vmem:[%s174 + $0x260] sm:$0xff] %v327
                %v329 = vld [vmem:[%s173 + $0x928] sm:$0xff]
                %330 = vst [vmem:[%s174 + $0x268] sm:$0xff] %v329
                %v331 = vld [vmem:[%s173 + $0x9c0] sm:$0xff]
                %332 = vst [vmem:[%s174 + $0x270] sm:$0xff] %v331
                %v333 = vld [vmem:[%s173 + $0x9c8] sm:$0xff]
                %334 = vst [vmem:[%s174 + $0x278] sm:$0xff] %v333
                %v335 = vld [vmem:[%s173 + $0x9d0] sm:$0xff]
                %336 = vst [vmem:[%s174 + $0x280] sm:$0xff] %v335
                %v337 = vld [vmem:[%s173 + $0x9d8] sm:$0xff]
                %338 = vst [vmem:[%s174 + $0x288] sm:$0xff] %v337
                %v339 = vld [vmem:[%s173 + $0x9e0] sm:$0xff]
                %340 = vst [vmem:[%s174 + $0x290] sm:$0xff] %v339
                %v341 = vld [vmem:[%s173 + $0x9e8] sm:$0xff]
                %342 = vst [vmem:[%s174 + $0x298] sm:$0xff] %v341
                %v343 = vld [vmem:[%s173 + $0xa80] sm:$0xff]
                %344 = vst [vmem:[%s174 + $0x2a0] sm:$0xff] %v343
                %v345 = vld [vmem:[%s173 + $0xa88] sm:$0xff]
                %346 = vst [vmem:[%s174 + $0x2a8] sm:$0xff] %v345
                %v347 = vld [vmem:[%s173 + $0xa90] sm:$0xff]
                %348 = vst [vmem:[%s174 + $0x2b0] sm:$0xff] %v347
                %v349 = vld [vmem:[%s173 + $0xa98] sm:$0xff]
                %350 = vst [vmem:[%s174 + $0x2b8] sm:$0xff] %v349
                %v351 = vld [vmem:[%s173 + $0xaa0] sm:$0xff]
                %352 = vst [vmem:[%s174 + $0x2c0] sm:$0xff] %v351
                %v353 = vld [vmem:[%s173 + $0xaa8] sm:$0xff]
                %354 = vst [vmem:[%s174 + $0x2c8] sm:$0xff] %v353
                %v355 = vld [vmem:[%s173 + $0xb40] sm:$0xff]
                %356 = vst [vmem:[%s174 + $0x2d0] sm:$0xff] %v355
                %v357 = vld [vmem:[%s173 + $0xb48] sm:$0xff]
                %358 = vst [vmem:[%s174 + $0x2d8] sm:$0xff] %v357
                %v359 = vld [vmem:[%s173 + $0xb50] sm:$0xff]
                %360 = vst [vmem:[%s174 + $0x2e0] sm:$0xff] %v359
                %v361 = vld [vmem:[%s173 + $0xb58] sm:$0xff]
                %362 = vst [vmem:[%s174 + $0x2e8] sm:$0xff] %v361
                %v363 = vld [vmem:[%s173 + $0xb60] sm:$0xff]
                %364 = vst [vmem:[%s174 + $0x2f0] sm:$0xff] %v363
                %v365 = vld [vmem:[%s173 + $0xb68] sm:$0xff]
                %366 = vst [vmem:[%s174 + $0x2f8] sm:$0xff] %v365
              $region45: #{model3_forward.2} parent=39 // loop_footer
                %s172 = sadd.s32 1, %s168
              $region46: #{model3_forward.2} parent=39 // loop_footer_branch
                %167 = sbr.rel target = $region42
              $region47: #{model3_forward.2} parent=39 // loop_exit
                _
            $region40: #{model3_forward.2} parent=35 // pred_fallthru
              _
            // Predicated region
            $region48: #{model3_forward.2} parent=35 // pred_check
              _
            $region49: #{model3_forward.2} parent=35 // pred_check_branch
              %368 = sbr.rel target = $region51
            $region50: #{model3_forward.2} parent=35 // pred_region
              _
            $region51: #{model3_forward.2} parent=35 // pred_fallthru
              _
          $region36: #{model3_forward.2} parent=31 // pred_fallthru
            _
          %369 = vnop
        $region32: #{model3_forward.2} parent=27 // pred_fallthru
          _
      $region28: #{model3_forward.2} parent=5 // pred_fallthru
        _
      %p370 = scmp.le.s32.totalorder 1, %s10
      %p371 = scmp.lt.s32.totalorder %s10, 5
      %p372 = pnand %p370, %p371
      %p373 = pneg %p372
      // Predicated region
      $region52: #{model3_forward.2} parent=5 // pred_check
        _
      $region53: #{model3_forward.2} parent=5 // pred_check_branch
        %375 = sbr.rel (%p372) target = $region55
      $region54: #{model3_forward.2} parent=5 // pred_region
        %s376 = ssub.s32 %s10, 1
        %s377 = sand.u32 %s23, 1
        %s378 = sand.u32 %s23, 1
        %s379 = smul.addr %s378, 768
        %s380 = scalar_lea.vmem [#allocation2], %s379
        // Predicated region
        $region56: #{model3_forward.2} parent=54 // pred_check
          %p381 = pneg %p36
        $region57: #{model3_forward.2} parent=54 // pred_check_branch
          %383 = sbr.rel (%p381) target = $region59
        $region58: #{model3_forward.2} parent=54 // pred_region
          _
        $region59: #{model3_forward.2} parent=54 // pred_fallthru
          _
        %s384 = sand.u32 %s23, 1
        %s385 = sand.u32 %s23, 1
        %s386 = smul.addr %s385, 768
        %s387 = scalar_lea.vmem [#allocation2], %s386
        %p388 = pneg %p36
        %p389 = pneg %p33
        %p390 = pneg %p57
        %p391 = pneg %p54
        %p392 = pneg %p78
        %p393 = pneg %p75
        %p394 = pneg %p99
        %p395 = pneg %p96
        %p396 = pneg %p125
        %p397 = pneg %p122
        %s398 = sand.u32 %s112, 1
        %s399 = sand.u32 %s112, 1
        %s400 = smul.addr %s399, 96
        %s401 = scalar_lea.vmem [#allocation3], %s400
        %s402 = smul.u32 12, %s15
        %s403 = smul.u32 12, %s15
        %v405 = vld [vmem:[%s1] sm:$0xf]
        %v406 = vld [vmem:[%s1 + $0x4] sm:$0xf]
        %v407 = vld [vmem:[%s2] sm:$0xff]
        %v408 = vld [vmem:[%s2 + $0x8] sm:$0xff]
        %v409 = vld [vmem:[%s3] sm:$0xff]
        %v410 = vld [vmem:[%s3 + $0x8] sm:$0xff]
        %v411 = vld [vmem:[%s380] sm:$0xff]
        %v412 = vld [vmem:[%s380 + $0x8] sm:$0xff]
        %v413 = vld [vmem:[%s380 + $0x10] sm:$0xff]
        %v414 = vld [vmem:[%s380 + $0x18] sm:$0xff]
        %v415 = vld [vmem:[%s380 + $0x20] sm:$0xff]
        %v416 = vld [vmem:[%s380 + $0x28] sm:$0xff]
        %v417 = vld [vmem:[%s380 + $0x30] sm:$0xff]
        %v418 = vld [vmem:[%s380 + $0x38] sm:$0xff]
        %v419 = vld [vmem:[%s380 + $0x40] sm:$0xff]
        %v420 = vld [vmem:[%s380 + $0x48] sm:$0xff]
        %v421 = vld [vmem:[%s380 + $0x50] sm:$0xff]
        %v422 = vld [vmem:[%s380 + $0x58] sm:$0xff]
        %v423 = vld [vmem:[%s380 + $0x60] sm:$0xff]
        %v424 = vld [vmem:[%s380 + $0x68] sm:$0xff]
        %v425 = vld [vmem:[%s380 + $0x70] sm:$0xff]
        %v426 = vld [vmem:[%s380 + $0x78] sm:$0xff]
        %v427 = vld [vmem:[%s380 + $0x80] sm:$0xff]
        %v428 = vld [vmem:[%s380 + $0x88] sm:$0xff]
        %v429 = vld [vmem:[%s380 + $0x90] sm:$0x33]
        %v430 = vld [vmem:[%s380 + $0x98] sm:$0x33]
        %v431 = vld [vmem:[%s380 + $0xa0] sm:$0x33]
        %v432 = vld [vmem:[%s380 + $0xa8] sm:$0x33]
        %v433 = vld [vmem:[%s380 + $0xb0] sm:$0x33]
        %v434 = vld [vmem:[%s380 + $0xb8] sm:$0x33]
        %v437 = vunpack.c.l.b16 %v405
        %v438 = vunpack.c.l.b16 %v406
        %v439 = vpack.c.b16 %v438, %v437
        %v464 = vunpack.c.l.b16 %v411
        %v465 = vunpack.c.h.b16 %v411
        %v466 = vunpack.c.l.b16 %v412
        %v467 = vunpack.c.h.b16 %v412
        %v468 = vunpack.c.l.b16 %v413
        %v469 = vunpack.c.h.b16 %v413
        %v470 = vunpack.c.l.b16 %v414
        %v471 = vunpack.c.h.b16 %v414
        %v472 = vunpack.c.l.b16 %v415
        %v473 = vunpack.c.h.b16 %v415
        %v474 = vunpack.c.l.b16 %v416
        %v475 = vunpack.c.h.b16 %v416
        %v476 = vunpack.c.l.b16 %v417
        %v477 = vunpack.c.h.b16 %v417
        %v478 = vunpack.c.l.b16 %v418
        %v479 = vunpack.c.h.b16 %v418
        %v480 = vunpack.c.l.b16 %v419
        %v481 = vunpack.c.h.b16 %v419
        %v482 = vunpack.c.l.b16 %v420
        %v483 = vunpack.c.h.b16 %v420
        %v484 = vunpack.c.l.b16 %v421
        %v485 = vunpack.c.h.b16 %v421
        %v486 = vunpack.c.l.b16 %v422
        %v487 = vunpack.c.h.b16 %v422
        %v488 = vunpack.c.l.b16 %v423
        %v489 = vunpack.c.h.b16 %v423
        %v490 = vunpack.c.l.b16 %v424
        %v491 = vunpack.c.h.b16 %v424
        %v492 = vunpack.c.l.b16 %v425
        %v493 = vunpack.c.h.b16 %v425
        %v494 = vunpack.c.l.b16 %v426
        %v495 = vunpack.c.h.b16 %v426
        %v496 = vunpack.c.l.b16 %v427
        %v497 = vunpack.c.h.b16 %v427
        %v498 = vunpack.c.l.b16 %v428
        %v499 = vunpack.c.h.b16 %v428
        %v500 = vunpack.c.l.b16 %v429
        %v501 = vunpack.c.h.b16 %v429
        %v502 = vunpack.c.l.b16 %v430
        %v503 = vunpack.c.h.b16 %v430
        %v504 = vunpack.c.l.b16 %v431
        %v505 = vunpack.c.h.b16 %v431
        %v506 = vunpack.c.l.b16 %v432
        %v507 = vunpack.c.h.b16 %v432
        %v508 = vunpack.c.l.b16 %v433
        %v509 = vunpack.c.h.b16 %v433
        %v510 = vunpack.c.l.b16 %v434
        %v511 = vunpack.c.h.b16 %v434
        %v512 = vpack.c.b16 %v476, %v464
        %v513 = vpack.c.b16 %v477, %v465
        %v514 = vpack.c.b16 %v478, %v466
        %v515 = vpack.c.b16 %v479, %v467
        %v516 = vpack.c.b16 %v480, %v468
        %v517 = vpack.c.b16 %v481, %v469
        %v518 = vpack.c.b16 %v482, %v470
        %v519 = vpack.c.b16 %v483, %v471
        %v520 = vpack.c.b16 %v484, %v472
        %v521 = vpack.c.b16 %v485, %v473
        %v522 = vpack.c.b16 %v486, %v474
        %v523 = vpack.c.b16 %v487, %v475
        %v524 = vpack.c.b16 %v500, %v488
        %v525 = vpack.c.b16 %v501, %v489
        %v526 = vpack.c.b16 %v502, %v490
        %v527 = vpack.c.b16 %v503, %v491
        %v528 = vpack.c.b16 %v504, %v492
        %v529 = vpack.c.b16 %v505, %v493
        %v530 = vpack.c.b16 %v506, %v494
        %v531 = vpack.c.b16 %v507, %v495
        %v532 = vpack.c.b16 %v508, %v496
        %v533 = vpack.c.b16 %v509, %v497
        %v534 = vpack.c.b16 %v510, %v498
        %v535 = vpack.c.b16 %v511, %v499
        %vm548 = vcmask 220160
        %v550 = vsel %vm548, %v439, 0
        %vm552 = vcmask 1044480
        %vm553 = vcmask 1045504
        %v554 = vsel %vm552, 4294967295, 65535
        %v555 = vsel %vm553, %v554, 0
        %v557 = vand.u32 %v524, %v555
        %v560 = vand.u32 %v525, %v555
        %v563 = vand.u32 %v526, %v555
        %v566 = vand.u32 %v527, %v555
        %v569 = vand.u32 %v528, %v555
        %v572 = vand.u32 %v529, %v555
        %v575 = vand.u32 %v530, %v555
        %v578 = vand.u32 %v531, %v555
        %v581 = vand.u32 %v532, %v555
        %v584 = vand.u32 %v533, %v555
        %v587 = vand.u32 %v534, %v555
        %v590 = vand.u32 %v535, %v555
        %592 = vmatpush.bf16.msra.mxu0 0
        %593 = vmatpush.bf16.msra.mxu0 0
        %594 = vmatpush.bf16.msra.mxu0 0
        %595 = vmatpush.bf16.msra.mxu0 0
        %596 = vmatpush.bf16.msra.mxu0 0
        %597 = vmatpush.bf16.msra.mxu0 0
        %598 = vmatpush.bf16.msra.mxu0 %v557
        %599 = vmatpush.bf16.msra.mxu0 %v512
        %600 = vmatmul.bf16.gmra.mxu0 %v550
        %v601 = vpop.f32.mrf.mxu0
        %v602 = vadd.f32 0.0, %v601
        %v603 = vpop.f32.mrf.mxu0
        %v604 = vadd.f32 0.0, %v603
        %605 = vdwg.mxu0
        %606 = vmatpush.bf16.msra.mxu0 0
        %607 = vmatpush.bf16.msra.mxu0 0
        %608 = vmatpush.bf16.msra.mxu0 0
        %609 = vmatpush.bf16.msra.mxu0 0
        %610 = vmatpush.bf16.msra.mxu0 0
        %611 = vmatpush.bf16.msra.mxu0 0
        %612 = vmatpush.bf16.msra.mxu0 %v560
        %613 = vmatpush.bf16.msra.mxu0 %v513
        %614 = vmatmul.bf16.gmra.mxu0 %v550
        %v615 = vpop.f32.mrf.mxu0
        %v616 = vadd.f32 0.0, %v615
        %v617 = vpop.f32.mrf.mxu0
        %v618 = vadd.f32 0.0, %v617
        %619 = vdwg.mxu0
        %620 = vmatpush.bf16.msra.mxu0 0
        %621 = vmatpush.bf16.msra.mxu0 0
        %622 = vmatpush.bf16.msra.mxu0 0
        %623 = vmatpush.bf16.msra.mxu0 0
        %624 = vmatpush.bf16.msra.mxu0 0
        %625 = vmatpush.bf16.msra.mxu0 0
        %626 = vmatpush.bf16.msra.mxu0 %v563
        %627 = vmatpush.bf16.msra.mxu0 %v514
        %628 = vmatmul.bf16.gmra.mxu0 %v550
        %v629 = vpop.f32.mrf.mxu0
        %v630 = vadd.f32 0.0, %v629
        %v631 = vpop.f32.mrf.mxu0
        %v632 = vadd.f32 0.0, %v631
        %633 = vdwg.mxu0
        %634 = vmatpush.bf16.msra.mxu0 0
        %635 = vmatpush.bf16.msra.mxu0 0
        %636 = vmatpush.bf16.msra.mxu0 0
        %637 = vmatpush.bf16.msra.mxu0 0
        %638 = vmatpush.bf16.msra.mxu0 0
        %639 = vmatpush.bf16.msra.mxu0 0
        %640 = vmatpush.bf16.msra.mxu0 %v566
        %641 = vmatpush.bf16.msra.mxu0 %v515
        %642 = vmatmul.bf16.gmra.mxu0 %v550
        %v643 = vpop.f32.mrf.mxu0
        %v644 = vadd.f32 0.0, %v643
        %v645 = vpop.f32.mrf.mxu0
        %v646 = vadd.f32 0.0, %v645
        %647 = vdwg.mxu0
        %648 = vmatpush.bf16.msra.mxu0 0
        %649 = vmatpush.bf16.msra.mxu0 0
        %650 = vmatpush.bf16.msra.mxu0 0
        %651 = vmatpush.bf16.msra.mxu0 0
        %652 = vmatpush.bf16.msra.mxu0 0
        %653 = vmatpush.bf16.msra.mxu0 0
        %654 = vmatpush.bf16.msra.mxu0 %v569
        %655 = vmatpush.bf16.msra.mxu0 %v516
        %656 = vmatmul.bf16.gmra.mxu0 %v550
        %v657 = vpop.f32.mrf.mxu0
        %v658 = vadd.f32 0.0, %v657
        %v659 = vpop.f32.mrf.mxu0
        %v660 = vadd.f32 0.0, %v659
        %661 = vdwg.mxu0
        %662 = vmatpush.bf16.msra.mxu0 0
        %663 = vmatpush.bf16.msra.mxu0 0
        %664 = vmatpush.bf16.msra.mxu0 0
        %665 = vmatpush.bf16.msra.mxu0 0
        %666 = vmatpush.bf16.msra.mxu0 0
        %667 = vmatpush.bf16.msra.mxu0 0
        %668 = vmatpush.bf16.msra.mxu0 %v572
        %669 = vmatpush.bf16.msra.mxu0 %v517
        %670 = vmatmul.bf16.gmra.mxu0 %v550
        %v671 = vpop.f32.mrf.mxu0
        %v672 = vadd.f32 0.0, %v671
        %v673 = vpop.f32.mrf.mxu0
        %v674 = vadd.f32 0.0, %v673
        %675 = vdwg.mxu0
        %676 = vmatpush.bf16.msra.mxu0 0
        %677 = vmatpush.bf16.msra.mxu0 0
        %678 = vmatpush.bf16.msra.mxu0 0
        %679 = vmatpush.bf16.msra.mxu0 0
        %680 = vmatpush.bf16.msra.mxu0 0
        %681 = vmatpush.bf16.msra.mxu0 0
        %682 = vmatpush.bf16.msra.mxu0 %v575
        %683 = vmatpush.bf16.msra.mxu0 %v518
        %684 = vmatmul.bf16.gmra.mxu0 %v550
        %v685 = vpop.f32.mrf.mxu0
        %v686 = vadd.f32 0.0, %v685
        %v687 = vpop.f32.mrf.mxu0
        %v688 = vadd.f32 0.0, %v687
        %689 = vdwg.mxu0
        %690 = vmatpush.bf16.msra.mxu0 0
        %691 = vmatpush.bf16.msra.mxu0 0
        %692 = vmatpush.bf16.msra.mxu0 0
        %693 = vmatpush.bf16.msra.mxu0 0
        %694 = vmatpush.bf16.msra.mxu0 0
        %695 = vmatpush.bf16.msra.mxu0 0
        %696 = vmatpush.bf16.msra.mxu0 %v578
        %697 = vmatpush.bf16.msra.mxu0 %v519
        %698 = vmatmul.bf16.gmra.mxu0 %v550
        %v699 = vpop.f32.mrf.mxu0
        %v700 = vadd.f32 0.0, %v699
        %v701 = vpop.f32.mrf.mxu0
        %v702 = vadd.f32 0.0, %v701
        %703 = vdwg.mxu0
        %704 = vmatpush.bf16.msra.mxu0 0
        %705 = vmatpush.bf16.msra.mxu0 0
        %706 = vmatpush.bf16.msra.mxu0 0
        %707 = vmatpush.bf16.msra.mxu0 0
        %708 = vmatpush.bf16.msra.mxu0 0
        %709 = vmatpush.bf16.msra.mxu0 0
        %710 = vmatpush.bf16.msra.mxu0 %v581
        %711 = vmatpush.bf16.msra.mxu0 %v520
        %712 = vmatmul.bf16.gmra.mxu0 %v550
        %v713 = vpop.f32.mrf.mxu0
        %v714 = vadd.f32 0.0, %v713
        %v715 = vpop.f32.mrf.mxu0
        %v716 = vadd.f32 0.0, %v715
        %717 = vdwg.mxu0
        %718 = vmatpush.bf16.msra.mxu0 0
        %719 = vmatpush.bf16.msra.mxu0 0
        %720 = vmatpush.bf16.msra.mxu0 0
        %721 = vmatpush.bf16.msra.mxu0 0
        %722 = vmatpush.bf16.msra.mxu0 0
        %723 = vmatpush.bf16.msra.mxu0 0
        %724 = vmatpush.bf16.msra.mxu0 %v584
        %725 = vmatpush.bf16.msra.mxu0 %v521
        %726 = vmatmul.bf16.gmra.mxu0 %v550
        %v727 = vpop.f32.mrf.mxu0
        %v728 = vadd.f32 0.0, %v727
        %v729 = vpop.f32.mrf.mxu0
        %v730 = vadd.f32 0.0, %v729
        %731 = vdwg.mxu0
        %732 = vmatpush.bf16.msra.mxu0 0
        %733 = vmatpush.bf16.msra.mxu0 0
        %734 = vmatpush.bf16.msra.mxu0 0
        %735 = vmatpush.bf16.msra.mxu0 0
        %736 = vmatpush.bf16.msra.mxu0 0
        %737 = vmatpush.bf16.msra.mxu0 0
        %738 = vmatpush.bf16.msra.mxu0 %v587
        %739 = vmatpush.bf16.msra.mxu0 %v522
        %740 = vmatmul.bf16.gmra.mxu0 %v550
        %v741 = vpop.f32.mrf.mxu0
        %v742 = vadd.f32 0.0, %v741
        %v743 = vpop.f32.mrf.mxu0
        %v744 = vadd.f32 0.0, %v743
        %745 = vdwg.mxu0
        %746 = vmatpush.bf16.msra.mxu0 0
        %747 = vmatpush.bf16.msra.mxu0 0
        %748 = vmatpush.bf16.msra.mxu0 0
        %749 = vmatpush.bf16.msra.mxu0 0
        %750 = vmatpush.bf16.msra.mxu0 0
        %751 = vmatpush.bf16.msra.mxu0 0
        %752 = vmatpush.bf16.msra.mxu0 %v590
        %753 = vmatpush.bf16.msra.mxu0 %v523
        %754 = vmatmul.bf16.gmra.mxu0 %v550
        %v755 = vpop.f32.mrf.mxu0
        %v756 = vadd.f32 0.0, %v755
        %v757 = vpop.f32.mrf.mxu0
        %v758 = vadd.f32 0.0, %v757
        %759 = vdwg.mxu0
        %761 = vset.pattern.permute.xlu0 0
        %762 = vperm.xlu0 %761, %v407
        %v763 = vpop.permute.xlu0 %762
        %766 = vset.pattern.permute.xlu0 0
        %767 = vperm.xlu0 %766, %v408
        %v768 = vpop.permute.xlu0 %767
        %v770 = vmul.f32 %v602, %v763
        %v771 = vmul.f32 %v616, %v763
        %v772 = vmul.f32 %v630, %v763
        %v773 = vmul.f32 %v644, %v763
        %v774 = vmul.f32 %v658, %v763
        %v775 = vmul.f32 %v672, %v763
        %v776 = vmul.f32 %v686, %v763
        %v777 = vmul.f32 %v700, %v763
        %v778 = vmul.f32 %v714, %v763
        %v779 = vmul.f32 %v728, %v763
        %v780 = vmul.f32 %v742, %v763
        %v781 = vmul.f32 %v756, %v763
        %v782 = vmul.f32 %v604, %v768
        %v783 = vmul.f32 %v618, %v768
        %v784 = vmul.f32 %v632, %v768
        %v785 = vmul.f32 %v646, %v768
        %v786 = vmul.f32 %v660, %v768
        %v787 = vmul.f32 %v674, %v768
        %v788 = vmul.f32 %v688, %v768
        %v789 = vmul.f32 %v702, %v768
        %v790 = vmul.f32 %v716, %v768
        %v791 = vmul.f32 %v730, %v768
        %v792 = vmul.f32 %v744, %v768
        %v793 = vmul.f32 %v758, %v768
        %795 = vset.pattern.permute.xlu0 0
        %796 = vperm.xlu0 %795, %v409
        %v797 = vpop.permute.xlu0 %796
        %800 = vset.pattern.permute.xlu0 0
        %801 = vperm.xlu0 %800, %v410
        %v802 = vpop.permute.xlu0 %801
        %v804 = vadd.f32 %v770, %v797
        %v805 = vadd.f32 %v771, %v797
        %v806 = vadd.f32 %v772, %v797
        %v807 = vadd.f32 %v773, %v797
        %v808 = vadd.f32 %v774, %v797
        %v809 = vadd.f32 %v775, %v797
        %v810 = vadd.f32 %v776, %v797
        %v811 = vadd.f32 %v777, %v797
        %v812 = vadd.f32 %v778, %v797
        %v813 = vadd.f32 %v779, %v797
        %v814 = vadd.f32 %v780, %v797
        %v815 = vadd.f32 %v781, %v797
        %v816 = vadd.f32 %v782, %v802
        %v817 = vadd.f32 %v783, %v802
        %v818 = vadd.f32 %v784, %v802
        %v819 = vadd.f32 %v785, %v802
        %v820 = vadd.f32 %v786, %v802
        %v821 = vadd.f32 %v787, %v802
        %v822 = vadd.f32 %v788, %v802
        %v823 = vadd.f32 %v789, %v802
        %v824 = vadd.f32 %v790, %v802
        %v825 = vadd.f32 %v791, %v802
        %v826 = vadd.f32 %v792, %v802
        %v827 = vadd.f32 %v793, %v802
        %s828 = scalar_lea.vmem %s380, 192 [#allocation2]
        %v829 = vld [vmem:[%s828] sm:$0xff]
        %v830 = vld [vmem:[%s828 + $0x8] sm:$0xff]
        %v831 = vld [vmem:[%s828 + $0x10] sm:$0xff]
        %v832 = vld [vmem:[%s828 + $0x18] sm:$0xff]
        %v833 = vld [vmem:[%s828 + $0x20] sm:$0xff]
        %v834 = vld [vmem:[%s828 + $0x28] sm:$0xff]
        %v835 = vld [vmem:[%s828 + $0x30] sm:$0xff]
        %v836 = vld [vmem:[%s828 + $0x38] sm:$0xff]
        %v837 = vld [vmem:[%s828 + $0x40] sm:$0xff]
        %v838 = vld [vmem:[%s828 + $0x48] sm:$0xff]
        %v839 = vld [vmem:[%s828 + $0x50] sm:$0xff]
        %v840 = vld [vmem:[%s828 + $0x58] sm:$0xff]
        %v841 = vld [vmem:[%s828 + $0x60] sm:$0xff]
        %v842 = vld [vmem:[%s828 + $0x68] sm:$0xff]
        %v843 = vld [vmem:[%s828 + $0x70] sm:$0xff]
        %v844 = vld [vmem:[%s828 + $0x78] sm:$0xff]
        %v845 = vld [vmem:[%s828 + $0x80] sm:$0xff]
        %v846 = vld [vmem:[%s828 + $0x88] sm:$0xff]
        %v847 = vld [vmem:[%s828 + $0x90] sm:$0x33]
        %v848 = vld [vmem:[%s828 + $0x98] sm:$0x33]
        %v849 = vld [vmem:[%s828 + $0xa0] sm:$0x33]
        %v850 = vld [vmem:[%s828 + $0xa8] sm:$0x33]
        %v851 = vld [vmem:[%s828 + $0xb0] sm:$0x33]
        %v852 = vld [vmem:[%s828 + $0xb8] sm:$0x33]
        %v877 = vunpack.c.l.b16 %v829
        %v878 = vunpack.c.h.b16 %v829
        %v879 = vunpack.c.l.b16 %v830
        %v880 = vunpack.c.h.b16 %v830
        %v881 = vunpack.c.l.b16 %v831
        %v882 = vunpack.c.h.b16 %v831
        %v883 = vunpack.c.l.b16 %v832
        %v884 = vunpack.c.h.b16 %v832
        %v885 = vunpack.c.l.b16 %v833
        %v886 = vunpack.c.h.b16 %v833
        %v887 = vunpack.c.l.b16 %v834
        %v888 = vunpack.c.h.b16 %v834
        %v889 = vunpack.c.l.b16 %v835
        %v890 = vunpack.c.h.b16 %v835
        %v891 = vunpack.c.l.b16 %v836
        %v892 = vunpack.c.h.b16 %v836
        %v893 = vunpack.c.l.b16 %v837
        %v894 = vunpack.c.h.b16 %v837
        %v895 = vunpack.c.l.b16 %v838
        %v896 = vunpack.c.h.b16 %v838
        %v897 = vunpack.c.l.b16 %v839
        %v898 = vunpack.c.h.b16 %v839
        %v899 = vunpack.c.l.b16 %v840
        %v900 = vunpack.c.h.b16 %v840
        %v901 = vunpack.c.l.b16 %v841
        %v902 = vunpack.c.h.b16 %v841
        %v903 = vunpack.c.l.b16 %v842
        %v904 = vunpack.c.h.b16 %v842
        %v905 = vunpack.c.l.b16 %v843
        %v906 = vunpack.c.h.b16 %v843
        %v907 = vunpack.c.l.b16 %v844
        %v908 = vunpack.c.h.b16 %v844
        %v909 = vunpack.c.l.b16 %v845
        %v910 = vunpack.c.h.b16 %v845
        %v911 = vunpack.c.l.b16 %v846
        %v912 = vunpack.c.h.b16 %v846
        %v913 = vunpack.c.l.b16 %v847
        %v914 = vunpack.c.h.b16 %v847
        %v915 = vunpack.c.l.b16 %v848
        %v916 = vunpack.c.h.b16 %v848
        %v917 = vunpack.c.l.b16 %v849
        %v918 = vunpack.c.h.b16 %v849
        %v919 = vunpack.c.l.b16 %v850
        %v920 = vunpack.c.h.b16 %v850
        %v921 = vunpack.c.l.b16 %v851
        %v922 = vunpack.c.h.b16 %v851
        %v923 = vunpack.c.l.b16 %v852
        %v924 = vunpack.c.h.b16 %v852
        %v925 = vpack.c.b16 %v889, %v877
        %v926 = vpack.c.b16 %v890, %v878
        %v927 = vpack.c.b16 %v891, %v879
        %v928 = vpack.c.b16 %v892, %v880
        %v929 = vpack.c.b16 %v893, %v881
        %v930 = vpack.c.b16 %v894, %v882
        %v931 = vpack.c.b16 %v895, %v883
        %v932 = vpack.c.b16 %v896, %v884
        %v933 = vpack.c.b16 %v897, %v885
        %v934 = vpack.c.b16 %v898, %v886
        %v935 = vpack.c.b16 %v899, %v887
        %v936 = vpack.c.b16 %v900, %v888
        %v937 = vpack.c.b16 %v913, %v901
        %v938 = vpack.c.b16 %v914, %v902
        %v939 = vpack.c.b16 %v915, %v903
        %v940 = vpack.c.b16 %v916, %v904
        %v941 = vpack.c.b16 %v917, %v905
        %v942 = vpack.c.b16 %v918, %v906
        %v943 = vpack.c.b16 %v919, %v907
        %v944 = vpack.c.b16 %v920, %v908
        %v945 = vpack.c.b16 %v921, %v909
        %v946 = vpack.c.b16 %v922, %v910
        %v947 = vpack.c.b16 %v923, %v911
        %v948 = vpack.c.b16 %v924, %v912
        %v962 = vand.u32 %v937, %v555
        %v965 = vand.u32 %v938, %v555
        %v968 = vand.u32 %v939, %v555
        %v971 = vand.u32 %v940, %v555
        %v974 = vand.u32 %v941, %v555
        %v977 = vand.u32 %v942, %v555
        %v980 = vand.u32 %v943, %v555
        %v983 = vand.u32 %v944, %v555
        %v986 = vand.u32 %v945, %v555
        %v989 = vand.u32 %v946, %v555
        %v992 = vand.u32 %v947, %v555
        %v995 = vand.u32 %v948, %v555
        %997 = vmatpush.bf16.msra.mxu0 0
        %998 = vmatpush.bf16.msra.mxu0 0
        %999 = vmatpush.bf16.msra.mxu0 0
        %1000 = vmatpush.bf16.msra.mxu0 0
        %1001 = vmatpush.bf16.msra.mxu0 0
        %1002 = vmatpush.bf16.msra.mxu0 0
        %1003 = vmatpush.bf16.msra.mxu0 %v962
        %1004 = vmatpush.bf16.msra.mxu0 %v925
        %1005 = vmatmul.bf16.gmra.mxu0 %v550
        %v1006 = vpop.f32.mrf.mxu0
        %v1007 = vadd.f32 0.0, %v1006
        %v1008 = vpop.f32.mrf.mxu0
        %v1009 = vadd.f32 0.0, %v1008
        %1010 = vdwg.mxu0
        %1011 = vmatpush.bf16.msra.mxu0 0
        %1012 = vmatpush.bf16.msra.mxu0 0
        %1013 = vmatpush.bf16.msra.mxu0 0
        %1014 = vmatpush.bf16.msra.mxu0 0
        %1015 = vmatpush.bf16.msra.mxu0 0
        %1016 = vmatpush.bf16.msra.mxu0 0
        %1017 = vmatpush.bf16.msra.mxu0 %v965
        %1018 = vmatpush.bf16.msra.mxu0 %v926
        %1019 = vmatmul.bf16.gmra.mxu0 %v550
        %v1020 = vpop.f32.mrf.mxu0
        %v1021 = vadd.f32 0.0, %v1020
        %v1022 = vpop.f32.mrf.mxu0
        %v1023 = vadd.f32 0.0, %v1022
        %1024 = vdwg.mxu0
        %1025 = vmatpush.bf16.msra.mxu0 0
        %1026 = vmatpush.bf16.msra.mxu0 0
        %1027 = vmatpush.bf16.msra.mxu0 0
        %1028 = vmatpush.bf16.msra.mxu0 0
        %1029 = vmatpush.bf16.msra.mxu0 0
        %1030 = vmatpush.bf16.msra.mxu0 0
        %1031 = vmatpush.bf16.msra.mxu0 %v968
        %1032 = vmatpush.bf16.msra.mxu0 %v927
        %1033 = vmatmul.bf16.gmra.mxu0 %v550
        %v1034 = vpop.f32.mrf.mxu0
        %v1035 = vadd.f32 0.0, %v1034
        %v1036 = vpop.f32.mrf.mxu0
        %v1037 = vadd.f32 0.0, %v1036
        %1038 = vdwg.mxu0
        %1039 = vmatpush.bf16.msra.mxu0 0
        %1040 = vmatpush.bf16.msra.mxu0 0
        %1041 = vmatpush.bf16.msra.mxu0 0
        %1042 = vmatpush.bf16.msra.mxu0 0
        %1043 = vmatpush.bf16.msra.mxu0 0
        %1044 = vmatpush.bf16.msra.mxu0 0
        %1045 = vmatpush.bf16.msra.mxu0 %v971
        %1046 = vmatpush.bf16.msra.mxu0 %v928
        %1047 = vmatmul.bf16.gmra.mxu0 %v550
        %v1048 = vpop.f32.mrf.mxu0
        %v1049 = vadd.f32 0.0, %v1048
        %v1050 = vpop.f32.mrf.mxu0
        %v1051 = vadd.f32 0.0, %v1050
        %1052 = vdwg.mxu0
        %1053 = vmatpush.bf16.msra.mxu0 0
        %1054 = vmatpush.bf16.msra.mxu0 0
        %1055 = vmatpush.bf16.msra.mxu0 0
        %1056 = vmatpush.bf16.msra.mxu0 0
        %1057 = vmatpush.bf16.msra.mxu0 0
        %1058 = vmatpush.bf16.msra.mxu0 0
        %1059 = vmatpush.bf16.msra.mxu0 %v974
        %1060 = vmatpush.bf16.msra.mxu0 %v929
        %1061 = vmatmul.bf16.gmra.mxu0 %v550
        %v1062 = vpop.f32.mrf.mxu0
        %v1063 = vadd.f32 0.0, %v1062
        %v1064 = vpop.f32.mrf.mxu0
        %v1065 = vadd.f32 0.0, %v1064
        %1066 = vdwg.mxu0
        %1067 = vmatpush.bf16.msra.mxu0 0
        %1068 = vmatpush.bf16.msra.mxu0 0
        %1069 = vmatpush.bf16.msra.mxu0 0
        %1070 = vmatpush.bf16.msra.mxu0 0
        %1071 = vmatpush.bf16.msra.mxu0 0
        %1072 = vmatpush.bf16.msra.mxu0 0
        %1073 = vmatpush.bf16.msra.mxu0 %v977
        %1074 = vmatpush.bf16.msra.mxu0 %v930
        %1075 = vmatmul.bf16.gmra.mxu0 %v550
        %v1076 = vpop.f32.mrf.mxu0
        %v1077 = vadd.f32 0.0, %v1076
        %v1078 = vpop.f32.mrf.mxu0
        %v1079 = vadd.f32 0.0, %v1078
        %1080 = vdwg.mxu0
        %1081 = vmatpush.bf16.msra.mxu0 0
        %1082 = vmatpush.bf16.msra.mxu0 0
        %1083 = vmatpush.bf16.msra.mxu0 0
        %1084 = vmatpush.bf16.msra.mxu0 0
        %1085 = vmatpush.bf16.msra.mxu0 0
        %1086 = vmatpush.bf16.msra.mxu0 0
        %1087 = vmatpush.bf16.msra.mxu0 %v980
        %1088 = vmatpush.bf16.msra.mxu0 %v931
        %1089 = vmatmul.bf16.gmra.mxu0 %v550
        %v1090 = vpop.f32.mrf.mxu0
        %v1091 = vadd.f32 0.0, %v1090
        %v1092 = vpop.f32.mrf.mxu0
        %v1093 = vadd.f32 0.0, %v1092
        %1094 = vdwg.mxu0
        %1095 = vmatpush.bf16.msra.mxu0 0
        %1096 = vmatpush.bf16.msra.mxu0 0
        %1097 = vmatpush.bf16.msra.mxu0 0
        %1098 = vmatpush.bf16.msra.mxu0 0
        %1099 = vmatpush.bf16.msra.mxu0 0
        %1100 = vmatpush.bf16.msra.mxu0 0
        %1101 = vmatpush.bf16.msra.mxu0 %v983
        %1102 = vmatpush.bf16.msra.mxu0 %v932
        %1103 = vmatmul.bf16.gmra.mxu0 %v550
        %v1104 = vpop.f32.mrf.mxu0
        %v1105 = vadd.f32 0.0, %v1104
        %v1106 = vpop.f32.mrf.mxu0
        %v1107 = vadd.f32 0.0, %v1106
        %1108 = vdwg.mxu0
        %1109 = vmatpush.bf16.msra.mxu0 0
        %1110 = vmatpush.bf16.msra.mxu0 0
        %1111 = vmatpush.bf16.msra.mxu0 0
        %1112 = vmatpush.bf16.msra.mxu0 0
        %1113 = vmatpush.bf16.msra.mxu0 0
        %1114 = vmatpush.bf16.msra.mxu0 0
        %1115 = vmatpush.bf16.msra.mxu0 %v986
        %1116 = vmatpush.bf16.msra.mxu0 %v933
        %1117 = vmatmul.bf16.gmra.mxu0 %v550
        %v1118 = vpop.f32.mrf.mxu0
        %v1119 = vadd.f32 0.0, %v1118
        %v1120 = vpop.f32.mrf.mxu0
        %v1121 = vadd.f32 0.0, %v1120
        %1122 = vdwg.mxu0
        %1123 = vmatpush.bf16.msra.mxu0 0
        %1124 = vmatpush.bf16.msra.mxu0 0
        %1125 = vmatpush.bf16.msra.mxu0 0
        %1126 = vmatpush.bf16.msra.mxu0 0
        %1127 = vmatpush.bf16.msra.mxu0 0
        %1128 = vmatpush.bf16.msra.mxu0 0
        %1129 = vmatpush.bf16.msra.mxu0 %v989
        %1130 = vmatpush.bf16.msra.mxu0 %v934
        %1131 = vmatmul.bf16.gmra.mxu0 %v550
        %v1132 = vpop.f32.mrf.mxu0
        %v1133 = vadd.f32 0.0, %v1132
        %v1134 = vpop.f32.mrf.mxu0
        %v1135 = vadd.f32 0.0, %v1134
        %1136 = vdwg.mxu0
        %1137 = vmatpush.bf16.msra.mxu0 0
        %1138 = vmatpush.bf16.msra.mxu0 0
        %1139 = vmatpush.bf16.msra.mxu0 0
        %1140 = vmatpush.bf16.msra.mxu0 0
        %1141 = vmatpush.bf16.msra.mxu0 0
        %1142 = vmatpush.bf16.msra.mxu0 0
        %1143 = vmatpush.bf16.msra.mxu0 %v992
        %1144 = vmatpush.bf16.msra.mxu0 %v935
        %1145 = vmatmul.bf16.gmra.mxu0 %v550
        %v1146 = vpop.f32.mrf.mxu0
        %v1147 = vadd.f32 0.0, %v1146
        %v1148 = vpop.f32.mrf.mxu0
        %v1149 = vadd.f32 0.0, %v1148
        %1150 = vdwg.mxu0
        %1151 = vmatpush.bf16.msra.mxu0 0
        %1152 = vmatpush.bf16.msra.mxu0 0
        %1153 = vmatpush.bf16.msra.mxu0 0
        %1154 = vmatpush.bf16.msra.mxu0 0
        %1155 = vmatpush.bf16.msra.mxu0 0
        %1156 = vmatpush.bf16.msra.mxu0 0
        %1157 = vmatpush.bf16.msra.mxu0 %v995
        %1158 = vmatpush.bf16.msra.mxu0 %v936
        %1159 = vmatmul.bf16.gmra.mxu0 %v550
        %v1160 = vpop.f32.mrf.mxu0
        %v1161 = vadd.f32 0.0, %v1160
        %v1162 = vpop.f32.mrf.mxu0
        %v1163 = vadd.f32 0.0, %v1162
        %1164 = vdwg.mxu0
        %v1165 = vmul.f32 %v1007, %v763
        %v1166 = vmul.f32 %v1021, %v763
        %v1167 = vmul.f32 %v1035, %v763
        %v1168 = vmul.f32 %v1049, %v763
        %v1169 = vmul.f32 %v1063, %v763
        %v1170 = vmul.f32 %v1077, %v763
        %v1171 = vmul.f32 %v1091, %v763
        %v1172 = vmul.f32 %v1105, %v763
        %v1173 = vmul.f32 %v1119, %v763
        %v1174 = vmul.f32 %v1133, %v763
        %v1175 = vmul.f32 %v1147, %v763
        %v1176 = vmul.f32 %v1161, %v763
        %v1177 = vmul.f32 %v1009, %v768
        %v1178 = vmul.f32 %v1023, %v768
        %v1179 = vmul.f32 %v1037, %v768
        %v1180 = vmul.f32 %v1051, %v768
        %v1181 = vmul.f32 %v1065, %v768
        %v1182 = vmul.f32 %v1079, %v768
        %v1183 = vmul.f32 %v1093, %v768
        %v1184 = vmul.f32 %v1107, %v768
        %v1185 = vmul.f32 %v1121, %v768
        %v1186 = vmul.f32 %v1135, %v768
        %v1187 = vmul.f32 %v1149, %v768
        %v1188 = vmul.f32 %v1163, %v768
        %v1189 = vadd.f32 %v1165, %v797
        %v1190 = vadd.f32 %v1166, %v797
        %v1191 = vadd.f32 %v1167, %v797
        %v1192 = vadd.f32 %v1168, %v797
        %v1193 = vadd.f32 %v1169, %v797
        %v1194 = vadd.f32 %v1170, %v797
        %v1195 = vadd.f32 %v1171, %v797
        %v1196 = vadd.f32 %v1172, %v797
        %v1197 = vadd.f32 %v1173, %v797
        %v1198 = vadd.f32 %v1174, %v797
        %v1199 = vadd.f32 %v1175, %v797
        %v1200 = vadd.f32 %v1176, %v797
        %v1201 = vadd.f32 %v1177, %v802
        %v1202 = vadd.f32 %v1178, %v802
        %v1203 = vadd.f32 %v1179, %v802
        %v1204 = vadd.f32 %v1180, %v802
        %v1205 = vadd.f32 %v1181, %v802
        %v1206 = vadd.f32 %v1182, %v802
        %v1207 = vadd.f32 %v1183, %v802
        %v1208 = vadd.f32 %v1184, %v802
        %v1209 = vadd.f32 %v1185, %v802
        %v1210 = vadd.f32 %v1186, %v802
        %v1211 = vadd.f32 %v1187, %v802
        %v1212 = vadd.f32 %v1188, %v802
        %v1213 = vmax.f32 %v804, %v1189
        %v1214 = vmax.f32 %v805, %v1190
        %v1215 = vmax.f32 %v806, %v1191
        %v1216 = vmax.f32 %v807, %v1192
        %v1217 = vmax.f32 %v808, %v1193
        %v1218 = vmax.f32 %v809, %v1194
        %v1219 = vmax.f32 %v810, %v1195
        %v1220 = vmax.f32 %v811, %v1196
        %v1221 = vmax.f32 %v812, %v1197
        %v1222 = vmax.f32 %v813, %v1198
        %v1223 = vmax.f32 %v814, %v1199
        %v1224 = vmax.f32 %v815, %v1200
        %v1225 = vmax.f32 %v816, %v1201
        %v1226 = vmax.f32 %v817, %v1202
        %v1227 = vmax.f32 %v818, %v1203
        %v1228 = vmax.f32 %v819, %v1204
        %v1229 = vmax.f32 %v820, %v1205
        %v1230 = vmax.f32 %v821, %v1206
        %v1231 = vmax.f32 %v822, %v1207
        %v1232 = vmax.f32 %v823, %v1208
        %v1233 = vmax.f32 %v824, %v1209
        %v1234 = vmax.f32 %v825, %v1210
        %v1235 = vmax.f32 %v826, %v1211
        %v1236 = vmax.f32 %v827, %v1212
        %s1237 = scalar_lea.vmem %s380, 384 [#allocation2]
        %v1238 = vld [vmem:[%s1237] sm:$0xff]
        %v1239 = vld [vmem:[%s1237 + $0x8] sm:$0xff]
        %v1240 = vld [vmem:[%s1237 + $0x10] sm:$0xff]
        %v1241 = vld [vmem:[%s1237 + $0x18] sm:$0xff]
        %v1242 = vld [vmem:[%s1237 + $0x20] sm:$0xff]
        %v1243 = vld [vmem:[%s1237 + $0x28] sm:$0xff]
        %v1244 = vld [vmem:[%s1237 + $0x30] sm:$0xff]
        %v1245 = vld [vmem:[%s1237 + $0x38] sm:$0xff]
        %v1246 = vld [vmem:[%s1237 + $0x40] sm:$0xff]
        %v1247 = vld [vmem:[%s1237 + $0x48] sm:$0xff]
        %v1248 = vld [vmem:[%s1237 + $0x50] sm:$0xff]
        %v1249 = vld [vmem:[%s1237 + $0x58] sm:$0xff]
        %v1250 = vld [vmem:[%s1237 + $0x60] sm:$0xff]
        %v1251 = vld [vmem:[%s1237 + $0x68] sm:$0xff]
        %v1252 = vld [vmem:[%s1237 + $0x70] sm:$0xff]
        %v1253 = vld [vmem:[%s1237 + $0x78] sm:$0xff]
        %v1254 = vld [vmem:[%s1237 + $0x80] sm:$0xff]
        %v1255 = vld [vmem:[%s1237 + $0x88] sm:$0xff]
        %v1256 = vld [vmem:[%s1237 + $0x90] sm:$0x33]
        %v1257 = vld [vmem:[%s1237 + $0x98] sm:$0x33]
        %v1258 = vld [vmem:[%s1237 + $0xa0] sm:$0x33]
        %v1259 = vld [vmem:[%s1237 + $0xa8] sm:$0x33]
        %v1260 = vld [vmem:[%s1237 + $0xb0] sm:$0x33]
        %v1261 = vld [vmem:[%s1237 + $0xb8] sm:$0x33]
        %v1286 = vunpack.c.l.b16 %v1238
        %v1287 = vunpack.c.h.b16 %v1238
        %v1288 = vunpack.c.l.b16 %v1239
        %v1289 = vunpack.c.h.b16 %v1239
        %v1290 = vunpack.c.l.b16 %v1240
        %v1291 = vunpack.c.h.b16 %v1240
        %v1292 = vunpack.c.l.b16 %v1241
        %v1293 = vunpack.c.h.b16 %v1241
        %v1294 = vunpack.c.l.b16 %v1242
        %v1295 = vunpack.c.h.b16 %v1242
        %v1296 = vunpack.c.l.b16 %v1243
        %v1297 = vunpack.c.h.b16 %v1243
        %v1298 = vunpack.c.l.b16 %v1244
        %v1299 = vunpack.c.h.b16 %v1244
        %v1300 = vunpack.c.l.b16 %v1245
        %v1301 = vunpack.c.h.b16 %v1245
        %v1302 = vunpack.c.l.b16 %v1246
        %v1303 = vunpack.c.h.b16 %v1246
        %v1304 = vunpack.c.l.b16 %v1247
        %v1305 = vunpack.c.h.b16 %v1247
        %v1306 = vunpack.c.l.b16 %v1248
        %v1307 = vunpack.c.h.b16 %v1248
        %v1308 = vunpack.c.l.b16 %v1249
        %v1309 = vunpack.c.h.b16 %v1249
        %v1310 = vunpack.c.l.b16 %v1250
        %v1311 = vunpack.c.h.b16 %v1250
        %v1312 = vunpack.c.l.b16 %v1251
        %v1313 = vunpack.c.h.b16 %v1251
        %v1314 = vunpack.c.l.b16 %v1252
        %v1315 = vunpack.c.h.b16 %v1252
        %v1316 = vunpack.c.l.b16 %v1253
        %v1317 = vunpack.c.h.b16 %v1253
        %v1318 = vunpack.c.l.b16 %v1254
        %v1319 = vunpack.c.h.b16 %v1254
        %v1320 = vunpack.c.l.b16 %v1255
        %v1321 = vunpack.c.h.b16 %v1255
        %v1322 = vunpack.c.l.b16 %v1256
        %v1323 = vunpack.c.h.b16 %v1256
        %v1324 = vunpack.c.l.b16 %v1257
        %v1325 = vunpack.c.h.b16 %v1257
        %v1326 = vunpack.c.l.b16 %v1258
        %v1327 = vunpack.c.h.b16 %v1258
        %v1328 = vunpack.c.l.b16 %v1259
        %v1329 = vunpack.c.h.b16 %v1259
        %v1330 = vunpack.c.l.b16 %v1260
        %v1331 = vunpack.c.h.b16 %v1260
        %v1332 = vunpack.c.l.b16 %v1261
        %v1333 = vunpack.c.h.b16 %v1261
        %v1334 = vpack.c.b16 %v1298, %v1286
        %v1335 = vpack.c.b16 %v1299, %v1287
        %v1336 = vpack.c.b16 %v1300, %v1288
        %v1337 = vpack.c.b16 %v1301, %v1289
        %v1338 = vpack.c.b16 %v1302, %v1290
        %v1339 = vpack.c.b16 %v1303, %v1291
        %v1340 = vpack.c.b16 %v1304, %v1292
        %v1341 = vpack.c.b16 %v1305, %v1293
        %v1342 = vpack.c.b16 %v1306, %v1294
        %v1343 = vpack.c.b16 %v1307, %v1295
        %v1344 = vpack.c.b16 %v1308, %v1296
        %v1345 = vpack.c.b16 %v1309, %v1297
        %v1346 = vpack.c.b16 %v1322, %v1310
        %v1347 = vpack.c.b16 %v1323, %v1311
        %v1348 = vpack.c.b16 %v1324, %v1312
        %v1349 = vpack.c.b16 %v1325, %v1313
        %v1350 = vpack.c.b16 %v1326, %v1314
        %v1351 = vpack.c.b16 %v1327, %v1315
        %v1352 = vpack.c.b16 %v1328, %v1316
        %v1353 = vpack.c.b16 %v1329, %v1317
        %v1354 = vpack.c.b16 %v1330, %v1318
        %v1355 = vpack.c.b16 %v1331, %v1319
        %v1356 = vpack.c.b16 %v1332, %v1320
        %v1357 = vpack.c.b16 %v1333, %v1321
        %v1371 = vand.u32 %v1346, %v555
        %v1374 = vand.u32 %v1347, %v555
        %v1377 = vand.u32 %v1348, %v555
        %v1380 = vand.u32 %v1349, %v555
        %v1383 = vand.u32 %v1350, %v555
        %v1386 = vand.u32 %v1351, %v555
        %v1389 = vand.u32 %v1352, %v555
        %v1392 = vand.u32 %v1353, %v555
        %v1395 = vand.u32 %v1354, %v555
        %v1398 = vand.u32 %v1355, %v555
        %v1401 = vand.u32 %v1356, %v555
        %v1404 = vand.u32 %v1357, %v555
        %1406 = vmatpush.bf16.msra.mxu0 0
        %1407 = vmatpush.bf16.msra.mxu0 0
        %1408 = vmatpush.bf16.msra.mxu0 0
        %1409 = vmatpush.bf16.msra.mxu0 0
        %1410 = vmatpush.bf16.msra.mxu0 0
        %1411 = vmatpush.bf16.msra.mxu0 0
        %1412 = vmatpush.bf16.msra.mxu0 %v1371
        %1413 = vmatpush.bf16.msra.mxu0 %v1334
        %1414 = vmatmul.bf16.gmra.mxu0 %v550
        %v1415 = vpop.f32.mrf.mxu0
        %v1416 = vadd.f32 0.0, %v1415
        %v1417 = vpop.f32.mrf.mxu0
        %v1418 = vadd.f32 0.0, %v1417
        %1419 = vdwg.mxu0
        %1420 = vmatpush.bf16.msra.mxu0 0
        %1421 = vmatpush.bf16.msra.mxu0 0
        %1422 = vmatpush.bf16.msra.mxu0 0
        %1423 = vmatpush.bf16.msra.mxu0 0
        %1424 = vmatpush.bf16.msra.mxu0 0
        %1425 = vmatpush.bf16.msra.mxu0 0
        %1426 = vmatpush.bf16.msra.mxu0 %v1374
        %1427 = vmatpush.bf16.msra.mxu0 %v1335
        %1428 = vmatmul.bf16.gmra.mxu0 %v550
        %v1429 = vpop.f32.mrf.mxu0
        %v1430 = vadd.f32 0.0, %v1429
        %v1431 = vpop.f32.mrf.mxu0
        %v1432 = vadd.f32 0.0, %v1431
        %1433 = vdwg.mxu0
        %1434 = vmatpush.bf16.msra.mxu0 0
        %1435 = vmatpush.bf16.msra.mxu0 0
        %1436 = vmatpush.bf16.msra.mxu0 0
        %1437 = vmatpush.bf16.msra.mxu0 0
        %1438 = vmatpush.bf16.msra.mxu0 0
        %1439 = vmatpush.bf16.msra.mxu0 0
        %1440 = vmatpush.bf16.msra.mxu0 %v1377
        %1441 = vmatpush.bf16.msra.mxu0 %v1336
        %1442 = vmatmul.bf16.gmra.mxu0 %v550
        %v1443 = vpop.f32.mrf.mxu0
        %v1444 = vadd.f32 0.0, %v1443
        %v1445 = vpop.f32.mrf.mxu0
        %v1446 = vadd.f32 0.0, %v1445
        %1447 = vdwg.mxu0
        %1448 = vmatpush.bf16.msra.mxu0 0
        %1449 = vmatpush.bf16.msra.mxu0 0
        %1450 = vmatpush.bf16.msra.mxu0 0
        %1451 = vmatpush.bf16.msra.mxu0 0
        %1452 = vmatpush.bf16.msra.mxu0 0
        %1453 = vmatpush.bf16.msra.mxu0 0
        %1454 = vmatpush.bf16.msra.mxu0 %v1380
        %1455 = vmatpush.bf16.msra.mxu0 %v1337
        %1456 = vmatmul.bf16.gmra.mxu0 %v550
        %v1457 = vpop.f32.mrf.mxu0
        %v1458 = vadd.f32 0.0, %v1457
        %v1459 = vpop.f32.mrf.mxu0
        %v1460 = vadd.f32 0.0, %v1459
        %1461 = vdwg.mxu0
        %1462 = vmatpush.bf16.msra.mxu0 0
        %1463 = vmatpush.bf16.msra.mxu0 0
        %1464 = vmatpush.bf16.msra.mxu0 0
        %1465 = vmatpush.bf16.msra.mxu0 0
        %1466 = vmatpush.bf16.msra.mxu0 0
        %1467 = vmatpush.bf16.msra.mxu0 0
        %1468 = vmatpush.bf16.msra.mxu0 %v1383
        %1469 = vmatpush.bf16.msra.mxu0 %v1338
        %1470 = vmatmul.bf16.gmra.mxu0 %v550
        %v1471 = vpop.f32.mrf.mxu0
        %v1472 = vadd.f32 0.0, %v1471
        %v1473 = vpop.f32.mrf.mxu0
        %v1474 = vadd.f32 0.0, %v1473
        %1475 = vdwg.mxu0
        %1476 = vmatpush.bf16.msra.mxu0 0
        %1477 = vmatpush.bf16.msra.mxu0 0
        %1478 = vmatpush.bf16.msra.mxu0 0
        %1479 = vmatpush.bf16.msra.mxu0 0
        %1480 = vmatpush.bf16.msra.mxu0 0
        %1481 = vmatpush.bf16.msra.mxu0 0
        %1482 = vmatpush.bf16.msra.mxu0 %v1386
        %1483 = vmatpush.bf16.msra.mxu0 %v1339
        %1484 = vmatmul.bf16.gmra.mxu0 %v550
        %v1485 = vpop.f32.mrf.mxu0
        %v1486 = vadd.f32 0.0, %v1485
        %v1487 = vpop.f32.mrf.mxu0
        %v1488 = vadd.f32 0.0, %v1487
        %1489 = vdwg.mxu0
        %1490 = vmatpush.bf16.msra.mxu0 0
        %1491 = vmatpush.bf16.msra.mxu0 0
        %1492 = vmatpush.bf16.msra.mxu0 0
        %1493 = vmatpush.bf16.msra.mxu0 0
        %1494 = vmatpush.bf16.msra.mxu0 0
        %1495 = vmatpush.bf16.msra.mxu0 0
        %1496 = vmatpush.bf16.msra.mxu0 %v1389
        %1497 = vmatpush.bf16.msra.mxu0 %v1340
        %1498 = vmatmul.bf16.gmra.mxu0 %v550
        %v1499 = vpop.f32.mrf.mxu0
        %v1500 = vadd.f32 0.0, %v1499
        %v1501 = vpop.f32.mrf.mxu0
        %v1502 = vadd.f32 0.0, %v1501
        %1503 = vdwg.mxu0
        %1504 = vmatpush.bf16.msra.mxu0 0
        %1505 = vmatpush.bf16.msra.mxu0 0
        %1506 = vmatpush.bf16.msra.mxu0 0
        %1507 = vmatpush.bf16.msra.mxu0 0
        %1508 = vmatpush.bf16.msra.mxu0 0
        %1509 = vmatpush.bf16.msra.mxu0 0
        %1510 = vmatpush.bf16.msra.mxu0 %v1392
        %1511 = vmatpush.bf16.msra.mxu0 %v1341
        %1512 = vmatmul.bf16.gmra.mxu0 %v550
        %v1513 = vpop.f32.mrf.mxu0
        %v1514 = vadd.f32 0.0, %v1513
        %v1515 = vpop.f32.mrf.mxu0
        %v1516 = vadd.f32 0.0, %v1515
        %1517 = vdwg.mxu0
        %1518 = vmatpush.bf16.msra.mxu0 0
        %1519 = vmatpush.bf16.msra.mxu0 0
        %1520 = vmatpush.bf16.msra.mxu0 0
        %1521 = vmatpush.bf16.msra.mxu0 0
        %1522 = vmatpush.bf16.msra.mxu0 0
        %1523 = vmatpush.bf16.msra.mxu0 0
        %1524 = vmatpush.bf16.msra.mxu0 %v1395
        %1525 = vmatpush.bf16.msra.mxu0 %v1342
        %1526 = vmatmul.bf16.gmra.mxu0 %v550
        %v1527 = vpop.f32.mrf.mxu0
        %v1528 = vadd.f32 0.0, %v1527
        %v1529 = vpop.f32.mrf.mxu0
        %v1530 = vadd.f32 0.0, %v1529
        %1531 = vdwg.mxu0
        %1532 = vmatpush.bf16.msra.mxu0 0
        %1533 = vmatpush.bf16.msra.mxu0 0
        %1534 = vmatpush.bf16.msra.mxu0 0
        %1535 = vmatpush.bf16.msra.mxu0 0
        %1536 = vmatpush.bf16.msra.mxu0 0
        %1537 = vmatpush.bf16.msra.mxu0 0
        %1538 = vmatpush.bf16.msra.mxu0 %v1398
        %1539 = vmatpush.bf16.msra.mxu0 %v1343
        %1540 = vmatmul.bf16.gmra.mxu0 %v550
        %v1541 = vpop.f32.mrf.mxu0
        %v1542 = vadd.f32 0.0, %v1541
        %v1543 = vpop.f32.mrf.mxu0
        %v1544 = vadd.f32 0.0, %v1543
        %1545 = vdwg.mxu0
        %1546 = vmatpush.bf16.msra.mxu0 0
        %1547 = vmatpush.bf16.msra.mxu0 0
        %1548 = vmatpush.bf16.msra.mxu0 0
        %1549 = vmatpush.bf16.msra.mxu0 0
        %1550 = vmatpush.bf16.msra.mxu0 0
        %1551 = vmatpush.bf16.msra.mxu0 0
        %1552 = vmatpush.bf16.msra.mxu0 %v1401
        %1553 = vmatpush.bf16.msra.mxu0 %v1344
        %1554 = vmatmul.bf16.gmra.mxu0 %v550
        %v1555 = vpop.f32.mrf.mxu0
        %v1556 = vadd.f32 0.0, %v1555
        %v1557 = vpop.f32.mrf.mxu0
        %v1558 = vadd.f32 0.0, %v1557
        %1559 = vdwg.mxu0
        %1560 = vmatpush.bf16.msra.mxu0 0
        %1561 = vmatpush.bf16.msra.mxu0 0
        %1562 = vmatpush.bf16.msra.mxu0 0
        %1563 = vmatpush.bf16.msra.mxu0 0
        %1564 = vmatpush.bf16.msra.mxu0 0
        %1565 = vmatpush.bf16.msra.mxu0 0
        %1566 = vmatpush.bf16.msra.mxu0 %v1404
        %1567 = vmatpush.bf16.msra.mxu0 %v1345
        %1568 = vmatmul.bf16.gmra.mxu0 %v550
        %v1569 = vpop.f32.mrf.mxu0
        %v1570 = vadd.f32 0.0, %v1569
        %v1571 = vpop.f32.mrf.mxu0
        %v1572 = vadd.f32 0.0, %v1571
        %1573 = vdwg.mxu0
        %v1574 = vmul.f32 %v1416, %v763
        %v1575 = vmul.f32 %v1430, %v763
        %v1576 = vmul.f32 %v1444, %v763
        %v1577 = vmul.f32 %v1458, %v763
        %v1578 = vmul.f32 %v1472, %v763
        %v1579 = vmul.f32 %v1486, %v763
        %v1580 = vmul.f32 %v1500, %v763
        %v1581 = vmul.f32 %v1514, %v763
        %v1582 = vmul.f32 %v1528, %v763
        %v1583 = vmul.f32 %v1542, %v763
        %v1584 = vmul.f32 %v1556, %v763
        %v1585 = vmul.f32 %v1570, %v763
        %v1586 = vmul.f32 %v1418, %v768
        %v1587 = vmul.f32 %v1432, %v768
        %v1588 = vmul.f32 %v1446, %v768
        %v1589 = vmul.f32 %v1460, %v768
        %v1590 = vmul.f32 %v1474, %v768
        %v1591 = vmul.f32 %v1488, %v768
        %v1592 = vmul.f32 %v1502, %v768
        %v1593 = vmul.f32 %v1516, %v768
        %v1594 = vmul.f32 %v1530, %v768
        %v1595 = vmul.f32 %v1544, %v768
        %v1596 = vmul.f32 %v1558, %v768
        %v1597 = vmul.f32 %v1572, %v768
        %v1598 = vadd.f32 %v1574, %v797
        %v1599 = vadd.f32 %v1575, %v797
        %v1600 = vadd.f32 %v1576, %v797
        %v1601 = vadd.f32 %v1577, %v797
        %v1602 = vadd.f32 %v1578, %v797
        %v1603 = vadd.f32 %v1579, %v797
        %v1604 = vadd.f32 %v1580, %v797
        %v1605 = vadd.f32 %v1581, %v797
        %v1606 = vadd.f32 %v1582, %v797
        %v1607 = vadd.f32 %v1583, %v797
        %v1608 = vadd.f32 %v1584, %v797
        %v1609 = vadd.f32 %v1585, %v797
        %v1610 = vadd.f32 %v1586, %v802
        %v1611 = vadd.f32 %v1587, %v802
        %v1612 = vadd.f32 %v1588, %v802
        %v1613 = vadd.f32 %v1589, %v802
        %v1614 = vadd.f32 %v1590, %v802
        %v1615 = vadd.f32 %v1591, %v802
        %v1616 = vadd.f32 %v1592, %v802
        %v1617 = vadd.f32 %v1593, %v802
        %v1618 = vadd.f32 %v1594, %v802
        %v1619 = vadd.f32 %v1595, %v802
        %v1620 = vadd.f32 %v1596, %v802
        %v1621 = vadd.f32 %v1597, %v802
        %v1622 = vmax.f32 %v1213, %v1598
        %v1623 = vmax.f32 %v1214, %v1599
        %v1624 = vmax.f32 %v1215, %v1600
        %v1625 = vmax.f32 %v1216, %v1601
        %v1626 = vmax.f32 %v1217, %v1602
        %v1627 = vmax.f32 %v1218, %v1603
        %v1628 = vmax.f32 %v1219, %v1604
        %v1629 = vmax.f32 %v1220, %v1605
        %v1630 = vmax.f32 %v1221, %v1606
        %v1631 = vmax.f32 %v1222, %v1607
        %v1632 = vmax.f32 %v1223, %v1608
        %v1633 = vmax.f32 %v1224, %v1609
        %v1634 = vmax.f32 %v1225, %v1610
        %v1635 = vmax.f32 %v1226, %v1611
        %v1636 = vmax.f32 %v1227, %v1612
        %v1637 = vmax.f32 %v1228, %v1613
        %v1638 = vmax.f32 %v1229, %v1614
        %v1639 = vmax.f32 %v1230, %v1615
        %v1640 = vmax.f32 %v1231, %v1616
        %v1641 = vmax.f32 %v1232, %v1617
        %v1642 = vmax.f32 %v1233, %v1618
        %v1643 = vmax.f32 %v1234, %v1619
        %v1644 = vmax.f32 %v1235, %v1620
        %v1645 = vmax.f32 %v1236, %v1621
        %s1646 = scalar_lea.vmem %s380, 576 [#allocation2]
        %v1647 = vld [vmem:[%s1646] sm:$0xff]
        %v1648 = vld [vmem:[%s1646 + $0x8] sm:$0xff]
        %v1649 = vld [vmem:[%s1646 + $0x10] sm:$0xff]
        %v1650 = vld [vmem:[%s1646 + $0x18] sm:$0xff]
        %v1651 = vld [vmem:[%s1646 + $0x20] sm:$0xff]
        %v1652 = vld [vmem:[%s1646 + $0x28] sm:$0xff]
        %v1653 = vld [vmem:[%s1646 + $0x30] sm:$0xff]
        %v1654 = vld [vmem:[%s1646 + $0x38] sm:$0xff]
        %v1655 = vld [vmem:[%s1646 + $0x40] sm:$0xff]
        %v1656 = vld [vmem:[%s1646 + $0x48] sm:$0xff]
        %v1657 = vld [vmem:[%s1646 + $0x50] sm:$0xff]
        %v1658 = vld [vmem:[%s1646 + $0x58] sm:$0xff]
        %v1659 = vld [vmem:[%s1646 + $0x60] sm:$0xff]
        %v1660 = vld [vmem:[%s1646 + $0x68] sm:$0xff]
        %v1661 = vld [vmem:[%s1646 + $0x70] sm:$0xff]
        %v1662 = vld [vmem:[%s1646 + $0x78] sm:$0xff]
        %v1663 = vld [vmem:[%s1646 + $0x80] sm:$0xff]
        %v1664 = vld [vmem:[%s1646 + $0x88] sm:$0xff]
        %v1665 = vld [vmem:[%s1646 + $0x90] sm:$0x33]
        %v1666 = vld [vmem:[%s1646 + $0x98] sm:$0x33]
        %v1667 = vld [vmem:[%s1646 + $0xa0] sm:$0x33]
        %v1668 = vld [vmem:[%s1646 + $0xa8] sm:$0x33]
        %v1669 = vld [vmem:[%s1646 + $0xb0] sm:$0x33]
        %v1670 = vld [vmem:[%s1646 + $0xb8] sm:$0x33]
        %v1695 = vunpack.c.l.b16 %v1647
        %v1696 = vunpack.c.h.b16 %v1647
        %v1697 = vunpack.c.l.b16 %v1648
        %v1698 = vunpack.c.h.b16 %v1648
        %v1699 = vunpack.c.l.b16 %v1649
        %v1700 = vunpack.c.h.b16 %v1649
        %v1701 = vunpack.c.l.b16 %v1650
        %v1702 = vunpack.c.h.b16 %v1650
        %v1703 = vunpack.c.l.b16 %v1651
        %v1704 = vunpack.c.h.b16 %v1651
        %v1705 = vunpack.c.l.b16 %v1652
        %v1706 = vunpack.c.h.b16 %v1652
        %v1707 = vunpack.c.l.b16 %v1653
        %v1708 = vunpack.c.h.b16 %v1653
        %v1709 = vunpack.c.l.b16 %v1654
        %v1710 = vunpack.c.h.b16 %v1654
        %v1711 = vunpack.c.l.b16 %v1655
        %v1712 = vunpack.c.h.b16 %v1655
        %v1713 = vunpack.c.l.b16 %v1656
        %v1714 = vunpack.c.h.b16 %v1656
        %v1715 = vunpack.c.l.b16 %v1657
        %v1716 = vunpack.c.h.b16 %v1657
        %v1717 = vunpack.c.l.b16 %v1658
        %v1718 = vunpack.c.h.b16 %v1658
        %v1719 = vunpack.c.l.b16 %v1659
        %v1720 = vunpack.c.h.b16 %v1659
        %v1721 = vunpack.c.l.b16 %v1660
        %v1722 = vunpack.c.h.b16 %v1660
        %v1723 = vunpack.c.l.b16 %v1661
        %v1724 = vunpack.c.h.b16 %v1661
        %v1725 = vunpack.c.l.b16 %v1662
        %v1726 = vunpack.c.h.b16 %v1662
        %v1727 = vunpack.c.l.b16 %v1663
        %v1728 = vunpack.c.h.b16 %v1663
        %v1729 = vunpack.c.l.b16 %v1664
        %v1730 = vunpack.c.h.b16 %v1664
        %v1731 = vunpack.c.l.b16 %v1665
        %v1732 = vunpack.c.h.b16 %v1665
        %v1733 = vunpack.c.l.b16 %v1666
        %v1734 = vunpack.c.h.b16 %v1666
        %v1735 = vunpack.c.l.b16 %v1667
        %v1736 = vunpack.c.h.b16 %v1667
        %v1737 = vunpack.c.l.b16 %v1668
        %v1738 = vunpack.c.h.b16 %v1668
        %v1739 = vunpack.c.l.b16 %v1669
        %v1740 = vunpack.c.h.b16 %v1669
        %v1741 = vunpack.c.l.b16 %v1670
        %v1742 = vunpack.c.h.b16 %v1670
        %v1743 = vpack.c.b16 %v1707, %v1695
        %v1744 = vpack.c.b16 %v1708, %v1696
        %v1745 = vpack.c.b16 %v1709, %v1697
        %v1746 = vpack.c.b16 %v1710, %v1698
        %v1747 = vpack.c.b16 %v1711, %v1699
        %v1748 = vpack.c.b16 %v1712, %v1700
        %v1749 = vpack.c.b16 %v1713, %v1701
        %v1750 = vpack.c.b16 %v1714, %v1702
        %v1751 = vpack.c.b16 %v1715, %v1703
        %v1752 = vpack.c.b16 %v1716, %v1704
        %v1753 = vpack.c.b16 %v1717, %v1705
        %v1754 = vpack.c.b16 %v1718, %v1706
        %v1755 = vpack.c.b16 %v1731, %v1719
        %v1756 = vpack.c.b16 %v1732, %v1720
        %v1757 = vpack.c.b16 %v1733, %v1721
        %v1758 = vpack.c.b16 %v1734, %v1722
        %v1759 = vpack.c.b16 %v1735, %v1723
        %v1760 = vpack.c.b16 %v1736, %v1724
        %v1761 = vpack.c.b16 %v1737, %v1725
        %v1762 = vpack.c.b16 %v1738, %v1726
        %v1763 = vpack.c.b16 %v1739, %v1727
        %v1764 = vpack.c.b16 %v1740, %v1728
        %v1765 = vpack.c.b16 %v1741, %v1729
        %v1766 = vpack.c.b16 %v1742, %v1730
        %v1780 = vand.u32 %v1755, %v555
        %v1783 = vand.u32 %v1756, %v555
        %v1786 = vand.u32 %v1757, %v555
        %v1789 = vand.u32 %v1758, %v555
        %v1792 = vand.u32 %v1759, %v555
        %v1795 = vand.u32 %v1760, %v555
        %v1798 = vand.u32 %v1761, %v555
        %v1801 = vand.u32 %v1762, %v555
        %v1804 = vand.u32 %v1763, %v555
        %v1807 = vand.u32 %v1764, %v555
        %v1810 = vand.u32 %v1765, %v555
        %v1813 = vand.u32 %v1766, %v555
        %1815 = vmatpush.bf16.msra.mxu0 0
        %1816 = vmatpush.bf16.msra.mxu0 0
        %1817 = vmatpush.bf16.msra.mxu0 0
        %1818 = vmatpush.bf16.msra.mxu0 0
        %1819 = vmatpush.bf16.msra.mxu0 0
        %1820 = vmatpush.bf16.msra.mxu0 0
        %1821 = vmatpush.bf16.msra.mxu0 %v1780
        %1822 = vmatpush.bf16.msra.mxu0 %v1743
        %1823 = vmatmul.bf16.gmra.mxu0 %v550
        %v1824 = vpop.f32.mrf.mxu0
        %v1825 = vadd.f32 0.0, %v1824
        %v1826 = vpop.f32.mrf.mxu0
        %v1827 = vadd.f32 0.0, %v1826
        %1828 = vdwg.mxu0
        %1829 = vmatpush.bf16.msra.mxu0 0
        %1830 = vmatpush.bf16.msra.mxu0 0
        %1831 = vmatpush.bf16.msra.mxu0 0
        %1832 = vmatpush.bf16.msra.mxu0 0
        %1833 = vmatpush.bf16.msra.mxu0 0
        %1834 = vmatpush.bf16.msra.mxu0 0
        %1835 = vmatpush.bf16.msra.mxu0 %v1783
        %1836 = vmatpush.bf16.msra.mxu0 %v1744
        %1837 = vmatmul.bf16.gmra.mxu0 %v550
        %v1838 = vpop.f32.mrf.mxu0
        %v1839 = vadd.f32 0.0, %v1838
        %v1840 = vpop.f32.mrf.mxu0
        %v1841 = vadd.f32 0.0, %v1840
        %1842 = vdwg.mxu0
        %1843 = vmatpush.bf16.msra.mxu0 0
        %1844 = vmatpush.bf16.msra.mxu0 0
        %1845 = vmatpush.bf16.msra.mxu0 0
        %1846 = vmatpush.bf16.msra.mxu0 0
        %1847 = vmatpush.bf16.msra.mxu0 0
        %1848 = vmatpush.bf16.msra.mxu0 0
        %1849 = vmatpush.bf16.msra.mxu0 %v1786
        %1850 = vmatpush.bf16.msra.mxu0 %v1745
        %1851 = vmatmul.bf16.gmra.mxu0 %v550
        %v1852 = vpop.f32.mrf.mxu0
        %v1853 = vadd.f32 0.0, %v1852
        %v1854 = vpop.f32.mrf.mxu0
        %v1855 = vadd.f32 0.0, %v1854
        %1856 = vdwg.mxu0
        %1857 = vmatpush.bf16.msra.mxu0 0
        %1858 = vmatpush.bf16.msra.mxu0 0
        %1859 = vmatpush.bf16.msra.mxu0 0
        %1860 = vmatpush.bf16.msra.mxu0 0
        %1861 = vmatpush.bf16.msra.mxu0 0
        %1862 = vmatpush.bf16.msra.mxu0 0
        %1863 = vmatpush.bf16.msra.mxu0 %v1789
        %1864 = vmatpush.bf16.msra.mxu0 %v1746
        %1865 = vmatmul.bf16.gmra.mxu0 %v550
        %v1866 = vpop.f32.mrf.mxu0
        %v1867 = vadd.f32 0.0, %v1866
        %v1868 = vpop.f32.mrf.mxu0
        %v1869 = vadd.f32 0.0, %v1868
        %1870 = vdwg.mxu0
        %1871 = vmatpush.bf16.msra.mxu0 0
        %1872 = vmatpush.bf16.msra.mxu0 0
        %1873 = vmatpush.bf16.msra.mxu0 0
        %1874 = vmatpush.bf16.msra.mxu0 0
        %1875 = vmatpush.bf16.msra.mxu0 0
        %1876 = vmatpush.bf16.msra.mxu0 0
        %1877 = vmatpush.bf16.msra.mxu0 %v1792
        %1878 = vmatpush.bf16.msra.mxu0 %v1747
        %1879 = vmatmul.bf16.gmra.mxu0 %v550
        %v1880 = vpop.f32.mrf.mxu0
        %v1881 = vadd.f32 0.0, %v1880
        %v1882 = vpop.f32.mrf.mxu0
        %v1883 = vadd.f32 0.0, %v1882
        %1884 = vdwg.mxu0
        %1885 = vmatpush.bf16.msra.mxu0 0
        %1886 = vmatpush.bf16.msra.mxu0 0
        %1887 = vmatpush.bf16.msra.mxu0 0
        %1888 = vmatpush.bf16.msra.mxu0 0
        %1889 = vmatpush.bf16.msra.mxu0 0
        %1890 = vmatpush.bf16.msra.mxu0 0
        %1891 = vmatpush.bf16.msra.mxu0 %v1795
        %1892 = vmatpush.bf16.msra.mxu0 %v1748
        %1893 = vmatmul.bf16.gmra.mxu0 %v550
        %v1894 = vpop.f32.mrf.mxu0
        %v1895 = vadd.f32 0.0, %v1894
        %v1896 = vpop.f32.mrf.mxu0
        %v1897 = vadd.f32 0.0, %v1896
        %1898 = vdwg.mxu0
        %1899 = vmatpush.bf16.msra.mxu0 0
        %1900 = vmatpush.bf16.msra.mxu0 0
        %1901 = vmatpush.bf16.msra.mxu0 0
        %1902 = vmatpush.bf16.msra.mxu0 0
        %1903 = vmatpush.bf16.msra.mxu0 0
        %1904 = vmatpush.bf16.msra.mxu0 0
        %1905 = vmatpush.bf16.msra.mxu0 %v1798
        %1906 = vmatpush.bf16.msra.mxu0 %v1749
        %1907 = vmatmul.bf16.gmra.mxu0 %v550
        %v1908 = vpop.f32.mrf.mxu0
        %v1909 = vadd.f32 0.0, %v1908
        %v1910 = vpop.f32.mrf.mxu0
        %v1911 = vadd.f32 0.0, %v1910
        %1912 = vdwg.mxu0
        %1913 = vmatpush.bf16.msra.mxu0 0
        %1914 = vmatpush.bf16.msra.mxu0 0
        %1915 = vmatpush.bf16.msra.mxu0 0
        %1916 = vmatpush.bf16.msra.mxu0 0
        %1917 = vmatpush.bf16.msra.mxu0 0
        %1918 = vmatpush.bf16.msra.mxu0 0
        %1919 = vmatpush.bf16.msra.mxu0 %v1801
        %1920 = vmatpush.bf16.msra.mxu0 %v1750
        %1921 = vmatmul.bf16.gmra.mxu0 %v550
        %v1922 = vpop.f32.mrf.mxu0
        %v1923 = vadd.f32 0.0, %v1922
        %v1924 = vpop.f32.mrf.mxu0
        %v1925 = vadd.f32 0.0, %v1924
        %1926 = vdwg.mxu0
        %1927 = vmatpush.bf16.msra.mxu0 0
        %1928 = vmatpush.bf16.msra.mxu0 0
        %1929 = vmatpush.bf16.msra.mxu0 0
        %1930 = vmatpush.bf16.msra.mxu0 0
        %1931 = vmatpush.bf16.msra.mxu0 0
        %1932 = vmatpush.bf16.msra.mxu0 0
        %1933 = vmatpush.bf16.msra.mxu0 %v1804
        %1934 = vmatpush.bf16.msra.mxu0 %v1751
        %1935 = vmatmul.bf16.gmra.mxu0 %v550
        %v1936 = vpop.f32.mrf.mxu0
        %v1937 = vadd.f32 0.0, %v1936
        %v1938 = vpop.f32.mrf.mxu0
        %v1939 = vadd.f32 0.0, %v1938
        %1940 = vdwg.mxu0
        %1941 = vmatpush.bf16.msra.mxu0 0
        %1942 = vmatpush.bf16.msra.mxu0 0
        %1943 = vmatpush.bf16.msra.mxu0 0
        %1944 = vmatpush.bf16.msra.mxu0 0
        %1945 = vmatpush.bf16.msra.mxu0 0
        %1946 = vmatpush.bf16.msra.mxu0 0
        %1947 = vmatpush.bf16.msra.mxu0 %v1807
        %1948 = vmatpush.bf16.msra.mxu0 %v1752
        %1949 = vmatmul.bf16.gmra.mxu0 %v550
        %v1950 = vpop.f32.mrf.mxu0
        %v1951 = vadd.f32 0.0, %v1950
        %v1952 = vpop.f32.mrf.mxu0
        %v1953 = vadd.f32 0.0, %v1952
        %1954 = vdwg.mxu0
        %1955 = vmatpush.bf16.msra.mxu0 0
        %1956 = vmatpush.bf16.msra.mxu0 0
        %1957 = vmatpush.bf16.msra.mxu0 0
        %1958 = vmatpush.bf16.msra.mxu0 0
        %1959 = vmatpush.bf16.msra.mxu0 0
        %1960 = vmatpush.bf16.msra.mxu0 0
        %1961 = vmatpush.bf16.msra.mxu0 %v1810
        %1962 = vmatpush.bf16.msra.mxu0 %v1753
        %1963 = vmatmul.bf16.gmra.mxu0 %v550
        %v1964 = vpop.f32.mrf.mxu0
        %v1965 = vadd.f32 0.0, %v1964
        %v1966 = vpop.f32.mrf.mxu0
        %v1967 = vadd.f32 0.0, %v1966
        %1968 = vdwg.mxu0
        %1969 = vmatpush.bf16.msra.mxu0 0
        %1970 = vmatpush.bf16.msra.mxu0 0
        %1971 = vmatpush.bf16.msra.mxu0 0
        %1972 = vmatpush.bf16.msra.mxu0 0
        %1973 = vmatpush.bf16.msra.mxu0 0
        %1974 = vmatpush.bf16.msra.mxu0 0
        %1975 = vmatpush.bf16.msra.mxu0 %v1813
        %1976 = vmatpush.bf16.msra.mxu0 %v1754
        %1977 = vmatmul.bf16.gmra.mxu0 %v550
        %v1978 = vpop.f32.mrf.mxu0
        %v1979 = vadd.f32 0.0, %v1978
        %v1980 = vpop.f32.mrf.mxu0
        %v1981 = vadd.f32 0.0, %v1980
        %1982 = vdwg.mxu0
        %v1983 = vmul.f32 %v1825, %v763
        %v1984 = vmul.f32 %v1839, %v763
        %v1985 = vmul.f32 %v1853, %v763
        %v1986 = vmul.f32 %v1867, %v763
        %v1987 = vmul.f32 %v1881, %v763
        %v1988 = vmul.f32 %v1895, %v763
        %v1989 = vmul.f32 %v1909, %v763
        %v1990 = vmul.f32 %v1923, %v763
        %v1991 = vmul.f32 %v1937, %v763
        %v1992 = vmul.f32 %v1951, %v763
        %v1993 = vmul.f32 %v1965, %v763
        %v1994 = vmul.f32 %v1979, %v763
        %v1995 = vmul.f32 %v1827, %v768
        %v1996 = vmul.f32 %v1841, %v768
        %v1997 = vmul.f32 %v1855, %v768
        %v1998 = vmul.f32 %v1869, %v768
        %v1999 = vmul.f32 %v1883, %v768
        %v2000 = vmul.f32 %v1897, %v768
        %v2001 = vmul.f32 %v1911, %v768
        %v2002 = vmul.f32 %v1925, %v768
        %v2003 = vmul.f32 %v1939, %v768
        %v2004 = vmul.f32 %v1953, %v768
        %v2005 = vmul.f32 %v1967, %v768
        %v2006 = vmul.f32 %v1981, %v768
        %v2007 = vadd.f32 %v1983, %v797
        %v2008 = vadd.f32 %v1984, %v797
        %v2009 = vadd.f32 %v1985, %v797
        %v2010 = vadd.f32 %v1986, %v797
        %v2011 = vadd.f32 %v1987, %v797
        %v2012 = vadd.f32 %v1988, %v797
        %v2013 = vadd.f32 %v1989, %v797
        %v2014 = vadd.f32 %v1990, %v797
        %v2015 = vadd.f32 %v1991, %v797
        %v2016 = vadd.f32 %v1992, %v797
        %v2017 = vadd.f32 %v1993, %v797
        %v2018 = vadd.f32 %v1994, %v797
        %v2019 = vadd.f32 %v1995, %v802
        %v2020 = vadd.f32 %v1996, %v802
        %v2021 = vadd.f32 %v1997, %v802
        %v2022 = vadd.f32 %v1998, %v802
        %v2023 = vadd.f32 %v1999, %v802
        %v2024 = vadd.f32 %v2000, %v802
        %v2025 = vadd.f32 %v2001, %v802
        %v2026 = vadd.f32 %v2002, %v802
        %v2027 = vadd.f32 %v2003, %v802
        %v2028 = vadd.f32 %v2004, %v802
        %v2029 = vadd.f32 %v2005, %v802
        %v2030 = vadd.f32 %v2006, %v802
        %v2031 = vmax.f32 %v1622, %v2007
        %v2032 = vmax.f32 %v1623, %v2008
        %v2033 = vmax.f32 %v1624, %v2009
        %v2034 = vmax.f32 %v1625, %v2010
        %v2035 = vmax.f32 %v1626, %v2011
        %v2036 = vmax.f32 %v1627, %v2012
        %v2037 = vmax.f32 %v1628, %v2013
        %v2038 = vmax.f32 %v1629, %v2014
        %v2039 = vmax.f32 %v1630, %v2015
        %v2040 = vmax.f32 %v1631, %v2016
        %v2041 = vmax.f32 %v1632, %v2017
        %v2042 = vmax.f32 %v1633, %v2018
        %v2043 = vmax.f32 %v1634, %v2019
        %v2044 = vmax.f32 %v1635, %v2020
        %v2045 = vmax.f32 %v1636, %v2021
        %v2046 = vmax.f32 %v1637, %v2022
        %v2047 = vmax.f32 %v1638, %v2023
        %v2048 = vmax.f32 %v1639, %v2024
        %v2049 = vmax.f32 %v1640, %v2025
        %v2050 = vmax.f32 %v1641, %v2026
        %v2051 = vmax.f32 %v1642, %v2027
        %v2052 = vmax.f32 %v1643, %v2028
        %v2053 = vmax.f32 %v1644, %v2029
        %v2054 = vmax.f32 %v1645, %v2030
        %v2055 = vmax.f32 %v2031, 0.0
        %v2056 = vmax.f32 %v2032, 0.0
        %v2057 = vmax.f32 %v2033, 0.0
        %v2058 = vmax.f32 %v2034, 0.0
        %v2059 = vmax.f32 %v2035, 0.0
        %v2060 = vmax.f32 %v2036, 0.0
        %v2061 = vmax.f32 %v2037, 0.0
        %v2062 = vmax.f32 %v2038, 0.0
        %v2063 = vmax.f32 %v2039, 0.0
        %v2064 = vmax.f32 %v2040, 0.0
        %v2065 = vmax.f32 %v2041, 0.0
        %v2066 = vmax.f32 %v2042, 0.0
        %v2067 = vmax.f32 %v2043, 0.0
        %v2068 = vmax.f32 %v2044, 0.0
        %v2069 = vmax.f32 %v2045, 0.0
        %v2070 = vmax.f32 %v2046, 0.0
        %v2071 = vmax.f32 %v2047, 0.0
        %v2072 = vmax.f32 %v2048, 0.0
        %v2073 = vmax.f32 %v2049, 0.0
        %v2074 = vmax.f32 %v2050, 0.0
        %v2075 = vmax.f32 %v2051, 0.0
        %v2076 = vmax.f32 %v2052, 0.0
        %v2077 = vmax.f32 %v2053, 0.0
        %v2078 = vmax.f32 %v2054, 0.0
        %v2079 = vpack.c.bf16 %v2056, %v2055
        %v2080 = vpack.c.bf16 %v2058, %v2057
        %v2081 = vpack.c.bf16 %v2060, %v2059
        %v2082 = vpack.c.bf16 %v2062, %v2061
        %v2083 = vpack.c.bf16 %v2064, %v2063
        %v2084 = vpack.c.bf16 %v2066, %v2065
        %v2085 = vpack.c.bf16 %v2068, %v2067
        %v2086 = vpack.c.bf16 %v2070, %v2069
        %v2087 = vpack.c.bf16 %v2072, %v2071
        %v2088 = vpack.c.bf16 %v2074, %v2073
        %v2089 = vpack.c.bf16 %v2076, %v2075
        %v2090 = vpack.c.bf16 %v2078, %v2077
        %2091 = vst [vmem:[%s401] sm:$0xff] %v2079
        %2092 = vst [vmem:[%s401 + $0x8] sm:$0xff] %v2080
        %2093 = vst [vmem:[%s401 + $0x10] sm:$0xff] %v2081
        %2094 = vst [vmem:[%s401 + $0x18] sm:$0xff] %v2082
        %2095 = vst [vmem:[%s401 + $0x20] sm:$0xff] %v2083
        %2096 = vst [vmem:[%s401 + $0x28] sm:$0xff] %v2084
        %2097 = vst [vmem:[%s401 + $0x30] sm:$0xff] %v2085
        %2098 = vst [vmem:[%s401 + $0x38] sm:$0xff] %v2086
        %2099 = vst [vmem:[%s401 + $0x40] sm:$0xff] %v2087
        %2100 = vst [vmem:[%s401 + $0x48] sm:$0xff] %v2088
        %2101 = vst [vmem:[%s401 + $0x50] sm:$0xff] %v2089
        %2102 = vst [vmem:[%s401 + $0x58] sm:$0xff] %v2090
        %s2103 = sand.u32 %s112, 1
        %s2104 = sand.u32 %s112, 1
        %s2105 = smul.addr %s2104, 96
        %s2106 = scalar_lea.vmem [#allocation3], %s2105
        // Predicated region
        $region60: #{model3_forward.2} parent=54 // pred_check
          %p2107 = pneg %p122
        $region61: #{model3_forward.2} parent=54 // pred_check_branch
          %2109 = sbr.rel (%p2107) target = $region63
        $region62: #{model3_forward.2} parent=54 // pred_region
          %s2110 = smul.u32 12, %s15
          %s2111 = smul.addr %s2110, 4
          %s2112 = scalar_lea.vmem %s4, %s2111
          // Predicated region
          $region64: #{model3_forward.2} parent=62 // pred_check
            _
          $region65: #{model3_forward.2} parent=62 // pred_check_branch
            %2114 = sbr.rel (0) target = $region67
          $region66: #{model3_forward.2} parent=62 // pred_region
            // Predicated region
            $region68: #{model3_forward.2} parent=66 // pred_check
              _
            $region69: #{model3_forward.2} parent=66 // pred_check_branch
              %2116 = sbr.rel (0) target = $region71
            $region70: #{model3_forward.2} parent=66 // pred_region
              loop: start=0, step=1, limit=1
              $region72: #{model3_forward.2} parent=70 // loop_pre_header
                _
              $region73: #{model3_forward.2} parent=70 // loop_header
                %s2118 = sphi 0, %s2122
                %p2119 = scmp.ge.s32.totalorder %s2118, 1
                %s2123 = sphi %s2106, %s2106
                %s2124 = sphi %s2112, %s2112
              $region74: #{model3_forward.2} parent=70 // loop_header_branch
                %2121 = sbr.rel (%p2119) target = $region78
              $region75: #{model3_forward.2} parent=70 // loop_body
                %v2125 = vld [vmem:[%s2123] sm:$0xff]
                %2126 = vst [vmem:[%s2124] sm:$0xff] %v2125
                %v2127 = vld [vmem:[%s2123 + $0x8] sm:$0xff]
                %2128 = vst [vmem:[%s2124 + $0x8] sm:$0xff] %v2127
                %v2129 = vld [vmem:[%s2123 + $0x10] sm:$0xff]
                %2130 = vst [vmem:[%s2124 + $0x10] sm:$0xff] %v2129
                %v2131 = vld [vmem:[%s2123 + $0x18] sm:$0xff]
                %2132 = vst [vmem:[%s2124 + $0x18] sm:$0xff] %v2131
                %v2133 = vld [vmem:[%s2123 + $0x20] sm:$0xff]
                %2134 = vst [vmem:[%s2124 + $0x20] sm:$0xff] %v2133
                %v2135 = vld [vmem:[%s2123 + $0x28] sm:$0xff]
                %2136 = vst [vmem:[%s2124 + $0x28] sm:$0xff] %v2135
                %v2137 = vld [vmem:[%s2123 + $0x30] sm:$0xff]
                %2138 = vst [vmem:[%s2124 + $0xc0] sm:$0xff] %v2137
                %v2139 = vld [vmem:[%s2123 + $0x38] sm:$0xff]
                %2140 = vst [vmem:[%s2124 + $0xc8] sm:$0xff] %v2139
                %v2141 = vld [vmem:[%s2123 + $0x40] sm:$0xff]
                %2142 = vst [vmem:[%s2124 + $0xd0] sm:$0xff] %v2141
                %v2143 = vld [vmem:[%s2123 + $0x48] sm:$0xff]
                %2144 = vst [vmem:[%s2124 + $0xd8] sm:$0xff] %v2143
                %v2145 = vld [vmem:[%s2123 + $0x50] sm:$0xff]
                %2146 = vst [vmem:[%s2124 + $0xe0] sm:$0xff] %v2145
                %v2147 = vld [vmem:[%s2123 + $0x58] sm:$0xff]
                %2148 = vst [vmem:[%s2124 + $0xe8] sm:$0xff] %v2147
              $region76: #{model3_forward.2} parent=70 // loop_footer
                %s2122 = sadd.s32 1, %s2118
              $region77: #{model3_forward.2} parent=70 // loop_footer_branch
                %2117 = sbr.rel target = $region73
              $region78: #{model3_forward.2} parent=70 // loop_exit
                _
            $region71: #{model3_forward.2} parent=66 // pred_fallthru
              _
            // Predicated region
            $region79: #{model3_forward.2} parent=66 // pred_check
              _
            $region80: #{model3_forward.2} parent=66 // pred_check_branch
              %2150 = sbr.rel target = $region82
            $region81: #{model3_forward.2} parent=66 // pred_region
              _
            $region82: #{model3_forward.2} parent=66 // pred_fallthru
              _
          $region67: #{model3_forward.2} parent=62 // pred_fallthru
            _
          %2151 = vnop
        $region63: #{model3_forward.2} parent=54 // pred_fallthru
          _
      $region55: #{model3_forward.2} parent=5 // pred_fallthru
        _
      %p2152 = scmp.le.s32.totalorder 2, %s10
      // Predicated region
      $region83: #{model3_forward.2} parent=5 // pred_check
        %p2153 = pneg %p2152
      $region84: #{model3_forward.2} parent=5 // pred_check_branch
        %2155 = sbr.rel (%p2153) target = $region86
      $region85: #{model3_forward.2} parent=5 // pred_region
        %s2156 = ssub.s32 %s10, 2
        // Predicated region
        $region87: #{model3_forward.2} parent=85 // pred_check
          %p2157 = pneg %p128
        $region88: #{model3_forward.2} parent=85 // pred_check_branch
          %2159 = sbr.rel (%p2157) target = $region90
        $region89: #{model3_forward.2} parent=85 // pred_region
          %s2160 = sand.u32 %s113, 1
          %s2161 = sand.u32 %s113, 1
          %s2162 = smul.addr %s2161, 96
          %s2163 = scalar_lea.vmem [#allocation3], %s2162
        $region90: #{model3_forward.2} parent=85 // pred_fallthru
          _
      $region86: #{model3_forward.2} parent=5 // pred_fallthru
        _
    $region6: #{model3_forward.2} parent=1 // loop_footer
      %s14 = sadd.s32 1, %s10
    $region7: #{model3_forward.2} parent=1 // loop_footer_branch
      %9 = sbr.rel target = $region3
    $region8: #{model3_forward.2} parent=1 // loop_exit
      _

// kernel: model3_forward.3
$region0: #{model3_forward.3}
  #allocation0 [shape = 'u32[]', space=smem, size = 0x4, offset = 0x4, fixed_abs, tag = 'smem constant byte address 0x4 - core index']
  #allocation1 [shape = 'u32[72,128]{1,0:T(1,128)}', space=vmem, size = 0x9000, scoped, tag = 'internal scratch']
  %s0 = inlined_call_operand.vmem [shape: bf16[4,144,512], index: 0, kind: input, shape index: {}]
  %s1 = inlined_call_operand.vmem [shape: bf16[32,144], index: 1, kind: input, shape index: {}]
  %s2 = inlined_call_operand.vmem [shape: f32[32,1], index: 2, kind: input, shape index: {}]
  %s3 = inlined_call_operand.vmem [shape: f32[32,1], index: 3, kind: input, shape index: {}]
  %s4 = inlined_call_operand.vmem [shape: bf16[64,288], index: 4, kind: input, shape index: {}]
  %s5 = inlined_call_operand.vmem [shape: f32[64,1], index: 5, kind: input, shape index: {}]
  %s6 = inlined_call_operand.vmem [shape: f32[64,1], index: 6, kind: input, shape index: {}]
  %s7 = inlined_call_operand.vmem [shape: f32[9,10,64], index: 7, kind: input, shape index: {}]
  %s8 = inlined_call_operand.vmem [shape: f32[10,1], index: 8, kind: input, shape index: {}]
  %s9 = inlined_call_operand.vmem [shape: f32[10,2], index: 9, kind: input, shape index: {}]
  %s10 = inlined_call_operand.vmem [shape: f32[1,2], index: 10, kind: input, shape index: {}]
  %s11 = inlined_call_operand.hbm [shape: f32[2,2], index: 11, kind: output, shape index: {}]
  %s12 = sld [smem:[#allocation0]]
  $region54: #{model3_forward.3} parent=0
    _
  %s14 = ssub.s32 1, %s12
  %s15 = scalar_select 0, %s14, %s12
  $region1: #{model3_forward.3} parent=0
    #allocation2 [shape = 'u8[1024]{0}', space=vmem, size = 0x400, scoped, tag = 'output window, operand 0, single buffered']
    #allocation3 [shape = 's32[1]{0}', space=sflag, size = 0x4, scoped, tag = 'scoped memory for model3_forward.3']
    %16 = vsyncpa [#allocation3], 0
    // Predicated region
    $region2: #{model3_forward.3} parent=1 // pred_check
      _
    $region3: #{model3_forward.3} parent=1 // pred_check_branch
      %18 = sbr.rel (0) target = $region5
    $region4: #{model3_forward.3} parent=1 // pred_region
      _
    $region5: #{model3_forward.3} parent=1 // pred_fallthru
      _
    // Predicated region
    $region6: #{model3_forward.3} parent=1 // pred_check
      _
    $region7: #{model3_forward.3} parent=1 // pred_check_branch
      %20 = sbr.rel (0) target = $region9
    $region8: #{model3_forward.3} parent=1 // pred_region
      _
    $region9: #{model3_forward.3} parent=1 // pred_fallthru
      _
    // Predicated region
    $region10: #{model3_forward.3} parent=1 // pred_check
      _
    $region11: #{model3_forward.3} parent=1 // pred_check_branch
      %22 = sbr.rel (0) target = $region13
    $region12: #{model3_forward.3} parent=1 // pred_region
      _
    $region13: #{model3_forward.3} parent=1 // pred_fallthru
      _
    // Predicated region
    $region14: #{model3_forward.3} parent=1 // pred_check
      _
    $region15: #{model3_forward.3} parent=1 // pred_check_branch
      %24 = sbr.rel (0) target = $region17
    $region16: #{model3_forward.3} parent=1 // pred_region
      _
    $region17: #{model3_forward.3} parent=1 // pred_fallthru
      _
    // Predicated region
    $region18: #{model3_forward.3} parent=1 // pred_check
      _
    $region19: #{model3_forward.3} parent=1 // pred_check_branch
      %26 = sbr.rel (0) target = $region21
    $region20: #{model3_forward.3} parent=1 // pred_region
      _
    $region21: #{model3_forward.3} parent=1 // pred_fallthru
      _
    // Predicated region
    $region22: #{model3_forward.3} parent=1 // pred_check
      _
    $region23: #{model3_forward.3} parent=1 // pred_check_branch
      %28 = sbr.rel (0) target = $region25
    $region24: #{model3_forward.3} parent=1 // pred_region
      _
    $region25: #{model3_forward.3} parent=1 // pred_fallthru
      _
    // Predicated region
    $region26: #{model3_forward.3} parent=1 // pred_check
      _
    $region27: #{model3_forward.3} parent=1 // pred_check_branch
      %30 = sbr.rel (0) target = $region29
    $region28: #{model3_forward.3} parent=1 // pred_region
      _
    $region29: #{model3_forward.3} parent=1 // pred_fallthru
      _
    // Predicated region
    $region30: #{model3_forward.3} parent=1 // pred_check
      _
    $region31: #{model3_forward.3} parent=1 // pred_check_branch
      %32 = sbr.rel (0) target = $region33
    $region32: #{model3_forward.3} parent=1 // pred_region
      _
    $region33: #{model3_forward.3} parent=1 // pred_fallthru
      _
    // Predicated region
    $region34: #{model3_forward.3} parent=1 // pred_check
      _
    $region35: #{model3_forward.3} parent=1 // pred_check_branch
      %34 = sbr.rel (0) target = $region37
    $region36: #{model3_forward.3} parent=1 // pred_region
      _
    $region37: #{model3_forward.3} parent=1 // pred_fallthru
      _
    // Predicated region
    $region38: #{model3_forward.3} parent=1 // pred_check
      _
    $region39: #{model3_forward.3} parent=1 // pred_check_branch
      %36 = sbr.rel (0) target = $region41
    $region40: #{model3_forward.3} parent=1 // pred_region
      _
    $region41: #{model3_forward.3} parent=1 // pred_fallthru
      _
    // Predicated region
    $region42: #{model3_forward.3} parent=1 // pred_check
      _
    $region43: #{model3_forward.3} parent=1 // pred_check_branch
      %38 = sbr.rel (0) target = $region45
    $region44: #{model3_forward.3} parent=1 // pred_region
      _
    $region45: #{model3_forward.3} parent=1 // pred_fallthru
      _
    %v40 = vld [vmem:[%s1] sm:$0xff]
    %v41 = vld [vmem:[%s1 + $0x8] sm:$0xff]
    %v42 = vld [vmem:[%s1 + $0x10] sm:$0xff]
    %v43 = vld [vmem:[%s1 + $0x18] sm:$0xff]
    %v44 = vld [vmem:[%s2] sm:$0xff]
    %v45 = vld [vmem:[%s2 + $0x8] sm:$0xff]
    %v46 = vld [vmem:[%s2 + $0x10] sm:$0xff]
    %v47 = vld [vmem:[%s2 + $0x18] sm:$0xff]
    %v48 = vld [vmem:[%s3] sm:$0xff]
    %v49 = vld [vmem:[%s3 + $0x8] sm:$0xff]
    %v50 = vld [vmem:[%s3 + $0x10] sm:$0xff]
    %v51 = vld [vmem:[%s3 + $0x18] sm:$0xff]
    %v52 = vld [vmem:[%s0] sm:$0xff]
    %v53 = vld [vmem:[%s0 + $0x8] sm:$0xff]
    %v54 = vld [vmem:[%s0 + $0x10] sm:$0xff]
    %v55 = vld [vmem:[%s0 + $0x18] sm:$0xff]
    %v56 = vld [vmem:[%s0 + $0x20] sm:$0xff]
    %v57 = vld [vmem:[%s0 + $0x28] sm:$0xff]
    %v58 = vld [vmem:[%s0 + $0x30] sm:$0xff]
    %v59 = vld [vmem:[%s0 + $0x38] sm:$0xff]
    %v60 = vld [vmem:[%s0 + $0x40] sm:$0xff]
    %v61 = vld [vmem:[%s0 + $0x48] sm:$0xff]
    %v62 = vld [vmem:[%s0 + $0x50] sm:$0xff]
    %v63 = vld [vmem:[%s0 + $0x58] sm:$0xff]
    %v64 = vld [vmem:[%s0 + $0x60] sm:$0xff]
    %v65 = vld [vmem:[%s0 + $0x68] sm:$0xff]
    %v66 = vld [vmem:[%s0 + $0x70] sm:$0xff]
    %v67 = vld [vmem:[%s0 + $0x78] sm:$0xff]
    %v68 = vld [vmem:[%s0 + $0x80] sm:$0xff]
    %v69 = vld [vmem:[%s0 + $0x88] sm:$0xff]
    %v70 = vld [vmem:[%s0 + $0x90] sm:$0xff]
    %v71 = vld [vmem:[%s0 + $0x98] sm:$0xff]
    %v72 = vld [vmem:[%s0 + $0xa0] sm:$0xff]
    %v73 = vld [vmem:[%s0 + $0xa8] sm:$0xff]
    %v74 = vld [vmem:[%s0 + $0xb0] sm:$0xff]
    %v75 = vld [vmem:[%s0 + $0xb8] sm:$0xff]
    %v76 = vld [vmem:[%s0 + $0xc0] sm:$0xff]
    %v77 = vld [vmem:[%s0 + $0xc8] sm:$0xff]
    %v78 = vld [vmem:[%s0 + $0xd0] sm:$0xff]
    %v79 = vld [vmem:[%s0 + $0xd8] sm:$0xff]
    %v80 = vld [vmem:[%s0 + $0xe0] sm:$0xff]
    %v81 = vld [vmem:[%s0 + $0xe8] sm:$0xff]
    %v82 = vld [vmem:[%s0 + $0xf0] sm:$0xff]
    %v83 = vld [vmem:[%s0 + $0xf8] sm:$0xff]
    %v84 = vld [vmem:[%s0 + $0x100] sm:$0xff]
    %v85 = vld [vmem:[%s0 + $0x108] sm:$0xff]
    %v86 = vld [vmem:[%s0 + $0x110] sm:$0xff]
    %v87 = vld [vmem:[%s0 + $0x118] sm:$0xff]
    %v92 = vunpack.c.l.b16 %v40
    %v93 = vunpack.c.h.b16 %v40
    %v94 = vunpack.c.l.b16 %v41
    %v95 = vunpack.c.h.b16 %v41
    %v96 = vunpack.c.l.b16 %v42
    %v97 = vunpack.c.h.b16 %v42
    %v98 = vunpack.c.l.b16 %v43
    %v99 = vunpack.c.h.b16 %v43
    %v100 = vpack.c.b16 %v94, %v92
    %v101 = vpack.c.b16 %v95, %v93
    %v102 = vpack.c.b16 %v98, %v96
    %v103 = vpack.c.b16 %v99, %v97
    %v142 = vunpack.c.l.b16 %v52
    %v143 = vunpack.c.h.b16 %v52
    %v144 = vunpack.c.l.b16 %v53
    %v145 = vunpack.c.h.b16 %v53
    %v146 = vunpack.c.l.b16 %v54
    %v147 = vunpack.c.h.b16 %v54
    %v148 = vunpack.c.l.b16 %v55
    %v149 = vunpack.c.h.b16 %v55
    %v150 = vunpack.c.l.b16 %v56
    %v151 = vunpack.c.h.b16 %v56
    %v152 = vunpack.c.l.b16 %v57
    %v153 = vunpack.c.h.b16 %v57
    %v154 = vunpack.c.l.b16 %v58
    %v155 = vunpack.c.h.b16 %v58
    %v156 = vunpack.c.l.b16 %v59
    %v157 = vunpack.c.h.b16 %v59
    %v158 = vunpack.c.l.b16 %v60
    %v159 = vunpack.c.h.b16 %v60
    %v160 = vunpack.c.l.b16 %v61
    %v161 = vunpack.c.h.b16 %v61
    %v162 = vunpack.c.l.b16 %v62
    %v163 = vunpack.c.h.b16 %v62
    %v164 = vunpack.c.l.b16 %v63
    %v165 = vunpack.c.h.b16 %v63
    %v166 = vunpack.c.l.b16 %v64
    %v167 = vunpack.c.h.b16 %v64
    %v168 = vunpack.c.l.b16 %v65
    %v169 = vunpack.c.h.b16 %v65
    %v170 = vunpack.c.l.b16 %v66
    %v171 = vunpack.c.h.b16 %v66
    %v172 = vunpack.c.l.b16 %v67
    %v173 = vunpack.c.h.b16 %v67
    %v174 = vunpack.c.l.b16 %v68
    %v175 = vunpack.c.h.b16 %v68
    %v176 = vunpack.c.l.b16 %v69
    %v177 = vunpack.c.h.b16 %v69
    %v178 = vunpack.c.l.b16 %v70
    %v179 = vunpack.c.h.b16 %v70
    %v180 = vunpack.c.l.b16 %v71
    %v181 = vunpack.c.h.b16 %v71
    %v182 = vunpack.c.l.b16 %v72
    %v183 = vunpack.c.h.b16 %v72
    %v184 = vunpack.c.l.b16 %v73
    %v185 = vunpack.c.h.b16 %v73
    %v186 = vunpack.c.l.b16 %v74
    %v187 = vunpack.c.h.b16 %v74
    %v188 = vunpack.c.l.b16 %v75
    %v189 = vunpack.c.h.b16 %v75
    %v190 = vunpack.c.l.b16 %v76
    %v191 = vunpack.c.h.b16 %v76
    %v192 = vunpack.c.l.b16 %v77
    %v193 = vunpack.c.h.b16 %v77
    %v194 = vunpack.c.l.b16 %v78
    %v195 = vunpack.c.h.b16 %v78
    %v196 = vunpack.c.l.b16 %v79
    %v197 = vunpack.c.h.b16 %v79
    %v198 = vunpack.c.l.b16 %v80
    %v199 = vunpack.c.h.b16 %v80
    %v200 = vunpack.c.l.b16 %v81
    %v201 = vunpack.c.h.b16 %v81
    %v202 = vunpack.c.l.b16 %v82
    %v203 = vunpack.c.h.b16 %v82
    %v204 = vunpack.c.l.b16 %v83
    %v205 = vunpack.c.h.b16 %v83
    %v206 = vunpack.c.l.b16 %v84
    %v207 = vunpack.c.h.b16 %v84
    %v208 = vunpack.c.l.b16 %v85
    %v209 = vunpack.c.h.b16 %v85
    %v210 = vunpack.c.l.b16 %v86
    %v211 = vunpack.c.h.b16 %v86
    %v212 = vunpack.c.l.b16 %v87
    %v213 = vunpack.c.h.b16 %v87
    %v214 = vpack.c.b16 %v146, %v142
    %v215 = vpack.c.b16 %v147, %v143
    %v216 = vpack.c.b16 %v148, %v144
    %v217 = vpack.c.b16 %v149, %v145
    %v218 = vpack.c.b16 %v154, %v150
    %v219 = vpack.c.b16 %v155, %v151
    %v220 = vpack.c.b16 %v156, %v152
    %v221 = vpack.c.b16 %v157, %v153
    %v222 = vpack.c.b16 %v162, %v158
    %v223 = vpack.c.b16 %v163, %v159
    %v224 = vpack.c.b16 %v164, %v160
    %v225 = vpack.c.b16 %v165, %v161
    %v226 = vpack.c.b16 %v170, %v166
    %v227 = vpack.c.b16 %v171, %v167
    %v228 = vpack.c.b16 %v172, %v168
    %v229 = vpack.c.b16 %v173, %v169
    %v230 = vpack.c.b16 %v178, %v174
    %v231 = vpack.c.b16 %v179, %v175
    %v232 = vpack.c.b16 %v180, %v176
    %v233 = vpack.c.b16 %v181, %v177
    %v234 = vpack.c.b16 %v186, %v182
    %v235 = vpack.c.b16 %v187, %v183
    %v236 = vpack.c.b16 %v188, %v184
    %v237 = vpack.c.b16 %v189, %v185
    %v238 = vpack.c.b16 %v194, %v190
    %v239 = vpack.c.b16 %v195, %v191
    %v240 = vpack.c.b16 %v196, %v192
    %v241 = vpack.c.b16 %v197, %v193
    %v242 = vpack.c.b16 %v202, %v198
    %v243 = vpack.c.b16 %v203, %v199
    %v244 = vpack.c.b16 %v204, %v200
    %v245 = vpack.c.b16 %v205, %v201
    %v246 = vpack.c.b16 %v210, %v206
    %v247 = vpack.c.b16 %v211, %v207
    %v248 = vpack.c.b16 %v212, %v208
    %v249 = vpack.c.b16 %v213, %v209
    %vm286 = vcmask 130048
    %v288 = vsel %vm286, %v101, 0
    %v291 = vsel %vm286, %v103, 0
    %293 = vmatpush.bf16.msra.mxu0 %v242
    %294 = vmatpush.bf16.msra.mxu0 %v238
    %295 = vmatpush.bf16.msra.mxu0 %v234
    %296 = vmatpush.bf16.msra.mxu0 %v230
    %297 = vmatpush.bf16.msra.mxu0 %v226
    %298 = vmatpush.bf16.msra.mxu0 %v222
    %299 = vmatpush.bf16.msra.mxu0 %v218
    %300 = vmatpush.bf16.msra.mxu0 %v214
    %301 = vmatmul.bf16.gmra.mxu0 %v100
    %v302 = vpop.f32.mrf.mxu0
    %v303 = vadd.f32 0.0, %v302
    %v304 = vpop.f32.mrf.mxu0
    %v305 = vadd.f32 0.0, %v304
    %306 = vmatmul.bf16.gmra.mxu0 %v102
    %v307 = vpop.f32.mrf.mxu0
    %v308 = vadd.f32 0.0, %v307
    %v309 = vpop.f32.mrf.mxu0
    %v310 = vadd.f32 0.0, %v309
    %311 = vdwg.mxu0
    %312 = vmatpush.bf16.msra.mxu0 0
    %313 = vmatpush.bf16.msra.mxu0 0
    %314 = vmatpush.bf16.msra.mxu0 0
    %315 = vmatpush.bf16.msra.mxu0 0
    %316 = vmatpush.bf16.msra.mxu0 0
    %317 = vmatpush.bf16.msra.mxu0 0
    %318 = vmatpush.bf16.msra.mxu0 0
    %319 = vmatpush.bf16.msra.mxu0 %v246
    %320 = vmatmul.bf16.gmra.mxu0 %v288
    %v321 = vpop.f32.mrf.mxu0
    %v322 = vadd.f32 %v303, %v321
    %v323 = vpop.f32.mrf.mxu0
    %v324 = vadd.f32 %v305, %v323
    %325 = vmatmul.bf16.gmra.mxu0 %v291
    %v326 = vpop.f32.mrf.mxu0
    %v327 = vadd.f32 %v308, %v326
    %v328 = vpop.f32.mrf.mxu0
    %v329 = vadd.f32 %v310, %v328
    %330 = vdwg.mxu0
    %331 = vmatpush.bf16.msra.mxu0 %v243
    %332 = vmatpush.bf16.msra.mxu0 %v239
    %333 = vmatpush.bf16.msra.mxu0 %v235
    %334 = vmatpush.bf16.msra.mxu0 %v231
    %335 = vmatpush.bf16.msra.mxu0 %v227
    %336 = vmatpush.bf16.msra.mxu0 %v223
    %337 = vmatpush.bf16.msra.mxu0 %v219
    %338 = vmatpush.bf16.msra.mxu0 %v215
    %339 = vmatmul.bf16.gmra.mxu0 %v100
    %v340 = vpop.f32.mrf.mxu0
    %v341 = vadd.f32 0.0, %v340
    %v342 = vpop.f32.mrf.mxu0
    %v343 = vadd.f32 0.0, %v342
    %344 = vmatmul.bf16.gmra.mxu0 %v102
    %v345 = vpop.f32.mrf.mxu0
    %v346 = vadd.f32 0.0, %v345
    %v347 = vpop.f32.mrf.mxu0
    %v348 = vadd.f32 0.0, %v347
    %349 = vdwg.mxu0
    %350 = vmatpush.bf16.msra.mxu0 0
    %351 = vmatpush.bf16.msra.mxu0 0
    %352 = vmatpush.bf16.msra.mxu0 0
    %353 = vmatpush.bf16.msra.mxu0 0
    %354 = vmatpush.bf16.msra.mxu0 0
    %355 = vmatpush.bf16.msra.mxu0 0
    %356 = vmatpush.bf16.msra.mxu0 0
    %357 = vmatpush.bf16.msra.mxu0 %v247
    %358 = vmatmul.bf16.gmra.mxu0 %v288
    %v359 = vpop.f32.mrf.mxu0
    %v360 = vadd.f32 %v341, %v359
    %v361 = vpop.f32.mrf.mxu0
    %v362 = vadd.f32 %v343, %v361
    %363 = vmatmul.bf16.gmra.mxu0 %v291
    %v364 = vpop.f32.mrf.mxu0
    %v365 = vadd.f32 %v346, %v364
    %v366 = vpop.f32.mrf.mxu0
    %v367 = vadd.f32 %v348, %v366
    %368 = vdwg.mxu0
    %369 = vmatpush.bf16.msra.mxu0 %v244
    %370 = vmatpush.bf16.msra.mxu0 %v240
    %371 = vmatpush.bf16.msra.mxu0 %v236
    %372 = vmatpush.bf16.msra.mxu0 %v232
    %373 = vmatpush.bf16.msra.mxu0 %v228
    %374 = vmatpush.bf16.msra.mxu0 %v224
    %375 = vmatpush.bf16.msra.mxu0 %v220
    %376 = vmatpush.bf16.msra.mxu0 %v216
    %377 = vmatmul.bf16.gmra.mxu0 %v100
    %v378 = vpop.f32.mrf.mxu0
    %v379 = vadd.f32 0.0, %v378
    %v380 = vpop.f32.mrf.mxu0
    %v381 = vadd.f32 0.0, %v380
    %382 = vmatmul.bf16.gmra.mxu0 %v102
    %v383 = vpop.f32.mrf.mxu0
    %v384 = vadd.f32 0.0, %v383
    %v385 = vpop.f32.mrf.mxu0
    %v386 = vadd.f32 0.0, %v385
    %387 = vdwg.mxu0
    %388 = vmatpush.bf16.msra.mxu0 0
    %389 = vmatpush.bf16.msra.mxu0 0
    %390 = vmatpush.bf16.msra.mxu0 0
    %391 = vmatpush.bf16.msra.mxu0 0
    %392 = vmatpush.bf16.msra.mxu0 0
    %393 = vmatpush.bf16.msra.mxu0 0
    %394 = vmatpush.bf16.msra.mxu0 0
    %395 = vmatpush.bf16.msra.mxu0 %v248
    %396 = vmatmul.bf16.gmra.mxu0 %v288
    %v397 = vpop.f32.mrf.mxu0
    %v398 = vadd.f32 %v379, %v397
    %v399 = vpop.f32.mrf.mxu0
    %v400 = vadd.f32 %v381, %v399
    %401 = vmatmul.bf16.gmra.mxu0 %v291
    %v402 = vpop.f32.mrf.mxu0
    %v403 = vadd.f32 %v384, %v402
    %v404 = vpop.f32.mrf.mxu0
    %v405 = vadd.f32 %v386, %v404
    %406 = vdwg.mxu0
    %407 = vmatpush.bf16.msra.mxu0 %v245
    %408 = vmatpush.bf16.msra.mxu0 %v241
    %409 = vmatpush.bf16.msra.mxu0 %v237
    %410 = vmatpush.bf16.msra.mxu0 %v233
    %411 = vmatpush.bf16.msra.mxu0 %v229
    %412 = vmatpush.bf16.msra.mxu0 %v225
    %413 = vmatpush.bf16.msra.mxu0 %v221
    %414 = vmatpush.bf16.msra.mxu0 %v217
    %415 = vmatmul.bf16.gmra.mxu0 %v100
    %v416 = vpop.f32.mrf.mxu0
    %v417 = vadd.f32 0.0, %v416
    %v418 = vpop.f32.mrf.mxu0
    %v419 = vadd.f32 0.0, %v418
    %420 = vmatmul.bf16.gmra.mxu0 %v102
    %v421 = vpop.f32.mrf.mxu0
    %v422 = vadd.f32 0.0, %v421
    %v423 = vpop.f32.mrf.mxu0
    %v424 = vadd.f32 0.0, %v423
    %425 = vdwg.mxu0
    %426 = vmatpush.bf16.msra.mxu0 0
    %427 = vmatpush.bf16.msra.mxu0 0
    %428 = vmatpush.bf16.msra.mxu0 0
    %429 = vmatpush.bf16.msra.mxu0 0
    %430 = vmatpush.bf16.msra.mxu0 0
    %431 = vmatpush.bf16.msra.mxu0 0
    %432 = vmatpush.bf16.msra.mxu0 0
    %433 = vmatpush.bf16.msra.mxu0 %v249
    %434 = vmatmul.bf16.gmra.mxu0 %v288
    %v435 = vpop.f32.mrf.mxu0
    %v436 = vadd.f32 %v417, %v435
    %v437 = vpop.f32.mrf.mxu0
    %v438 = vadd.f32 %v419, %v437
    %439 = vmatmul.bf16.gmra.mxu0 %v291
    %v440 = vpop.f32.mrf.mxu0
    %v441 = vadd.f32 %v422, %v440
    %v442 = vpop.f32.mrf.mxu0
    %v443 = vadd.f32 %v424, %v442
    %444 = vdwg.mxu0
    %446 = vset.pattern.permute.xlu0 0
    %447 = vperm.xlu0 %446, %v44
    %v448 = vpop.permute.xlu0 %447
    %451 = vset.pattern.permute.xlu0 0
    %452 = vperm.xlu0 %451, %v45
    %v453 = vpop.permute.xlu0 %452
    %456 = vset.pattern.permute.xlu0 0
    %457 = vperm.xlu0 %456, %v46
    %v458 = vpop.permute.xlu0 %457
    %461 = vset.pattern.permute.xlu0 0
    %462 = vperm.xlu0 %461, %v47
    %v463 = vpop.permute.xlu0 %462
    %v465 = vmul.f32 %v322, %v448
    %v466 = vmul.f32 %v360, %v448
    %v467 = vmul.f32 %v398, %v448
    %v468 = vmul.f32 %v436, %v448
    %v469 = vmul.f32 %v324, %v453
    %v470 = vmul.f32 %v362, %v453
    %v471 = vmul.f32 %v400, %v453
    %v472 = vmul.f32 %v438, %v453
    %v473 = vmul.f32 %v327, %v458
    %v474 = vmul.f32 %v365, %v458
    %v475 = vmul.f32 %v403, %v458
    %v476 = vmul.f32 %v441, %v458
    %v477 = vmul.f32 %v329, %v463
    %v478 = vmul.f32 %v367, %v463
    %v479 = vmul.f32 %v405, %v463
    %v480 = vmul.f32 %v443, %v463
    %482 = vset.pattern.permute.xlu0 0
    %483 = vperm.xlu0 %482, %v48
    %v484 = vpop.permute.xlu0 %483
    %487 = vset.pattern.permute.xlu0 0
    %488 = vperm.xlu0 %487, %v49
    %v489 = vpop.permute.xlu0 %488
    %492 = vset.pattern.permute.xlu0 0
    %493 = vperm.xlu0 %492, %v50
    %v494 = vpop.permute.xlu0 %493
    %497 = vset.pattern.permute.xlu0 0
    %498 = vperm.xlu0 %497, %v51
    %v499 = vpop.permute.xlu0 %498
    %v501 = vadd.f32 %v465, %v484
    %v502 = vadd.f32 %v466, %v484
    %v503 = vadd.f32 %v467, %v484
    %v504 = vadd.f32 %v468, %v484
    %v505 = vadd.f32 %v469, %v489
    %v506 = vadd.f32 %v470, %v489
    %v507 = vadd.f32 %v471, %v489
    %v508 = vadd.f32 %v472, %v489
    %v509 = vadd.f32 %v473, %v494
    %v510 = vadd.f32 %v474, %v494
    %v511 = vadd.f32 %v475, %v494
    %v512 = vadd.f32 %v476, %v494
    %v513 = vadd.f32 %v477, %v499
    %v514 = vadd.f32 %v478, %v499
    %v515 = vadd.f32 %v479, %v499
    %v516 = vadd.f32 %v480, %v499
    %s517 = scalar_lea.vmem %s0, 288
    %v518 = vld [vmem:[%s517] sm:$0xff]
    %v519 = vld [vmem:[%s517 + $0x8] sm:$0xff]
    %v520 = vld [vmem:[%s517 + $0x10] sm:$0xff]
    %v521 = vld [vmem:[%s517 + $0x18] sm:$0xff]
    %v522 = vld [vmem:[%s517 + $0x20] sm:$0xff]
    %v523 = vld [vmem:[%s517 + $0x28] sm:$0xff]
    %v524 = vld [vmem:[%s517 + $0x30] sm:$0xff]
    %v525 = vld [vmem:[%s517 + $0x38] sm:$0xff]
    %v526 = vld [vmem:[%s517 + $0x40] sm:$0xff]
    %v527 = vld [vmem:[%s517 + $0x48] sm:$0xff]
    %v528 = vld [vmem:[%s517 + $0x50] sm:$0xff]
    %v529 = vld [vmem:[%s517 + $0x58] sm:$0xff]
    %v530 = vld [vmem:[%s517 + $0x60] sm:$0xff]
    %v531 = vld [vmem:[%s517 + $0x68] sm:$0xff]
    %v532 = vld [vmem:[%s517 + $0x70] sm:$0xff]
    %v533 = vld [vmem:[%s517 + $0x78] sm:$0xff]
    %v534 = vld [vmem:[%s517 + $0x80] sm:$0xff]
    %v535 = vld [vmem:[%s517 + $0x88] sm:$0xff]
    %v536 = vld [vmem:[%s517 + $0x90] sm:$0xff]
    %v537 = vld [vmem:[%s517 + $0x98] sm:$0xff]
    %v538 = vld [vmem:[%s517 + $0xa0] sm:$0xff]
    %v539 = vld [vmem:[%s517 + $0xa8] sm:$0xff]
    %v540 = vld [vmem:[%s517 + $0xb0] sm:$0xff]
    %v541 = vld [vmem:[%s517 + $0xb8] sm:$0xff]
    %v542 = vld [vmem:[%s517 + $0xc0] sm:$0xff]
    %v543 = vld [vmem:[%s517 + $0xc8] sm:$0xff]
    %v544 = vld [vmem:[%s517 + $0xd0] sm:$0xff]
    %v545 = vld [vmem:[%s517 + $0xd8] sm:$0xff]
    %v546 = vld [vmem:[%s517 + $0xe0] sm:$0xff]
    %v547 = vld [vmem:[%s517 + $0xe8] sm:$0xff]
    %v548 = vld [vmem:[%s517 + $0xf0] sm:$0xff]
    %v549 = vld [vmem:[%s517 + $0xf8] sm:$0xff]
    %v550 = vld [vmem:[%s517 + $0x100] sm:$0xff]
    %v551 = vld [vmem:[%s517 + $0x108] sm:$0xff]
    %v552 = vld [vmem:[%s517 + $0x110] sm:$0xff]
    %v553 = vld [vmem:[%s517 + $0x118] sm:$0xff]
    %v590 = vunpack.c.l.b16 %v518
    %v591 = vunpack.c.h.b16 %v518
    %v592 = vunpack.c.l.b16 %v519
    %v593 = vunpack.c.h.b16 %v519
    %v594 = vunpack.c.l.b16 %v520
    %v595 = vunpack.c.h.b16 %v520
    %v596 = vunpack.c.l.b16 %v521
    %v597 = vunpack.c.h.b16 %v521
    %v598 = vunpack.c.l.b16 %v522
    %v599 = vunpack.c.h.b16 %v522
    %v600 = vunpack.c.l.b16 %v523
    %v601 = vunpack.c.h.b16 %v523
    %v602 = vunpack.c.l.b16 %v524
    %v603 = vunpack.c.h.b16 %v524
    %v604 = vunpack.c.l.b16 %v525
    %v605 = vunpack.c.h.b16 %v525
    %v606 = vunpack.c.l.b16 %v526
    %v607 = vunpack.c.h.b16 %v526
    %v608 = vunpack.c.l.b16 %v527
    %v609 = vunpack.c.h.b16 %v527
    %v610 = vunpack.c.l.b16 %v528
    %v611 = vunpack.c.h.b16 %v528
    %v612 = vunpack.c.l.b16 %v529
    %v613 = vunpack.c.h.b16 %v529
    %v614 = vunpack.c.l.b16 %v530
    %v615 = vunpack.c.h.b16 %v530
    %v616 = vunpack.c.l.b16 %v531
    %v617 = vunpack.c.h.b16 %v531
    %v618 = vunpack.c.l.b16 %v532
    %v619 = vunpack.c.h.b16 %v532
    %v620 = vunpack.c.l.b16 %v533
    %v621 = vunpack.c.h.b16 %v533
    %v622 = vunpack.c.l.b16 %v534
    %v623 = vunpack.c.h.b16 %v534
    %v624 = vunpack.c.l.b16 %v535
    %v625 = vunpack.c.h.b16 %v535
    %v626 = vunpack.c.l.b16 %v536
    %v627 = vunpack.c.h.b16 %v536
    %v628 = vunpack.c.l.b16 %v537
    %v629 = vunpack.c.h.b16 %v537
    %v630 = vunpack.c.l.b16 %v538
    %v631 = vunpack.c.h.b16 %v538
    %v632 = vunpack.c.l.b16 %v539
    %v633 = vunpack.c.h.b16 %v539
    %v634 = vunpack.c.l.b16 %v540
    %v635 = vunpack.c.h.b16 %v540
    %v636 = vunpack.c.l.b16 %v541
    %v637 = vunpack.c.h.b16 %v541
    %v638 = vunpack.c.l.b16 %v542
    %v639 = vunpack.c.h.b16 %v542
    %v640 = vunpack.c.l.b16 %v543
    %v641 = vunpack.c.h.b16 %v543
    %v642 = vunpack.c.l.b16 %v544
    %v643 = vunpack.c.h.b16 %v544
    %v644 = vunpack.c.l.b16 %v545
    %v645 = vunpack.c.h.b16 %v545
    %v646 = vunpack.c.l.b16 %v546
    %v647 = vunpack.c.h.b16 %v546
    %v648 = vunpack.c.l.b16 %v547
    %v649 = vunpack.c.h.b16 %v547
    %v650 = vunpack.c.l.b16 %v548
    %v651 = vunpack.c.h.b16 %v548
    %v652 = vunpack.c.l.b16 %v549
    %v653 = vunpack.c.h.b16 %v549
    %v654 = vunpack.c.l.b16 %v550
    %v655 = vunpack.c.h.b16 %v550
    %v656 = vunpack.c.l.b16 %v551
    %v657 = vunpack.c.h.b16 %v551
    %v658 = vunpack.c.l.b16 %v552
    %v659 = vunpack.c.h.b16 %v552
    %v660 = vunpack.c.l.b16 %v553
    %v661 = vunpack.c.h.b16 %v553
    %v662 = vpack.c.b16 %v594, %v590
    %v663 = vpack.c.b16 %v595, %v591
    %v664 = vpack.c.b16 %v596, %v592
    %v665 = vpack.c.b16 %v597, %v593
    %v666 = vpack.c.b16 %v602, %v598
    %v667 = vpack.c.b16 %v603, %v599
    %v668 = vpack.c.b16 %v604, %v600
    %v669 = vpack.c.b16 %v605, %v601
    %v670 = vpack.c.b16 %v610, %v606
    %v671 = vpack.c.b16 %v611, %v607
    %v672 = vpack.c.b16 %v612, %v608
    %v673 = vpack.c.b16 %v613, %v609
    %v674 = vpack.c.b16 %v618, %v614
    %v675 = vpack.c.b16 %v619, %v615
    %v676 = vpack.c.b16 %v620, %v616
    %v677 = vpack.c.b16 %v621, %v617
    %v678 = vpack.c.b16 %v626, %v622
    %v679 = vpack.c.b16 %v627, %v623
    %v680 = vpack.c.b16 %v628, %v624
    %v681 = vpack.c.b16 %v629, %v625
    %v682 = vpack.c.b16 %v634, %v630
    %v683 = vpack.c.b16 %v635, %v631
    %v684 = vpack.c.b16 %v636, %v632
    %v685 = vpack.c.b16 %v637, %v633
    %v686 = vpack.c.b16 %v642, %v638
    %v687 = vpack.c.b16 %v643, %v639
    %v688 = vpack.c.b16 %v644, %v640
    %v689 = vpack.c.b16 %v645, %v641
    %v690 = vpack.c.b16 %v650, %v646
    %v691 = vpack.c.b16 %v651, %v647
    %v692 = vpack.c.b16 %v652, %v648
    %v693 = vpack.c.b16 %v653, %v649
    %v694 = vpack.c.b16 %v658, %v654
    %v695 = vpack.c.b16 %v659, %v655
    %v696 = vpack.c.b16 %v660, %v656
    %v697 = vpack.c.b16 %v661, %v657
    %734 = vmatpush.bf16.msra.mxu0 %v690
    %735 = vmatpush.bf16.msra.mxu0 %v686
    %736 = vmatpush.bf16.msra.mxu0 %v682
    %737 = vmatpush.bf16.msra.mxu0 %v678
    %738 = vmatpush.bf16.msra.mxu0 %v674
    %739 = vmatpush.bf16.msra.mxu0 %v670
    %740 = vmatpush.bf16.msra.mxu0 %v666
    %741 = vmatpush.bf16.msra.mxu0 %v662
    %742 = vmatmul.bf16.gmra.mxu0 %v100
    %v743 = vpop.f32.mrf.mxu0
    %v744 = vadd.f32 0.0, %v743
    %v745 = vpop.f32.mrf.mxu0
    %v746 = vadd.f32 0.0, %v745
    %747 = vmatmul.bf16.gmra.mxu0 %v102
    %v748 = vpop.f32.mrf.mxu0
    %v749 = vadd.f32 0.0, %v748
    %v750 = vpop.f32.mrf.mxu0
    %v751 = vadd.f32 0.0, %v750
    %752 = vdwg.mxu0
    %753 = vmatpush.bf16.msra.mxu0 0
    %754 = vmatpush.bf16.msra.mxu0 0
    %755 = vmatpush.bf16.msra.mxu0 0
    %756 = vmatpush.bf16.msra.mxu0 0
    %757 = vmatpush.bf16.msra.mxu0 0
    %758 = vmatpush.bf16.msra.mxu0 0
    %759 = vmatpush.bf16.msra.mxu0 0
    %760 = vmatpush.bf16.msra.mxu0 %v694
    %761 = vmatmul.bf16.gmra.mxu0 %v288
    %v762 = vpop.f32.mrf.mxu0
    %v763 = vadd.f32 %v744, %v762
    %v764 = vpop.f32.mrf.mxu0
    %v765 = vadd.f32 %v746, %v764
    %766 = vmatmul.bf16.gmra.mxu0 %v291
    %v767 = vpop.f32.mrf.mxu0
    %v768 = vadd.f32 %v749, %v767
    %v769 = vpop.f32.mrf.mxu0
    %v770 = vadd.f32 %v751, %v769
    %771 = vdwg.mxu0
    %772 = vmatpush.bf16.msra.mxu0 %v691
    %773 = vmatpush.bf16.msra.mxu0 %v687
    %774 = vmatpush.bf16.msra.mxu0 %v683
    %775 = vmatpush.bf16.msra.mxu0 %v679
    %776 = vmatpush.bf16.msra.mxu0 %v675
    %777 = vmatpush.bf16.msra.mxu0 %v671
    %778 = vmatpush.bf16.msra.mxu0 %v667
    %779 = vmatpush.bf16.msra.mxu0 %v663
    %780 = vmatmul.bf16.gmra.mxu0 %v100
    %v781 = vpop.f32.mrf.mxu0
    %v782 = vadd.f32 0.0, %v781
    %v783 = vpop.f32.mrf.mxu0
    %v784 = vadd.f32 0.0, %v783
    %785 = vmatmul.bf16.gmra.mxu0 %v102
    %v786 = vpop.f32.mrf.mxu0
    %v787 = vadd.f32 0.0, %v786
    %v788 = vpop.f32.mrf.mxu0
    %v789 = vadd.f32 0.0, %v788
    %790 = vdwg.mxu0
    %791 = vmatpush.bf16.msra.mxu0 0
    %792 = vmatpush.bf16.msra.mxu0 0
    %793 = vmatpush.bf16.msra.mxu0 0
    %794 = vmatpush.bf16.msra.mxu0 0
    %795 = vmatpush.bf16.msra.mxu0 0
    %796 = vmatpush.bf16.msra.mxu0 0
    %797 = vmatpush.bf16.msra.mxu0 0
    %798 = vmatpush.bf16.msra.mxu0 %v695
    %799 = vmatmul.bf16.gmra.mxu0 %v288
    %v800 = vpop.f32.mrf.mxu0
    %v801 = vadd.f32 %v782, %v800
    %v802 = vpop.f32.mrf.mxu0
    %v803 = vadd.f32 %v784, %v802
    %804 = vmatmul.bf16.gmra.mxu0 %v291
    %v805 = vpop.f32.mrf.mxu0
    %v806 = vadd.f32 %v787, %v805
    %v807 = vpop.f32.mrf.mxu0
    %v808 = vadd.f32 %v789, %v807
    %809 = vdwg.mxu0
    %810 = vmatpush.bf16.msra.mxu0 %v692
    %811 = vmatpush.bf16.msra.mxu0 %v688
    %812 = vmatpush.bf16.msra.mxu0 %v684
    %813 = vmatpush.bf16.msra.mxu0 %v680
    %814 = vmatpush.bf16.msra.mxu0 %v676
    %815 = vmatpush.bf16.msra.mxu0 %v672
    %816 = vmatpush.bf16.msra.mxu0 %v668
    %817 = vmatpush.bf16.msra.mxu0 %v664
    %818 = vmatmul.bf16.gmra.mxu0 %v100
    %v819 = vpop.f32.mrf.mxu0
    %v820 = vadd.f32 0.0, %v819
    %v821 = vpop.f32.mrf.mxu0
    %v822 = vadd.f32 0.0, %v821
    %823 = vmatmul.bf16.gmra.mxu0 %v102
    %v824 = vpop.f32.mrf.mxu0
    %v825 = vadd.f32 0.0, %v824
    %v826 = vpop.f32.mrf.mxu0
    %v827 = vadd.f32 0.0, %v826
    %828 = vdwg.mxu0
    %829 = vmatpush.bf16.msra.mxu0 0
    %830 = vmatpush.bf16.msra.mxu0 0
    %831 = vmatpush.bf16.msra.mxu0 0
    %832 = vmatpush.bf16.msra.mxu0 0
    %833 = vmatpush.bf16.msra.mxu0 0
    %834 = vmatpush.bf16.msra.mxu0 0
    %835 = vmatpush.bf16.msra.mxu0 0
    %836 = vmatpush.bf16.msra.mxu0 %v696
    %837 = vmatmul.bf16.gmra.mxu0 %v288
    %v838 = vpop.f32.mrf.mxu0
    %v839 = vadd.f32 %v820, %v838
    %v840 = vpop.f32.mrf.mxu0
    %v841 = vadd.f32 %v822, %v840
    %842 = vmatmul.bf16.gmra.mxu0 %v291
    %v843 = vpop.f32.mrf.mxu0
    %v844 = vadd.f32 %v825, %v843
    %v845 = vpop.f32.mrf.mxu0
    %v846 = vadd.f32 %v827, %v845
    %847 = vdwg.mxu0
    %848 = vmatpush.bf16.msra.mxu0 %v693
    %849 = vmatpush.bf16.msra.mxu0 %v689
    %850 = vmatpush.bf16.msra.mxu0 %v685
    %851 = vmatpush.bf16.msra.mxu0 %v681
    %852 = vmatpush.bf16.msra.mxu0 %v677
    %853 = vmatpush.bf16.msra.mxu0 %v673
    %854 = vmatpush.bf16.msra.mxu0 %v669
    %855 = vmatpush.bf16.msra.mxu0 %v665
    %856 = vmatmul.bf16.gmra.mxu0 %v100
    %v857 = vpop.f32.mrf.mxu0
    %v858 = vadd.f32 0.0, %v857
    %v859 = vpop.f32.mrf.mxu0
    %v860 = vadd.f32 0.0, %v859
    %861 = vmatmul.bf16.gmra.mxu0 %v102
    %v862 = vpop.f32.mrf.mxu0
    %v863 = vadd.f32 0.0, %v862
    %v864 = vpop.f32.mrf.mxu0
    %v865 = vadd.f32 0.0, %v864
    %866 = vdwg.mxu0
    %867 = vmatpush.bf16.msra.mxu0 0
    %868 = vmatpush.bf16.msra.mxu0 0
    %869 = vmatpush.bf16.msra.mxu0 0
    %870 = vmatpush.bf16.msra.mxu0 0
    %871 = vmatpush.bf16.msra.mxu0 0
    %872 = vmatpush.bf16.msra.mxu0 0
    %873 = vmatpush.bf16.msra.mxu0 0
    %874 = vmatpush.bf16.msra.mxu0 %v697
    %875 = vmatmul.bf16.gmra.mxu0 %v288
    %v876 = vpop.f32.mrf.mxu0
    %v877 = vadd.f32 %v858, %v876
    %v878 = vpop.f32.mrf.mxu0
    %v879 = vadd.f32 %v860, %v878
    %880 = vmatmul.bf16.gmra.mxu0 %v291
    %v881 = vpop.f32.mrf.mxu0
    %v882 = vadd.f32 %v863, %v881
    %v883 = vpop.f32.mrf.mxu0
    %v884 = vadd.f32 %v865, %v883
    %885 = vdwg.mxu0
    %v886 = vmul.f32 %v763, %v448
    %v887 = vmul.f32 %v801, %v448
    %v888 = vmul.f32 %v839, %v448
    %v889 = vmul.f32 %v877, %v448
    %v890 = vmul.f32 %v765, %v453
    %v891 = vmul.f32 %v803, %v453
    %v892 = vmul.f32 %v841, %v453
    %v893 = vmul.f32 %v879, %v453
    %v894 = vmul.f32 %v768, %v458
    %v895 = vmul.f32 %v806, %v458
    %v896 = vmul.f32 %v844, %v458
    %v897 = vmul.f32 %v882, %v458
    %v898 = vmul.f32 %v770, %v463
    %v899 = vmul.f32 %v808, %v463
    %v900 = vmul.f32 %v846, %v463
    %v901 = vmul.f32 %v884, %v463
    %v902 = vadd.f32 %v886, %v484
    %v903 = vadd.f32 %v887, %v484
    %v904 = vadd.f32 %v888, %v484
    %v905 = vadd.f32 %v889, %v484
    %v906 = vadd.f32 %v890, %v489
    %v907 = vadd.f32 %v891, %v489
    %v908 = vadd.f32 %v892, %v489
    %v909 = vadd.f32 %v893, %v489
    %v910 = vadd.f32 %v894, %v494
    %v911 = vadd.f32 %v895, %v494
    %v912 = vadd.f32 %v896, %v494
    %v913 = vadd.f32 %v897, %v494
    %v914 = vadd.f32 %v898, %v499
    %v915 = vadd.f32 %v899, %v499
    %v916 = vadd.f32 %v900, %v499
    %v917 = vadd.f32 %v901, %v499
    %v918 = vmax.f32 %v501, %v902
    %v919 = vmax.f32 %v502, %v903
    %v920 = vmax.f32 %v503, %v904
    %v921 = vmax.f32 %v504, %v905
    %v922 = vmax.f32 %v505, %v906
    %v923 = vmax.f32 %v506, %v907
    %v924 = vmax.f32 %v507, %v908
    %v925 = vmax.f32 %v508, %v909
    %v926 = vmax.f32 %v509, %v910
    %v927 = vmax.f32 %v510, %v911
    %v928 = vmax.f32 %v511, %v912
    %v929 = vmax.f32 %v512, %v913
    %v930 = vmax.f32 %v513, %v914
    %v931 = vmax.f32 %v514, %v915
    %v932 = vmax.f32 %v515, %v916
    %v933 = vmax.f32 %v516, %v917
    %s934 = scalar_lea.vmem %s0, 576
    %v935 = vld [vmem:[%s934] sm:$0xff]
    %v936 = vld [vmem:[%s934 + $0x8] sm:$0xff]
    %v937 = vld [vmem:[%s934 + $0x10] sm:$0xff]
    %v938 = vld [vmem:[%s934 + $0x18] sm:$0xff]
    %v939 = vld [vmem:[%s934 + $0x20] sm:$0xff]
    %v940 = vld [vmem:[%s934 + $0x28] sm:$0xff]
    %v941 = vld [vmem:[%s934 + $0x30] sm:$0xff]
    %v942 = vld [vmem:[%s934 + $0x38] sm:$0xff]
    %v943 = vld [vmem:[%s934 + $0x40] sm:$0xff]
    %v944 = vld [vmem:[%s934 + $0x48] sm:$0xff]
    %v945 = vld [vmem:[%s934 + $0x50] sm:$0xff]
    %v946 = vld [vmem:[%s934 + $0x58] sm:$0xff]
    %v947 = vld [vmem:[%s934 + $0x60] sm:$0xff]
    %v948 = vld [vmem:[%s934 + $0x68] sm:$0xff]
    %v949 = vld [vmem:[%s934 + $0x70] sm:$0xff]
    %v950 = vld [vmem:[%s934 + $0x78] sm:$0xff]
    %v951 = vld [vmem:[%s934 + $0x80] sm:$0xff]
    %v952 = vld [vmem:[%s934 + $0x88] sm:$0xff]
    %v953 = vld [vmem:[%s934 + $0x90] sm:$0xff]
    %v954 = vld [vmem:[%s934 + $0x98] sm:$0xff]
    %v955 = vld [vmem:[%s934 + $0xa0] sm:$0xff]
    %v956 = vld [vmem:[%s934 + $0xa8] sm:$0xff]
    %v957 = vld [vmem:[%s934 + $0xb0] sm:$0xff]
    %v958 = vld [vmem:[%s934 + $0xb8] sm:$0xff]
    %v959 = vld [vmem:[%s934 + $0xc0] sm:$0xff]
    %v960 = vld [vmem:[%s934 + $0xc8] sm:$0xff]
    %v961 = vld [vmem:[%s934 + $0xd0] sm:$0xff]
    %v962 = vld [vmem:[%s934 + $0xd8] sm:$0xff]
    %v963 = vld [vmem:[%s934 + $0xe0] sm:$0xff]
    %v964 = vld [vmem:[%s934 + $0xe8] sm:$0xff]
    %v965 = vld [vmem:[%s934 + $0xf0] sm:$0xff]
    %v966 = vld [vmem:[%s934 + $0xf8] sm:$0xff]
    %v967 = vld [vmem:[%s934 + $0x100] sm:$0xff]
    %v968 = vld [vmem:[%s934 + $0x108] sm:$0xff]
    %v969 = vld [vmem:[%s934 + $0x110] sm:$0xff]
    %v970 = vld [vmem:[%s934 + $0x118] sm:$0xff]
    %v1007 = vunpack.c.l.b16 %v935
    %v1008 = vunpack.c.h.b16 %v935
    %v1009 = vunpack.c.l.b16 %v936
    %v1010 = vunpack.c.h.b16 %v936
    %v1011 = vunpack.c.l.b16 %v937
    %v1012 = vunpack.c.h.b16 %v937
    %v1013 = vunpack.c.l.b16 %v938
    %v1014 = vunpack.c.h.b16 %v938
    %v1015 = vunpack.c.l.b16 %v939
    %v1016 = vunpack.c.h.b16 %v939
    %v1017 = vunpack.c.l.b16 %v940
    %v1018 = vunpack.c.h.b16 %v940
    %v1019 = vunpack.c.l.b16 %v941
    %v1020 = vunpack.c.h.b16 %v941
    %v1021 = vunpack.c.l.b16 %v942
    %v1022 = vunpack.c.h.b16 %v942
    %v1023 = vunpack.c.l.b16 %v943
    %v1024 = vunpack.c.h.b16 %v943
    %v1025 = vunpack.c.l.b16 %v944
    %v1026 = vunpack.c.h.b16 %v944
    %v1027 = vunpack.c.l.b16 %v945
    %v1028 = vunpack.c.h.b16 %v945
    %v1029 = vunpack.c.l.b16 %v946
    %v1030 = vunpack.c.h.b16 %v946
    %v1031 = vunpack.c.l.b16 %v947
    %v1032 = vunpack.c.h.b16 %v947
    %v1033 = vunpack.c.l.b16 %v948
    %v1034 = vunpack.c.h.b16 %v948
    %v1035 = vunpack.c.l.b16 %v949
    %v1036 = vunpack.c.h.b16 %v949
    %v1037 = vunpack.c.l.b16 %v950
    %v1038 = vunpack.c.h.b16 %v950
    %v1039 = vunpack.c.l.b16 %v951
    %v1040 = vunpack.c.h.b16 %v951
    %v1041 = vunpack.c.l.b16 %v952
    %v1042 = vunpack.c.h.b16 %v952
    %v1043 = vunpack.c.l.b16 %v953
    %v1044 = vunpack.c.h.b16 %v953
    %v1045 = vunpack.c.l.b16 %v954
    %v1046 = vunpack.c.h.b16 %v954
    %v1047 = vunpack.c.l.b16 %v955
    %v1048 = vunpack.c.h.b16 %v955
    %v1049 = vunpack.c.l.b16 %v956
    %v1050 = vunpack.c.h.b16 %v956
    %v1051 = vunpack.c.l.b16 %v957
    %v1052 = vunpack.c.h.b16 %v957
    %v1053 = vunpack.c.l.b16 %v958
    %v1054 = vunpack.c.h.b16 %v958
    %v1055 = vunpack.c.l.b16 %v959
    %v1056 = vunpack.c.h.b16 %v959
    %v1057 = vunpack.c.l.b16 %v960
    %v1058 = vunpack.c.h.b16 %v960
    %v1059 = vunpack.c.l.b16 %v961
    %v1060 = vunpack.c.h.b16 %v961
    %v1061 = vunpack.c.l.b16 %v962
    %v1062 = vunpack.c.h.b16 %v962
    %v1063 = vunpack.c.l.b16 %v963
    %v1064 = vunpack.c.h.b16 %v963
    %v1065 = vunpack.c.l.b16 %v964
    %v1066 = vunpack.c.h.b16 %v964
    %v1067 = vunpack.c.l.b16 %v965
    %v1068 = vunpack.c.h.b16 %v965
    %v1069 = vunpack.c.l.b16 %v966
    %v1070 = vunpack.c.h.b16 %v966
    %v1071 = vunpack.c.l.b16 %v967
    %v1072 = vunpack.c.h.b16 %v967
    %v1073 = vunpack.c.l.b16 %v968
    %v1074 = vunpack.c.h.b16 %v968
    %v1075 = vunpack.c.l.b16 %v969
    %v1076 = vunpack.c.h.b16 %v969
    %v1077 = vunpack.c.l.b16 %v970
    %v1078 = vunpack.c.h.b16 %v970
    %v1079 = vpack.c.b16 %v1011, %v1007
    %v1080 = vpack.c.b16 %v1012, %v1008
    %v1081 = vpack.c.b16 %v1013, %v1009
    %v1082 = vpack.c.b16 %v1014, %v1010
    %v1083 = vpack.c.b16 %v1019, %v1015
    %v1084 = vpack.c.b16 %v1020, %v1016
    %v1085 = vpack.c.b16 %v1021, %v1017
    %v1086 = vpack.c.b16 %v1022, %v1018
    %v1087 = vpack.c.b16 %v1027, %v1023
    %v1088 = vpack.c.b16 %v1028, %v1024
    %v1089 = vpack.c.b16 %v1029, %v1025
    %v1090 = vpack.c.b16 %v1030, %v1026
    %v1091 = vpack.c.b16 %v1035, %v1031
    %v1092 = vpack.c.b16 %v1036, %v1032
    %v1093 = vpack.c.b16 %v1037, %v1033
    %v1094 = vpack.c.b16 %v1038, %v1034
    %v1095 = vpack.c.b16 %v1043, %v1039
    %v1096 = vpack.c.b16 %v1044, %v1040
    %v1097 = vpack.c.b16 %v1045, %v1041
    %v1098 = vpack.c.b16 %v1046, %v1042
    %v1099 = vpack.c.b16 %v1051, %v1047
    %v1100 = vpack.c.b16 %v1052, %v1048
    %v1101 = vpack.c.b16 %v1053, %v1049
    %v1102 = vpack.c.b16 %v1054, %v1050
    %v1103 = vpack.c.b16 %v1059, %v1055
    %v1104 = vpack.c.b16 %v1060, %v1056
    %v1105 = vpack.c.b16 %v1061, %v1057
    %v1106 = vpack.c.b16 %v1062, %v1058
    %v1107 = vpack.c.b16 %v1067, %v1063
    %v1108 = vpack.c.b16 %v1068, %v1064
    %v1109 = vpack.c.b16 %v1069, %v1065
    %v1110 = vpack.c.b16 %v1070, %v1066
    %v1111 = vpack.c.b16 %v1075, %v1071
    %v1112 = vpack.c.b16 %v1076, %v1072
    %v1113 = vpack.c.b16 %v1077, %v1073
    %v1114 = vpack.c.b16 %v1078, %v1074
    %1151 = vmatpush.bf16.msra.mxu0 %v1107
    %1152 = vmatpush.bf16.msra.mxu0 %v1103
    %1153 = vmatpush.bf16.msra.mxu0 %v1099
    %1154 = vmatpush.bf16.msra.mxu0 %v1095
    %1155 = vmatpush.bf16.msra.mxu0 %v1091
    %1156 = vmatpush.bf16.msra.mxu0 %v1087
    %1157 = vmatpush.bf16.msra.mxu0 %v1083
    %1158 = vmatpush.bf16.msra.mxu0 %v1079
    %1159 = vmatmul.bf16.gmra.mxu0 %v100
    %v1160 = vpop.f32.mrf.mxu0
    %v1161 = vadd.f32 0.0, %v1160
    %v1162 = vpop.f32.mrf.mxu0
    %v1163 = vadd.f32 0.0, %v1162
    %1164 = vmatmul.bf16.gmra.mxu0 %v102
    %v1165 = vpop.f32.mrf.mxu0
    %v1166 = vadd.f32 0.0, %v1165
    %v1167 = vpop.f32.mrf.mxu0
    %v1168 = vadd.f32 0.0, %v1167
    %1169 = vdwg.mxu0
    %1170 = vmatpush.bf16.msra.mxu0 0
    %1171 = vmatpush.bf16.msra.mxu0 0
    %1172 = vmatpush.bf16.msra.mxu0 0
    %1173 = vmatpush.bf16.msra.mxu0 0
    %1174 = vmatpush.bf16.msra.mxu0 0
    %1175 = vmatpush.bf16.msra.mxu0 0
    %1176 = vmatpush.bf16.msra.mxu0 0
    %1177 = vmatpush.bf16.msra.mxu0 %v1111
    %1178 = vmatmul.bf16.gmra.mxu0 %v288
    %v1179 = vpop.f32.mrf.mxu0
    %v1180 = vadd.f32 %v1161, %v1179
    %v1181 = vpop.f32.mrf.mxu0
    %v1182 = vadd.f32 %v1163, %v1181
    %1183 = vmatmul.bf16.gmra.mxu0 %v291
    %v1184 = vpop.f32.mrf.mxu0
    %v1185 = vadd.f32 %v1166, %v1184
    %v1186 = vpop.f32.mrf.mxu0
    %v1187 = vadd.f32 %v1168, %v1186
    %1188 = vdwg.mxu0
    %1189 = vmatpush.bf16.msra.mxu0 %v1108
    %1190 = vmatpush.bf16.msra.mxu0 %v1104
    %1191 = vmatpush.bf16.msra.mxu0 %v1100
    %1192 = vmatpush.bf16.msra.mxu0 %v1096
    %1193 = vmatpush.bf16.msra.mxu0 %v1092
    %1194 = vmatpush.bf16.msra.mxu0 %v1088
    %1195 = vmatpush.bf16.msra.mxu0 %v1084
    %1196 = vmatpush.bf16.msra.mxu0 %v1080
    %1197 = vmatmul.bf16.gmra.mxu0 %v100
    %v1198 = vpop.f32.mrf.mxu0
    %v1199 = vadd.f32 0.0, %v1198
    %v1200 = vpop.f32.mrf.mxu0
    %v1201 = vadd.f32 0.0, %v1200
    %1202 = vmatmul.bf16.gmra.mxu0 %v102
    %v1203 = vpop.f32.mrf.mxu0
    %v1204 = vadd.f32 0.0, %v1203
    %v1205 = vpop.f32.mrf.mxu0
    %v1206 = vadd.f32 0.0, %v1205
    %1207 = vdwg.mxu0
    %1208 = vmatpush.bf16.msra.mxu0 0
    %1209 = vmatpush.bf16.msra.mxu0 0
    %1210 = vmatpush.bf16.msra.mxu0 0
    %1211 = vmatpush.bf16.msra.mxu0 0
    %1212 = vmatpush.bf16.msra.mxu0 0
    %1213 = vmatpush.bf16.msra.mxu0 0
    %1214 = vmatpush.bf16.msra.mxu0 0
    %1215 = vmatpush.bf16.msra.mxu0 %v1112
    %1216 = vmatmul.bf16.gmra.mxu0 %v288
    %v1217 = vpop.f32.mrf.mxu0
    %v1218 = vadd.f32 %v1199, %v1217
    %v1219 = vpop.f32.mrf.mxu0
    %v1220 = vadd.f32 %v1201, %v1219
    %1221 = vmatmul.bf16.gmra.mxu0 %v291
    %v1222 = vpop.f32.mrf.mxu0
    %v1223 = vadd.f32 %v1204, %v1222
    %v1224 = vpop.f32.mrf.mxu0
    %v1225 = vadd.f32 %v1206, %v1224
    %1226 = vdwg.mxu0
    %1227 = vmatpush.bf16.msra.mxu0 %v1109
    %1228 = vmatpush.bf16.msra.mxu0 %v1105
    %1229 = vmatpush.bf16.msra.mxu0 %v1101
    %1230 = vmatpush.bf16.msra.mxu0 %v1097
    %1231 = vmatpush.bf16.msra.mxu0 %v1093
    %1232 = vmatpush.bf16.msra.mxu0 %v1089
    %1233 = vmatpush.bf16.msra.mxu0 %v1085
    %1234 = vmatpush.bf16.msra.mxu0 %v1081
    %1235 = vmatmul.bf16.gmra.mxu0 %v100
    %v1236 = vpop.f32.mrf.mxu0
    %v1237 = vadd.f32 0.0, %v1236
    %v1238 = vpop.f32.mrf.mxu0
    %v1239 = vadd.f32 0.0, %v1238
    %1240 = vmatmul.bf16.gmra.mxu0 %v102
    %v1241 = vpop.f32.mrf.mxu0
    %v1242 = vadd.f32 0.0, %v1241
    %v1243 = vpop.f32.mrf.mxu0
    %v1244 = vadd.f32 0.0, %v1243
    %1245 = vdwg.mxu0
    %1246 = vmatpush.bf16.msra.mxu0 0
    %1247 = vmatpush.bf16.msra.mxu0 0
    %1248 = vmatpush.bf16.msra.mxu0 0
    %1249 = vmatpush.bf16.msra.mxu0 0
    %1250 = vmatpush.bf16.msra.mxu0 0
    %1251 = vmatpush.bf16.msra.mxu0 0
    %1252 = vmatpush.bf16.msra.mxu0 0
    %1253 = vmatpush.bf16.msra.mxu0 %v1113
    %1254 = vmatmul.bf16.gmra.mxu0 %v288
    %v1255 = vpop.f32.mrf.mxu0
    %v1256 = vadd.f32 %v1237, %v1255
    %v1257 = vpop.f32.mrf.mxu0
    %v1258 = vadd.f32 %v1239, %v1257
    %1259 = vmatmul.bf16.gmra.mxu0 %v291
    %v1260 = vpop.f32.mrf.mxu0
    %v1261 = vadd.f32 %v1242, %v1260
    %v1262 = vpop.f32.mrf.mxu0
    %v1263 = vadd.f32 %v1244, %v1262
    %1264 = vdwg.mxu0
    %1265 = vmatpush.bf16.msra.mxu0 %v1110
    %1266 = vmatpush.bf16.msra.mxu0 %v1106
    %1267 = vmatpush.bf16.msra.mxu0 %v1102
    %1268 = vmatpush.bf16.msra.mxu0 %v1098
    %1269 = vmatpush.bf16.msra.mxu0 %v1094
    %1270 = vmatpush.bf16.msra.mxu0 %v1090
    %1271 = vmatpush.bf16.msra.mxu0 %v1086
    %1272 = vmatpush.bf16.msra.mxu0 %v1082
    %1273 = vmatmul.bf16.gmra.mxu0 %v100
    %v1274 = vpop.f32.mrf.mxu0
    %v1275 = vadd.f32 0.0, %v1274
    %v1276 = vpop.f32.mrf.mxu0
    %v1277 = vadd.f32 0.0, %v1276
    %1278 = vmatmul.bf16.gmra.mxu0 %v102
    %v1279 = vpop.f32.mrf.mxu0
    %v1280 = vadd.f32 0.0, %v1279
    %v1281 = vpop.f32.mrf.mxu0
    %v1282 = vadd.f32 0.0, %v1281
    %1283 = vdwg.mxu0
    %1284 = vmatpush.bf16.msra.mxu0 0
    %1285 = vmatpush.bf16.msra.mxu0 0
    %1286 = vmatpush.bf16.msra.mxu0 0
    %1287 = vmatpush.bf16.msra.mxu0 0
    %1288 = vmatpush.bf16.msra.mxu0 0
    %1289 = vmatpush.bf16.msra.mxu0 0
    %1290 = vmatpush.bf16.msra.mxu0 0
    %1291 = vmatpush.bf16.msra.mxu0 %v1114
    %1292 = vmatmul.bf16.gmra.mxu0 %v288
    %v1293 = vpop.f32.mrf.mxu0
    %v1294 = vadd.f32 %v1275, %v1293
    %v1295 = vpop.f32.mrf.mxu0
    %v1296 = vadd.f32 %v1277, %v1295
    %1297 = vmatmul.bf16.gmra.mxu0 %v291
    %v1298 = vpop.f32.mrf.mxu0
    %v1299 = vadd.f32 %v1280, %v1298
    %v1300 = vpop.f32.mrf.mxu0
    %v1301 = vadd.f32 %v1282, %v1300
    %1302 = vdwg.mxu0
    %v1303 = vmul.f32 %v1180, %v448
    %v1304 = vmul.f32 %v1218, %v448
    %v1305 = vmul.f32 %v1256, %v448
    %v1306 = vmul.f32 %v1294, %v448
    %v1307 = vmul.f32 %v1182, %v453
    %v1308 = vmul.f32 %v1220, %v453
    %v1309 = vmul.f32 %v1258, %v453
    %v1310 = vmul.f32 %v1296, %v453
    %v1311 = vmul.f32 %v1185, %v458
    %v1312 = vmul.f32 %v1223, %v458
    %v1313 = vmul.f32 %v1261, %v458
    %v1314 = vmul.f32 %v1299, %v458
    %v1315 = vmul.f32 %v1187, %v463
    %v1316 = vmul.f32 %v1225, %v463
    %v1317 = vmul.f32 %v1263, %v463
    %v1318 = vmul.f32 %v1301, %v463
    %v1319 = vadd.f32 %v1303, %v484
    %v1320 = vadd.f32 %v1304, %v484
    %v1321 = vadd.f32 %v1305, %v484
    %v1322 = vadd.f32 %v1306, %v484
    %v1323 = vadd.f32 %v1307, %v489
    %v1324 = vadd.f32 %v1308, %v489
    %v1325 = vadd.f32 %v1309, %v489
    %v1326 = vadd.f32 %v1310, %v489
    %v1327 = vadd.f32 %v1311, %v494
    %v1328 = vadd.f32 %v1312, %v494
    %v1329 = vadd.f32 %v1313, %v494
    %v1330 = vadd.f32 %v1314, %v494
    %v1331 = vadd.f32 %v1315, %v499
    %v1332 = vadd.f32 %v1316, %v499
    %v1333 = vadd.f32 %v1317, %v499
    %v1334 = vadd.f32 %v1318, %v499
    %v1335 = vmax.f32 %v918, %v1319
    %v1336 = vmax.f32 %v919, %v1320
    %v1337 = vmax.f32 %v920, %v1321
    %v1338 = vmax.f32 %v921, %v1322
    %v1339 = vmax.f32 %v922, %v1323
    %v1340 = vmax.f32 %v923, %v1324
    %v1341 = vmax.f32 %v924, %v1325
    %v1342 = vmax.f32 %v925, %v1326
    %v1343 = vmax.f32 %v926, %v1327
    %v1344 = vmax.f32 %v927, %v1328
    %v1345 = vmax.f32 %v928, %v1329
    %v1346 = vmax.f32 %v929, %v1330
    %v1347 = vmax.f32 %v930, %v1331
    %v1348 = vmax.f32 %v931, %v1332
    %v1349 = vmax.f32 %v932, %v1333
    %v1350 = vmax.f32 %v933, %v1334
    %s1351 = scalar_lea.vmem %s0, 864
    %v1352 = vld [vmem:[%s1351] sm:$0xff]
    %v1353 = vld [vmem:[%s1351 + $0x8] sm:$0xff]
    %v1354 = vld [vmem:[%s1351 + $0x10] sm:$0xff]
    %v1355 = vld [vmem:[%s1351 + $0x18] sm:$0xff]
    %v1356 = vld [vmem:[%s1351 + $0x20] sm:$0xff]
    %v1357 = vld [vmem:[%s1351 + $0x28] sm:$0xff]
    %v1358 = vld [vmem:[%s1351 + $0x30] sm:$0xff]
    %v1359 = vld [vmem:[%s1351 + $0x38] sm:$0xff]
    %v1360 = vld [vmem:[%s1351 + $0x40] sm:$0xff]
    %v1361 = vld [vmem:[%s1351 + $0x48] sm:$0xff]
    %v1362 = vld [vmem:[%s1351 + $0x50] sm:$0xff]
    %v1363 = vld [vmem:[%s1351 + $0x58] sm:$0xff]
    %v1364 = vld [vmem:[%s1351 + $0x60] sm:$0xff]
    %v1365 = vld [vmem:[%s1351 + $0x68] sm:$0xff]
    %v1366 = vld [vmem:[%s1351 + $0x70] sm:$0xff]
    %v1367 = vld [vmem:[%s1351 + $0x78] sm:$0xff]
    %v1368 = vld [vmem:[%s1351 + $0x80] sm:$0xff]
    %v1369 = vld [vmem:[%s1351 + $0x88] sm:$0xff]
    %v1370 = vld [vmem:[%s1351 + $0x90] sm:$0xff]
    %v1371 = vld [vmem:[%s1351 + $0x98] sm:$0xff]
    %v1372 = vld [vmem:[%s1351 + $0xa0] sm:$0xff]
    %v1373 = vld [vmem:[%s1351 + $0xa8] sm:$0xff]
    %v1374 = vld [vmem:[%s1351 + $0xb0] sm:$0xff]
    %v1375 = vld [vmem:[%s1351 + $0xb8] sm:$0xff]
    %v1376 = vld [vmem:[%s1351 + $0xc0] sm:$0xff]
    %v1377 = vld [vmem:[%s1351 + $0xc8] sm:$0xff]
    %v1378 = vld [vmem:[%s1351 + $0xd0] sm:$0xff]
    %v1379 = vld [vmem:[%s1351 + $0xd8] sm:$0xff]
    %v1380 = vld [vmem:[%s1351 + $0xe0] sm:$0xff]
    %v1381 = vld [vmem:[%s1351 + $0xe8] sm:$0xff]
    %v1382 = vld [vmem:[%s1351 + $0xf0] sm:$0xff]
    %v1383 = vld [vmem:[%s1351 + $0xf8] sm:$0xff]
    %v1384 = vld [vmem:[%s1351 + $0x100] sm:$0xff]
    %v1385 = vld [vmem:[%s1351 + $0x108] sm:$0xff]
    %v1386 = vld [vmem:[%s1351 + $0x110] sm:$0xff]
    %v1387 = vld [vmem:[%s1351 + $0x118] sm:$0xff]
    %v1424 = vunpack.c.l.b16 %v1352
    %v1425 = vunpack.c.h.b16 %v1352
    %v1426 = vunpack.c.l.b16 %v1353
    %v1427 = vunpack.c.h.b16 %v1353
    %v1428 = vunpack.c.l.b16 %v1354
    %v1429 = vunpack.c.h.b16 %v1354
    %v1430 = vunpack.c.l.b16 %v1355
    %v1431 = vunpack.c.h.b16 %v1355
    %v1432 = vunpack.c.l.b16 %v1356
    %v1433 = vunpack.c.h.b16 %v1356
    %v1434 = vunpack.c.l.b16 %v1357
    %v1435 = vunpack.c.h.b16 %v1357
    %v1436 = vunpack.c.l.b16 %v1358
    %v1437 = vunpack.c.h.b16 %v1358
    %v1438 = vunpack.c.l.b16 %v1359
    %v1439 = vunpack.c.h.b16 %v1359
    %v1440 = vunpack.c.l.b16 %v1360
    %v1441 = vunpack.c.h.b16 %v1360
    %v1442 = vunpack.c.l.b16 %v1361
    %v1443 = vunpack.c.h.b16 %v1361
    %v1444 = vunpack.c.l.b16 %v1362
    %v1445 = vunpack.c.h.b16 %v1362
    %v1446 = vunpack.c.l.b16 %v1363
    %v1447 = vunpack.c.h.b16 %v1363
    %v1448 = vunpack.c.l.b16 %v1364
    %v1449 = vunpack.c.h.b16 %v1364
    %v1450 = vunpack.c.l.b16 %v1365
    %v1451 = vunpack.c.h.b16 %v1365
    %v1452 = vunpack.c.l.b16 %v1366
    %v1453 = vunpack.c.h.b16 %v1366
    %v1454 = vunpack.c.l.b16 %v1367
    %v1455 = vunpack.c.h.b16 %v1367
    %v1456 = vunpack.c.l.b16 %v1368
    %v1457 = vunpack.c.h.b16 %v1368
    %v1458 = vunpack.c.l.b16 %v1369
    %v1459 = vunpack.c.h.b16 %v1369
    %v1460 = vunpack.c.l.b16 %v1370
    %v1461 = vunpack.c.h.b16 %v1370
    %v1462 = vunpack.c.l.b16 %v1371
    %v1463 = vunpack.c.h.b16 %v1371
    %v1464 = vunpack.c.l.b16 %v1372
    %v1465 = vunpack.c.h.b16 %v1372
    %v1466 = vunpack.c.l.b16 %v1373
    %v1467 = vunpack.c.h.b16 %v1373
    %v1468 = vunpack.c.l.b16 %v1374
    %v1469 = vunpack.c.h.b16 %v1374
    %v1470 = vunpack.c.l.b16 %v1375
    %v1471 = vunpack.c.h.b16 %v1375
    %v1472 = vunpack.c.l.b16 %v1376
    %v1473 = vunpack.c.h.b16 %v1376
    %v1474 = vunpack.c.l.b16 %v1377
    %v1475 = vunpack.c.h.b16 %v1377
    %v1476 = vunpack.c.l.b16 %v1378
    %v1477 = vunpack.c.h.b16 %v1378
    %v1478 = vunpack.c.l.b16 %v1379
    %v1479 = vunpack.c.h.b16 %v1379
    %v1480 = vunpack.c.l.b16 %v1380
    %v1481 = vunpack.c.h.b16 %v1380
    %v1482 = vunpack.c.l.b16 %v1381
    %v1483 = vunpack.c.h.b16 %v1381
    %v1484 = vunpack.c.l.b16 %v1382
    %v1485 = vunpack.c.h.b16 %v1382
    %v1486 = vunpack.c.l.b16 %v1383
    %v1487 = vunpack.c.h.b16 %v1383
    %v1488 = vunpack.c.l.b16 %v1384
    %v1489 = vunpack.c.h.b16 %v1384
    %v1490 = vunpack.c.l.b16 %v1385
    %v1491 = vunpack.c.h.b16 %v1385
    %v1492 = vunpack.c.l.b16 %v1386
    %v1493 = vunpack.c.h.b16 %v1386
    %v1494 = vunpack.c.l.b16 %v1387
    %v1495 = vunpack.c.h.b16 %v1387
    %v1496 = vpack.c.b16 %v1428, %v1424
    %v1497 = vpack.c.b16 %v1429, %v1425
    %v1498 = vpack.c.b16 %v1430, %v1426
    %v1499 = vpack.c.b16 %v1431, %v1427
    %v1500 = vpack.c.b16 %v1436, %v1432
    %v1501 = vpack.c.b16 %v1437, %v1433
    %v1502 = vpack.c.b16 %v1438, %v1434
    %v1503 = vpack.c.b16 %v1439, %v1435
    %v1504 = vpack.c.b16 %v1444, %v1440
    %v1505 = vpack.c.b16 %v1445, %v1441
    %v1506 = vpack.c.b16 %v1446, %v1442
    %v1507 = vpack.c.b16 %v1447, %v1443
    %v1508 = vpack.c.b16 %v1452, %v1448
    %v1509 = vpack.c.b16 %v1453, %v1449
    %v1510 = vpack.c.b16 %v1454, %v1450
    %v1511 = vpack.c.b16 %v1455, %v1451
    %v1512 = vpack.c.b16 %v1460, %v1456
    %v1513 = vpack.c.b16 %v1461, %v1457
    %v1514 = vpack.c.b16 %v1462, %v1458
    %v1515 = vpack.c.b16 %v1463, %v1459
    %v1516 = vpack.c.b16 %v1468, %v1464
    %v1517 = vpack.c.b16 %v1469, %v1465
    %v1518 = vpack.c.b16 %v1470, %v1466
    %v1519 = vpack.c.b16 %v1471, %v1467
    %v1520 = vpack.c.b16 %v1476, %v1472
    %v1521 = vpack.c.b16 %v1477, %v1473
    %v1522 = vpack.c.b16 %v1478, %v1474
    %v1523 = vpack.c.b16 %v1479, %v1475
    %v1524 = vpack.c.b16 %v1484, %v1480
    %v1525 = vpack.c.b16 %v1485, %v1481
    %v1526 = vpack.c.b16 %v1486, %v1482
    %v1527 = vpack.c.b16 %v1487, %v1483
    %v1528 = vpack.c.b16 %v1492, %v1488
    %v1529 = vpack.c.b16 %v1493, %v1489
    %v1530 = vpack.c.b16 %v1494, %v1490
    %v1531 = vpack.c.b16 %v1495, %v1491
    %1568 = vmatpush.bf16.msra.mxu0 %v1524
    %1569 = vmatpush.bf16.msra.mxu0 %v1520
    %1570 = vmatpush.bf16.msra.mxu0 %v1516
    %1571 = vmatpush.bf16.msra.mxu0 %v1512
    %1572 = vmatpush.bf16.msra.mxu0 %v1508
    %1573 = vmatpush.bf16.msra.mxu0 %v1504
    %1574 = vmatpush.bf16.msra.mxu0 %v1500
    %1575 = vmatpush.bf16.msra.mxu0 %v1496
    %1576 = vmatmul.bf16.gmra.mxu0 %v100
    %v1577 = vpop.f32.mrf.mxu0
    %v1578 = vadd.f32 0.0, %v1577
    %v1579 = vpop.f32.mrf.mxu0
    %v1580 = vadd.f32 0.0, %v1579
    %1581 = vmatmul.bf16.gmra.mxu0 %v102
    %v1582 = vpop.f32.mrf.mxu0
    %v1583 = vadd.f32 0.0, %v1582
    %v1584 = vpop.f32.mrf.mxu0
    %v1585 = vadd.f32 0.0, %v1584
    %1586 = vdwg.mxu0
    %1587 = vmatpush.bf16.msra.mxu0 0
    %1588 = vmatpush.bf16.msra.mxu0 0
    %1589 = vmatpush.bf16.msra.mxu0 0
    %1590 = vmatpush.bf16.msra.mxu0 0
    %1591 = vmatpush.bf16.msra.mxu0 0
    %1592 = vmatpush.bf16.msra.mxu0 0
    %1593 = vmatpush.bf16.msra.mxu0 0
    %1594 = vmatpush.bf16.msra.mxu0 %v1528
    %1595 = vmatmul.bf16.gmra.mxu0 %v288
    %v1596 = vpop.f32.mrf.mxu0
    %v1597 = vadd.f32 %v1578, %v1596
    %v1598 = vpop.f32.mrf.mxu0
    %v1599 = vadd.f32 %v1580, %v1598
    %1600 = vmatmul.bf16.gmra.mxu0 %v291
    %v1601 = vpop.f32.mrf.mxu0
    %v1602 = vadd.f32 %v1583, %v1601
    %v1603 = vpop.f32.mrf.mxu0
    %v1604 = vadd.f32 %v1585, %v1603
    %1605 = vdwg.mxu0
    %1606 = vmatpush.bf16.msra.mxu0 %v1525
    %1607 = vmatpush.bf16.msra.mxu0 %v1521
    %1608 = vmatpush.bf16.msra.mxu0 %v1517
    %1609 = vmatpush.bf16.msra.mxu0 %v1513
    %1610 = vmatpush.bf16.msra.mxu0 %v1509
    %1611 = vmatpush.bf16.msra.mxu0 %v1505
    %1612 = vmatpush.bf16.msra.mxu0 %v1501
    %1613 = vmatpush.bf16.msra.mxu0 %v1497
    %1614 = vmatmul.bf16.gmra.mxu0 %v100
    %v1615 = vpop.f32.mrf.mxu0
    %v1616 = vadd.f32 0.0, %v1615
    %v1617 = vpop.f32.mrf.mxu0
    %v1618 = vadd.f32 0.0, %v1617
    %1619 = vmatmul.bf16.gmra.mxu0 %v102
    %v1620 = vpop.f32.mrf.mxu0
    %v1621 = vadd.f32 0.0, %v1620
    %v1622 = vpop.f32.mrf.mxu0
    %v1623 = vadd.f32 0.0, %v1622
    %1624 = vdwg.mxu0
    %1625 = vmatpush.bf16.msra.mxu0 0
    %1626 = vmatpush.bf16.msra.mxu0 0
    %1627 = vmatpush.bf16.msra.mxu0 0
    %1628 = vmatpush.bf16.msra.mxu0 0
    %1629 = vmatpush.bf16.msra.mxu0 0
    %1630 = vmatpush.bf16.msra.mxu0 0
    %1631 = vmatpush.bf16.msra.mxu0 0
    %1632 = vmatpush.bf16.msra.mxu0 %v1529
    %1633 = vmatmul.bf16.gmra.mxu0 %v288
    %v1634 = vpop.f32.mrf.mxu0
    %v1635 = vadd.f32 %v1616, %v1634
    %v1636 = vpop.f32.mrf.mxu0
    %v1637 = vadd.f32 %v1618, %v1636
    %1638 = vmatmul.bf16.gmra.mxu0 %v291
    %v1639 = vpop.f32.mrf.mxu0
    %v1640 = vadd.f32 %v1621, %v1639
    %v1641 = vpop.f32.mrf.mxu0
    %v1642 = vadd.f32 %v1623, %v1641
    %1643 = vdwg.mxu0
    %1644 = vmatpush.bf16.msra.mxu0 %v1526
    %1645 = vmatpush.bf16.msra.mxu0 %v1522
    %1646 = vmatpush.bf16.msra.mxu0 %v1518
    %1647 = vmatpush.bf16.msra.mxu0 %v1514
    %1648 = vmatpush.bf16.msra.mxu0 %v1510
    %1649 = vmatpush.bf16.msra.mxu0 %v1506
    %1650 = vmatpush.bf16.msra.mxu0 %v1502
    %1651 = vmatpush.bf16.msra.mxu0 %v1498
    %1652 = vmatmul.bf16.gmra.mxu0 %v100
    %v1653 = vpop.f32.mrf.mxu0
    %v1654 = vadd.f32 0.0, %v1653
    %v1655 = vpop.f32.mrf.mxu0
    %v1656 = vadd.f32 0.0, %v1655
    %1657 = vmatmul.bf16.gmra.mxu0 %v102
    %v1658 = vpop.f32.mrf.mxu0
    %v1659 = vadd.f32 0.0, %v1658
    %v1660 = vpop.f32.mrf.mxu0
    %v1661 = vadd.f32 0.0, %v1660
    %1662 = vdwg.mxu0
    %1663 = vmatpush.bf16.msra.mxu0 0
    %1664 = vmatpush.bf16.msra.mxu0 0
    %1665 = vmatpush.bf16.msra.mxu0 0
    %1666 = vmatpush.bf16.msra.mxu0 0
    %1667 = vmatpush.bf16.msra.mxu0 0
    %1668 = vmatpush.bf16.msra.mxu0 0
    %1669 = vmatpush.bf16.msra.mxu0 0
    %1670 = vmatpush.bf16.msra.mxu0 %v1530
    %1671 = vmatmul.bf16.gmra.mxu0 %v288
    %v1672 = vpop.f32.mrf.mxu0
    %v1673 = vadd.f32 %v1654, %v1672
    %v1674 = vpop.f32.mrf.mxu0
    %v1675 = vadd.f32 %v1656, %v1674
    %1676 = vmatmul.bf16.gmra.mxu0 %v291
    %v1677 = vpop.f32.mrf.mxu0
    %v1678 = vadd.f32 %v1659, %v1677
    %v1679 = vpop.f32.mrf.mxu0
    %v1680 = vadd.f32 %v1661, %v1679
    %1681 = vdwg.mxu0
    %1682 = vmatpush.bf16.msra.mxu0 %v1527
    %1683 = vmatpush.bf16.msra.mxu0 %v1523
    %1684 = vmatpush.bf16.msra.mxu0 %v1519
    %1685 = vmatpush.bf16.msra.mxu0 %v1515
    %1686 = vmatpush.bf16.msra.mxu0 %v1511
    %1687 = vmatpush.bf16.msra.mxu0 %v1507
    %1688 = vmatpush.bf16.msra.mxu0 %v1503
    %1689 = vmatpush.bf16.msra.mxu0 %v1499
    %1690 = vmatmul.bf16.gmra.mxu0 %v100
    %v1691 = vpop.f32.mrf.mxu0
    %v1692 = vadd.f32 0.0, %v1691
    %v1693 = vpop.f32.mrf.mxu0
    %v1694 = vadd.f32 0.0, %v1693
    %1695 = vmatmul.bf16.gmra.mxu0 %v102
    %v1696 = vpop.f32.mrf.mxu0
    %v1697 = vadd.f32 0.0, %v1696
    %v1698 = vpop.f32.mrf.mxu0
    %v1699 = vadd.f32 0.0, %v1698
    %1700 = vdwg.mxu0
    %1701 = vmatpush.bf16.msra.mxu0 0
    %1702 = vmatpush.bf16.msra.mxu0 0
    %1703 = vmatpush.bf16.msra.mxu0 0
    %1704 = vmatpush.bf16.msra.mxu0 0
    %1705 = vmatpush.bf16.msra.mxu0 0
    %1706 = vmatpush.bf16.msra.mxu0 0
    %1707 = vmatpush.bf16.msra.mxu0 0
    %1708 = vmatpush.bf16.msra.mxu0 %v1531
    %1709 = vmatmul.bf16.gmra.mxu0 %v288
    %v1710 = vpop.f32.mrf.mxu0
    %v1711 = vadd.f32 %v1692, %v1710
    %v1712 = vpop.f32.mrf.mxu0
    %v1713 = vadd.f32 %v1694, %v1712
    %1714 = vmatmul.bf16.gmra.mxu0 %v291
    %v1715 = vpop.f32.mrf.mxu0
    %v1716 = vadd.f32 %v1697, %v1715
    %v1717 = vpop.f32.mrf.mxu0
    %v1718 = vadd.f32 %v1699, %v1717
    %1719 = vdwg.mxu0
    %v1720 = vmul.f32 %v1597, %v448
    %v1721 = vmul.f32 %v1635, %v448
    %v1722 = vmul.f32 %v1673, %v448
    %v1723 = vmul.f32 %v1711, %v448
    %v1724 = vmul.f32 %v1599, %v453
    %v1725 = vmul.f32 %v1637, %v453
    %v1726 = vmul.f32 %v1675, %v453
    %v1727 = vmul.f32 %v1713, %v453
    %v1728 = vmul.f32 %v1602, %v458
    %v1729 = vmul.f32 %v1640, %v458
    %v1730 = vmul.f32 %v1678, %v458
    %v1731 = vmul.f32 %v1716, %v458
    %v1732 = vmul.f32 %v1604, %v463
    %v1733 = vmul.f32 %v1642, %v463
    %v1734 = vmul.f32 %v1680, %v463
    %v1735 = vmul.f32 %v1718, %v463
    %v1736 = vadd.f32 %v1720, %v484
    %v1737 = vadd.f32 %v1721, %v484
    %v1738 = vadd.f32 %v1722, %v484
    %v1739 = vadd.f32 %v1723, %v484
    %v1740 = vadd.f32 %v1724, %v489
    %v1741 = vadd.f32 %v1725, %v489
    %v1742 = vadd.f32 %v1726, %v489
    %v1743 = vadd.f32 %v1727, %v489
    %v1744 = vadd.f32 %v1728, %v494
    %v1745 = vadd.f32 %v1729, %v494
    %v1746 = vadd.f32 %v1730, %v494
    %v1747 = vadd.f32 %v1731, %v494
    %v1748 = vadd.f32 %v1732, %v499
    %v1749 = vadd.f32 %v1733, %v499
    %v1750 = vadd.f32 %v1734, %v499
    %v1751 = vadd.f32 %v1735, %v499
    %v1752 = vmax.f32 %v1335, %v1736
    %v1753 = vmax.f32 %v1336, %v1737
    %v1754 = vmax.f32 %v1337, %v1738
    %v1755 = vmax.f32 %v1338, %v1739
    %v1756 = vmax.f32 %v1339, %v1740
    %v1757 = vmax.f32 %v1340, %v1741
    %v1758 = vmax.f32 %v1341, %v1742
    %v1759 = vmax.f32 %v1342, %v1743
    %v1760 = vmax.f32 %v1343, %v1744
    %v1761 = vmax.f32 %v1344, %v1745
    %v1762 = vmax.f32 %v1345, %v1746
    %v1763 = vmax.f32 %v1346, %v1747
    %v1764 = vmax.f32 %v1347, %v1748
    %v1765 = vmax.f32 %v1348, %v1749
    %v1766 = vmax.f32 %v1349, %v1750
    %v1767 = vmax.f32 %v1350, %v1751
    %v1768 = vmax.f32 %v1752, 0.0
    %v1769 = vmax.f32 %v1753, 0.0
    %v1770 = vmax.f32 %v1754, 0.0
    %v1771 = vmax.f32 %v1755, 0.0
    %v1772 = vmax.f32 %v1756, 0.0
    %v1773 = vmax.f32 %v1757, 0.0
    %v1774 = vmax.f32 %v1758, 0.0
    %v1775 = vmax.f32 %v1759, 0.0
    %v1776 = vmax.f32 %v1760, 0.0
    %v1777 = vmax.f32 %v1761, 0.0
    %v1778 = vmax.f32 %v1762, 0.0
    %v1779 = vmax.f32 %v1763, 0.0
    %v1780 = vmax.f32 %v1764, 0.0
    %v1781 = vmax.f32 %v1765, 0.0
    %v1782 = vmax.f32 %v1766, 0.0
    %v1783 = vmax.f32 %v1767, 0.0
    %v1784 = vpack.c.bf16 %v1769, %v1768
    %v1785 = vpack.c.bf16 %v1771, %v1770
    %v1786 = vpack.c.bf16 %v1773, %v1772
    %v1787 = vpack.c.bf16 %v1775, %v1774
    %v1788 = vpack.c.bf16 %v1777, %v1776
    %v1789 = vpack.c.bf16 %v1779, %v1778
    %v1790 = vpack.c.bf16 %v1781, %v1780
    %v1791 = vpack.c.bf16 %v1783, %v1782
    %v1792 = vld [vmem:[%s4] sm:$0xff]
    %v1793 = vld [vmem:[%s4 + $0x8] sm:$0xf]
    %v1794 = vld [vmem:[%s4 + $0xc] sm:$0xff]
    %v1795 = vld [vmem:[%s4 + $0x14] sm:$0xf]
    %v1796 = vld [vmem:[%s4 + $0x18] sm:$0xff]
    %v1797 = vld [vmem:[%s4 + $0x20] sm:$0xf]
    %v1798 = vld [vmem:[%s4 + $0x24] sm:$0xff]
    %v1799 = vld [vmem:[%s4 + $0x2c] sm:$0xf]
    %v1800 = vld [vmem:[%s4 + $0x30] sm:$0xff]
    %v1801 = vld [vmem:[%s4 + $0x38] sm:$0xf]
    %v1802 = vld [vmem:[%s4 + $0x3c] sm:$0xff]
    %v1803 = vld [vmem:[%s4 + $0x44] sm:$0xf]
    %v1804 = vld [vmem:[%s4 + $0x48] sm:$0xff]
    %v1805 = vld [vmem:[%s4 + $0x50] sm:$0xf]
    %v1806 = vld [vmem:[%s4 + $0x54] sm:$0xff]
    %v1807 = vld [vmem:[%s4 + $0x5c] sm:$0xf]
    %v1808 = vld [vmem:[%s5] sm:$0xff]
    %v1809 = vld [vmem:[%s5 + $0x8] sm:$0xff]
    %v1810 = vld [vmem:[%s5 + $0x10] sm:$0xff]
    %v1811 = vld [vmem:[%s5 + $0x18] sm:$0xff]
    %v1812 = vld [vmem:[%s5 + $0x20] sm:$0xff]
    %v1813 = vld [vmem:[%s5 + $0x28] sm:$0xff]
    %v1814 = vld [vmem:[%s5 + $0x30] sm:$0xff]
    %v1815 = vld [vmem:[%s5 + $0x38] sm:$0xff]
    %v1816 = vld [vmem:[%s6] sm:$0xff]
    %v1817 = vld [vmem:[%s6 + $0x8] sm:$0xff]
    %v1818 = vld [vmem:[%s6 + $0x10] sm:$0xff]
    %v1819 = vld [vmem:[%s6 + $0x18] sm:$0xff]
    %v1820 = vld [vmem:[%s6 + $0x20] sm:$0xff]
    %v1821 = vld [vmem:[%s6 + $0x28] sm:$0xff]
    %v1822 = vld [vmem:[%s6 + $0x30] sm:$0xff]
    %v1823 = vld [vmem:[%s6 + $0x38] sm:$0xff]
    %v1832 = vunpack.c.l.b16 %v1792
    %v1833 = vunpack.c.l.b16 %v1794
    %v1834 = vunpack.c.l.b16 %v1796
    %v1835 = vunpack.c.l.b16 %v1798
    %v1836 = vunpack.c.l.b16 %v1800
    %v1837 = vunpack.c.l.b16 %v1802
    %v1838 = vunpack.c.l.b16 %v1804
    %v1839 = vunpack.c.l.b16 %v1806
    %v1840 = vpack.c.b16 %v1833, %v1832
    %v1841 = vpack.c.b16 %v1835, %v1834
    %v1842 = vpack.c.b16 %v1837, %v1836
    %v1843 = vpack.c.b16 %v1839, %v1838
    %1844 = vrot.lane.b32.xlu0 %v1840, 96
    %v1845 = vpop.permute.xlu0 %1844
    %1846 = vrot.lane.b32.xlu0 %v1841, 96
    %v1847 = vpop.permute.xlu0 %1846
    %1848 = vrot.lane.b32.xlu0 %v1842, 96
    %v1849 = vpop.permute.xlu0 %1848
    %1850 = vrot.lane.b32.xlu0 %v1843, 96
    %v1851 = vpop.permute.xlu0 %1850
    %v1856 = vunpack.c.l.b16 %v1784
    %v1857 = vunpack.c.l.b16 %v1786
    %v1858 = vunpack.c.l.b16 %v1788
    %v1859 = vunpack.c.l.b16 %v1790
    %v1860 = vpack.c.b16 %v1857, %v1856
    %v1861 = vpack.c.b16 %v1859, %v1858
    %1862 = vrot.lane.b32.xlu0 %v1860, 96
    %v1863 = vpop.permute.xlu0 %1862
    %1864 = vrot.lane.b32.xlu0 %v1861, 96
    %v1865 = vpop.permute.xlu0 %1864
    %vm1868 = vcmask 261120
    %v1870 = vsel %vm1868, %v1845, 0
    %v1873 = vsel %vm1868, %v1847, 0
    %v1876 = vsel %vm1868, %v1849, 0
    %v1879 = vsel %vm1868, %v1851, 0
    %1881 = vmatpush.bf16.msra.mxu0 0
    %1882 = vmatpush.bf16.msra.mxu0 0
    %1883 = vmatpush.bf16.msra.mxu0 0
    %1884 = vmatpush.bf16.msra.mxu0 0
    %1885 = vmatpush.bf16.msra.mxu0 0
    %1886 = vmatpush.bf16.msra.mxu0 0
    %1887 = vmatpush.bf16.msra.mxu0 %v1865
    %1888 = vmatpush.bf16.msra.mxu0 %v1863
    %1889 = vmatmul.bf16.gmra.mxu0 %v1870
    %v1890 = vpop.f32.mrf.mxu0
    %v1891 = vadd.f32 0.0, %v1890
    %v1892 = vpop.f32.mrf.mxu0
    %v1893 = vadd.f32 0.0, %v1892
    %1894 = vmatmul.bf16.gmra.mxu0 %v1873
    %v1895 = vpop.f32.mrf.mxu0
    %v1896 = vadd.f32 0.0, %v1895
    %v1897 = vpop.f32.mrf.mxu0
    %v1898 = vadd.f32 0.0, %v1897
    %1899 = vmatmul.bf16.gmra.mxu0 %v1876
    %v1900 = vpop.f32.mrf.mxu0
    %v1901 = vadd.f32 0.0, %v1900
    %v1902 = vpop.f32.mrf.mxu0
    %v1903 = vadd.f32 0.0, %v1902
    %1904 = vmatmul.bf16.gmra.mxu0 %v1879
    %v1905 = vpop.f32.mrf.mxu0
    %v1906 = vadd.f32 0.0, %v1905
    %v1907 = vpop.f32.mrf.mxu0
    %v1908 = vadd.f32 0.0, %v1907
    %1909 = vdwg.mxu0
    %v1913 = vsel %vm1868, %v1840, 0
    %v1916 = vsel %vm1868, %v1841, 0
    %v1919 = vsel %vm1868, %v1842, 0
    %v1922 = vsel %vm1868, %v1843, 0
    %1924 = vmatpush.bf16.msra.mxu0 0
    %1925 = vmatpush.bf16.msra.mxu0 0
    %1926 = vmatpush.bf16.msra.mxu0 0
    %1927 = vmatpush.bf16.msra.mxu0 0
    %1928 = vmatpush.bf16.msra.mxu0 0
    %1929 = vmatpush.bf16.msra.mxu0 0
    %1930 = vmatpush.bf16.msra.mxu0 %v1861
    %1931 = vmatpush.bf16.msra.mxu0 %v1860
    %1932 = vmatmul.bf16.gmra.mxu0 %v1913
    %v1933 = vpop.f32.mrf.mxu0
    %v1934 = vadd.f32 %v1891, %v1933
    %v1935 = vpop.f32.mrf.mxu0
    %v1936 = vadd.f32 %v1893, %v1935
    %1937 = vmatmul.bf16.gmra.mxu0 %v1916
    %v1938 = vpop.f32.mrf.mxu0
    %v1939 = vadd.f32 %v1896, %v1938
    %v1940 = vpop.f32.mrf.mxu0
    %v1941 = vadd.f32 %v1898, %v1940
    %1942 = vmatmul.bf16.gmra.mxu0 %v1919
    %v1943 = vpop.f32.mrf.mxu0
    %v1944 = vadd.f32 %v1901, %v1943
    %v1945 = vpop.f32.mrf.mxu0
    %v1946 = vadd.f32 %v1903, %v1945
    %1947 = vmatmul.bf16.gmra.mxu0 %v1922
    %v1948 = vpop.f32.mrf.mxu0
    %v1949 = vadd.f32 %v1906, %v1948
    %v1950 = vpop.f32.mrf.mxu0
    %v1951 = vadd.f32 %v1908, %v1950
    %1952 = vdwg.mxu0
    %1953 = vrot.lane.b32.xlu0 %v1840, 64
    %v1954 = vpop.permute.xlu0 %1953
    %1955 = vrot.lane.b32.xlu0 %v1841, 64
    %v1956 = vpop.permute.xlu0 %1955
    %1957 = vrot.lane.b32.xlu0 %v1842, 64
    %v1958 = vpop.permute.xlu0 %1957
    %1959 = vrot.lane.b32.xlu0 %v1843, 64
    %v1960 = vpop.permute.xlu0 %1959
    %1961 = vrot.lane.b32.xlu0 %v1860, 64
    %v1962 = vpop.permute.xlu0 %1961
    %1963 = vrot.lane.b32.xlu0 %v1861, 64
    %v1964 = vpop.permute.xlu0 %1963
    %v1968 = vsel %vm1868, %v1954, 0
    %v1971 = vsel %vm1868, %v1956, 0
    %v1974 = vsel %vm1868, %v1958, 0
    %v1977 = vsel %vm1868, %v1960, 0
    %1979 = vmatpush.bf16.msra.mxu0 0
    %1980 = vmatpush.bf16.msra.mxu0 0
    %1981 = vmatpush.bf16.msra.mxu0 0
    %1982 = vmatpush.bf16.msra.mxu0 0
    %1983 = vmatpush.bf16.msra.mxu0 0
    %1984 = vmatpush.bf16.msra.mxu0 0
    %1985 = vmatpush.bf16.msra.mxu0 %v1964
    %1986 = vmatpush.bf16.msra.mxu0 %v1962
    %1987 = vmatmul.bf16.gmra.mxu0 %v1968
    %v1988 = vpop.f32.mrf.mxu0
    %v1989 = vadd.f32 0.0, %v1988
    %v1990 = vpop.f32.mrf.mxu0
    %v1991 = vadd.f32 0.0, %v1990
    %1992 = vmatmul.bf16.gmra.mxu0 %v1971
    %v1993 = vpop.f32.mrf.mxu0
    %v1994 = vadd.f32 0.0, %v1993
    %v1995 = vpop.f32.mrf.mxu0
    %v1996 = vadd.f32 0.0, %v1995
    %1997 = vmatmul.bf16.gmra.mxu0 %v1974
    %v1998 = vpop.f32.mrf.mxu0
    %v1999 = vadd.f32 0.0, %v1998
    %v2000 = vpop.f32.mrf.mxu0
    %v2001 = vadd.f32 0.0, %v2000
    %2002 = vmatmul.bf16.gmra.mxu0 %v1977
    %v2003 = vpop.f32.mrf.mxu0
    %v2004 = vadd.f32 0.0, %v2003
    %v2005 = vpop.f32.mrf.mxu0
    %v2006 = vadd.f32 0.0, %v2005
    %2007 = vdwg.mxu0
    %v2008 = vadd.f32 %v1934, %v1989
    %v2009 = vadd.f32 %v1936, %v1991
    %v2010 = vadd.f32 %v1939, %v1994
    %v2011 = vadd.f32 %v1941, %v1996
    %v2012 = vadd.f32 %v1944, %v1999
    %v2013 = vadd.f32 %v1946, %v2001
    %v2014 = vadd.f32 %v1949, %v2004
    %v2015 = vadd.f32 %v1951, %v2006
    %2016 = vrot.lane.b32.xlu0 %v1840, 32
    %v2017 = vpop.permute.xlu0 %2016
    %2018 = vrot.lane.b32.xlu0 %v1841, 32
    %v2019 = vpop.permute.xlu0 %2018
    %2020 = vrot.lane.b32.xlu0 %v1842, 32
    %v2021 = vpop.permute.xlu0 %2020
    %2022 = vrot.lane.b32.xlu0 %v1843, 32
    %v2023 = vpop.permute.xlu0 %2022
    %v2024 = vunpack.c.h.b16 %v1784
    %v2025 = vunpack.c.h.b16 %v1786
    %v2026 = vunpack.c.h.b16 %v1788
    %v2027 = vunpack.c.h.b16 %v1790
    %v2028 = vpack.c.b16 %v2025, %v2024
    %v2029 = vpack.c.b16 %v2027, %v2026
    %v2033 = vsel %vm1868, %v2017, 0
    %v2036 = vsel %vm1868, %v2019, 0
    %v2039 = vsel %vm1868, %v2021, 0
    %v2042 = vsel %vm1868, %v2023, 0
    %2044 = vmatpush.bf16.msra.mxu0 0
    %2045 = vmatpush.bf16.msra.mxu0 0
    %2046 = vmatpush.bf16.msra.mxu0 0
    %2047 = vmatpush.bf16.msra.mxu0 0
    %2048 = vmatpush.bf16.msra.mxu0 0
    %2049 = vmatpush.bf16.msra.mxu0 0
    %2050 = vmatpush.bf16.msra.mxu0 %v2029
    %2051 = vmatpush.bf16.msra.mxu0 %v2028
    %2052 = vmatmul.bf16.gmra.mxu0 %v2033
    %v2053 = vpop.f32.mrf.mxu0
    %v2054 = vadd.f32 0.0, %v2053
    %v2055 = vpop.f32.mrf.mxu0
    %v2056 = vadd.f32 0.0, %v2055
    %2057 = vmatmul.bf16.gmra.mxu0 %v2036
    %v2058 = vpop.f32.mrf.mxu0
    %v2059 = vadd.f32 0.0, %v2058
    %v2060 = vpop.f32.mrf.mxu0
    %v2061 = vadd.f32 0.0, %v2060
    %2062 = vmatmul.bf16.gmra.mxu0 %v2039
    %v2063 = vpop.f32.mrf.mxu0
    %v2064 = vadd.f32 0.0, %v2063
    %v2065 = vpop.f32.mrf.mxu0
    %v2066 = vadd.f32 0.0, %v2065
    %2067 = vmatmul.bf16.gmra.mxu0 %v2042
    %v2068 = vpop.f32.mrf.mxu0
    %v2069 = vadd.f32 0.0, %v2068
    %v2070 = vpop.f32.mrf.mxu0
    %v2071 = vadd.f32 0.0, %v2070
    %2072 = vdwg.mxu0
    %v2073 = vadd.f32 %v2008, %v2054
    %v2074 = vadd.f32 %v2009, %v2056
    %v2075 = vadd.f32 %v2010, %v2059
    %v2076 = vadd.f32 %v2011, %v2061
    %v2077 = vadd.f32 %v2012, %v2064
    %v2078 = vadd.f32 %v2013, %v2066
    %v2079 = vadd.f32 %v2014, %v2069
    %v2080 = vadd.f32 %v2015, %v2071
    %v2081 = vunpack.c.h.b16 %v1792
    %v2082 = vunpack.c.h.b16 %v1794
    %v2083 = vunpack.c.h.b16 %v1796
    %v2084 = vunpack.c.h.b16 %v1798
    %v2085 = vunpack.c.h.b16 %v1800
    %v2086 = vunpack.c.h.b16 %v1802
    %v2087 = vunpack.c.h.b16 %v1804
    %v2088 = vunpack.c.h.b16 %v1806
    %v2089 = vpack.c.b16 %v2082, %v2081
    %v2090 = vpack.c.b16 %v2084, %v2083
    %v2091 = vpack.c.b16 %v2086, %v2085
    %v2092 = vpack.c.b16 %v2088, %v2087
    %2093 = vrot.lane.b32.xlu0 %v2028, 96
    %v2094 = vpop.permute.xlu0 %2093
    %2095 = vrot.lane.b32.xlu0 %v2029, 96
    %v2096 = vpop.permute.xlu0 %2095
    %v2100 = vsel %vm1868, %v2089, 0
    %v2103 = vsel %vm1868, %v2090, 0
    %v2106 = vsel %vm1868, %v2091, 0
    %v2109 = vsel %vm1868, %v2092, 0
    %2111 = vmatpush.bf16.msra.mxu0 0
    %2112 = vmatpush.bf16.msra.mxu0 0
    %2113 = vmatpush.bf16.msra.mxu0 0
    %2114 = vmatpush.bf16.msra.mxu0 0
    %2115 = vmatpush.bf16.msra.mxu0 0
    %2116 = vmatpush.bf16.msra.mxu0 0
    %2117 = vmatpush.bf16.msra.mxu0 %v2096
    %2118 = vmatpush.bf16.msra.mxu0 %v2094
    %2119 = vmatmul.bf16.gmra.mxu0 %v2100
    %v2120 = vpop.f32.mrf.mxu0
    %v2121 = vadd.f32 0.0, %v2120
    %v2122 = vpop.f32.mrf.mxu0
    %v2123 = vadd.f32 0.0, %v2122
    %2124 = vmatmul.bf16.gmra.mxu0 %v2103
    %v2125 = vpop.f32.mrf.mxu0
    %v2126 = vadd.f32 0.0, %v2125
    %v2127 = vpop.f32.mrf.mxu0
    %v2128 = vadd.f32 0.0, %v2127
    %2129 = vmatmul.bf16.gmra.mxu0 %v2106
    %v2130 = vpop.f32.mrf.mxu0
    %v2131 = vadd.f32 0.0, %v2130
    %v2132 = vpop.f32.mrf.mxu0
    %v2133 = vadd.f32 0.0, %v2132
    %2134 = vmatmul.bf16.gmra.mxu0 %v2109
    %v2135 = vpop.f32.mrf.mxu0
    %v2136 = vadd.f32 0.0, %v2135
    %v2137 = vpop.f32.mrf.mxu0
    %v2138 = vadd.f32 0.0, %v2137
    %2139 = vdwg.mxu0
    %v2140 = vadd.f32 %v2073, %v2121
    %v2141 = vadd.f32 %v2074, %v2123
    %v2142 = vadd.f32 %v2075, %v2126
    %v2143 = vadd.f32 %v2076, %v2128
    %v2144 = vadd.f32 %v2077, %v2131
    %v2145 = vadd.f32 %v2078, %v2133
    %v2146 = vadd.f32 %v2079, %v2136
    %v2147 = vadd.f32 %v2080, %v2138
    %2148 = vrot.lane.b32.xlu0 %v2089, 96
    %v2149 = vpop.permute.xlu0 %2148
    %2150 = vrot.lane.b32.xlu0 %v2090, 96
    %v2151 = vpop.permute.xlu0 %2150
    %2152 = vrot.lane.b32.xlu0 %v2091, 96
    %v2153 = vpop.permute.xlu0 %2152
    %2154 = vrot.lane.b32.xlu0 %v2092, 96
    %v2155 = vpop.permute.xlu0 %2154
    %2156 = vrot.lane.b32.xlu0 %v2028, 64
    %v2157 = vpop.permute.xlu0 %2156
    %2158 = vrot.lane.b32.xlu0 %v2029, 64
    %v2159 = vpop.permute.xlu0 %2158
    %v2163 = vsel %vm1868, %v2149, 0
    %v2166 = vsel %vm1868, %v2151, 0
    %v2169 = vsel %vm1868, %v2153, 0
    %v2172 = vsel %vm1868, %v2155, 0
    %2174 = vmatpush.bf16.msra.mxu0 0
    %2175 = vmatpush.bf16.msra.mxu0 0
    %2176 = vmatpush.bf16.msra.mxu0 0
    %2177 = vmatpush.bf16.msra.mxu0 0
    %2178 = vmatpush.bf16.msra.mxu0 0
    %2179 = vmatpush.bf16.msra.mxu0 0
    %2180 = vmatpush.bf16.msra.mxu0 %v2159
    %2181 = vmatpush.bf16.msra.mxu0 %v2157
    %2182 = vmatmul.bf16.gmra.mxu0 %v2163
    %v2183 = vpop.f32.mrf.mxu0
    %v2184 = vadd.f32 0.0, %v2183
    %v2185 = vpop.f32.mrf.mxu0
    %v2186 = vadd.f32 0.0, %v2185
    %2187 = vmatmul.bf16.gmra.mxu0 %v2166
    %v2188 = vpop.f32.mrf.mxu0
    %v2189 = vadd.f32 0.0, %v2188
    %v2190 = vpop.f32.mrf.mxu0
    %v2191 = vadd.f32 0.0, %v2190
    %2192 = vmatmul.bf16.gmra.mxu0 %v2169
    %v2193 = vpop.f32.mrf.mxu0
    %v2194 = vadd.f32 0.0, %v2193
    %v2195 = vpop.f32.mrf.mxu0
    %v2196 = vadd.f32 0.0, %v2195
    %2197 = vmatmul.bf16.gmra.mxu0 %v2172
    %v2198 = vpop.f32.mrf.mxu0
    %v2199 = vadd.f32 0.0, %v2198
    %v2200 = vpop.f32.mrf.mxu0
    %v2201 = vadd.f32 0.0, %v2200
    %2202 = vdwg.mxu0
    %v2203 = vadd.f32 %v2140, %v2184
    %v2204 = vadd.f32 %v2141, %v2186
    %v2205 = vadd.f32 %v2142, %v2189
    %v2206 = vadd.f32 %v2143, %v2191
    %v2207 = vadd.f32 %v2144, %v2194
    %v2208 = vadd.f32 %v2145, %v2196
    %v2209 = vadd.f32 %v2146, %v2199
    %v2210 = vadd.f32 %v2147, %v2201
    %2211 = vrot.lane.b32.xlu0 %v2089, 64
    %v2212 = vpop.permute.xlu0 %2211
    %2213 = vrot.lane.b32.xlu0 %v2090, 64
    %v2214 = vpop.permute.xlu0 %2213
    %2215 = vrot.lane.b32.xlu0 %v2091, 64
    %v2216 = vpop.permute.xlu0 %2215
    %2217 = vrot.lane.b32.xlu0 %v2092, 64
    %v2218 = vpop.permute.xlu0 %2217
    %v2223 = vunpack.c.l.b16 %v1785
    %v2224 = vunpack.c.l.b16 %v1787
    %v2225 = vunpack.c.l.b16 %v1789
    %v2226 = vunpack.c.l.b16 %v1791
    %v2227 = vpack.c.b16 %v2224, %v2223
    %v2228 = vpack.c.b16 %v2226, %v2225
    %v2232 = vsel %vm1868, %v2212, 0
    %v2235 = vsel %vm1868, %v2214, 0
    %v2238 = vsel %vm1868, %v2216, 0
    %v2241 = vsel %vm1868, %v2218, 0
    %2243 = vmatpush.bf16.msra.mxu0 0
    %2244 = vmatpush.bf16.msra.mxu0 0
    %2245 = vmatpush.bf16.msra.mxu0 0
    %2246 = vmatpush.bf16.msra.mxu0 0
    %2247 = vmatpush.bf16.msra.mxu0 0
    %2248 = vmatpush.bf16.msra.mxu0 0
    %2249 = vmatpush.bf16.msra.mxu0 %v2228
    %2250 = vmatpush.bf16.msra.mxu0 %v2227
    %2251 = vmatmul.bf16.gmra.mxu0 %v2232
    %v2252 = vpop.f32.mrf.mxu0
    %v2253 = vadd.f32 0.0, %v2252
    %v2254 = vpop.f32.mrf.mxu0
    %v2255 = vadd.f32 0.0, %v2254
    %2256 = vmatmul.bf16.gmra.mxu0 %v2235
    %v2257 = vpop.f32.mrf.mxu0
    %v2258 = vadd.f32 0.0, %v2257
    %v2259 = vpop.f32.mrf.mxu0
    %v2260 = vadd.f32 0.0, %v2259
    %2261 = vmatmul.bf16.gmra.mxu0 %v2238
    %v2262 = vpop.f32.mrf.mxu0
    %v2263 = vadd.f32 0.0, %v2262
    %v2264 = vpop.f32.mrf.mxu0
    %v2265 = vadd.f32 0.0, %v2264
    %2266 = vmatmul.bf16.gmra.mxu0 %v2241
    %v2267 = vpop.f32.mrf.mxu0
    %v2268 = vadd.f32 0.0, %v2267
    %v2269 = vpop.f32.mrf.mxu0
    %v2270 = vadd.f32 0.0, %v2269
    %2271 = vdwg.mxu0
    %v2272 = vadd.f32 %v2203, %v2253
    %v2273 = vadd.f32 %v2204, %v2255
    %v2274 = vadd.f32 %v2205, %v2258
    %v2275 = vadd.f32 %v2206, %v2260
    %v2276 = vadd.f32 %v2207, %v2263
    %v2277 = vadd.f32 %v2208, %v2265
    %v2278 = vadd.f32 %v2209, %v2268
    %v2279 = vadd.f32 %v2210, %v2270
    %2280 = vrot.lane.b32.xlu0 %v2089, 32
    %v2281 = vpop.permute.xlu0 %2280
    %2282 = vrot.lane.b32.xlu0 %v2090, 32
    %v2283 = vpop.permute.xlu0 %2282
    %2284 = vrot.lane.b32.xlu0 %v2091, 32
    %v2285 = vpop.permute.xlu0 %2284
    %2286 = vrot.lane.b32.xlu0 %v2092, 32
    %v2287 = vpop.permute.xlu0 %2286
    %2288 = vrot.lane.b32.xlu0 %v2227, 96
    %v2289 = vpop.permute.xlu0 %2288
    %2290 = vrot.lane.b32.xlu0 %v2228, 96
    %v2291 = vpop.permute.xlu0 %2290
    %v2295 = vsel %vm1868, %v2281, 0
    %v2298 = vsel %vm1868, %v2283, 0
    %v2301 = vsel %vm1868, %v2285, 0
    %v2304 = vsel %vm1868, %v2287, 0
    %2306 = vmatpush.bf16.msra.mxu0 0
    %2307 = vmatpush.bf16.msra.mxu0 0
    %2308 = vmatpush.bf16.msra.mxu0 0
    %2309 = vmatpush.bf16.msra.mxu0 0
    %2310 = vmatpush.bf16.msra.mxu0 0
    %2311 = vmatpush.bf16.msra.mxu0 0
    %2312 = vmatpush.bf16.msra.mxu0 %v2291
    %2313 = vmatpush.bf16.msra.mxu0 %v2289
    %2314 = vmatmul.bf16.gmra.mxu0 %v2295
    %v2315 = vpop.f32.mrf.mxu0
    %v2316 = vadd.f32 0.0, %v2315
    %v2317 = vpop.f32.mrf.mxu0
    %v2318 = vadd.f32 0.0, %v2317
    %2319 = vmatmul.bf16.gmra.mxu0 %v2298
    %v2320 = vpop.f32.mrf.mxu0
    %v2321 = vadd.f32 0.0, %v2320
    %v2322 = vpop.f32.mrf.mxu0
    %v2323 = vadd.f32 0.0, %v2322
    %2324 = vmatmul.bf16.gmra.mxu0 %v2301
    %v2325 = vpop.f32.mrf.mxu0
    %v2326 = vadd.f32 0.0, %v2325
    %v2327 = vpop.f32.mrf.mxu0
    %v2328 = vadd.f32 0.0, %v2327
    %2329 = vmatmul.bf16.gmra.mxu0 %v2304
    %v2330 = vpop.f32.mrf.mxu0
    %v2331 = vadd.f32 0.0, %v2330
    %v2332 = vpop.f32.mrf.mxu0
    %v2333 = vadd.f32 0.0, %v2332
    %2334 = vdwg.mxu0
    %v2335 = vadd.f32 %v2272, %v2316
    %v2336 = vadd.f32 %v2273, %v2318
    %v2337 = vadd.f32 %v2274, %v2321
    %v2338 = vadd.f32 %v2275, %v2323
    %v2339 = vadd.f32 %v2276, %v2326
    %v2340 = vadd.f32 %v2277, %v2328
    %v2341 = vadd.f32 %v2278, %v2331
    %v2342 = vadd.f32 %v2279, %v2333
    %v2351 = vunpack.c.l.b16 %v1793
    %v2352 = vunpack.c.l.b16 %v1795
    %v2353 = vunpack.c.l.b16 %v1797
    %v2354 = vunpack.c.l.b16 %v1799
    %v2355 = vunpack.c.l.b16 %v1801
    %v2356 = vunpack.c.l.b16 %v1803
    %v2357 = vunpack.c.l.b16 %v1805
    %v2358 = vunpack.c.l.b16 %v1807
    %v2359 = vpack.c.b16 %v2352, %v2351
    %v2360 = vpack.c.b16 %v2354, %v2353
    %v2361 = vpack.c.b16 %v2356, %v2355
    %v2362 = vpack.c.b16 %v2358, %v2357
    %2363 = vrot.lane.b32.xlu0 %v2227, 64
    %v2364 = vpop.permute.xlu0 %2363
    %2365 = vrot.lane.b32.xlu0 %v2228, 64
    %v2366 = vpop.permute.xlu0 %2365
    %v2370 = vsel %vm1868, %v2359, 0
    %v2373 = vsel %vm1868, %v2360, 0
    %v2376 = vsel %vm1868, %v2361, 0
    %v2379 = vsel %vm1868, %v2362, 0
    %2381 = vmatpush.bf16.msra.mxu0 0
    %2382 = vmatpush.bf16.msra.mxu0 0
    %2383 = vmatpush.bf16.msra.mxu0 0
    %2384 = vmatpush.bf16.msra.mxu0 0
    %2385 = vmatpush.bf16.msra.mxu0 0
    %2386 = vmatpush.bf16.msra.mxu0 0
    %2387 = vmatpush.bf16.msra.mxu0 %v2366
    %2388 = vmatpush.bf16.msra.mxu0 %v2364
    %2389 = vmatmul.bf16.gmra.mxu0 %v2370
    %v2390 = vpop.f32.mrf.mxu0
    %v2391 = vadd.f32 0.0, %v2390
    %v2392 = vpop.f32.mrf.mxu0
    %v2393 = vadd.f32 0.0, %v2392
    %2394 = vmatmul.bf16.gmra.mxu0 %v2373
    %v2395 = vpop.f32.mrf.mxu0
    %v2396 = vadd.f32 0.0, %v2395
    %v2397 = vpop.f32.mrf.mxu0
    %v2398 = vadd.f32 0.0, %v2397
    %2399 = vmatmul.bf16.gmra.mxu0 %v2376
    %v2400 = vpop.f32.mrf.mxu0
    %v2401 = vadd.f32 0.0, %v2400
    %v2402 = vpop.f32.mrf.mxu0
    %v2403 = vadd.f32 0.0, %v2402
    %2404 = vmatmul.bf16.gmra.mxu0 %v2379
    %v2405 = vpop.f32.mrf.mxu0
    %v2406 = vadd.f32 0.0, %v2405
    %v2407 = vpop.f32.mrf.mxu0
    %v2408 = vadd.f32 0.0, %v2407
    %2409 = vdwg.mxu0
    %v2410 = vadd.f32 %v2335, %v2391
    %v2411 = vadd.f32 %v2336, %v2393
    %v2412 = vadd.f32 %v2337, %v2396
    %v2413 = vadd.f32 %v2338, %v2398
    %v2414 = vadd.f32 %v2339, %v2401
    %v2415 = vadd.f32 %v2340, %v2403
    %v2416 = vadd.f32 %v2341, %v2406
    %v2417 = vadd.f32 %v2342, %v2408
    %2419 = vset.pattern.permute.xlu0 0
    %2420 = vperm.xlu0 %2419, %v1808
    %v2421 = vpop.permute.xlu0 %2420
    %2424 = vset.pattern.permute.xlu0 0
    %2425 = vperm.xlu0 %2424, %v1809
    %v2426 = vpop.permute.xlu0 %2425
    %2429 = vset.pattern.permute.xlu0 0
    %2430 = vperm.xlu0 %2429, %v1810
    %v2431 = vpop.permute.xlu0 %2430
    %2434 = vset.pattern.permute.xlu0 0
    %2435 = vperm.xlu0 %2434, %v1811
    %v2436 = vpop.permute.xlu0 %2435
    %2439 = vset.pattern.permute.xlu0 0
    %2440 = vperm.xlu0 %2439, %v1812
    %v2441 = vpop.permute.xlu0 %2440
    %2444 = vset.pattern.permute.xlu0 0
    %2445 = vperm.xlu0 %2444, %v1813
    %v2446 = vpop.permute.xlu0 %2445
    %2449 = vset.pattern.permute.xlu0 0
    %2450 = vperm.xlu0 %2449, %v1814
    %v2451 = vpop.permute.xlu0 %2450
    %2454 = vset.pattern.permute.xlu0 0
    %2455 = vperm.xlu0 %2454, %v1815
    %v2456 = vpop.permute.xlu0 %2455
    %v2458 = vmul.f32 %v2410, %v2421
    %v2459 = vmul.f32 %v2411, %v2426
    %v2460 = vmul.f32 %v2412, %v2431
    %v2461 = vmul.f32 %v2413, %v2436
    %v2462 = vmul.f32 %v2414, %v2441
    %v2463 = vmul.f32 %v2415, %v2446
    %v2464 = vmul.f32 %v2416, %v2451
    %v2465 = vmul.f32 %v2417, %v2456
    %2467 = vset.pattern.permute.xlu0 0
    %2468 = vperm.xlu0 %2467, %v1816
    %v2469 = vpop.permute.xlu0 %2468
    %2472 = vset.pattern.permute.xlu0 0
    %2473 = vperm.xlu0 %2472, %v1817
    %v2474 = vpop.permute.xlu0 %2473
    %2477 = vset.pattern.permute.xlu0 0
    %2478 = vperm.xlu0 %2477, %v1818
    %v2479 = vpop.permute.xlu0 %2478
    %2482 = vset.pattern.permute.xlu0 0
    %2483 = vperm.xlu0 %2482, %v1819
    %v2484 = vpop.permute.xlu0 %2483
    %2487 = vset.pattern.permute.xlu0 0
    %2488 = vperm.xlu0 %2487, %v1820
    %v2489 = vpop.permute.xlu0 %2488
    %2492 = vset.pattern.permute.xlu0 0
    %2493 = vperm.xlu0 %2492, %v1821
    %v2494 = vpop.permute.xlu0 %2493
    %2497 = vset.pattern.permute.xlu0 0
    %2498 = vperm.xlu0 %2497, %v1822
    %v2499 = vpop.permute.xlu0 %2498
    %2502 = vset.pattern.permute.xlu0 0
    %2503 = vperm.xlu0 %2502, %v1823
    %v2504 = vpop.permute.xlu0 %2503
    %v2506 = vadd.f32 %v2458, %v2469
    %v2507 = vadd.f32 %v2459, %v2474
    %v2508 = vadd.f32 %v2460, %v2479
    %v2509 = vadd.f32 %v2461, %v2484
    %v2510 = vadd.f32 %v2462, %v2489
    %v2511 = vadd.f32 %v2463, %v2494
    %v2512 = vadd.f32 %v2464, %v2499
    %v2513 = vadd.f32 %v2465, %v2504
    %2514 = vrot.lane.b32.xlu0 %v1860, 32
    %v2515 = vpop.permute.xlu0 %2514
    %2516 = vrot.lane.b32.xlu0 %v1861, 32
    %v2517 = vpop.permute.xlu0 %2516
    %2520 = vmatpush.bf16.msra.mxu0 0
    %2521 = vmatpush.bf16.msra.mxu0 0
    %2522 = vmatpush.bf16.msra.mxu0 0
    %2523 = vmatpush.bf16.msra.mxu0 0
    %2524 = vmatpush.bf16.msra.mxu0 0
    %2525 = vmatpush.bf16.msra.mxu0 0
    %2526 = vmatpush.bf16.msra.mxu0 %v2517
    %2527 = vmatpush.bf16.msra.mxu0 %v2515
    %2528 = vmatmul.bf16.gmra.mxu0 %v1870
    %v2529 = vpop.f32.mrf.mxu0
    %v2530 = vadd.f32 0.0, %v2529
    %v2531 = vpop.f32.mrf.mxu0
    %v2532 = vadd.f32 0.0, %v2531
    %2533 = vmatmul.bf16.gmra.mxu0 %v1873
    %v2534 = vpop.f32.mrf.mxu0
    %v2535 = vadd.f32 0.0, %v2534
    %v2536 = vpop.f32.mrf.mxu0
    %v2537 = vadd.f32 0.0, %v2536
    %2538 = vmatmul.bf16.gmra.mxu0 %v1876
    %v2539 = vpop.f32.mrf.mxu0
    %v2540 = vadd.f32 0.0, %v2539
    %v2541 = vpop.f32.mrf.mxu0
    %v2542 = vadd.f32 0.0, %v2541
    %2543 = vmatmul.bf16.gmra.mxu0 %v1879
    %v2544 = vpop.f32.mrf.mxu0
    %v2545 = vadd.f32 0.0, %v2544
    %v2546 = vpop.f32.mrf.mxu0
    %v2547 = vadd.f32 0.0, %v2546
    %2548 = vdwg.mxu0
    %2549 = vmatpush.bf16.msra.mxu0 0
    %2550 = vmatpush.bf16.msra.mxu0 0
    %2551 = vmatpush.bf16.msra.mxu0 0
    %2552 = vmatpush.bf16.msra.mxu0 0
    %2553 = vmatpush.bf16.msra.mxu0 0
    %2554 = vmatpush.bf16.msra.mxu0 0
    %2555 = vmatpush.bf16.msra.mxu0 %v1964
    %2556 = vmatpush.bf16.msra.mxu0 %v1962
    %2557 = vmatmul.bf16.gmra.mxu0 %v1913
    %v2558 = vpop.f32.mrf.mxu0
    %v2559 = vadd.f32 %v2530, %v2558
    %v2560 = vpop.f32.mrf.mxu0
    %v2561 = vadd.f32 %v2532, %v2560
    %2562 = vmatmul.bf16.gmra.mxu0 %v1916
    %v2563 = vpop.f32.mrf.mxu0
    %v2564 = vadd.f32 %v2535, %v2563
    %v2565 = vpop.f32.mrf.mxu0
    %v2566 = vadd.f32 %v2537, %v2565
    %2567 = vmatmul.bf16.gmra.mxu0 %v1919
    %v2568 = vpop.f32.mrf.mxu0
    %v2569 = vadd.f32 %v2540, %v2568
    %v2570 = vpop.f32.mrf.mxu0
    %v2571 = vadd.f32 %v2542, %v2570
    %2572 = vmatmul.bf16.gmra.mxu0 %v1922
    %v2573 = vpop.f32.mrf.mxu0
    %v2574 = vadd.f32 %v2545, %v2573
    %v2575 = vpop.f32.mrf.mxu0
    %v2576 = vadd.f32 %v2547, %v2575
    %2577 = vdwg.mxu0
    %2578 = vrot.lane.b32.xlu0 %v1860, 126
    %v2579 = vpop.permute.xlu0 %2578
    %2580 = vrot.lane.b32.xlu0 %v1861, 126
    %v2581 = vpop.permute.xlu0 %2580
    %2584 = vmatpush.bf16.msra.mxu0 0
    %2585 = vmatpush.bf16.msra.mxu0 0
    %2586 = vmatpush.bf16.msra.mxu0 0
    %2587 = vmatpush.bf16.msra.mxu0 0
    %2588 = vmatpush.bf16.msra.mxu0 0
    %2589 = vmatpush.bf16.msra.mxu0 0
    %2590 = vmatpush.bf16.msra.mxu0 %v2581
    %2591 = vmatpush.bf16.msra.mxu0 %v2579
    %2592 = vmatmul.bf16.gmra.mxu0 %v1968
    %v2593 = vpop.f32.mrf.mxu0
    %v2594 = vadd.f32 0.0, %v2593
    %v2595 = vpop.f32.mrf.mxu0
    %v2596 = vadd.f32 0.0, %v2595
    %2597 = vmatmul.bf16.gmra.mxu0 %v1971
    %v2598 = vpop.f32.mrf.mxu0
    %v2599 = vadd.f32 0.0, %v2598
    %v2600 = vpop.f32.mrf.mxu0
    %v2601 = vadd.f32 0.0, %v2600
    %2602 = vmatmul.bf16.gmra.mxu0 %v1974
    %v2603 = vpop.f32.mrf.mxu0
    %v2604 = vadd.f32 0.0, %v2603
    %v2605 = vpop.f32.mrf.mxu0
    %v2606 = vadd.f32 0.0, %v2605
    %2607 = vmatmul.bf16.gmra.mxu0 %v1977
    %v2608 = vpop.f32.mrf.mxu0
    %v2609 = vadd.f32 0.0, %v2608
    %v2610 = vpop.f32.mrf.mxu0
    %v2611 = vadd.f32 0.0, %v2610
    %2612 = vdwg.mxu0
    %v2613 = vadd.f32 %v2559, %v2594
    %v2614 = vadd.f32 %v2561, %v2596
    %v2615 = vadd.f32 %v2564, %v2599
    %v2616 = vadd.f32 %v2566, %v2601
    %v2617 = vadd.f32 %v2569, %v2604
    %v2618 = vadd.f32 %v2571, %v2606
    %v2619 = vadd.f32 %v2574, %v2609
    %v2620 = vadd.f32 %v2576, %v2611
    %2621 = vmatpush.bf16.msra.mxu0 0
    %2622 = vmatpush.bf16.msra.mxu0 0
    %2623 = vmatpush.bf16.msra.mxu0 0
    %2624 = vmatpush.bf16.msra.mxu0 0
    %2625 = vmatpush.bf16.msra.mxu0 0
    %2626 = vmatpush.bf16.msra.mxu0 0
    %2627 = vmatpush.bf16.msra.mxu0 %v2159
    %2628 = vmatpush.bf16.msra.mxu0 %v2157
    %2629 = vmatmul.bf16.gmra.mxu0 %v2033
    %v2630 = vpop.f32.mrf.mxu0
    %v2631 = vadd.f32 0.0, %v2630
    %v2632 = vpop.f32.mrf.mxu0
    %v2633 = vadd.f32 0.0, %v2632
    %2634 = vmatmul.bf16.gmra.mxu0 %v2036
    %v2635 = vpop.f32.mrf.mxu0
    %v2636 = vadd.f32 0.0, %v2635
    %v2637 = vpop.f32.mrf.mxu0
    %v2638 = vadd.f32 0.0, %v2637
    %2639 = vmatmul.bf16.gmra.mxu0 %v2039
    %v2640 = vpop.f32.mrf.mxu0
    %v2641 = vadd.f32 0.0, %v2640
    %v2642 = vpop.f32.mrf.mxu0
    %v2643 = vadd.f32 0.0, %v2642
    %2644 = vmatmul.bf16.gmra.mxu0 %v2042
    %v2645 = vpop.f32.mrf.mxu0
    %v2646 = vadd.f32 0.0, %v2645
    %v2647 = vpop.f32.mrf.mxu0
    %v2648 = vadd.f32 0.0, %v2647
    %2649 = vdwg.mxu0
    %v2650 = vadd.f32 %v2613, %v2631
    %v2651 = vadd.f32 %v2614, %v2633
    %v2652 = vadd.f32 %v2615, %v2636
    %v2653 = vadd.f32 %v2616, %v2638
    %v2654 = vadd.f32 %v2617, %v2641
    %v2655 = vadd.f32 %v2618, %v2643
    %v2656 = vadd.f32 %v2619, %v2646
    %v2657 = vadd.f32 %v2620, %v2648
    %2658 = vrot.lane.b32.xlu0 %v2028, 32
    %v2659 = vpop.permute.xlu0 %2658
    %2660 = vrot.lane.b32.xlu0 %v2029, 32
    %v2661 = vpop.permute.xlu0 %2660
    %2664 = vmatpush.bf16.msra.mxu0 0
    %2665 = vmatpush.bf16.msra.mxu0 0
    %2666 = vmatpush.bf16.msra.mxu0 0
    %2667 = vmatpush.bf16.msra.mxu0 0
    %2668 = vmatpush.bf16.msra.mxu0 0
    %2669 = vmatpush.bf16.msra.mxu0 0
    %2670 = vmatpush.bf16.msra.mxu0 %v2661
    %2671 = vmatpush.bf16.msra.mxu0 %v2659
    %2672 = vmatmul.bf16.gmra.mxu0 %v2100
    %v2673 = vpop.f32.mrf.mxu0
    %v2674 = vadd.f32 0.0, %v2673
    %v2675 = vpop.f32.mrf.mxu0
    %v2676 = vadd.f32 0.0, %v2675
    %2677 = vmatmul.bf16.gmra.mxu0 %v2103
    %v2678 = vpop.f32.mrf.mxu0
    %v2679 = vadd.f32 0.0, %v2678
    %v2680 = vpop.f32.mrf.mxu0
    %v2681 = vadd.f32 0.0, %v2680
    %2682 = vmatmul.bf16.gmra.mxu0 %v2106
    %v2683 = vpop.f32.mrf.mxu0
    %v2684 = vadd.f32 0.0, %v2683
    %v2685 = vpop.f32.mrf.mxu0
    %v2686 = vadd.f32 0.0, %v2685
    %2687 = vmatmul.bf16.gmra.mxu0 %v2109
    %v2688 = vpop.f32.mrf.mxu0
    %v2689 = vadd.f32 0.0, %v2688
    %v2690 = vpop.f32.mrf.mxu0
    %v2691 = vadd.f32 0.0, %v2690
    %2692 = vdwg.mxu0
    %v2693 = vadd.f32 %v2650, %v2674
    %v2694 = vadd.f32 %v2651, %v2676
    %v2695 = vadd.f32 %v2652, %v2679
    %v2696 = vadd.f32 %v2653, %v2681
    %v2697 = vadd.f32 %v2654, %v2684
    %v2698 = vadd.f32 %v2655, %v2686
    %v2699 = vadd.f32 %v2656, %v2689
    %v2700 = vadd.f32 %v2657, %v2691
    %2701 = vrot.lane.b32.xlu0 %v2028, 126
    %v2702 = vpop.permute.xlu0 %2701
    %2703 = vrot.lane.b32.xlu0 %v2029, 126
    %v2704 = vpop.permute.xlu0 %2703
    %2707 = vmatpush.bf16.msra.mxu0 0
    %2708 = vmatpush.bf16.msra.mxu0 0
    %2709 = vmatpush.bf16.msra.mxu0 0
    %2710 = vmatpush.bf16.msra.mxu0 0
    %2711 = vmatpush.bf16.msra.mxu0 0
    %2712 = vmatpush.bf16.msra.mxu0 0
    %2713 = vmatpush.bf16.msra.mxu0 %v2704
    %2714 = vmatpush.bf16.msra.mxu0 %v2702
    %2715 = vmatmul.bf16.gmra.mxu0 %v2163
    %v2716 = vpop.f32.mrf.mxu0
    %v2717 = vadd.f32 0.0, %v2716
    %v2718 = vpop.f32.mrf.mxu0
    %v2719 = vadd.f32 0.0, %v2718
    %2720 = vmatmul.bf16.gmra.mxu0 %v2166
    %v2721 = vpop.f32.mrf.mxu0
    %v2722 = vadd.f32 0.0, %v2721
    %v2723 = vpop.f32.mrf.mxu0
    %v2724 = vadd.f32 0.0, %v2723
    %2725 = vmatmul.bf16.gmra.mxu0 %v2169
    %v2726 = vpop.f32.mrf.mxu0
    %v2727 = vadd.f32 0.0, %v2726
    %v2728 = vpop.f32.mrf.mxu0
    %v2729 = vadd.f32 0.0, %v2728
    %2730 = vmatmul.bf16.gmra.mxu0 %v2172
    %v2731 = vpop.f32.mrf.mxu0
    %v2732 = vadd.f32 0.0, %v2731
    %v2733 = vpop.f32.mrf.mxu0
    %v2734 = vadd.f32 0.0, %v2733
    %2735 = vdwg.mxu0
    %v2736 = vadd.f32 %v2693, %v2717
    %v2737 = vadd.f32 %v2694, %v2719
    %v2738 = vadd.f32 %v2695, %v2722
    %v2739 = vadd.f32 %v2696, %v2724
    %v2740 = vadd.f32 %v2697, %v2727
    %v2741 = vadd.f32 %v2698, %v2729
    %v2742 = vadd.f32 %v2699, %v2732
    %v2743 = vadd.f32 %v2700, %v2734
    %2744 = vmatpush.bf16.msra.mxu0 0
    %2745 = vmatpush.bf16.msra.mxu0 0
    %2746 = vmatpush.bf16.msra.mxu0 0
    %2747 = vmatpush.bf16.msra.mxu0 0
    %2748 = vmatpush.bf16.msra.mxu0 0
    %2749 = vmatpush.bf16.msra.mxu0 0
    %2750 = vmatpush.bf16.msra.mxu0 %v2366
    %2751 = vmatpush.bf16.msra.mxu0 %v2364
    %2752 = vmatmul.bf16.gmra.mxu0 %v2232
    %v2753 = vpop.f32.mrf.mxu0
    %v2754 = vadd.f32 0.0, %v2753
    %v2755 = vpop.f32.mrf.mxu0
    %v2756 = vadd.f32 0.0, %v2755
    %2757 = vmatmul.bf16.gmra.mxu0 %v2235
    %v2758 = vpop.f32.mrf.mxu0
    %v2759 = vadd.f32 0.0, %v2758
    %v2760 = vpop.f32.mrf.mxu0
    %v2761 = vadd.f32 0.0, %v2760
    %2762 = vmatmul.bf16.gmra.mxu0 %v2238
    %v2763 = vpop.f32.mrf.mxu0
    %v2764 = vadd.f32 0.0, %v2763
    %v2765 = vpop.f32.mrf.mxu0
    %v2766 = vadd.f32 0.0, %v2765
    %2767 = vmatmul.bf16.gmra.mxu0 %v2241
    %v2768 = vpop.f32.mrf.mxu0
    %v2769 = vadd.f32 0.0, %v2768
    %v2770 = vpop.f32.mrf.mxu0
    %v2771 = vadd.f32 0.0, %v2770
    %2772 = vdwg.mxu0
    %v2773 = vadd.f32 %v2736, %v2754
    %v2774 = vadd.f32 %v2737, %v2756
    %v2775 = vadd.f32 %v2738, %v2759
    %v2776 = vadd.f32 %v2739, %v2761
    %v2777 = vadd.f32 %v2740, %v2764
    %v2778 = vadd.f32 %v2741, %v2766
    %v2779 = vadd.f32 %v2742, %v2769
    %v2780 = vadd.f32 %v2743, %v2771
    %2781 = vrot.lane.b32.xlu0 %v2227, 32
    %v2782 = vpop.permute.xlu0 %2781
    %2783 = vrot.lane.b32.xlu0 %v2228, 32
    %v2784 = vpop.permute.xlu0 %2783
    %2787 = vmatpush.bf16.msra.mxu0 0
    %2788 = vmatpush.bf16.msra.mxu0 0
    %2789 = vmatpush.bf16.msra.mxu0 0
    %2790 = vmatpush.bf16.msra.mxu0 0
    %2791 = vmatpush.bf16.msra.mxu0 0
    %2792 = vmatpush.bf16.msra.mxu0 0
    %2793 = vmatpush.bf16.msra.mxu0 %v2784
    %2794 = vmatpush.bf16.msra.mxu0 %v2782
    %2795 = vmatmul.bf16.gmra.mxu0 %v2295
    %v2796 = vpop.f32.mrf.mxu0
    %v2797 = vadd.f32 0.0, %v2796
    %v2798 = vpop.f32.mrf.mxu0
    %v2799 = vadd.f32 0.0, %v2798
    %2800 = vmatmul.bf16.gmra.mxu0 %v2298
    %v2801 = vpop.f32.mrf.mxu0
    %v2802 = vadd.f32 0.0, %v2801
    %v2803 = vpop.f32.mrf.mxu0
    %v2804 = vadd.f32 0.0, %v2803
    %2805 = vmatmul.bf16.gmra.mxu0 %v2301
    %v2806 = vpop.f32.mrf.mxu0
    %v2807 = vadd.f32 0.0, %v2806
    %v2808 = vpop.f32.mrf.mxu0
    %v2809 = vadd.f32 0.0, %v2808
    %2810 = vmatmul.bf16.gmra.mxu0 %v2304
    %v2811 = vpop.f32.mrf.mxu0
    %v2812 = vadd.f32 0.0, %v2811
    %v2813 = vpop.f32.mrf.mxu0
    %v2814 = vadd.f32 0.0, %v2813
    %2815 = vdwg.mxu0
    %v2816 = vadd.f32 %v2773, %v2797
    %v2817 = vadd.f32 %v2774, %v2799
    %v2818 = vadd.f32 %v2775, %v2802
    %v2819 = vadd.f32 %v2776, %v2804
    %v2820 = vadd.f32 %v2777, %v2807
    %v2821 = vadd.f32 %v2778, %v2809
    %v2822 = vadd.f32 %v2779, %v2812
    %v2823 = vadd.f32 %v2780, %v2814
    %2824 = vrot.lane.b32.xlu0 %v2227, 126
    %v2825 = vpop.permute.xlu0 %2824
    %2826 = vrot.lane.b32.xlu0 %v2228, 126
    %v2827 = vpop.permute.xlu0 %2826
    %2830 = vmatpush.bf16.msra.mxu0 0
    %2831 = vmatpush.bf16.msra.mxu0 0
    %2832 = vmatpush.bf16.msra.mxu0 0
    %2833 = vmatpush.bf16.msra.mxu0 0
    %2834 = vmatpush.bf16.msra.mxu0 0
    %2835 = vmatpush.bf16.msra.mxu0 0
    %2836 = vmatpush.bf16.msra.mxu0 %v2827
    %2837 = vmatpush.bf16.msra.mxu0 %v2825
    %2838 = vmatmul.bf16.gmra.mxu0 %v2370
    %v2839 = vpop.f32.mrf.mxu0
    %v2840 = vadd.f32 0.0, %v2839
    %v2841 = vpop.f32.mrf.mxu0
    %v2842 = vadd.f32 0.0, %v2841
    %2843 = vmatmul.bf16.gmra.mxu0 %v2373
    %v2844 = vpop.f32.mrf.mxu0
    %v2845 = vadd.f32 0.0, %v2844
    %v2846 = vpop.f32.mrf.mxu0
    %v2847 = vadd.f32 0.0, %v2846
    %2848 = vmatmul.bf16.gmra.mxu0 %v2376
    %v2849 = vpop.f32.mrf.mxu0
    %v2850 = vadd.f32 0.0, %v2849
    %v2851 = vpop.f32.mrf.mxu0
    %v2852 = vadd.f32 0.0, %v2851
    %2853 = vmatmul.bf16.gmra.mxu0 %v2379
    %v2854 = vpop.f32.mrf.mxu0
    %v2855 = vadd.f32 0.0, %v2854
    %v2856 = vpop.f32.mrf.mxu0
    %v2857 = vadd.f32 0.0, %v2856
    %2858 = vdwg.mxu0
    %v2859 = vadd.f32 %v2816, %v2840
    %v2860 = vadd.f32 %v2817, %v2842
    %v2861 = vadd.f32 %v2818, %v2845
    %v2862 = vadd.f32 %v2819, %v2847
    %v2863 = vadd.f32 %v2820, %v2850
    %v2864 = vadd.f32 %v2821, %v2852
    %v2865 = vadd.f32 %v2822, %v2855
    %v2866 = vadd.f32 %v2823, %v2857
    %v2867 = vmul.f32 %v2859, %v2421
    %v2868 = vmul.f32 %v2860, %v2426
    %v2869 = vmul.f32 %v2861, %v2431
    %v2870 = vmul.f32 %v2862, %v2436
    %v2871 = vmul.f32 %v2863, %v2441
    %v2872 = vmul.f32 %v2864, %v2446
    %v2873 = vmul.f32 %v2865, %v2451
    %v2874 = vmul.f32 %v2866, %v2456
    %v2875 = vadd.f32 %v2867, %v2469
    %v2876 = vadd.f32 %v2868, %v2474
    %v2877 = vadd.f32 %v2869, %v2479
    %v2878 = vadd.f32 %v2870, %v2484
    %v2879 = vadd.f32 %v2871, %v2489
    %v2880 = vadd.f32 %v2872, %v2494
    %v2881 = vadd.f32 %v2873, %v2499
    %v2882 = vadd.f32 %v2874, %v2504
    %v2883 = vmax.f32 %v2506, %v2875
    %v2884 = vmax.f32 %v2507, %v2876
    %v2885 = vmax.f32 %v2508, %v2877
    %v2886 = vmax.f32 %v2509, %v2878
    %v2887 = vmax.f32 %v2510, %v2879
    %v2888 = vmax.f32 %v2511, %v2880
    %v2889 = vmax.f32 %v2512, %v2881
    %v2890 = vmax.f32 %v2513, %v2882
    %2891 = vmatpush.bf16.msra.mxu0 0
    %2892 = vmatpush.bf16.msra.mxu0 0
    %2893 = vmatpush.bf16.msra.mxu0 0
    %2894 = vmatpush.bf16.msra.mxu0 0
    %2895 = vmatpush.bf16.msra.mxu0 0
    %2896 = vmatpush.bf16.msra.mxu0 0
    %2897 = vmatpush.bf16.msra.mxu0 %v2291
    %2898 = vmatpush.bf16.msra.mxu0 %v2289
    %2899 = vmatmul.bf16.gmra.mxu0 %v1870
    %v2900 = vpop.f32.mrf.mxu0
    %v2901 = vadd.f32 0.0, %v2900
    %v2902 = vpop.f32.mrf.mxu0
    %v2903 = vadd.f32 0.0, %v2902
    %2904 = vmatmul.bf16.gmra.mxu0 %v1873
    %v2905 = vpop.f32.mrf.mxu0
    %v2906 = vadd.f32 0.0, %v2905
    %v2907 = vpop.f32.mrf.mxu0
    %v2908 = vadd.f32 0.0, %v2907
    %2909 = vmatmul.bf16.gmra.mxu0 %v1876
    %v2910 = vpop.f32.mrf.mxu0
    %v2911 = vadd.f32 0.0, %v2910
    %v2912 = vpop.f32.mrf.mxu0
    %v2913 = vadd.f32 0.0, %v2912
    %2914 = vmatmul.bf16.gmra.mxu0 %v1879
    %v2915 = vpop.f32.mrf.mxu0
    %v2916 = vadd.f32 0.0, %v2915
    %v2917 = vpop.f32.mrf.mxu0
    %v2918 = vadd.f32 0.0, %v2917
    %2919 = vdwg.mxu0
    %2920 = vmatpush.bf16.msra.mxu0 0
    %2921 = vmatpush.bf16.msra.mxu0 0
    %2922 = vmatpush.bf16.msra.mxu0 0
    %2923 = vmatpush.bf16.msra.mxu0 0
    %2924 = vmatpush.bf16.msra.mxu0 0
    %2925 = vmatpush.bf16.msra.mxu0 0
    %2926 = vmatpush.bf16.msra.mxu0 %v2228
    %2927 = vmatpush.bf16.msra.mxu0 %v2227
    %2928 = vmatmul.bf16.gmra.mxu0 %v1913
    %v2929 = vpop.f32.mrf.mxu0
    %v2930 = vadd.f32 %v2901, %v2929
    %v2931 = vpop.f32.mrf.mxu0
    %v2932 = vadd.f32 %v2903, %v2931
    %2933 = vmatmul.bf16.gmra.mxu0 %v1916
    %v2934 = vpop.f32.mrf.mxu0
    %v2935 = vadd.f32 %v2906, %v2934
    %v2936 = vpop.f32.mrf.mxu0
    %v2937 = vadd.f32 %v2908, %v2936
    %2938 = vmatmul.bf16.gmra.mxu0 %v1919
    %v2939 = vpop.f32.mrf.mxu0
    %v2940 = vadd.f32 %v2911, %v2939
    %v2941 = vpop.f32.mrf.mxu0
    %v2942 = vadd.f32 %v2913, %v2941
    %2943 = vmatmul.bf16.gmra.mxu0 %v1922
    %v2944 = vpop.f32.mrf.mxu0
    %v2945 = vadd.f32 %v2916, %v2944
    %v2946 = vpop.f32.mrf.mxu0
    %v2947 = vadd.f32 %v2918, %v2946
    %2948 = vdwg.mxu0
    %2949 = vmatpush.bf16.msra.mxu0 0
    %2950 = vmatpush.bf16.msra.mxu0 0
    %2951 = vmatpush.bf16.msra.mxu0 0
    %2952 = vmatpush.bf16.msra.mxu0 0
    %2953 = vmatpush.bf16.msra.mxu0 0
    %2954 = vmatpush.bf16.msra.mxu0 0
    %2955 = vmatpush.bf16.msra.mxu0 %v2366
    %2956 = vmatpush.bf16.msra.mxu0 %v2364
    %2957 = vmatmul.bf16.gmra.mxu0 %v1968
    %v2958 = vpop.f32.mrf.mxu0
    %v2959 = vadd.f32 0.0, %v2958
    %v2960 = vpop.f32.mrf.mxu0
    %v2961 = vadd.f32 0.0, %v2960
    %2962 = vmatmul.bf16.gmra.mxu0 %v1971
    %v2963 = vpop.f32.mrf.mxu0
    %v2964 = vadd.f32 0.0, %v2963
    %v2965 = vpop.f32.mrf.mxu0
    %v2966 = vadd.f32 0.0, %v2965
    %2967 = vmatmul.bf16.gmra.mxu0 %v1974
    %v2968 = vpop.f32.mrf.mxu0
    %v2969 = vadd.f32 0.0, %v2968
    %v2970 = vpop.f32.mrf.mxu0
    %v2971 = vadd.f32 0.0, %v2970
    %2972 = vmatmul.bf16.gmra.mxu0 %v1977
    %v2973 = vpop.f32.mrf.mxu0
    %v2974 = vadd.f32 0.0, %v2973
    %v2975 = vpop.f32.mrf.mxu0
    %v2976 = vadd.f32 0.0, %v2975
    %2977 = vdwg.mxu0
    %v2978 = vadd.f32 %v2930, %v2959
    %v2979 = vadd.f32 %v2932, %v2961
    %v2980 = vadd.f32 %v2935, %v2964
    %v2981 = vadd.f32 %v2937, %v2966
    %v2982 = vadd.f32 %v2940, %v2969
    %v2983 = vadd.f32 %v2942, %v2971
    %v2984 = vadd.f32 %v2945, %v2974
    %v2985 = vadd.f32 %v2947, %v2976
    %v2986 = vunpack.c.h.b16 %v1785
    %v2987 = vunpack.c.h.b16 %v1787
    %v2988 = vunpack.c.h.b16 %v1789
    %v2989 = vunpack.c.h.b16 %v1791
    %v2990 = vpack.c.b16 %v2987, %v2986
    %v2991 = vpack.c.b16 %v2989, %v2988
    %2994 = vmatpush.bf16.msra.mxu0 0
    %2995 = vmatpush.bf16.msra.mxu0 0
    %2996 = vmatpush.bf16.msra.mxu0 0
    %2997 = vmatpush.bf16.msra.mxu0 0
    %2998 = vmatpush.bf16.msra.mxu0 0
    %2999 = vmatpush.bf16.msra.mxu0 0
    %3000 = vmatpush.bf16.msra.mxu0 %v2991
    %3001 = vmatpush.bf16.msra.mxu0 %v2990
    %3002 = vmatmul.bf16.gmra.mxu0 %v2033
    %v3003 = vpop.f32.mrf.mxu0
    %v3004 = vadd.f32 0.0, %v3003
    %v3005 = vpop.f32.mrf.mxu0
    %v3006 = vadd.f32 0.0, %v3005
    %3007 = vmatmul.bf16.gmra.mxu0 %v2036
    %v3008 = vpop.f32.mrf.mxu0
    %v3009 = vadd.f32 0.0, %v3008
    %v3010 = vpop.f32.mrf.mxu0
    %v3011 = vadd.f32 0.0, %v3010
    %3012 = vmatmul.bf16.gmra.mxu0 %v2039
    %v3013 = vpop.f32.mrf.mxu0
    %v3014 = vadd.f32 0.0, %v3013
    %v3015 = vpop.f32.mrf.mxu0
    %v3016 = vadd.f32 0.0, %v3015
    %3017 = vmatmul.bf16.gmra.mxu0 %v2042
    %v3018 = vpop.f32.mrf.mxu0
    %v3019 = vadd.f32 0.0, %v3018
    %v3020 = vpop.f32.mrf.mxu0
    %v3021 = vadd.f32 0.0, %v3020
    %3022 = vdwg.mxu0
    %v3023 = vadd.f32 %v2978, %v3004
    %v3024 = vadd.f32 %v2979, %v3006
    %v3025 = vadd.f32 %v2980, %v3009
    %v3026 = vadd.f32 %v2981, %v3011
    %v3027 = vadd.f32 %v2982, %v3014
    %v3028 = vadd.f32 %v2983, %v3016
    %v3029 = vadd.f32 %v2984, %v3019
    %v3030 = vadd.f32 %v2985, %v3021
    %3031 = vrot.lane.b32.xlu0 %v2990, 96
    %v3032 = vpop.permute.xlu0 %3031
    %3033 = vrot.lane.b32.xlu0 %v2991, 96
    %v3034 = vpop.permute.xlu0 %3033
    %3037 = vmatpush.bf16.msra.mxu0 0
    %3038 = vmatpush.bf16.msra.mxu0 0
    %3039 = vmatpush.bf16.msra.mxu0 0
    %3040 = vmatpush.bf16.msra.mxu0 0
    %3041 = vmatpush.bf16.msra.mxu0 0
    %3042 = vmatpush.bf16.msra.mxu0 0
    %3043 = vmatpush.bf16.msra.mxu0 %v3034
    %3044 = vmatpush.bf16.msra.mxu0 %v3032
    %3045 = vmatmul.bf16.gmra.mxu0 %v2100
    %v3046 = vpop.f32.mrf.mxu0
    %v3047 = vadd.f32 0.0, %v3046
    %v3048 = vpop.f32.mrf.mxu0
    %v3049 = vadd.f32 0.0, %v3048
    %3050 = vmatmul.bf16.gmra.mxu0 %v2103
    %v3051 = vpop.f32.mrf.mxu0
    %v3052 = vadd.f32 0.0, %v3051
    %v3053 = vpop.f32.mrf.mxu0
    %v3054 = vadd.f32 0.0, %v3053
    %3055 = vmatmul.bf16.gmra.mxu0 %v2106
    %v3056 = vpop.f32.mrf.mxu0
    %v3057 = vadd.f32 0.0, %v3056
    %v3058 = vpop.f32.mrf.mxu0
    %v3059 = vadd.f32 0.0, %v3058
    %3060 = vmatmul.bf16.gmra.mxu0 %v2109
    %v3061 = vpop.f32.mrf.mxu0
    %v3062 = vadd.f32 0.0, %v3061
    %v3063 = vpop.f32.mrf.mxu0
    %v3064 = vadd.f32 0.0, %v3063
    %3065 = vdwg.mxu0
    %v3066 = vadd.f32 %v3023, %v3047
    %v3067 = vadd.f32 %v3024, %v3049
    %v3068 = vadd.f32 %v3025, %v3052
    %v3069 = vadd.f32 %v3026, %v3054
    %v3070 = vadd.f32 %v3027, %v3057
    %v3071 = vadd.f32 %v3028, %v3059
    %v3072 = vadd.f32 %v3029, %v3062
    %v3073 = vadd.f32 %v3030, %v3064
    %3074 = vrot.lane.b32.xlu0 %v2990, 64
    %v3075 = vpop.permute.xlu0 %3074
    %3076 = vrot.lane.b32.xlu0 %v2991, 64
    %v3077 = vpop.permute.xlu0 %3076
    %3080 = vmatpush.bf16.msra.mxu0 0
    %3081 = vmatpush.bf16.msra.mxu0 0
    %3082 = vmatpush.bf16.msra.mxu0 0
    %3083 = vmatpush.bf16.msra.mxu0 0
    %3084 = vmatpush.bf16.msra.mxu0 0
    %3085 = vmatpush.bf16.msra.mxu0 0
    %3086 = vmatpush.bf16.msra.mxu0 %v3077
    %3087 = vmatpush.bf16.msra.mxu0 %v3075
    %3088 = vmatmul.bf16.gmra.mxu0 %v2163
    %v3089 = vpop.f32.mrf.mxu0
    %v3090 = vadd.f32 0.0, %v3089
    %v3091 = vpop.f32.mrf.mxu0
    %v3092 = vadd.f32 0.0, %v3091
    %3093 = vmatmul.bf16.gmra.mxu0 %v2166
    %v3094 = vpop.f32.mrf.mxu0
    %v3095 = vadd.f32 0.0, %v3094
    %v3096 = vpop.f32.mrf.mxu0
    %v3097 = vadd.f32 0.0, %v3096
    %3098 = vmatmul.bf16.gmra.mxu0 %v2169
    %v3099 = vpop.f32.mrf.mxu0
    %v3100 = vadd.f32 0.0, %v3099
    %v3101 = vpop.f32.mrf.mxu0
    %v3102 = vadd.f32 0.0, %v3101
    %3103 = vmatmul.bf16.gmra.mxu0 %v2172
    %v3104 = vpop.f32.mrf.mxu0
    %v3105 = vadd.f32 0.0, %v3104
    %v3106 = vpop.f32.mrf.mxu0
    %v3107 = vadd.f32 0.0, %v3106
    %3108 = vdwg.mxu0
    %v3109 = vadd.f32 %v3066, %v3090
    %v3110 = vadd.f32 %v3067, %v3092
    %v3111 = vadd.f32 %v3068, %v3095
    %v3112 = vadd.f32 %v3069, %v3097
    %v3113 = vadd.f32 %v3070, %v3100
    %v3114 = vadd.f32 %v3071, %v3102
    %v3115 = vadd.f32 %v3072, %v3105
    %v3116 = vadd.f32 %v3073, %v3107
    %3117 = vrot.lane.b32.xlu0 %v1860, 120
    %v3118 = vpop.permute.xlu0 %3117
    %3119 = vrot.lane.b32.xlu0 %v1861, 120
    %v3120 = vpop.permute.xlu0 %3119
    %3123 = vmatpush.bf16.msra.mxu0 0
    %3124 = vmatpush.bf16.msra.mxu0 0
    %3125 = vmatpush.bf16.msra.mxu0 0
    %3126 = vmatpush.bf16.msra.mxu0 0
    %3127 = vmatpush.bf16.msra.mxu0 0
    %3128 = vmatpush.bf16.msra.mxu0 0
    %3129 = vmatpush.bf16.msra.mxu0 %v3120
    %3130 = vmatpush.bf16.msra.mxu0 %v3118
    %3131 = vmatmul.bf16.gmra.mxu0 %v2232
    %v3132 = vpop.f32.mrf.mxu0
    %v3133 = vadd.f32 0.0, %v3132
    %v3134 = vpop.f32.mrf.mxu0
    %v3135 = vadd.f32 0.0, %v3134
    %3136 = vmatmul.bf16.gmra.mxu0 %v2235
    %v3137 = vpop.f32.mrf.mxu0
    %v3138 = vadd.f32 0.0, %v3137
    %v3139 = vpop.f32.mrf.mxu0
    %v3140 = vadd.f32 0.0, %v3139
    %3141 = vmatmul.bf16.gmra.mxu0 %v2238
    %v3142 = vpop.f32.mrf.mxu0
    %v3143 = vadd.f32 0.0, %v3142
    %v3144 = vpop.f32.mrf.mxu0
    %v3145 = vadd.f32 0.0, %v3144
    %3146 = vmatmul.bf16.gmra.mxu0 %v2241
    %v3147 = vpop.f32.mrf.mxu0
    %v3148 = vadd.f32 0.0, %v3147
    %v3149 = vpop.f32.mrf.mxu0
    %v3150 = vadd.f32 0.0, %v3149
    %3151 = vdwg.mxu0
    %v3152 = vadd.f32 %v3109, %v3133
    %v3153 = vadd.f32 %v3110, %v3135
    %v3154 = vadd.f32 %v3111, %v3138
    %v3155 = vadd.f32 %v3112, %v3140
    %v3156 = vadd.f32 %v3113, %v3143
    %v3157 = vadd.f32 %v3114, %v3145
    %v3158 = vadd.f32 %v3115, %v3148
    %v3159 = vadd.f32 %v3116, %v3150
    %3160 = vrot.lane.b32.xlu0 %v1860, 88
    %v3161 = vpop.permute.xlu0 %3160
    %3162 = vrot.lane.b32.xlu0 %v1861, 88
    %v3163 = vpop.permute.xlu0 %3162
    %3166 = vmatpush.bf16.msra.mxu0 0
    %3167 = vmatpush.bf16.msra.mxu0 0
    %3168 = vmatpush.bf16.msra.mxu0 0
    %3169 = vmatpush.bf16.msra.mxu0 0
    %3170 = vmatpush.bf16.msra.mxu0 0
    %3171 = vmatpush.bf16.msra.mxu0 0
    %3172 = vmatpush.bf16.msra.mxu0 %v3163
    %3173 = vmatpush.bf16.msra.mxu0 %v3161
    %3174 = vmatmul.bf16.gmra.mxu0 %v2295
    %v3175 = vpop.f32.mrf.mxu0
    %v3176 = vadd.f32 0.0, %v3175
    %v3177 = vpop.f32.mrf.mxu0
    %v3178 = vadd.f32 0.0, %v3177
    %3179 = vmatmul.bf16.gmra.mxu0 %v2298
    %v3180 = vpop.f32.mrf.mxu0
    %v3181 = vadd.f32 0.0, %v3180
    %v3182 = vpop.f32.mrf.mxu0
    %v3183 = vadd.f32 0.0, %v3182
    %3184 = vmatmul.bf16.gmra.mxu0 %v2301
    %v3185 = vpop.f32.mrf.mxu0
    %v3186 = vadd.f32 0.0, %v3185
    %v3187 = vpop.f32.mrf.mxu0
    %v3188 = vadd.f32 0.0, %v3187
    %3189 = vmatmul.bf16.gmra.mxu0 %v2304
    %v3190 = vpop.f32.mrf.mxu0
    %v3191 = vadd.f32 0.0, %v3190
    %v3192 = vpop.f32.mrf.mxu0
    %v3193 = vadd.f32 0.0, %v3192
    %3194 = vdwg.mxu0
    %v3195 = vadd.f32 %v3152, %v3176
    %v3196 = vadd.f32 %v3153, %v3178
    %v3197 = vadd.f32 %v3154, %v3181
    %v3198 = vadd.f32 %v3155, %v3183
    %v3199 = vadd.f32 %v3156, %v3186
    %v3200 = vadd.f32 %v3157, %v3188
    %v3201 = vadd.f32 %v3158, %v3191
    %v3202 = vadd.f32 %v3159, %v3193
    %3203 = vrot.lane.b32.xlu0 %v1860, 56
    %v3204 = vpop.permute.xlu0 %3203
    %3205 = vrot.lane.b32.xlu0 %v1861, 56
    %v3206 = vpop.permute.xlu0 %3205
    %3209 = vmatpush.bf16.msra.mxu0 0
    %3210 = vmatpush.bf16.msra.mxu0 0
    %3211 = vmatpush.bf16.msra.mxu0 0
    %3212 = vmatpush.bf16.msra.mxu0 0
    %3213 = vmatpush.bf16.msra.mxu0 0
    %3214 = vmatpush.bf16.msra.mxu0 0
    %3215 = vmatpush.bf16.msra.mxu0 %v3206
    %3216 = vmatpush.bf16.msra.mxu0 %v3204
    %3217 = vmatmul.bf16.gmra.mxu0 %v2370
    %v3218 = vpop.f32.mrf.mxu0
    %v3219 = vadd.f32 0.0, %v3218
    %v3220 = vpop.f32.mrf.mxu0
    %v3221 = vadd.f32 0.0, %v3220
    %3222 = vmatmul.bf16.gmra.mxu0 %v2373
    %v3223 = vpop.f32.mrf.mxu0
    %v3224 = vadd.f32 0.0, %v3223
    %v3225 = vpop.f32.mrf.mxu0
    %v3226 = vadd.f32 0.0, %v3225
    %3227 = vmatmul.bf16.gmra.mxu0 %v2376
    %v3228 = vpop.f32.mrf.mxu0
    %v3229 = vadd.f32 0.0, %v3228
    %v3230 = vpop.f32.mrf.mxu0
    %v3231 = vadd.f32 0.0, %v3230
    %3232 = vmatmul.bf16.gmra.mxu0 %v2379
    %v3233 = vpop.f32.mrf.mxu0
    %v3234 = vadd.f32 0.0, %v3233
    %v3235 = vpop.f32.mrf.mxu0
    %v3236 = vadd.f32 0.0, %v3235
    %3237 = vdwg.mxu0
    %v3238 = vadd.f32 %v3195, %v3219
    %v3239 = vadd.f32 %v3196, %v3221
    %v3240 = vadd.f32 %v3197, %v3224
    %v3241 = vadd.f32 %v3198, %v3226
    %v3242 = vadd.f32 %v3199, %v3229
    %v3243 = vadd.f32 %v3200, %v3231
    %v3244 = vadd.f32 %v3201, %v3234
    %v3245 = vadd.f32 %v3202, %v3236
    %v3246 = vmul.f32 %v3238, %v2421
    %v3247 = vmul.f32 %v3239, %v2426
    %v3248 = vmul.f32 %v3240, %v2431
    %v3249 = vmul.f32 %v3241, %v2436
    %v3250 = vmul.f32 %v3242, %v2441
    %v3251 = vmul.f32 %v3243, %v2446
    %v3252 = vmul.f32 %v3244, %v2451
    %v3253 = vmul.f32 %v3245, %v2456
    %v3254 = vadd.f32 %v3246, %v2469
    %v3255 = vadd.f32 %v3247, %v2474
    %v3256 = vadd.f32 %v3248, %v2479
    %v3257 = vadd.f32 %v3249, %v2484
    %v3258 = vadd.f32 %v3250, %v2489
    %v3259 = vadd.f32 %v3251, %v2494
    %v3260 = vadd.f32 %v3252, %v2499
    %v3261 = vadd.f32 %v3253, %v2504
    %v3262 = vmax.f32 %v2883, %v3254
    %v3263 = vmax.f32 %v2884, %v3255
    %v3264 = vmax.f32 %v2885, %v3256
    %v3265 = vmax.f32 %v2886, %v3257
    %v3266 = vmax.f32 %v2887, %v3258
    %v3267 = vmax.f32 %v2888, %v3259
    %v3268 = vmax.f32 %v2889, %v3260
    %v3269 = vmax.f32 %v2890, %v3261
    %3270 = vmatpush.bf16.msra.mxu0 0
    %3271 = vmatpush.bf16.msra.mxu0 0
    %3272 = vmatpush.bf16.msra.mxu0 0
    %3273 = vmatpush.bf16.msra.mxu0 0
    %3274 = vmatpush.bf16.msra.mxu0 0
    %3275 = vmatpush.bf16.msra.mxu0 0
    %3276 = vmatpush.bf16.msra.mxu0 %v2784
    %3277 = vmatpush.bf16.msra.mxu0 %v2782
    %3278 = vmatmul.bf16.gmra.mxu0 %v1870
    %v3279 = vpop.f32.mrf.mxu0
    %v3280 = vadd.f32 0.0, %v3279
    %v3281 = vpop.f32.mrf.mxu0
    %v3282 = vadd.f32 0.0, %v3281
    %3283 = vmatmul.bf16.gmra.mxu0 %v1873
    %v3284 = vpop.f32.mrf.mxu0
    %v3285 = vadd.f32 0.0, %v3284
    %v3286 = vpop.f32.mrf.mxu0
    %v3287 = vadd.f32 0.0, %v3286
    %3288 = vmatmul.bf16.gmra.mxu0 %v1876
    %v3289 = vpop.f32.mrf.mxu0
    %v3290 = vadd.f32 0.0, %v3289
    %v3291 = vpop.f32.mrf.mxu0
    %v3292 = vadd.f32 0.0, %v3291
    %3293 = vmatmul.bf16.gmra.mxu0 %v1879
    %v3294 = vpop.f32.mrf.mxu0
    %v3295 = vadd.f32 0.0, %v3294
    %v3296 = vpop.f32.mrf.mxu0
    %v3297 = vadd.f32 0.0, %v3296
    %3298 = vdwg.mxu0
    %3299 = vmatpush.bf16.msra.mxu0 0
    %3300 = vmatpush.bf16.msra.mxu0 0
    %3301 = vmatpush.bf16.msra.mxu0 0
    %3302 = vmatpush.bf16.msra.mxu0 0
    %3303 = vmatpush.bf16.msra.mxu0 0
    %3304 = vmatpush.bf16.msra.mxu0 0
    %3305 = vmatpush.bf16.msra.mxu0 %v2366
    %3306 = vmatpush.bf16.msra.mxu0 %v2364
    %3307 = vmatmul.bf16.gmra.mxu0 %v1913
    %v3308 = vpop.f32.mrf.mxu0
    %v3309 = vadd.f32 %v3280, %v3308
    %v3310 = vpop.f32.mrf.mxu0
    %v3311 = vadd.f32 %v3282, %v3310
    %3312 = vmatmul.bf16.gmra.mxu0 %v1916
    %v3313 = vpop.f32.mrf.mxu0
    %v3314 = vadd.f32 %v3285, %v3313
    %v3315 = vpop.f32.mrf.mxu0
    %v3316 = vadd.f32 %v3287, %v3315
    %3317 = vmatmul.bf16.gmra.mxu0 %v1919
    %v3318 = vpop.f32.mrf.mxu0
    %v3319 = vadd.f32 %v3290, %v3318
    %v3320 = vpop.f32.mrf.mxu0
    %v3321 = vadd.f32 %v3292, %v3320
    %3322 = vmatmul.bf16.gmra.mxu0 %v1922
    %v3323 = vpop.f32.mrf.mxu0
    %v3324 = vadd.f32 %v3295, %v3323
    %v3325 = vpop.f32.mrf.mxu0
    %v3326 = vadd.f32 %v3297, %v3325
    %3327 = vdwg.mxu0
    %3328 = vmatpush.bf16.msra.mxu0 0
    %3329 = vmatpush.bf16.msra.mxu0 0
    %3330 = vmatpush.bf16.msra.mxu0 0
    %3331 = vmatpush.bf16.msra.mxu0 0
    %3332 = vmatpush.bf16.msra.mxu0 0
    %3333 = vmatpush.bf16.msra.mxu0 0
    %3334 = vmatpush.bf16.msra.mxu0 %v2827
    %3335 = vmatpush.bf16.msra.mxu0 %v2825
    %3336 = vmatmul.bf16.gmra.mxu0 %v1968
    %v3337 = vpop.f32.mrf.mxu0
    %v3338 = vadd.f32 0.0, %v3337
    %v3339 = vpop.f32.mrf.mxu0
    %v3340 = vadd.f32 0.0, %v3339
    %3341 = vmatmul.bf16.gmra.mxu0 %v1971
    %v3342 = vpop.f32.mrf.mxu0
    %v3343 = vadd.f32 0.0, %v3342
    %v3344 = vpop.f32.mrf.mxu0
    %v3345 = vadd.f32 0.0, %v3344
    %3346 = vmatmul.bf16.gmra.mxu0 %v1974
    %v3347 = vpop.f32.mrf.mxu0
    %v3348 = vadd.f32 0.0, %v3347
    %v3349 = vpop.f32.mrf.mxu0
    %v3350 = vadd.f32 0.0, %v3349
    %3351 = vmatmul.bf16.gmra.mxu0 %v1977
    %v3352 = vpop.f32.mrf.mxu0
    %v3353 = vadd.f32 0.0, %v3352
    %v3354 = vpop.f32.mrf.mxu0
    %v3355 = vadd.f32 0.0, %v3354
    %3356 = vdwg.mxu0
    %v3357 = vadd.f32 %v3309, %v3338
    %v3358 = vadd.f32 %v3311, %v3340
    %v3359 = vadd.f32 %v3314, %v3343
    %v3360 = vadd.f32 %v3316, %v3345
    %v3361 = vadd.f32 %v3319, %v3348
    %v3362 = vadd.f32 %v3321, %v3350
    %v3363 = vadd.f32 %v3324, %v3353
    %v3364 = vadd.f32 %v3326, %v3355
    %3365 = vmatpush.bf16.msra.mxu0 0
    %3366 = vmatpush.bf16.msra.mxu0 0
    %3367 = vmatpush.bf16.msra.mxu0 0
    %3368 = vmatpush.bf16.msra.mxu0 0
    %3369 = vmatpush.bf16.msra.mxu0 0
    %3370 = vmatpush.bf16.msra.mxu0 0
    %3371 = vmatpush.bf16.msra.mxu0 %v3077
    %3372 = vmatpush.bf16.msra.mxu0 %v3075
    %3373 = vmatmul.bf16.gmra.mxu0 %v2033
    %v3374 = vpop.f32.mrf.mxu0
    %v3375 = vadd.f32 0.0, %v3374
    %v3376 = vpop.f32.mrf.mxu0
    %v3377 = vadd.f32 0.0, %v3376
    %3378 = vmatmul.bf16.gmra.mxu0 %v2036
    %v3379 = vpop.f32.mrf.mxu0
    %v3380 = vadd.f32 0.0, %v3379
    %v3381 = vpop.f32.mrf.mxu0
    %v3382 = vadd.f32 0.0, %v3381
    %3383 = vmatmul.bf16.gmra.mxu0 %v2039
    %v3384 = vpop.f32.mrf.mxu0
    %v3385 = vadd.f32 0.0, %v3384
    %v3386 = vpop.f32.mrf.mxu0
    %v3387 = vadd.f32 0.0, %v3386
    %3388 = vmatmul.bf16.gmra.mxu0 %v2042
    %v3389 = vpop.f32.mrf.mxu0
    %v3390 = vadd.f32 0.0, %v3389
    %v3391 = vpop.f32.mrf.mxu0
    %v3392 = vadd.f32 0.0, %v3391
    %3393 = vdwg.mxu0
    %v3394 = vadd.f32 %v3357, %v3375
    %v3395 = vadd.f32 %v3358, %v3377
    %v3396 = vadd.f32 %v3359, %v3380
    %v3397 = vadd.f32 %v3360, %v3382
    %v3398 = vadd.f32 %v3361, %v3385
    %v3399 = vadd.f32 %v3362, %v3387
    %v3400 = vadd.f32 %v3363, %v3390
    %v3401 = vadd.f32 %v3364, %v3392
    %3402 = vrot.lane.b32.xlu0 %v2990, 32
    %v3403 = vpop.permute.xlu0 %3402
    %3404 = vrot.lane.b32.xlu0 %v2991, 32
    %v3405 = vpop.permute.xlu0 %3404
    %3408 = vmatpush.bf16.msra.mxu0 0
    %3409 = vmatpush.bf16.msra.mxu0 0
    %3410 = vmatpush.bf16.msra.mxu0 0
    %3411 = vmatpush.bf16.msra.mxu0 0
    %3412 = vmatpush.bf16.msra.mxu0 0
    %3413 = vmatpush.bf16.msra.mxu0 0
    %3414 = vmatpush.bf16.msra.mxu0 %v3405
    %3415 = vmatpush.bf16.msra.mxu0 %v3403
    %3416 = vmatmul.bf16.gmra.mxu0 %v2100
    %v3417 = vpop.f32.mrf.mxu0
    %v3418 = vadd.f32 0.0, %v3417
    %v3419 = vpop.f32.mrf.mxu0
    %v3420 = vadd.f32 0.0, %v3419
    %3421 = vmatmul.bf16.gmra.mxu0 %v2103
    %v3422 = vpop.f32.mrf.mxu0
    %v3423 = vadd.f32 0.0, %v3422
    %v3424 = vpop.f32.mrf.mxu0
    %v3425 = vadd.f32 0.0, %v3424
    %3426 = vmatmul.bf16.gmra.mxu0 %v2106
    %v3427 = vpop.f32.mrf.mxu0
    %v3428 = vadd.f32 0.0, %v3427
    %v3429 = vpop.f32.mrf.mxu0
    %v3430 = vadd.f32 0.0, %v3429
    %3431 = vmatmul.bf16.gmra.mxu0 %v2109
    %v3432 = vpop.f32.mrf.mxu0
    %v3433 = vadd.f32 0.0, %v3432
    %v3434 = vpop.f32.mrf.mxu0
    %v3435 = vadd.f32 0.0, %v3434
    %3436 = vdwg.mxu0
    %v3437 = vadd.f32 %v3394, %v3418
    %v3438 = vadd.f32 %v3395, %v3420
    %v3439 = vadd.f32 %v3396, %v3423
    %v3440 = vadd.f32 %v3397, %v3425
    %v3441 = vadd.f32 %v3398, %v3428
    %v3442 = vadd.f32 %v3399, %v3430
    %v3443 = vadd.f32 %v3400, %v3433
    %v3444 = vadd.f32 %v3401, %v3435
    %3445 = vrot.lane.b32.xlu0 %v2990, 126
    %v3446 = vpop.permute.xlu0 %3445
    %3447 = vrot.lane.b32.xlu0 %v2991, 126
    %v3448 = vpop.permute.xlu0 %3447
    %3451 = vmatpush.bf16.msra.mxu0 0
    %3452 = vmatpush.bf16.msra.mxu0 0
    %3453 = vmatpush.bf16.msra.mxu0 0
    %3454 = vmatpush.bf16.msra.mxu0 0
    %3455 = vmatpush.bf16.msra.mxu0 0
    %3456 = vmatpush.bf16.msra.mxu0 0
    %3457 = vmatpush.bf16.msra.mxu0 %v3448
    %3458 = vmatpush.bf16.msra.mxu0 %v3446
    %3459 = vmatmul.bf16.gmra.mxu0 %v2163
    %v3460 = vpop.f32.mrf.mxu0
    %v3461 = vadd.f32 0.0, %v3460
    %v3462 = vpop.f32.mrf.mxu0
    %v3463 = vadd.f32 0.0, %v3462
    %3464 = vmatmul.bf16.gmra.mxu0 %v2166
    %v3465 = vpop.f32.mrf.mxu0
    %v3466 = vadd.f32 0.0, %v3465
    %v3467 = vpop.f32.mrf.mxu0
    %v3468 = vadd.f32 0.0, %v3467
    %3469 = vmatmul.bf16.gmra.mxu0 %v2169
    %v3470 = vpop.f32.mrf.mxu0
    %v3471 = vadd.f32 0.0, %v3470
    %v3472 = vpop.f32.mrf.mxu0
    %v3473 = vadd.f32 0.0, %v3472
    %3474 = vmatmul.bf16.gmra.mxu0 %v2172
    %v3475 = vpop.f32.mrf.mxu0
    %v3476 = vadd.f32 0.0, %v3475
    %v3477 = vpop.f32.mrf.mxu0
    %v3478 = vadd.f32 0.0, %v3477
    %3479 = vdwg.mxu0
    %v3480 = vadd.f32 %v3437, %v3461
    %v3481 = vadd.f32 %v3438, %v3463
    %v3482 = vadd.f32 %v3439, %v3466
    %v3483 = vadd.f32 %v3440, %v3468
    %v3484 = vadd.f32 %v3441, %v3471
    %v3485 = vadd.f32 %v3442, %v3473
    %v3486 = vadd.f32 %v3443, %v3476
    %v3487 = vadd.f32 %v3444, %v3478
    %3488 = vmatpush.bf16.msra.mxu0 0
    %3489 = vmatpush.bf16.msra.mxu0 0
    %3490 = vmatpush.bf16.msra.mxu0 0
    %3491 = vmatpush.bf16.msra.mxu0 0
    %3492 = vmatpush.bf16.msra.mxu0 0
    %3493 = vmatpush.bf16.msra.mxu0 0
    %3494 = vmatpush.bf16.msra.mxu0 %v3206
    %3495 = vmatpush.bf16.msra.mxu0 %v3204
    %3496 = vmatmul.bf16.gmra.mxu0 %v2232
    %v3497 = vpop.f32.mrf.mxu0
    %v3498 = vadd.f32 0.0, %v3497
    %v3499 = vpop.f32.mrf.mxu0
    %v3500 = vadd.f32 0.0, %v3499
    %3501 = vmatmul.bf16.gmra.mxu0 %v2235
    %v3502 = vpop.f32.mrf.mxu0
    %v3503 = vadd.f32 0.0, %v3502
    %v3504 = vpop.f32.mrf.mxu0
    %v3505 = vadd.f32 0.0, %v3504
    %3506 = vmatmul.bf16.gmra.mxu0 %v2238
    %v3507 = vpop.f32.mrf.mxu0
    %v3508 = vadd.f32 0.0, %v3507
    %v3509 = vpop.f32.mrf.mxu0
    %v3510 = vadd.f32 0.0, %v3509
    %3511 = vmatmul.bf16.gmra.mxu0 %v2241
    %v3512 = vpop.f32.mrf.mxu0
    %v3513 = vadd.f32 0.0, %v3512
    %v3514 = vpop.f32.mrf.mxu0
    %v3515 = vadd.f32 0.0, %v3514
    %3516 = vdwg.mxu0
    %v3517 = vadd.f32 %v3480, %v3498
    %v3518 = vadd.f32 %v3481, %v3500
    %v3519 = vadd.f32 %v3482, %v3503
    %v3520 = vadd.f32 %v3483, %v3505
    %v3521 = vadd.f32 %v3484, %v3508
    %v3522 = vadd.f32 %v3485, %v3510
    %v3523 = vadd.f32 %v3486, %v3513
    %v3524 = vadd.f32 %v3487, %v3515
    %3525 = vrot.lane.b32.xlu0 %v1860, 24
    %v3526 = vpop.permute.xlu0 %3525
    %3527 = vrot.lane.b32.xlu0 %v2028, 24
    %v3528 = vpop.permute.xlu0 %3527
    %3529 = vrot.lane.b32.xlu0 %v1861, 24
    %v3530 = vpop.permute.xlu0 %3529
    %3531 = vrot.lane.b32.xlu0 %v2029, 24
    %v3532 = vpop.permute.xlu0 %3531
    %vm3533 = vcmask 195584
    %v3534 = vsel %vm3533, %v3526, %v3528
    %v3535 = vsel %vm3533, %v3530, %v3532
    %3538 = vmatpush.bf16.msra.mxu0 0
    %3539 = vmatpush.bf16.msra.mxu0 0
    %3540 = vmatpush.bf16.msra.mxu0 0
    %3541 = vmatpush.bf16.msra.mxu0 0
    %3542 = vmatpush.bf16.msra.mxu0 0
    %3543 = vmatpush.bf16.msra.mxu0 0
    %3544 = vmatpush.bf16.msra.mxu0 %v3535
    %3545 = vmatpush.bf16.msra.mxu0 %v3534
    %3546 = vmatmul.bf16.gmra.mxu0 %v2295
    %v3547 = vpop.f32.mrf.mxu0
    %v3548 = vadd.f32 0.0, %v3547
    %v3549 = vpop.f32.mrf.mxu0
    %v3550 = vadd.f32 0.0, %v3549
    %3551 = vmatmul.bf16.gmra.mxu0 %v2298
    %v3552 = vpop.f32.mrf.mxu0
    %v3553 = vadd.f32 0.0, %v3552
    %v3554 = vpop.f32.mrf.mxu0
    %v3555 = vadd.f32 0.0, %v3554
    %3556 = vmatmul.bf16.gmra.mxu0 %v2301
    %v3557 = vpop.f32.mrf.mxu0
    %v3558 = vadd.f32 0.0, %v3557
    %v3559 = vpop.f32.mrf.mxu0
    %v3560 = vadd.f32 0.0, %v3559
    %3561 = vmatmul.bf16.gmra.mxu0 %v2304
    %v3562 = vpop.f32.mrf.mxu0
    %v3563 = vadd.f32 0.0, %v3562
    %v3564 = vpop.f32.mrf.mxu0
    %v3565 = vadd.f32 0.0, %v3564
    %3566 = vdwg.mxu0
    %v3567 = vadd.f32 %v3517, %v3548
    %v3568 = vadd.f32 %v3518, %v3550
    %v3569 = vadd.f32 %v3519, %v3553
    %v3570 = vadd.f32 %v3520, %v3555
    %v3571 = vadd.f32 %v3521, %v3558
    %v3572 = vadd.f32 %v3522, %v3560
    %v3573 = vadd.f32 %v3523, %v3563
    %v3574 = vadd.f32 %v3524, %v3565
    %3575 = vrot.lane.b32.xlu0 %v1860, 118
    %v3576 = vpop.permute.xlu0 %3575
    %3577 = vrot.lane.b32.xlu0 %v1861, 118
    %v3578 = vpop.permute.xlu0 %3577
    %3581 = vmatpush.bf16.msra.mxu0 0
    %3582 = vmatpush.bf16.msra.mxu0 0
    %3583 = vmatpush.bf16.msra.mxu0 0
    %3584 = vmatpush.bf16.msra.mxu0 0
    %3585 = vmatpush.bf16.msra.mxu0 0
    %3586 = vmatpush.bf16.msra.mxu0 0
    %3587 = vmatpush.bf16.msra.mxu0 %v3578
    %3588 = vmatpush.bf16.msra.mxu0 %v3576
    %3589 = vmatmul.bf16.gmra.mxu0 %v2370
    %v3590 = vpop.f32.mrf.mxu0
    %v3591 = vadd.f32 0.0, %v3590
    %v3592 = vpop.f32.mrf.mxu0
    %v3593 = vadd.f32 0.0, %v3592
    %3594 = vmatmul.bf16.gmra.mxu0 %v2373
    %v3595 = vpop.f32.mrf.mxu0
    %v3596 = vadd.f32 0.0, %v3595
    %v3597 = vpop.f32.mrf.mxu0
    %v3598 = vadd.f32 0.0, %v3597
    %3599 = vmatmul.bf16.gmra.mxu0 %v2376
    %v3600 = vpop.f32.mrf.mxu0
    %v3601 = vadd.f32 0.0, %v3600
    %v3602 = vpop.f32.mrf.mxu0
    %v3603 = vadd.f32 0.0, %v3602
    %3604 = vmatmul.bf16.gmra.mxu0 %v2379
    %v3605 = vpop.f32.mrf.mxu0
    %v3606 = vadd.f32 0.0, %v3605
    %v3607 = vpop.f32.mrf.mxu0
    %v3608 = vadd.f32 0.0, %v3607
    %3609 = vdwg.mxu0
    %v3610 = vadd.f32 %v3567, %v3591
    %v3611 = vadd.f32 %v3568, %v3593
    %v3612 = vadd.f32 %v3569, %v3596
    %v3613 = vadd.f32 %v3570, %v3598
    %v3614 = vadd.f32 %v3571, %v3601
    %v3615 = vadd.f32 %v3572, %v3603
    %v3616 = vadd.f32 %v3573, %v3606
    %v3617 = vadd.f32 %v3574, %v3608
    %v3618 = vmul.f32 %v3610, %v2421
    %v3619 = vmul.f32 %v3611, %v2426
    %v3620 = vmul.f32 %v3612, %v2431
    %v3621 = vmul.f32 %v3613, %v2436
    %v3622 = vmul.f32 %v3614, %v2441
    %v3623 = vmul.f32 %v3615, %v2446
    %v3624 = vmul.f32 %v3616, %v2451
    %v3625 = vmul.f32 %v3617, %v2456
    %v3626 = vadd.f32 %v3618, %v2469
    %v3627 = vadd.f32 %v3619, %v2474
    %v3628 = vadd.f32 %v3620, %v2479
    %v3629 = vadd.f32 %v3621, %v2484
    %v3630 = vadd.f32 %v3622, %v2489
    %v3631 = vadd.f32 %v3623, %v2494
    %v3632 = vadd.f32 %v3624, %v2499
    %v3633 = vadd.f32 %v3625, %v2504
    %v3634 = vmax.f32 %v3262, %v3626
    %v3635 = vmax.f32 %v3263, %v3627
    %v3636 = vmax.f32 %v3264, %v3628
    %v3637 = vmax.f32 %v3265, %v3629
    %v3638 = vmax.f32 %v3266, %v3630
    %v3639 = vmax.f32 %v3267, %v3631
    %v3640 = vmax.f32 %v3268, %v3632
    %v3641 = vmax.f32 %v3269, %v3633
    %v3642 = vmax.f32 %v3634, 0.0
    %v3643 = vmax.f32 %v3635, 0.0
    %v3644 = vmax.f32 %v3636, 0.0
    %v3645 = vmax.f32 %v3637, 0.0
    %v3646 = vmax.f32 %v3638, 0.0
    %v3647 = vmax.f32 %v3639, 0.0
    %v3648 = vmax.f32 %v3640, 0.0
    %v3649 = vmax.f32 %v3641, 0.0
    %v3650 = vld [vmem:[%s7] sm:$0xff]
    %v3651 = vld [vmem:[%s7 + $0x8] sm:$0x3]
    %s3652 = scalar_lea.vmem %s7, 16
    %v3653 = vld [vmem:[%s3652] sm:$0xff]
    %v3654 = vld [vmem:[%s3652 + $0x8] sm:$0x3]
    %3663 = vrot.lane.b32.xlu0 %v3642, 126
    %v3664 = vpop.permute.xlu0 %3663
    %3665 = vrot.lane.b32.xlu0 %v3643, 126
    %v3666 = vpop.permute.xlu0 %3665
    %3667 = vrot.lane.b32.xlu0 %v3644, 126
    %v3668 = vpop.permute.xlu0 %3667
    %3669 = vrot.lane.b32.xlu0 %v3645, 126
    %v3670 = vpop.permute.xlu0 %3669
    %3671 = vrot.lane.b32.xlu0 %v3646, 126
    %v3672 = vpop.permute.xlu0 %3671
    %3673 = vrot.lane.b32.xlu0 %v3647, 126
    %v3674 = vpop.permute.xlu0 %3673
    %3675 = vrot.lane.b32.xlu0 %v3648, 126
    %v3676 = vpop.permute.xlu0 %3675
    %3677 = vrot.lane.b32.xlu0 %v3649, 126
    %v3678 = vpop.permute.xlu0 %3677
    %vm3687 = vcmask 523264
    %v3689 = vsel %vm3687, %v3653, 0
    %v3692 = vsel %vm3687, %v3654, 0
    %3694 = vmatpush.msra.mxu0 0.0
    %3695 = vmatpush.msra.mxu0 0.0
    %3696 = vmatpush.msra.mxu0 0.0
    %3697 = vmatpush.msra.mxu0 0.0
    %3698 = vmatpush.msra.mxu0 0.0
    %3699 = vmatpush.msra.mxu0 0.0
    %3700 = vmatpush.msra.mxu0 0.0
    %3701 = vmatpush.msra.mxu0 0.0
    %3702 = vmatpush.msra.mxu0 %v3678
    %3703 = vmatpush.msra.mxu0 %v3676
    %3704 = vmatpush.msra.mxu0 %v3674
    %3705 = vmatpush.msra.mxu0 %v3672
    %3706 = vmatpush.msra.mxu0 %v3670
    %3707 = vmatpush.msra.mxu0 %v3668
    %3708 = vmatpush.msra.mxu0 %v3666
    %3709 = vmatpush.msra.mxu0 %v3664
    %3710 = vmatmul.f32.gmra.mxu0 %v3689
    %v3711 = vpop.f32.mrf.mxu0
    %v3712 = vadd.f32 0.0, %v3711
    %3713 = vmatmul.f32.gmra.mxu0 %v3692
    %v3714 = vpop.f32.mrf.mxu0
    %v3715 = vadd.f32 0.0, %v3714
    %3716 = vdwg.mxu0
    %v3718 = vsel %vm3687, %v3650, 0
    %v3721 = vsel %vm3687, %v3651, 0
    %3723 = vmatpush.msra.mxu0 0.0
    %3724 = vmatpush.msra.mxu0 0.0
    %3725 = vmatpush.msra.mxu0 0.0
    %3726 = vmatpush.msra.mxu0 0.0
    %3727 = vmatpush.msra.mxu0 0.0
    %3728 = vmatpush.msra.mxu0 0.0
    %3729 = vmatpush.msra.mxu0 0.0
    %3730 = vmatpush.msra.mxu0 0.0
    %3731 = vmatpush.msra.mxu0 %v3649
    %3732 = vmatpush.msra.mxu0 %v3648
    %3733 = vmatpush.msra.mxu0 %v3647
    %3734 = vmatpush.msra.mxu0 %v3646
    %3735 = vmatpush.msra.mxu0 %v3645
    %3736 = vmatpush.msra.mxu0 %v3644
    %3737 = vmatpush.msra.mxu0 %v3643
    %3738 = vmatpush.msra.mxu0 %v3642
    %3739 = vmatmul.f32.gmra.mxu0 %v3718
    %v3740 = vpop.f32.mrf.mxu0
    %v3741 = vadd.f32 %v3712, %v3740
    %3742 = vmatmul.f32.gmra.mxu0 %v3721
    %v3743 = vpop.f32.mrf.mxu0
    %v3744 = vadd.f32 %v3715, %v3743
    %3745 = vdwg.mxu0
    %s3746 = scalar_lea.vmem %s7, 32
    %v3747 = vld [vmem:[%s3746] sm:$0xff]
    %v3748 = vld [vmem:[%s3746 + $0x8] sm:$0x3]
    %3749 = vrot.lane.b32.xlu0 %v3642, 124
    %v3750 = vpop.permute.xlu0 %3749
    %3751 = vrot.lane.b32.xlu0 %v3643, 124
    %v3752 = vpop.permute.xlu0 %3751
    %3753 = vrot.lane.b32.xlu0 %v3644, 124
    %v3754 = vpop.permute.xlu0 %3753
    %3755 = vrot.lane.b32.xlu0 %v3645, 124
    %v3756 = vpop.permute.xlu0 %3755
    %3757 = vrot.lane.b32.xlu0 %v3646, 124
    %v3758 = vpop.permute.xlu0 %3757
    %3759 = vrot.lane.b32.xlu0 %v3647, 124
    %v3760 = vpop.permute.xlu0 %3759
    %3761 = vrot.lane.b32.xlu0 %v3648, 124
    %v3762 = vpop.permute.xlu0 %3761
    %3763 = vrot.lane.b32.xlu0 %v3649, 124
    %v3764 = vpop.permute.xlu0 %3763
    %v3774 = vsel %vm3687, %v3747, 0
    %v3777 = vsel %vm3687, %v3748, 0
    %3779 = vmatpush.msra.mxu0 0.0
    %3780 = vmatpush.msra.mxu0 0.0
    %3781 = vmatpush.msra.mxu0 0.0
    %3782 = vmatpush.msra.mxu0 0.0
    %3783 = vmatpush.msra.mxu0 0.0
    %3784 = vmatpush.msra.mxu0 0.0
    %3785 = vmatpush.msra.mxu0 0.0
    %3786 = vmatpush.msra.mxu0 0.0
    %3787 = vmatpush.msra.mxu0 %v3764
    %3788 = vmatpush.msra.mxu0 %v3762
    %3789 = vmatpush.msra.mxu0 %v3760
    %3790 = vmatpush.msra.mxu0 %v3758
    %3791 = vmatpush.msra.mxu0 %v3756
    %3792 = vmatpush.msra.mxu0 %v3754
    %3793 = vmatpush.msra.mxu0 %v3752
    %3794 = vmatpush.msra.mxu0 %v3750
    %3795 = vmatmul.f32.gmra.mxu0 %v3774
    %v3796 = vpop.f32.mrf.mxu0
    %v3797 = vadd.f32 0.0, %v3796
    %3798 = vmatmul.f32.gmra.mxu0 %v3777
    %v3799 = vpop.f32.mrf.mxu0
    %v3800 = vadd.f32 0.0, %v3799
    %3801 = vdwg.mxu0
    %v3802 = vadd.f32 %v3741, %v3797
    %v3803 = vadd.f32 %v3744, %v3800
    %s3804 = scalar_lea.vmem %s7, 48
    %v3805 = vld [vmem:[%s3804] sm:$0xff]
    %v3806 = vld [vmem:[%s3804 + $0x8] sm:$0x3]
    %3807 = vrot.lane.b32.xlu0 %v3642, 120
    %v3808 = vpop.permute.xlu0 %3807
    %3809 = vrot.lane.b32.xlu0 %v3643, 120
    %v3810 = vpop.permute.xlu0 %3809
    %3811 = vrot.lane.b32.xlu0 %v3644, 120
    %v3812 = vpop.permute.xlu0 %3811
    %3813 = vrot.lane.b32.xlu0 %v3645, 120
    %v3814 = vpop.permute.xlu0 %3813
    %3815 = vrot.lane.b32.xlu0 %v3646, 120
    %v3816 = vpop.permute.xlu0 %3815
    %3817 = vrot.lane.b32.xlu0 %v3647, 120
    %v3818 = vpop.permute.xlu0 %3817
    %3819 = vrot.lane.b32.xlu0 %v3648, 120
    %v3820 = vpop.permute.xlu0 %3819
    %3821 = vrot.lane.b32.xlu0 %v3649, 120
    %v3822 = vpop.permute.xlu0 %3821
    %v3832 = vsel %vm3687, %v3805, 0
    %v3835 = vsel %vm3687, %v3806, 0
    %3837 = vmatpush.msra.mxu0 0.0
    %3838 = vmatpush.msra.mxu0 0.0
    %3839 = vmatpush.msra.mxu0 0.0
    %3840 = vmatpush.msra.mxu0 0.0
    %3841 = vmatpush.msra.mxu0 0.0
    %3842 = vmatpush.msra.mxu0 0.0
    %3843 = vmatpush.msra.mxu0 0.0
    %3844 = vmatpush.msra.mxu0 0.0
    %3845 = vmatpush.msra.mxu0 %v3822
    %3846 = vmatpush.msra.mxu0 %v3820
    %3847 = vmatpush.msra.mxu0 %v3818
    %3848 = vmatpush.msra.mxu0 %v3816
    %3849 = vmatpush.msra.mxu0 %v3814
    %3850 = vmatpush.msra.mxu0 %v3812
    %3851 = vmatpush.msra.mxu0 %v3810
    %3852 = vmatpush.msra.mxu0 %v3808
    %3853 = vmatmul.f32.gmra.mxu0 %v3832
    %v3854 = vpop.f32.mrf.mxu0
    %v3855 = vadd.f32 0.0, %v3854
    %3856 = vmatmul.f32.gmra.mxu0 %v3835
    %v3857 = vpop.f32.mrf.mxu0
    %v3858 = vadd.f32 0.0, %v3857
    %3859 = vdwg.mxu0
    %v3860 = vadd.f32 %v3802, %v3855
    %v3861 = vadd.f32 %v3803, %v3858
    %s3862 = scalar_lea.vmem %s7, 64
    %v3863 = vld [vmem:[%s3862] sm:$0xff]
    %v3864 = vld [vmem:[%s3862 + $0x8] sm:$0x3]
    %3865 = vrot.lane.b32.xlu0 %v3642, 118
    %v3866 = vpop.permute.xlu0 %3865
    %3867 = vrot.lane.b32.xlu0 %v3643, 118
    %v3868 = vpop.permute.xlu0 %3867
    %3869 = vrot.lane.b32.xlu0 %v3644, 118
    %v3870 = vpop.permute.xlu0 %3869
    %3871 = vrot.lane.b32.xlu0 %v3645, 118
    %v3872 = vpop.permute.xlu0 %3871
    %3873 = vrot.lane.b32.xlu0 %v3646, 118
    %v3874 = vpop.permute.xlu0 %3873
    %3875 = vrot.lane.b32.xlu0 %v3647, 118
    %v3876 = vpop.permute.xlu0 %3875
    %3877 = vrot.lane.b32.xlu0 %v3648, 118
    %v3878 = vpop.permute.xlu0 %3877
    %3879 = vrot.lane.b32.xlu0 %v3649, 118
    %v3880 = vpop.permute.xlu0 %3879
    %v3890 = vsel %vm3687, %v3863, 0
    %v3893 = vsel %vm3687, %v3864, 0
    %3895 = vmatpush.msra.mxu0 0.0
    %3896 = vmatpush.msra.mxu0 0.0
    %3897 = vmatpush.msra.mxu0 0.0
    %3898 = vmatpush.msra.mxu0 0.0
    %3899 = vmatpush.msra.mxu0 0.0
    %3900 = vmatpush.msra.mxu0 0.0
    %3901 = vmatpush.msra.mxu0 0.0
    %3902 = vmatpush.msra.mxu0 0.0
    %3903 = vmatpush.msra.mxu0 %v3880
    %3904 = vmatpush.msra.mxu0 %v3878
    %3905 = vmatpush.msra.mxu0 %v3876
    %3906 = vmatpush.msra.mxu0 %v3874
    %3907 = vmatpush.msra.mxu0 %v3872
    %3908 = vmatpush.msra.mxu0 %v3870
    %3909 = vmatpush.msra.mxu0 %v3868
    %3910 = vmatpush.msra.mxu0 %v3866
    %3911 = vmatmul.f32.gmra.mxu0 %v3890
    %v3912 = vpop.f32.mrf.mxu0
    %v3913 = vadd.f32 0.0, %v3912
    %3914 = vmatmul.f32.gmra.mxu0 %v3893
    %v3915 = vpop.f32.mrf.mxu0
    %v3916 = vadd.f32 0.0, %v3915
    %3917 = vdwg.mxu0
    %v3918 = vadd.f32 %v3860, %v3913
    %v3919 = vadd.f32 %v3861, %v3916
    %s3920 = scalar_lea.vmem %s7, 80
    %v3921 = vld [vmem:[%s3920] sm:$0xff]
    %v3922 = vld [vmem:[%s3920 + $0x8] sm:$0x3]
    %3923 = vrot.lane.b32.xlu0 %v3642, 116
    %v3924 = vpop.permute.xlu0 %3923
    %3925 = vrot.lane.b32.xlu0 %v3643, 116
    %v3926 = vpop.permute.xlu0 %3925
    %3927 = vrot.lane.b32.xlu0 %v3644, 116
    %v3928 = vpop.permute.xlu0 %3927
    %3929 = vrot.lane.b32.xlu0 %v3645, 116
    %v3930 = vpop.permute.xlu0 %3929
    %3931 = vrot.lane.b32.xlu0 %v3646, 116
    %v3932 = vpop.permute.xlu0 %3931
    %3933 = vrot.lane.b32.xlu0 %v3647, 116
    %v3934 = vpop.permute.xlu0 %3933
    %3935 = vrot.lane.b32.xlu0 %v3648, 116
    %v3936 = vpop.permute.xlu0 %3935
    %3937 = vrot.lane.b32.xlu0 %v3649, 116
    %v3938 = vpop.permute.xlu0 %3937
    %v3948 = vsel %vm3687, %v3921, 0
    %v3951 = vsel %vm3687, %v3922, 0
    %3953 = vmatpush.msra.mxu0 0.0
    %3954 = vmatpush.msra.mxu0 0.0
    %3955 = vmatpush.msra.mxu0 0.0
    %3956 = vmatpush.msra.mxu0 0.0
    %3957 = vmatpush.msra.mxu0 0.0
    %3958 = vmatpush.msra.mxu0 0.0
    %3959 = vmatpush.msra.mxu0 0.0
    %3960 = vmatpush.msra.mxu0 0.0
    %3961 = vmatpush.msra.mxu0 %v3938
    %3962 = vmatpush.msra.mxu0 %v3936
    %3963 = vmatpush.msra.mxu0 %v3934
    %3964 = vmatpush.msra.mxu0 %v3932
    %3965 = vmatpush.msra.mxu0 %v3930
    %3966 = vmatpush.msra.mxu0 %v3928
    %3967 = vmatpush.msra.mxu0 %v3926
    %3968 = vmatpush.msra.mxu0 %v3924
    %3969 = vmatmul.f32.gmra.mxu0 %v3948
    %v3970 = vpop.f32.mrf.mxu0
    %v3971 = vadd.f32 0.0, %v3970
    %3972 = vmatmul.f32.gmra.mxu0 %v3951
    %v3973 = vpop.f32.mrf.mxu0
    %v3974 = vadd.f32 0.0, %v3973
    %3975 = vdwg.mxu0
    %v3976 = vadd.f32 %v3918, %v3971
    %v3977 = vadd.f32 %v3919, %v3974
    %s3978 = scalar_lea.vmem %s7, 96
    %v3979 = vld [vmem:[%s3978] sm:$0xff]
    %v3980 = vld [vmem:[%s3978 + $0x8] sm:$0x3]
    %3981 = vrot.lane.b32.xlu0 %v3642, 112
    %v3982 = vpop.permute.xlu0 %3981
    %3983 = vrot.lane.b32.xlu0 %v3643, 112
    %v3984 = vpop.permute.xlu0 %3983
    %3985 = vrot.lane.b32.xlu0 %v3644, 112
    %v3986 = vpop.permute.xlu0 %3985
    %3987 = vrot.lane.b32.xlu0 %v3645, 112
    %v3988 = vpop.permute.xlu0 %3987
    %3989 = vrot.lane.b32.xlu0 %v3646, 112
    %v3990 = vpop.permute.xlu0 %3989
    %3991 = vrot.lane.b32.xlu0 %v3647, 112
    %v3992 = vpop.permute.xlu0 %3991
    %3993 = vrot.lane.b32.xlu0 %v3648, 112
    %v3994 = vpop.permute.xlu0 %3993
    %3995 = vrot.lane.b32.xlu0 %v3649, 112
    %v3996 = vpop.permute.xlu0 %3995
    %v4006 = vsel %vm3687, %v3979, 0
    %v4009 = vsel %vm3687, %v3980, 0
    %4011 = vmatpush.msra.mxu0 0.0
    %4012 = vmatpush.msra.mxu0 0.0
    %4013 = vmatpush.msra.mxu0 0.0
    %4014 = vmatpush.msra.mxu0 0.0
    %4015 = vmatpush.msra.mxu0 0.0
    %4016 = vmatpush.msra.mxu0 0.0
    %4017 = vmatpush.msra.mxu0 0.0
    %4018 = vmatpush.msra.mxu0 0.0
    %4019 = vmatpush.msra.mxu0 %v3996
    %4020 = vmatpush.msra.mxu0 %v3994
    %4021 = vmatpush.msra.mxu0 %v3992
    %4022 = vmatpush.msra.mxu0 %v3990
    %4023 = vmatpush.msra.mxu0 %v3988
    %4024 = vmatpush.msra.mxu0 %v3986
    %4025 = vmatpush.msra.mxu0 %v3984
    %4026 = vmatpush.msra.mxu0 %v3982
    %4027 = vmatmul.f32.gmra.mxu0 %v4006
    %v4028 = vpop.f32.mrf.mxu0
    %v4029 = vadd.f32 0.0, %v4028
    %4030 = vmatmul.f32.gmra.mxu0 %v4009
    %v4031 = vpop.f32.mrf.mxu0
    %v4032 = vadd.f32 0.0, %v4031
    %4033 = vdwg.mxu0
    %v4034 = vadd.f32 %v3976, %v4029
    %v4035 = vadd.f32 %v3977, %v4032
    %s4036 = scalar_lea.vmem %s7, 112
    %v4037 = vld [vmem:[%s4036] sm:$0xff]
    %v4038 = vld [vmem:[%s4036 + $0x8] sm:$0x3]
    %4039 = vrot.lane.b32.xlu0 %v3642, 110
    %v4040 = vpop.permute.xlu0 %4039
    %4041 = vrot.lane.b32.xlu0 %v3643, 110
    %v4042 = vpop.permute.xlu0 %4041
    %4043 = vrot.lane.b32.xlu0 %v3644, 110
    %v4044 = vpop.permute.xlu0 %4043
    %4045 = vrot.lane.b32.xlu0 %v3645, 110
    %v4046 = vpop.permute.xlu0 %4045
    %4047 = vrot.lane.b32.xlu0 %v3646, 110
    %v4048 = vpop.permute.xlu0 %4047
    %4049 = vrot.lane.b32.xlu0 %v3647, 110
    %v4050 = vpop.permute.xlu0 %4049
    %4051 = vrot.lane.b32.xlu0 %v3648, 110
    %v4052 = vpop.permute.xlu0 %4051
    %4053 = vrot.lane.b32.xlu0 %v3649, 110
    %v4054 = vpop.permute.xlu0 %4053
    %v4064 = vsel %vm3687, %v4037, 0
    %v4067 = vsel %vm3687, %v4038, 0
    %4069 = vmatpush.msra.mxu0 0.0
    %4070 = vmatpush.msra.mxu0 0.0
    %4071 = vmatpush.msra.mxu0 0.0
    %4072 = vmatpush.msra.mxu0 0.0
    %4073 = vmatpush.msra.mxu0 0.0
    %4074 = vmatpush.msra.mxu0 0.0
    %4075 = vmatpush.msra.mxu0 0.0
    %4076 = vmatpush.msra.mxu0 0.0
    %4077 = vmatpush.msra.mxu0 %v4054
    %4078 = vmatpush.msra.mxu0 %v4052
    %4079 = vmatpush.msra.mxu0 %v4050
    %4080 = vmatpush.msra.mxu0 %v4048
    %4081 = vmatpush.msra.mxu0 %v4046
    %4082 = vmatpush.msra.mxu0 %v4044
    %4083 = vmatpush.msra.mxu0 %v4042
    %4084 = vmatpush.msra.mxu0 %v4040
    %4085 = vmatmul.f32.gmra.mxu0 %v4064
    %v4086 = vpop.f32.mrf.mxu0
    %v4087 = vadd.f32 0.0, %v4086
    %4088 = vmatmul.f32.gmra.mxu0 %v4067
    %v4089 = vpop.f32.mrf.mxu0
    %v4090 = vadd.f32 0.0, %v4089
    %4091 = vdwg.mxu0
    %v4092 = vadd.f32 %v4034, %v4087
    %v4093 = vadd.f32 %v4035, %v4090
    %s4094 = scalar_lea.vmem %s7, 128
    %v4095 = vld [vmem:[%s4094] sm:$0xff]
    %v4096 = vld [vmem:[%s4094 + $0x8] sm:$0x3]
    %4097 = vrot.lane.b32.xlu0 %v3642, 108
    %v4098 = vpop.permute.xlu0 %4097
    %4099 = vrot.lane.b32.xlu0 %v3643, 108
    %v4100 = vpop.permute.xlu0 %4099
    %4101 = vrot.lane.b32.xlu0 %v3644, 108
    %v4102 = vpop.permute.xlu0 %4101
    %4103 = vrot.lane.b32.xlu0 %v3645, 108
    %v4104 = vpop.permute.xlu0 %4103
    %4105 = vrot.lane.b32.xlu0 %v3646, 108
    %v4106 = vpop.permute.xlu0 %4105
    %4107 = vrot.lane.b32.xlu0 %v3647, 108
    %v4108 = vpop.permute.xlu0 %4107
    %4109 = vrot.lane.b32.xlu0 %v3648, 108
    %v4110 = vpop.permute.xlu0 %4109
    %4111 = vrot.lane.b32.xlu0 %v3649, 108
    %v4112 = vpop.permute.xlu0 %4111
    %v4122 = vsel %vm3687, %v4095, 0
    %v4125 = vsel %vm3687, %v4096, 0
    %4127 = vmatpush.msra.mxu0 0.0
    %4128 = vmatpush.msra.mxu0 0.0
    %4129 = vmatpush.msra.mxu0 0.0
    %4130 = vmatpush.msra.mxu0 0.0
    %4131 = vmatpush.msra.mxu0 0.0
    %4132 = vmatpush.msra.mxu0 0.0
    %4133 = vmatpush.msra.mxu0 0.0
    %4134 = vmatpush.msra.mxu0 0.0
    %4135 = vmatpush.msra.mxu0 %v4112
    %4136 = vmatpush.msra.mxu0 %v4110
    %4137 = vmatpush.msra.mxu0 %v4108
    %4138 = vmatpush.msra.mxu0 %v4106
    %4139 = vmatpush.msra.mxu0 %v4104
    %4140 = vmatpush.msra.mxu0 %v4102
    %4141 = vmatpush.msra.mxu0 %v4100
    %4142 = vmatpush.msra.mxu0 %v4098
    %4143 = vmatmul.f32.gmra.mxu0 %v4122
    %v4144 = vpop.f32.mrf.mxu0
    %v4145 = vadd.f32 0.0, %v4144
    %4146 = vmatmul.f32.gmra.mxu0 %v4125
    %v4147 = vpop.f32.mrf.mxu0
    %v4148 = vadd.f32 0.0, %v4147
    %4149 = vdwg.mxu0
    %v4150 = vadd.f32 %v4092, %v4145
    %v4151 = vadd.f32 %v4093, %v4148
    %v4152 = vld [vmem:[%s8] sm:$0xff]
    %v4153 = vld [vmem:[%s8 + $0x8] sm:$0x3]
    %4155 = vset.pattern.permute.xlu0 0
    %4156 = vperm.xlu0 %4155, %v4152
    %v4157 = vpop.permute.xlu0 %4156
    %4160 = vset.pattern.permute.xlu0 0
    %4161 = vperm.xlu0 %4160, %v4153
    %v4162 = vpop.permute.xlu0 %4161
    %v4164 = vadd.f32 %v4150, %v4157
    %v4165 = vadd.f32 %v4151, %v4162
    %v4166 = vmax.f32 %v4164, 0.0
    %v4167 = vmax.f32 %v4165, 0.0
    %v4168 = vld [vmem:[%s9] sm:$0xff]
    %v4169 = vld [vmem:[%s9 + $0x8] sm:$0x3]
    %v4170 = vld [vmem:[%s10] sm:$0x1]
    %v4172 = vperm.slane %v4170, 0
    %4174 = vxpose.xlu0.b32.start [1/16] %v4166, 128
    %4175 = vxpose.xlu0.b32.cont [2/16] %v4167, 128
    %4176 = vxpose.xlu0.b32.cont [3/16] 0.0, 128
    %4177 = vxpose.xlu0.b32.cont [4/16] 0.0, 128
    %4178 = vxpose.xlu0.b32.cont [5/16] 0.0, 128
    %4179 = vxpose.xlu0.b32.cont [6/16] 0.0, 128
    %4180 = vxpose.xlu0.b32.cont [7/16] 0.0, 128
    %4181 = vxpose.xlu0.b32.cont [8/16] 0.0, 128
    %4182 = vxpose.xlu0.b32.cont [9/16] 0.0, 128
    %4183 = vxpose.xlu0.b32.cont [10/16] 0.0, 128
    %4184 = vxpose.xlu0.b32.cont [11/16] 0.0, 128
    %4185 = vxpose.xlu0.b32.cont [12/16] 0.0, 128
    %4186 = vxpose.xlu0.b32.cont [13/16] 0.0, 128
    %4187 = vxpose.xlu0.b32.cont [14/16] 0.0, 128
    %4188 = vxpose.xlu0.b32.cont [15/16] 0.0, 128
    %4189 = vxpose.xlu0.b32.end [16/16] 0.0, 128
    %v4190 = vpop.trf.xlu0
    %v4191 = vpop.trf.xlu0
    %v4192 = vpop.trf.xlu0
    %v4193 = vpop.trf.xlu0
    %v4194 = vpop.trf.xlu0
    %v4195 = vpop.trf.xlu0
    %v4196 = vpop.trf.xlu0
    %v4197 = vpop.trf.xlu0
    %v4198 = vpop.trf.xlu0
    %v4199 = vpop.trf.xlu0
    %v4200 = vpop.trf.xlu0
    %v4201 = vpop.trf.xlu0
    %v4202 = vpop.trf.xlu0
    %v4203 = vpop.trf.xlu0
    %v4204 = vpop.trf.xlu0
    %v4205 = vpop.trf.xlu0
    %vm4206 = vcmask 80896
    %v4208 = vsel %vm4206, %v4190, 0
    %vm4210 = vcmask 1041408
    %v4212 = vsel %vm4210, %v4169, 0
    %4214 = vmatpush.msra.mxu0 0.0
    %4215 = vmatpush.msra.mxu0 0.0
    %4216 = vmatpush.msra.mxu0 0.0
    %4217 = vmatpush.msra.mxu0 0.0
    %4218 = vmatpush.msra.mxu0 0.0
    %4219 = vmatpush.msra.mxu0 0.0
    %4220 = vmatpush.msra.mxu0 0.0
    %4221 = vmatpush.msra.mxu0 0.0
    %4222 = vmatpush.msra.mxu0 0.0
    %4223 = vmatpush.msra.mxu0 0.0
    %4224 = vmatpush.msra.mxu0 0.0
    %4225 = vmatpush.msra.mxu0 0.0
    %4226 = vmatpush.msra.mxu0 0.0
    %4227 = vmatpush.msra.mxu0 0.0
    %4228 = vmatpush.msra.mxu0 %v4212
    %4229 = vmatpush.msra.mxu0 %v4168
    %4230 = vmatmul.f32.gmra.mxu0 %v4208
    %v4231 = vpop.f32.mrf.mxu0
    %v4232 = vadd.f32 %v4172, %v4231
    %4233 = vdwg.mxu0
    %vm4234 = vcmask 9216
    %4235 = vst.msk [vmem:[#allocation2] sm:$0x3] %vm4234, %v4232
    // Predicated region
    $region46: #{model3_forward.3} parent=1 // pred_check
      _
    $region47: #{model3_forward.3} parent=1 // pred_check_branch
      %4237 = sbr.rel (0) target = $region49
    $region48: #{model3_forward.3} parent=1 // pred_region
      %4239 = vsyncadd [#allocation3], 0
      %s4241 = sshll.u32 [#allocation2], 4
      %s4242 = int_to_ptr.vmem [resolvable:$true] %s4241
      %s4243 = sshll.u32 %s11, 4
      %s4244 = int_to_ptr.hbm [resolvable:$true] %s4243
      %4246 = dma.vmem_to_hbm [thread:$0]  %s4242, 32, %s4244, [#allocation3]
    $region49: #{model3_forward.3} parent=1 // pred_fallthru
      _
    // Predicated region
    $region50: #{model3_forward.3} parent=1 // pred_check
      _
    $region51: #{model3_forward.3} parent=1 // pred_check_branch
      %4248 = sbr.rel (0) target = $region53
    $region52: #{model3_forward.3} parent=1 // pred_region
      %4250 = dma.done [#allocation3], 32
    $region53: #{model3_forward.3} parent=1 // pred_fallthru
      _
    %4251 = vsyncpa [#allocation3], 1

</llo_original>
